<compile_context>
chip_gen: v7x
topology: tpu7x:2x2x1
jax: 0.10.0
libtpu: 0.0.40
codegen_flags: <defaults>
</compile_context>

<pallas_src>
import jax
import jax.numpy as jnp
from jax.experimental import pallas as pl
from jax.experimental.pallas import tpu as pltpu

LANE = 128


def _round_up(x, m):
    return (x + m - 1) // m * m


def _choose_tm(m, bytes_per_row, vmem_budget=6 << 20):
    """Largest row tile (multiple of 8) within the VMEM budget, preferring a
    divisor of m so no M padding / post-call slice round trip is needed."""
    cap = max(8, min(1024, (vmem_budget // max(bytes_per_row, 1)) // 8 * 8))
    d = min(cap, (m // 8) * 8)
    while d >= 8:
        if m % d == 0:
            return d
        d -= 8
    return min(cap, _round_up(m, 8))  # fallback: padding required


def _vmem_limit(*parts):
    need = sum(parts) + (4 << 20)                      # headroom for internal scratch
    return int(min(64 << 20, max(32 << 20, need)))     # v7x-safe cap


# ---------------------------------------------------------------------------
# Pallas kernels
# ---------------------------------------------------------------------------
def _matmul_stats_kernel(a_ref, w_ref, o_ref, stats_ref, sum_sc, ssq_sc):
    """Pass 1: streamed matmul tile -> bf16 HBM; per-column sum / sum^2 (f32)
    accumulated in scratch across the inner ("arbitrary") grid axis and emitted
    per outer ("parallel") index on its last inner step."""
    i = pl.program_id(1)
    nsteps = pl.num_programs(1)

    @pl.when(i == 0)
    def _():
        sum_sc[...] = jnp.zeros_like(sum_sc)
        ssq_sc[...] = jnp.zeros_like(ssq_sc)

    pre = jnp.dot(a_ref[...], w_ref[...], preferred_element_type=jnp.float32)
    o_ref[...] = pre.astype(o_ref.dtype)                      # bf16 writeback
    sum_sc[...] += jnp.sum(pre, axis=0, keepdims=True)        # stats from f32 pre
    ssq_sc[...] += jnp.sum(pre * pre, axis=0, keepdims=True)

    @pl.when(i == nsteps - 1)
    def _():
        stats_ref[0:1, :] = sum_sc[...]
        stats_ref[1:2, :] = ssq_sc[...]


def _affine_relu_kernel(x_ref, s_ref, b_ref, o_ref):
    """Pass 2: streamed y = max(x*scale + bias, 0), bf16 in/out, f32 math."""
    x = x_ref[...].astype(jnp.float32)
    o_ref[...] = jnp.maximum(x * s_ref[...] + b_ref[...], 0.0).astype(o_ref.dtype)


def _matmul_tanh_kernel(a_ref, w_ref, o_ref):
    pre = jnp.dot(a_ref[...], w_ref[...], preferred_element_type=jnp.float32)
    o_ref[...] = jnp.tanh(pre).astype(o_ref.dtype)


# ---------------------------------------------------------------------------
# pallas_call wrappers
# ---------------------------------------------------------------------------
def fused_matmul_stats(patches, w_pad):
    """patches [M, K] bf16 @ w_pad [K, Np] bf16 -> (pre [Mp, Np] bf16,
    stats [P, 2, Np] f32 with per-core-chunk (sum, sum^2))."""
    m, k = patches.shape
    np_ = w_pad.shape[1]
    tm = _choose_tm(m, 4 * k + 4 * np_)        # dbl-buffered bf16 patch row + out row
    mp = _round_up(m, tm)
    if mp != m:
        patches = jnp.pad(patches, ((0, mp - m), (0, 0)))
    n_tiles = mp // tm
    p_split = 2 if (n_tiles % 2 == 0 and n_tiles >= 2) else 1   # 2-TC split (v7x)
    t = n_tiles // p_split
    vlim = _vmem_limit(2 * tm * k * 2, 2 * k * np_ * 2, 2 * tm * np_ * 2, 8 * np_ * 4)

    pre, stats = pl.pallas_call(
        _matmul_stats_kernel,
        out_shape=(jax.ShapeDtypeStruct((mp, np_), jnp.bfloat16),
                   jax.ShapeDtypeStruct((p_split, 2, np_), jnp.float32)),
        grid=(p_split, t),
        in_specs=[pl.BlockSpec((tm, k), lambda p, i: (p * t + i, 0)),
                  pl.BlockSpec((k, np_), lambda p, i: (0, 0))],
        out_specs=(pl.BlockSpec((tm, np_), lambda p, i: (p * t + i, 0)),
                   pl.BlockSpec((None, 2, np_), lambda p, i: (p, 0, 0))),
        scratch_shapes=[pltpu.VMEM((1, np_), jnp.float32),
                        pltpu.VMEM((1, np_), jnp.float32)],
        compiler_params=pltpu.CompilerParams(
            dimension_semantics=("parallel", "arbitrary"),
            vmem_limit_bytes=vlim),
    )(patches, w_pad)
    return pre, stats


def fused_affine_relu(pre, scale, bias):
    """pre [M, Np] bf16, scale/bias [1, Np] f32 -> [M, Np] bf16, streamed."""
    m, np_ = pre.shape
    tm = _choose_tm(m, 4 * np_ + 4 * np_)
    vlim = _vmem_limit(4 * tm * np_ * 2, 2 * np_ * 4 * 2)
    return pl.pallas_call(
        _affine_relu_kernel,
        out_shape=jax.ShapeDtypeStruct((m, np_), jnp.bfloat16),
        grid=(m // tm,),
        in_specs=[pl.BlockSpec((tm, np_), lambda i: (i, 0)),
                  pl.BlockSpec((1, np_), lambda i: (0, 0)),
                  pl.BlockSpec((1, np_), lambda i: (0, 0))],
        out_specs=pl.BlockSpec((tm, np_), lambda i: (i, 0)),
        compiler_params=pltpu.CompilerParams(
            dimension_semantics=("parallel",), vmem_limit_bytes=vlim),
    )(pre, scale, bias)


def fused_matmul_tanh(patches, w_pad):
    m, k = patches.shape
    np_ = w_pad.shape[1]
    tm = _choose_tm(m, 4 * k + 4 * np_)
    mp = _round_up(m, tm)
    if mp != m:
        patches = jnp.pad(patches, ((0, mp - m), (0, 0)))
    vlim = _vmem_limit(2 * tm * k * 2, 2 * k * np_ * 2, 2 * tm * np_ * 2)
    return pl.pallas_call(
        _matmul_tanh_kernel,
        out_shape=jax.ShapeDtypeStruct((mp, np_), jnp.bfloat16),
        grid=(mp // tm,),
        in_specs=[pl.BlockSpec((tm, k), lambda i: (i, 0)),
                  pl.BlockSpec((k, np_), lambda i: (0, 0))],
        out_specs=pl.BlockSpec((tm, np_), lambda i: (i, 0)),
        compiler_params=pltpu.CompilerParams(
            dimension_semantics=("parallel",), vmem_limit_bytes=vlim),
    )(patches, w_pad)


# ---------------------------------------------------------------------------
# XLA glue: patch extraction, BN scale/bias folding, phase reassembly
# ---------------------------------------------------------------------------
def _im2col_full(x, k, padding):
    """Stride-1 ConvTranspose2d as full correlation with the flipped kernel.
    x: [N,H,W,Cin] bf16 -> patches [N*OH*OW, k*k*Cin] (tap order kh,kw,ci)."""
    n, h, w, cin = x.shape
    oh = h - 1 + k - 2 * padding
    ow = w - 1 + k - 2 * padding
    p = k - 1 - padding
    xp = jnp.pad(x, ((0, 0), (p, p), (p, p), (0, 0)))
    pieces = [xp[:, kh:kh + oh, kw:kw + ow, :]
              for kh in range(k) for kw in range(k)]
    patches = jnp.concatenate(pieces, axis=-1).reshape(n * oh * ow, k * k * cin)
    return patches, (n, oh, ow)


def _im2col_subpixel3x3(x):
    """Shared 3x3 patches of the 1-padded input covering all 4 output phases of a
    stride-2, k=4, pad=1 ConvTranspose2d.  Tap order (th, tw, ci)."""
    n, h, w, cin = x.shape
    xp = jnp.pad(x, ((0, 0), (1, 1), (1, 1), (0, 0)))
    pieces = [xp[:, th:th + h, tw:tw + w, :]
              for th in range(3) for tw in range(3)]
    patches = jnp.concatenate(pieces, axis=-1).reshape(n * h * w, 9 * cin)
    return patches, (n, h, w)


def _pack_subpixel_weight(w):
    """w: (cin, cout, 4, 4) PyTorch ConvTranspose2d weight -> (9*cin, 4*cout)
    with rows ordered (th, tw, ci) and columns ordered (ry, rx, co).
    out[2*oy+ry, 2*ox+rx, co] = sum_{th,tw,ci} xp[oy+th, ox+tw, ci] * Wpk[...]."""
    cin, cout = w.shape[0], w.shape[1]
    wpk = jnp.zeros((3, 3, cin, 2, 2, cout), jnp.float32)
    for ry in range(2):
        for rx in range(2):
            for dh in range(2):
                for dw in range(2):
                    th, tw = ry + dh, rx + dw
                    kh, kw = 3 - ry - 2 * dh, 3 - rx - 2 * dw
                    wpk = wpk.at[th, tw, :, ry, rx, :].set(w[:, :, kh, kw])
    return wpk.reshape(9 * cin, 4 * cout)


def _bn_scale_bias(stats, gamma, beta, count, phases, cout, np_, eps):
    """Fold training-mode batch-norm (biased variance) into per-column scale/bias
    for the phase-packed layout.  All math in f32 on tiny (Np,) vectors."""
    s = jnp.sum(stats, axis=0)                       # combine per-core partials
    ssum = s[0, :phases * cout]
    sq = s[1, :phases * cout]
    if phases > 1:                                   # merge the 4 phase columns
        ssum = ssum.reshape(phases, cout).sum(axis=0)
        sq = sq.reshape(phases, cout).sum(axis=0)
    inv_n = 1.0 / count
    mean = ssum * inv_n
    var = jnp.maximum(sq * inv_n - mean * mean, 0.0)
    scale = gamma * jax.lax.rsqrt(var + eps)
    bias = beta - mean * scale
    if phases > 1:
        scale = jnp.tile(scale, phases)
        bias = jnp.tile(bias, phases)
    pad = np_ - phases * cout
    scale = jnp.pad(scale, (0, pad)).reshape(1, np_)
    bias = jnp.pad(bias, (0, pad)).reshape(1, np_)
    return scale, bias


# ---------------------------------------------------------------------------
# Generator
# ---------------------------------------------------------------------------
def init_generator_params(key, num_noise_vec_channels, base_num_out_channels,
                          num_img_channels):
    nz, ngf, nc = num_noise_vec_channels, base_num_out_channels, num_img_channels
    chans = [nz, ngf * 8, ngf * 4, ngf * 2, ngf, nc]
    k = 4
    static_cfg, params = [], []
    for i in range(5):
        cin, cout = chans[i], chans[i + 1]
        key, sub = jax.random.split(key)
        # deterministic synthetic init (no checkpoint load)
        w = jax.random.normal(sub, (cin, cout, k, k), jnp.float32) * 0.05
        stride = 1 if i == 0 else 2
        padding = 0 if i == 0 else 1
        has_bn = i < 4
        if stride == 1:
            # full-conv form: correlation with spatially flipped kernel
            wflat = jnp.transpose(w[:, :, ::-1, ::-1],
                                  (2, 3, 0, 1)).reshape(k * k * cin, cout)
            phases = 1
        else:
            wflat = _pack_subpixel_weight(w)         # (9*cin, 4*cout), phase-packed N
            phases = 4
        np_ = _round_up(phases * cout, LANE)
        w_pad = jnp.pad(wflat, ((0, 0), (0, np_ - phases * cout))).astype(jnp.bfloat16)
        gamma = jnp.ones((cout,), jnp.float32) if has_bn else None
        beta = jnp.zeros((cout,), jnp.float32) if has_bn else None
        static_cfg.append(dict(k=k, stride=stride, padding=padding, cout=cout,
                               phases=phases, has_bn=has_bn, eps=1e-5))
        params.append(dict(w=w_pad, gamma=gamma, beta=beta))
    return static_cfg, params


def make_generator_forward(static_cfg):
    """Equivalent of Generator.forward; NCHW in / NCHW out like PyTorch.
    BatchNorm uses training-mode batch statistics (biased variance), matching
    nn.BatchNorm2d in its default train() state.  MXU operands are bf16."""
    def forward(x_nchw, params):
        x = jnp.transpose(x_nchw, (0, 2, 3, 1)).astype(jnp.bfloat16)   # NHWC bf16
        for cfg, prm in zip(static_cfg, params):
            cout, phases = cfg["cout"], cfg["phases"]
            if cfg["stride"] == 1:
                patches, (n, hh, ww) = _im2col_full(x, cfg["k"], cfg["padding"])
                oh, ow = hh, ww
            else:
                patches, (n, hh, ww) = _im2col_subpixel3x3(x)
                oh, ow = 2 * hh, 2 * ww
            m_real = patches.shape[0]
            np_ = prm["w"].shape[1]
            if cfg["has_bn"]:
                pre, stats = fused_matmul_stats(patches, prm["w"])
                count = float(phases * m_real)                 # = n*oh*ow per channel
                scale, bias = _bn_scale_bias(stats, prm["gamma"], prm["beta"],
                                             count, phases, cout, np_, cfg["eps"])
                act = fused_affine_relu(pre, scale, bias)
            else:
                act = fused_matmul_tanh(patches, prm["w"])
            act = act[:m_real, :phases * cout]
            if phases == 4:
                # pixel shuffle: (n, hh, ww, ry, rx, c) -> (n, 2*hh, 2*ww, c)
                act = act.reshape(n, hh, ww, 2, 2, cout).transpose(0, 1, 3, 2, 4, 5)
                x = act.reshape(n, oh, ow, cout)
            else:
                x = act.reshape(n, oh, ow, cout)
        return jnp.transpose(x, (0, 3, 1, 2)).astype(jnp.float32)      # NCHW f32
    return jax.jit(forward)


if __name__ == "__main__":
    key = jax.random.PRNGKey(0)
    k_param, k_in = jax.random.split(key)

    num_noise_vec_channels = 8   # nz
    base_num_out_channels = 8    # ngf
    num_img_channels = 3         # nc
    batch = 2

    static_cfg, params = init_generator_params(
        k_param, num_noise_vec_channels, base_num_out_channels,
        num_img_channels)
    forward = make_generator_forward(static_cfg)

    # noise vector input, NCHW: (N, nz, 1, 1)
    noise = jax.random.normal(k_in, (batch, num_noise_vec_channels, 1, 1),
                              jnp.float32)

    out = jax.block_until_ready(forward(noise, params))

    assert out.shape == (batch, num_img_channels, 64, 64), out.shape
    assert bool(jnp.all(jnp.isfinite(out)))
    assert bool(jnp.all(jnp.abs(out) <= 1.0 + 1e-6))  # tanh range
    print("KERNEL_OK")
</pallas_src>

<mosaic_0001>
module attributes {stable_mosaic.version = 11 : i64} {
  func.func @_affine_relu_kernel(%arg0: i32, %arg1: memref<32x128xbf16, #tpu.memory_space<vmem>>, %arg2: memref<1x128xf32, #tpu.memory_space<vmem>>, %arg3: memref<1x128xf32, #tpu.memory_space<vmem>>, %arg4: memref<32x128xbf16, #tpu.memory_space<vmem>>) attributes {dimension_semantics = [#tpu.dimension_semantics<parallel>], iteration_bounds = array<i64: 1>, scalar_prefetch = 0 : i64, scratch_operands = 0 : i64, tpu.core_type = #tpu.core_type<tc>, window_params = [{transform_indices = @transform_0, window_bounds = array<i64: 32, 128>}, {pipeline_mode = #tpu.pipeline_mode<synchronous>, transform_indices = @transform_1, window_bounds = array<i64: 1, 128>}, {pipeline_mode = #tpu.pipeline_mode<synchronous>, transform_indices = @transform_2, window_bounds = array<i64: 1, 128>}, {transform_indices = @transform_3, window_bounds = array<i64: 32, 128>}]} {
    %c0 = arith.constant 0 : index
    %c0_0 = arith.constant 0 : index
    %0 = vector.load %arg1[%c0, %c0_0] : memref<32x128xbf16, #tpu.memory_space<vmem>>, vector<32x128xbf16>
    %1 = arith.extf %0 : vector<32x128xbf16> to vector<32x128xf32>
    %c0_1 = arith.constant 0 : index
    %c0_2 = arith.constant 0 : index
    %2 = vector.load %arg2[%c0_1, %c0_2] : memref<1x128xf32, #tpu.memory_space<vmem>>, vector<1x128xf32>
    %3 = vector.broadcast %2 : vector<1x128xf32> to vector<32x128xf32>
    %4 = arith.mulf %1, %3 : vector<32x128xf32>
    %c0_3 = arith.constant 0 : index
    %c0_4 = arith.constant 0 : index
    %5 = vector.load %arg3[%c0_3, %c0_4] : memref<1x128xf32, #tpu.memory_space<vmem>>, vector<1x128xf32>
    %6 = vector.broadcast %5 : vector<1x128xf32> to vector<32x128xf32>
    %7 = arith.addf %4, %6 : vector<32x128xf32>
    %cst = arith.constant 0.000000e+00 : f32
    %8 = vector.broadcast %cst : f32 to vector<32x128xf32>
    %9 = arith.maximumf %7, %8 : vector<32x128xf32>
    %10 = arith.truncf %9 : vector<32x128xf32> to vector<32x128xbf16>
    %c0_5 = arith.constant 0 : index
    %c0_6 = arith.constant 0 : index
    %11 = vector.load %arg4[%c0_5, %c0_6] : memref<32x128xbf16, #tpu.memory_space<vmem>>, vector<32x128xbf16>
    tpu.vector_store %arg4[%c0_5, %c0_6], %10 {strides = array<i32>} : memref<32x128xbf16, #tpu.memory_space<vmem>>, vector<32x128xbf16>,
    return
  }
  func.func @transform_0(%arg0: i32) -> (i32, i32) {
    %c0_i32 = arith.constant 0 : i32
    %c0_i32_0 = arith.constant 0 : i32
    return %arg0, %c0_i32 : i32, i32
  }
  func.func @transform_1(%arg0: i32) -> (i32, i32) {
    %c0_i32 = arith.constant 0 : i32
    %c0_i32_0 = arith.constant 0 : i32
    %c0_i32_1 = arith.constant 0 : i32
    return %c0_i32, %c0_i32_0 : i32, i32
  }
  func.func @transform_2(%arg0: i32) -> (i32, i32) {
    %c0_i32 = arith.constant 0 : i32
    %c0_i32_0 = arith.constant 0 : i32
    %c0_i32_1 = arith.constant 0 : i32
    return %c0_i32, %c0_i32_0 : i32, i32
  }
  func.func @transform_3(%arg0: i32) -> (i32, i32) {
    %c0_i32 = arith.constant 0 : i32
    %c0_i32_0 = arith.constant 0 : i32
    return %arg0, %c0_i32 : i32, i32
  }
}

module attributes {stable_mosaic.version = 11 : i64} {
  func.func @_matmul_stats_kernel(%arg0: i32, %arg1: i32, %arg2: memref<32x128xbf16, #tpu.memory_space<vmem>>, %arg3: memref<128x128xbf16, #tpu.memory_space<vmem>>, %arg4: memref<32x128xbf16, #tpu.memory_space<vmem>>, %arg5: memref<1x2x128xf32, #tpu.memory_space<vmem>>, %arg6: memref<1x128xf32, #tpu.memory_space<vmem>>, %arg7: memref<1x128xf32, #tpu.memory_space<vmem>>) attributes {dimension_semantics = [#tpu.dimension_semantics<parallel>, #tpu.dimension_semantics<arbitrary>], iteration_bounds = array<i64: 1, 1>, scalar_prefetch = 0 : i64, scratch_operands = 2 : i64, tpu.core_type = #tpu.core_type<tc>, window_params = [{transform_indices = @transform_0, window_bounds = array<i64: 32, 128>}, {pipeline_mode = #tpu.pipeline_mode<synchronous>, transform_indices = @transform_1, window_bounds = array<i64: 128, 128>}, {transform_indices = @transform_2, window_bounds = array<i64: 32, 128>}, {transform_indices = @transform_3, window_bounds = array<i64: 1, 2, 128>}]} {
    %c0_i32 = arith.constant 0 : i32
    %0 = arith.cmpi eq, %arg1, %c0_i32 : i32
    %1 = arith.extui %0 : i1 to i32
    %c0_i32_0 = arith.constant 0 : i32
    %2 = arith.cmpi ne, %1, %c0_i32_0 : i32
    scf.if %2 {
      %cst_18 = arith.constant 0.000000e+00 : f32
      %22 = vector.broadcast %cst_18 : f32 to vector<1x128xf32>
      %c0_19 = arith.constant 0 : index
      %c0_20 = arith.constant 0 : index
      %23 = vector.load %arg6[%c0_19, %c0_20] : memref<1x128xf32, #tpu.memory_space<vmem>>, vector<1x128xf32>
      tpu.vector_store %arg6[%c0_19, %c0_20], %22 {strides = array<i32>} : memref<1x128xf32, #tpu.memory_space<vmem>>, vector<1x128xf32>,
      %cst_21 = arith.constant 0.000000e+00 : f32
      %24 = vector.broadcast %cst_21 : f32 to vector<1x128xf32>
      %c0_22 = arith.constant 0 : index
      %c0_23 = arith.constant 0 : index
      %25 = vector.load %arg7[%c0_22, %c0_23] : memref<1x128xf32, #tpu.memory_space<vmem>>, vector<1x128xf32>
      tpu.vector_store %arg7[%c0_22, %c0_23], %24 {strides = array<i32>} : memref<1x128xf32, #tpu.memory_space<vmem>>, vector<1x128xf32>,
    } else {
    }
    %c0 = arith.constant 0 : index
    %c0_1 = arith.constant 0 : index
    %3 = vector.load %arg2[%c0, %c0_1] : memref<32x128xbf16, #tpu.memory_space<vmem>>, vector<32x128xbf16>
    %c0_2 = arith.constant 0 : index
    %c0_3 = arith.constant 0 : index
    %4 = vector.load %arg3[%c0_2, %c0_3] : memref<128x128xbf16, #tpu.memory_space<vmem>>, vector<128x128xbf16>
    %cst = arith.constant dense<0.000000e+00> : vector<32x128xf32>
    %5 = tpu.matmul %3, %4, %cst {dimension_numbers = #tpu.dot_dimension_numbers<[1], [0], [0], [1], [0, 0, 1, 1], [], []>} : vector<32x128xbf16>, vector<128x128xbf16>, vector<32x128xf32> -> vector<32x128xf32>
    %6 = arith.truncf %5 : vector<32x128xf32> to vector<32x128xbf16>
    %c0_4 = arith.constant 0 : index
    %c0_5 = arith.constant 0 : index
    %7 = vector.load %arg4[%c0_4, %c0_5] : memref<32x128xbf16, #tpu.memory_space<vmem>>, vector<32x128xbf16>
    tpu.vector_store %arg4[%c0_4, %c0_5], %6 {strides = array<i32>} : memref<32x128xbf16, #tpu.memory_space<vmem>>, vector<32x128xbf16>,
    %c0_6 = arith.constant 0 : index
    %c0_7 = arith.constant 0 : index
    %8 = vector.load %arg6[%c0_6, %c0_7] : memref<1x128xf32, #tpu.memory_space<vmem>>, vector<1x128xf32>
    %cst_8 = arith.constant dense<0.000000e+00> : vector<128xf32>
    %9 = vector.multi_reduction <add>, %5, %cst_8 [0] : vector<32x128xf32> to vector<128xf32>
    %10 = vector.shape_cast %9 : vector<128xf32> to vector<1x128xf32>
    %11 = arith.addf %8, %10 : vector<1x128xf32>
    %c0_9 = arith.constant 0 : index
    %c0_10 = arith.constant 0 : index
    %12 = vector.load %arg6[%c0_9, %c0_10] : memref<1x128xf32, #tpu.memory_space<vmem>>, vector<1x128xf32>
    tpu.vector_store %arg6[%c0_9, %c0_10], %11 {strides = array<i32>} : memref<1x128xf32, #tpu.memory_space<vmem>>, vector<1x128xf32>,
    %c0_11 = arith.constant 0 : index
    %c0_12 = arith.constant 0 : index
    %13 = vector.load %arg7[%c0_11, %c0_12] : memref<1x128xf32, #tpu.memory_space<vmem>>, vector<1x128xf32>
    %14 = arith.mulf %5, %5 : vector<32x128xf32>
    %cst_13 = arith.constant dense<0.000000e+00> : vector<128xf32>
    %15 = vector.multi_reduction <add>, %14, %cst_13 [0] : vector<32x128xf32> to vector<128xf32>
    %16 = vector.shape_cast %15 : vector<128xf32> to vector<1x128xf32>
    %17 = arith.addf %13, %16 : vector<1x128xf32>
    %c0_14 = arith.constant 0 : index
    %c0_15 = arith.constant 0 : index
    %18 = vector.load %arg7[%c0_14, %c0_15] : memref<1x128xf32, #tpu.memory_space<vmem>>, vector<1x128xf32>
    tpu.vector_store %arg7[%c0_14, %c0_15], %17 {strides = array<i32>} : memref<1x128xf32, #tpu.memory_space<vmem>>, vector<1x128xf32>,
    %c0_i32_16 = arith.constant 0 : i32
    %19 = arith.cmpi eq, %arg1, %c0_i32_16 : i32
    %20 = arith.extui %19 : i1 to i32
    %c0_i32_17 = arith.constant 0 : i32
    %21 = arith.cmpi ne, %20, %c0_i32_17 : i32
    scf.if %21 {
      %c0_18 = arith.constant 0 : index
      %c0_19 = arith.constant 0 : index
      %22 = vector.load %arg6[%c0_18, %c0_19] : memref<1x128xf32, #tpu.memory_space<vmem>>, vector<1x128xf32>
      %c0_20 = arith.constant 0 : index
      %c0_21 = arith.constant 0 : index
      %c0_22 = arith.constant 0 : index
      %23 = vector.load %arg5[%c0_20, %c0_21, %c0_22] : memref<1x2x128xf32, #tpu.memory_space<vmem>>, vector<1x1x128xf32>
      %24 = vector.shape_cast %23 : vector<1x1x128xf32> to vector<1x128xf32>
      %25 = vector.shape_cast %22 : vector<1x128xf32> to vector<1x1x128xf32>
      tpu.vector_store %arg5[%c0_20, %c0_21, %c0_22], %25 {strides = array<i32>} : memref<1x2x128xf32, #tpu.memory_space<vmem>>, vector<1x1x128xf32>,
      %c0_23 = arith.constant 0 : index
      %c0_24 = arith.constant 0 : index
      %26 = vector.load %arg7[%c0_23, %c0_24] : memref<1x128xf32, #tpu.memory_space<vmem>>, vector<1x128xf32>
      %c0_25 = arith.constant 0 : index
      %c1 = arith.constant 1 : index
      %c0_26 = arith.constant 0 : index
      %27 = vector.load %arg5[%c0_25, %c1, %c0_26] : memref<1x2x128xf32, #tpu.memory_space<vmem>>, vector<1x1x128xf32>
      %28 = vector.shape_cast %27 : vector<1x1x128xf32> to vector<1x128xf32>
      %29 = vector.shape_cast %26 : vector<1x128xf32> to vector<1x1x128xf32>
      tpu.vector_store %arg5[%c0_25, %c1, %c0_26], %29 {strides = array<i32>} : memref<1x2x128xf32, #tpu.memory_space<vmem>>, vector<1x1x128xf32>,
    } else {
    }
    return
  }
  func.func @transform_0(%arg0: i32, %arg1: i32) -> (i32, i32) {
    %c1_i32 = arith.constant 1 : i32
    %0 = arith.muli %arg0, %c1_i32 : i32
    %1 = arith.addi %0, %arg1 : i32
    %c0_i32 = arith.constant 0 : i32
    %c0_i32_0 = arith.constant 0 : i32
    return %1, %c0_i32 : i32, i32
  }
  func.func @transform_1(%arg0: i32, %arg1: i32) -> (i32, i32) {
    %c0_i32 = arith.constant 0 : i32
    %c0_i32_0 = arith.constant 0 : i32
    %c0_i32_1 = arith.constant 0 : i32
    return %c0_i32, %c0_i32_0 : i32, i32
  }
  func.func @transform_2(%arg0: i32, %arg1: i32) -> (i32, i32) {
    %c1_i32 = arith.constant 1 : i32
    %0 = arith.muli %arg0, %c1_i32 : i32
    %1 = arith.addi %0, %arg1 : i32
    %c0_i32 = arith.constant 0 : i32
    %c0_i32_0 = arith.constant 0 : i32
    return %1, %c0_i32 : i32, i32
  }
  func.func @transform_3(%arg0: i32, %arg1: i32) -> (i32, i32, i32) {
    %c0_i32 = arith.constant 0 : i32
    %c0_i32_0 = arith.constant 0 : i32
    %c0_i32_1 = arith.constant 0 : i32
    return %arg0, %c0_i32, %c0_i32_0 : i32, i32, i32
  }
}

module attributes {stable_mosaic.version = 11 : i64} {
  func.func @_matmul_stats_kernel(%arg0: i32, %arg1: i32, %arg2: memref<32x576xbf16, #tpu.memory_space<vmem>>, %arg3: memref<576x128xbf16, #tpu.memory_space<vmem>>, %arg4: memref<32x128xbf16, #tpu.memory_space<vmem>>, %arg5: memref<1x2x128xf32, #tpu.memory_space<vmem>>, %arg6: memref<1x128xf32, #tpu.memory_space<vmem>>, %arg7: memref<1x128xf32, #tpu.memory_space<vmem>>) attributes {dimension_semantics = [#tpu.dimension_semantics<parallel>, #tpu.dimension_semantics<arbitrary>], iteration_bounds = array<i64: 1, 1>, scalar_prefetch = 0 : i64, scratch_operands = 2 : i64, tpu.core_type = #tpu.core_type<tc>, window_params = [{transform_indices = @transform_0, window_bounds = array<i64: 32, 576>}, {pipeline_mode = #tpu.pipeline_mode<synchronous>, transform_indices = @transform_1, window_bounds = array<i64: 576, 128>}, {transform_indices = @transform_2, window_bounds = array<i64: 32, 128>}, {transform_indices = @transform_3, window_bounds = array<i64: 1, 2, 128>}]} {
    %c0_i32 = arith.constant 0 : i32
    %0 = arith.cmpi eq, %arg1, %c0_i32 : i32
    %1 = arith.extui %0 : i1 to i32
    %c0_i32_0 = arith.constant 0 : i32
    %2 = arith.cmpi ne, %1, %c0_i32_0 : i32
    scf.if %2 {
      %cst_18 = arith.constant 0.000000e+00 : f32
      %22 = vector.broadcast %cst_18 : f32 to vector<1x128xf32>
      %c0_19 = arith.constant 0 : index
      %c0_20 = arith.constant 0 : index
      %23 = vector.load %arg6[%c0_19, %c0_20] : memref<1x128xf32, #tpu.memory_space<vmem>>, vector<1x128xf32>
      tpu.vector_store %arg6[%c0_19, %c0_20], %22 {strides = array<i32>} : memref<1x128xf32, #tpu.memory_space<vmem>>, vector<1x128xf32>,
      %cst_21 = arith.constant 0.000000e+00 : f32
      %24 = vector.broadcast %cst_21 : f32 to vector<1x128xf32>
      %c0_22 = arith.constant 0 : index
      %c0_23 = arith.constant 0 : index
      %25 = vector.load %arg7[%c0_22, %c0_23] : memref<1x128xf32, #tpu.memory_space<vmem>>, vector<1x128xf32>
      tpu.vector_store %arg7[%c0_22, %c0_23], %24 {strides = array<i32>} : memref<1x128xf32, #tpu.memory_space<vmem>>, vector<1x128xf32>,
    } else {
    }
    %c0 = arith.constant 0 : index
    %c0_1 = arith.constant 0 : index
    %3 = vector.load %arg2[%c0, %c0_1] : memref<32x576xbf16, #tpu.memory_space<vmem>>, vector<32x576xbf16>
    %c0_2 = arith.constant 0 : index
    %c0_3 = arith.constant 0 : index
    %4 = vector.load %arg3[%c0_2, %c0_3] : memref<576x128xbf16, #tpu.memory_space<vmem>>, vector<576x128xbf16>
    %cst = arith.constant dense<0.000000e+00> : vector<32x128xf32>
    %5 = tpu.matmul %3, %4, %cst {dimension_numbers = #tpu.dot_dimension_numbers<[1], [0], [0], [1], [0, 0, 1, 1], [], []>} : vector<32x576xbf16>, vector<576x128xbf16>, vector<32x128xf32> -> vector<32x128xf32>
    %6 = arith.truncf %5 : vector<32x128xf32> to vector<32x128xbf16>
    %c0_4 = arith.constant 0 : index
    %c0_5 = arith.constant 0 : index
    %7 = vector.load %arg4[%c0_4, %c0_5] : memref<32x128xbf16, #tpu.memory_space<vmem>>, vector<32x128xbf16>
    tpu.vector_store %arg4[%c0_4, %c0_5], %6 {strides = array<i32>} : memref<32x128xbf16, #tpu.memory_space<vmem>>, vector<32x128xbf16>,
    %c0_6 = arith.constant 0 : index
    %c0_7 = arith.constant 0 : index
    %8 = vector.load %arg6[%c0_6, %c0_7] : memref<1x128xf32, #tpu.memory_space<vmem>>, vector<1x128xf32>
    %cst_8 = arith.constant dense<0.000000e+00> : vector<128xf32>
    %9 = vector.multi_reduction <add>, %5, %cst_8 [0] : vector<32x128xf32> to vector<128xf32>
    %10 = vector.shape_cast %9 : vector<128xf32> to vector<1x128xf32>
    %11 = arith.addf %8, %10 : vector<1x128xf32>
    %c0_9 = arith.constant 0 : index
    %c0_10 = arith.constant 0 : index
    %12 = vector.load %arg6[%c0_9, %c0_10] : memref<1x128xf32, #tpu.memory_space<vmem>>, vector<1x128xf32>
    tpu.vector_store %arg6[%c0_9, %c0_10], %11 {strides = array<i32>} : memref<1x128xf32, #tpu.memory_space<vmem>>, vector<1x128xf32>,
    %c0_11 = arith.constant 0 : index
    %c0_12 = arith.constant 0 : index
    %13 = vector.load %arg7[%c0_11, %c0_12] : memref<1x128xf32, #tpu.memory_space<vmem>>, vector<1x128xf32>
    %14 = arith.mulf %5, %5 : vector<32x128xf32>
    %cst_13 = arith.constant dense<0.000000e+00> : vector<128xf32>
    %15 = vector.multi_reduction <add>, %14, %cst_13 [0] : vector<32x128xf32> to vector<128xf32>
    %16 = vector.shape_cast %15 : vector<128xf32> to vector<1x128xf32>
    %17 = arith.addf %13, %16 : vector<1x128xf32>
    %c0_14 = arith.constant 0 : index
    %c0_15 = arith.constant 0 : index
    %18 = vector.load %arg7[%c0_14, %c0_15] : memref<1x128xf32, #tpu.memory_space<vmem>>, vector<1x128xf32>
    tpu.vector_store %arg7[%c0_14, %c0_15], %17 {strides = array<i32>} : memref<1x128xf32, #tpu.memory_space<vmem>>, vector<1x128xf32>,
    %c0_i32_16 = arith.constant 0 : i32
    %19 = arith.cmpi eq, %arg1, %c0_i32_16 : i32
    %20 = arith.extui %19 : i1 to i32
    %c0_i32_17 = arith.constant 0 : i32
    %21 = arith.cmpi ne, %20, %c0_i32_17 : i32
    scf.if %21 {
      %c0_18 = arith.constant 0 : index
      %c0_19 = arith.constant 0 : index
      %22 = vector.load %arg6[%c0_18, %c0_19] : memref<1x128xf32, #tpu.memory_space<vmem>>, vector<1x128xf32>
      %c0_20 = arith.constant 0 : index
      %c0_21 = arith.constant 0 : index
      %c0_22 = arith.constant 0 : index
      %23 = vector.load %arg5[%c0_20, %c0_21, %c0_22] : memref<1x2x128xf32, #tpu.memory_space<vmem>>, vector<1x1x128xf32>
      %24 = vector.shape_cast %23 : vector<1x1x128xf32> to vector<1x128xf32>
      %25 = vector.shape_cast %22 : vector<1x128xf32> to vector<1x1x128xf32>
      tpu.vector_store %arg5[%c0_20, %c0_21, %c0_22], %25 {strides = array<i32>} : memref<1x2x128xf32, #tpu.memory_space<vmem>>, vector<1x1x128xf32>,
      %c0_23 = arith.constant 0 : index
      %c0_24 = arith.constant 0 : index
      %26 = vector.load %arg7[%c0_23, %c0_24] : memref<1x128xf32, #tpu.memory_space<vmem>>, vector<1x128xf32>
      %c0_25 = arith.constant 0 : index
      %c1 = arith.constant 1 : index
      %c0_26 = arith.constant 0 : index
      %27 = vector.load %arg5[%c0_25, %c1, %c0_26] : memref<1x2x128xf32, #tpu.memory_space<vmem>>, vector<1x1x128xf32>
      %28 = vector.shape_cast %27 : vector<1x1x128xf32> to vector<1x128xf32>
      %29 = vector.shape_cast %26 : vector<1x128xf32> to vector<1x1x128xf32>
      tpu.vector_store %arg5[%c0_25, %c1, %c0_26], %29 {strides = array<i32>} : memref<1x2x128xf32, #tpu.memory_space<vmem>>, vector<1x1x128xf32>,
    } else {
    }
    return
  }
  func.func @transform_0(%arg0: i32, %arg1: i32) -> (i32, i32) {
    %c1_i32 = arith.constant 1 : i32
    %0 = arith.muli %arg0, %c1_i32 : i32
    %1 = arith.addi %0, %arg1 : i32
    %c0_i32 = arith.constant 0 : i32
    %c0_i32_0 = arith.constant 0 : i32
    return %1, %c0_i32 : i32, i32
  }
  func.func @transform_1(%arg0: i32, %arg1: i32) -> (i32, i32) {
    %c0_i32 = arith.constant 0 : i32
    %c0_i32_0 = arith.constant 0 : i32
    %c0_i32_1 = arith.constant 0 : i32
    return %c0_i32, %c0_i32_0 : i32, i32
  }
  func.func @transform_2(%arg0: i32, %arg1: i32) -> (i32, i32) {
    %c1_i32 = arith.constant 1 : i32
    %0 = arith.muli %arg0, %c1_i32 : i32
    %1 = arith.addi %0, %arg1 : i32
    %c0_i32 = arith.constant 0 : i32
    %c0_i32_0 = arith.constant 0 : i32
    return %1, %c0_i32 : i32, i32
  }
  func.func @transform_3(%arg0: i32, %arg1: i32) -> (i32, i32, i32) {
    %c0_i32 = arith.constant 0 : i32
    %c0_i32_0 = arith.constant 0 : i32
    %c0_i32_1 = arith.constant 0 : i32
    return %arg0, %c0_i32, %c0_i32_0 : i32, i32, i32
  }
}

module attributes {stable_mosaic.version = 11 : i64} {
  func.func @_matmul_stats_kernel(%arg0: i32, %arg1: i32, %arg2: memref<128x288xbf16, #tpu.memory_space<vmem>>, %arg3: memref<288x128xbf16, #tpu.memory_space<vmem>>, %arg4: memref<128x128xbf16, #tpu.memory_space<vmem>>, %arg5: memref<1x2x128xf32, #tpu.memory_space<vmem>>, %arg6: memref<1x128xf32, #tpu.memory_space<vmem>>, %arg7: memref<1x128xf32, #tpu.memory_space<vmem>>) attributes {dimension_semantics = [#tpu.dimension_semantics<parallel>, #tpu.dimension_semantics<arbitrary>], iteration_bounds = array<i64: 1, 1>, scalar_prefetch = 0 : i64, scratch_operands = 2 : i64, tpu.core_type = #tpu.core_type<tc>, window_params = [{transform_indices = @transform_0, window_bounds = array<i64: 128, 288>}, {pipeline_mode = #tpu.pipeline_mode<synchronous>, transform_indices = @transform_1, window_bounds = array<i64: 288, 128>}, {transform_indices = @transform_2, window_bounds = array<i64: 128, 128>}, {transform_indices = @transform_3, window_bounds = array<i64: 1, 2, 128>}]} {
    %c0_i32 = arith.constant 0 : i32
    %0 = arith.cmpi eq, %arg1, %c0_i32 : i32
    %1 = arith.extui %0 : i1 to i32
    %c0_i32_0 = arith.constant 0 : i32
    %2 = arith.cmpi ne, %1, %c0_i32_0 : i32
    scf.if %2 {
      %cst_18 = arith.constant 0.000000e+00 : f32
      %22 = vector.broadcast %cst_18 : f32 to vector<1x128xf32>
      %c0_19 = arith.constant 0 : index
      %c0_20 = arith.constant 0 : index
      %23 = vector.load %arg6[%c0_19, %c0_20] : memref<1x128xf32, #tpu.memory_space<vmem>>, vector<1x128xf32>
      tpu.vector_store %arg6[%c0_19, %c0_20], %22 {strides = array<i32>} : memref<1x128xf32, #tpu.memory_space<vmem>>, vector<1x128xf32>,
      %cst_21 = arith.constant 0.000000e+00 : f32
      %24 = vector.broadcast %cst_21 : f32 to vector<1x128xf32>
      %c0_22 = arith.constant 0 : index
      %c0_23 = arith.constant 0 : index
      %25 = vector.load %arg7[%c0_22, %c0_23] : memref<1x128xf32, #tpu.memory_space<vmem>>, vector<1x128xf32>
      tpu.vector_store %arg7[%c0_22, %c0_23], %24 {strides = array<i32>} : memref<1x128xf32, #tpu.memory_space<vmem>>, vector<1x128xf32>,
    } else {
    }
    %c0 = arith.constant 0 : index
    %c0_1 = arith.constant 0 : index
    %3 = vector.load %arg2[%c0, %c0_1] : memref<128x288xbf16, #tpu.memory_space<vmem>>, vector<128x288xbf16>
    %c0_2 = arith.constant 0 : index
    %c0_3 = arith.constant 0 : index
    %4 = vector.load %arg3[%c0_2, %c0_3] : memref<288x128xbf16, #tpu.memory_space<vmem>>, vector<288x128xbf16>
    %cst = arith.constant dense<0.000000e+00> : vector<128x128xf32>
    %5 = tpu.matmul %3, %4, %cst {dimension_numbers = #tpu.dot_dimension_numbers<[1], [0], [0], [1], [0, 0, 1, 1], [], []>} : vector<128x288xbf16>, vector<288x128xbf16>, vector<128x128xf32> -> vector<128x128xf32>
    %6 = arith.truncf %5 : vector<128x128xf32> to vector<128x128xbf16>
    %c0_4 = arith.constant 0 : index
    %c0_5 = arith.constant 0 : index
    %7 = vector.load %arg4[%c0_4, %c0_5] : memref<128x128xbf16, #tpu.memory_space<vmem>>, vector<128x128xbf16>
    tpu.vector_store %arg4[%c0_4, %c0_5], %6 {strides = array<i32>} : memref<128x128xbf16, #tpu.memory_space<vmem>>, vector<128x128xbf16>,
    %c0_6 = arith.constant 0 : index
    %c0_7 = arith.constant 0 : index
    %8 = vector.load %arg6[%c0_6, %c0_7] : memref<1x128xf32, #tpu.memory_space<vmem>>, vector<1x128xf32>
    %cst_8 = arith.constant dense<0.000000e+00> : vector<128xf32>
    %9 = vector.multi_reduction <add>, %5, %cst_8 [0] : vector<128x128xf32> to vector<128xf32>
    %10 = vector.shape_cast %9 : vector<128xf32> to vector<1x128xf32>
    %11 = arith.addf %8, %10 : vector<1x128xf32>
    %c0_9 = arith.constant 0 : index
    %c0_10 = arith.constant 0 : index
    %12 = vector.load %arg6[%c0_9, %c0_10] : memref<1x128xf32, #tpu.memory_space<vmem>>, vector<1x128xf32>
    tpu.vector_store %arg6[%c0_9, %c0_10], %11 {strides = array<i32>} : memref<1x128xf32, #tpu.memory_space<vmem>>, vector<1x128xf32>,
    %c0_11 = arith.constant 0 : index
    %c0_12 = arith.constant 0 : index
    %13 = vector.load %arg7[%c0_11, %c0_12] : memref<1x128xf32, #tpu.memory_space<vmem>>, vector<1x128xf32>
    %14 = arith.mulf %5, %5 : vector<128x128xf32>
    %cst_13 = arith.constant dense<0.000000e+00> : vector<128xf32>
    %15 = vector.multi_reduction <add>, %14, %cst_13 [0] : vector<128x128xf32> to vector<128xf32>
    %16 = vector.shape_cast %15 : vector<128xf32> to vector<1x128xf32>
    %17 = arith.addf %13, %16 : vector<1x128xf32>
    %c0_14 = arith.constant 0 : index
    %c0_15 = arith.constant 0 : index
    %18 = vector.load %arg7[%c0_14, %c0_15] : memref<1x128xf32, #tpu.memory_space<vmem>>, vector<1x128xf32>
    tpu.vector_store %arg7[%c0_14, %c0_15], %17 {strides = array<i32>} : memref<1x128xf32, #tpu.memory_space<vmem>>, vector<1x128xf32>,
    %c0_i32_16 = arith.constant 0 : i32
    %19 = arith.cmpi eq, %arg1, %c0_i32_16 : i32
    %20 = arith.extui %19 : i1 to i32
    %c0_i32_17 = arith.constant 0 : i32
    %21 = arith.cmpi ne, %20, %c0_i32_17 : i32
    scf.if %21 {
      %c0_18 = arith.constant 0 : index
      %c0_19 = arith.constant 0 : index
      %22 = vector.load %arg6[%c0_18, %c0_19] : memref<1x128xf32, #tpu.memory_space<vmem>>, vector<1x128xf32>
      %c0_20 = arith.constant 0 : index
      %c0_21 = arith.constant 0 : index
      %c0_22 = arith.constant 0 : index
      %23 = vector.load %arg5[%c0_20, %c0_21, %c0_22] : memref<1x2x128xf32, #tpu.memory_space<vmem>>, vector<1x1x128xf32>
      %24 = vector.shape_cast %23 : vector<1x1x128xf32> to vector<1x128xf32>
      %25 = vector.shape_cast %22 : vector<1x128xf32> to vector<1x1x128xf32>
      tpu.vector_store %arg5[%c0_20, %c0_21, %c0_22], %25 {strides = array<i32>} : memref<1x2x128xf32, #tpu.memory_space<vmem>>, vector<1x1x128xf32>,
      %c0_23 = arith.constant 0 : index
      %c0_24 = arith.constant 0 : index
      %26 = vector.load %arg7[%c0_23, %c0_24] : memref<1x128xf32, #tpu.memory_space<vmem>>, vector<1x128xf32>
      %c0_25 = arith.constant 0 : index
      %c1 = arith.constant 1 : index
      %c0_26 = arith.constant 0 : index
      %27 = vector.load %arg5[%c0_25, %c1, %c0_26] : memref<1x2x128xf32, #tpu.memory_space<vmem>>, vector<1x1x128xf32>
      %28 = vector.shape_cast %27 : vector<1x1x128xf32> to vector<1x128xf32>
      %29 = vector.shape_cast %26 : vector<1x128xf32> to vector<1x1x128xf32>
      tpu.vector_store %arg5[%c0_25, %c1, %c0_26], %29 {strides = array<i32>} : memref<1x2x128xf32, #tpu.memory_space<vmem>>, vector<1x1x128xf32>,
    } else {
    }
    return
  }
  func.func @transform_0(%arg0: i32, %arg1: i32) -> (i32, i32) {
    %c1_i32 = arith.constant 1 : i32
    %0 = arith.muli %arg0, %c1_i32 : i32
    %1 = arith.addi %0, %arg1 : i32
    %c0_i32 = arith.constant 0 : i32
    %c0_i32_0 = arith.constant 0 : i32
    return %1, %c0_i32 : i32, i32
  }
  func.func @transform_1(%arg0: i32, %arg1: i32) -> (i32, i32) {
    %c0_i32 = arith.constant 0 : i32
    %c0_i32_0 = arith.constant 0 : i32
    %c0_i32_1 = arith.constant 0 : i32
    return %c0_i32, %c0_i32_0 : i32, i32
  }
  func.func @transform_2(%arg0: i32, %arg1: i32) -> (i32, i32) {
    %c1_i32 = arith.constant 1 : i32
    %0 = arith.muli %arg0, %c1_i32 : i32
    %1 = arith.addi %0, %arg1 : i32
    %c0_i32 = arith.constant 0 : i32
    %c0_i32_0 = arith.constant 0 : i32
    return %1, %c0_i32 : i32, i32
  }
  func.func @transform_3(%arg0: i32, %arg1: i32) -> (i32, i32, i32) {
    %c0_i32 = arith.constant 0 : i32
    %c0_i32_0 = arith.constant 0 : i32
    %c0_i32_1 = arith.constant 0 : i32
    return %arg0, %c0_i32, %c0_i32_0 : i32, i32, i32
  }
}

module attributes {stable_mosaic.version = 11 : i64} {
  func.func @_affine_relu_kernel(%arg0: i32, %arg1: memref<128x128xbf16, #tpu.memory_space<vmem>>, %arg2: memref<1x128xf32, #tpu.memory_space<vmem>>, %arg3: memref<1x128xf32, #tpu.memory_space<vmem>>, %arg4: memref<128x128xbf16, #tpu.memory_space<vmem>>) attributes {dimension_semantics = [#tpu.dimension_semantics<parallel>], iteration_bounds = array<i64: 1>, scalar_prefetch = 0 : i64, scratch_operands = 0 : i64, tpu.core_type = #tpu.core_type<tc>, window_params = [{transform_indices = @transform_0, window_bounds = array<i64: 128, 128>}, {pipeline_mode = #tpu.pipeline_mode<synchronous>, transform_indices = @transform_1, window_bounds = array<i64: 1, 128>}, {pipeline_mode = #tpu.pipeline_mode<synchronous>, transform_indices = @transform_2, window_bounds = array<i64: 1, 128>}, {transform_indices = @transform_3, window_bounds = array<i64: 128, 128>}]} {
    %c0 = arith.constant 0 : index
    %c0_0 = arith.constant 0 : index
    %0 = vector.load %arg1[%c0, %c0_0] : memref<128x128xbf16, #tpu.memory_space<vmem>>, vector<128x128xbf16>
    %1 = arith.extf %0 : vector<128x128xbf16> to vector<128x128xf32>
    %c0_1 = arith.constant 0 : index
    %c0_2 = arith.constant 0 : index
    %2 = vector.load %arg2[%c0_1, %c0_2] : memref<1x128xf32, #tpu.memory_space<vmem>>, vector<1x128xf32>
    %3 = vector.broadcast %2 : vector<1x128xf32> to vector<128x128xf32>
    %4 = arith.mulf %1, %3 : vector<128x128xf32>
    %c0_3 = arith.constant 0 : index
    %c0_4 = arith.constant 0 : index
    %5 = vector.load %arg3[%c0_3, %c0_4] : memref<1x128xf32, #tpu.memory_space<vmem>>, vector<1x128xf32>
    %6 = vector.broadcast %5 : vector<1x128xf32> to vector<128x128xf32>
    %7 = arith.addf %4, %6 : vector<128x128xf32>
    %cst = arith.constant 0.000000e+00 : f32
    %8 = vector.broadcast %cst : f32 to vector<128x128xf32>
    %9 = arith.maximumf %7, %8 : vector<128x128xf32>
    %10 = arith.truncf %9 : vector<128x128xf32> to vector<128x128xbf16>
    %c0_5 = arith.constant 0 : index
    %c0_6 = arith.constant 0 : index
    %11 = vector.load %arg4[%c0_5, %c0_6] : memref<128x128xbf16, #tpu.memory_space<vmem>>, vector<128x128xbf16>
    tpu.vector_store %arg4[%c0_5, %c0_6], %10 {strides = array<i32>} : memref<128x128xbf16, #tpu.memory_space<vmem>>, vector<128x128xbf16>,
    return
  }
  func.func @transform_0(%arg0: i32) -> (i32, i32) {
    %c0_i32 = arith.constant 0 : i32
    %c0_i32_0 = arith.constant 0 : i32
    return %arg0, %c0_i32 : i32, i32
  }
  func.func @transform_1(%arg0: i32) -> (i32, i32) {
    %c0_i32 = arith.constant 0 : i32
    %c0_i32_0 = arith.constant 0 : i32
    %c0_i32_1 = arith.constant 0 : i32
    return %c0_i32, %c0_i32_0 : i32, i32
  }
  func.func @transform_2(%arg0: i32) -> (i32, i32) {
    %c0_i32 = arith.constant 0 : i32
    %c0_i32_0 = arith.constant 0 : i32
    %c0_i32_1 = arith.constant 0 : i32
    return %c0_i32, %c0_i32_0 : i32, i32
  }
  func.func @transform_3(%arg0: i32) -> (i32, i32) {
    %c0_i32 = arith.constant 0 : i32
    %c0_i32_0 = arith.constant 0 : i32
    return %arg0, %c0_i32 : i32, i32
  }
}

module attributes {stable_mosaic.version = 11 : i64} {
  func.func @_matmul_stats_kernel(%arg0: i32, %arg1: i32, %arg2: memref<512x144xbf16, #tpu.memory_space<vmem>>, %arg3: memref<144x128xbf16, #tpu.memory_space<vmem>>, %arg4: memref<512x128xbf16, #tpu.memory_space<vmem>>, %arg5: memref<1x2x128xf32, #tpu.memory_space<vmem>>, %arg6: memref<1x128xf32, #tpu.memory_space<vmem>>, %arg7: memref<1x128xf32, #tpu.memory_space<vmem>>) attributes {dimension_semantics = [#tpu.dimension_semantics<parallel>, #tpu.dimension_semantics<arbitrary>], iteration_bounds = array<i64: 1, 1>, scalar_prefetch = 0 : i64, scratch_operands = 2 : i64, tpu.core_type = #tpu.core_type<tc>, window_params = [{transform_indices = @transform_0, window_bounds = array<i64: 512, 144>}, {pipeline_mode = #tpu.pipeline_mode<synchronous>, transform_indices = @transform_1, window_bounds = array<i64: 144, 128>}, {transform_indices = @transform_2, window_bounds = array<i64: 512, 128>}, {transform_indices = @transform_3, window_bounds = array<i64: 1, 2, 128>}]} {
    %c0_i32 = arith.constant 0 : i32
    %0 = arith.cmpi eq, %arg1, %c0_i32 : i32
    %1 = arith.extui %0 : i1 to i32
    %c0_i32_0 = arith.constant 0 : i32
    %2 = arith.cmpi ne, %1, %c0_i32_0 : i32
    scf.if %2 {
      %cst_18 = arith.constant 0.000000e+00 : f32
      %22 = vector.broadcast %cst_18 : f32 to vector<1x128xf32>
      %c0_19 = arith.constant 0 : index
      %c0_20 = arith.constant 0 : index
      %23 = vector.load %arg6[%c0_19, %c0_20] : memref<1x128xf32, #tpu.memory_space<vmem>>, vector<1x128xf32>
      tpu.vector_store %arg6[%c0_19, %c0_20], %22 {strides = array<i32>} : memref<1x128xf32, #tpu.memory_space<vmem>>, vector<1x128xf32>,
      %cst_21 = arith.constant 0.000000e+00 : f32
      %24 = vector.broadcast %cst_21 : f32 to vector<1x128xf32>
      %c0_22 = arith.constant 0 : index
      %c0_23 = arith.constant 0 : index
      %25 = vector.load %arg7[%c0_22, %c0_23] : memref<1x128xf32, #tpu.memory_space<vmem>>, vector<1x128xf32>
      tpu.vector_store %arg7[%c0_22, %c0_23], %24 {strides = array<i32>} : memref<1x128xf32, #tpu.memory_space<vmem>>, vector<1x128xf32>,
    } else {
    }
    %c0 = arith.constant 0 : index
    %c0_1 = arith.constant 0 : index
    %3 = vector.load %arg2[%c0, %c0_1] : memref<512x144xbf16, #tpu.memory_space<vmem>>, vector<512x144xbf16>
    %c0_2 = arith.constant 0 : index
    %c0_3 = arith.constant 0 : index
    %4 = vector.load %arg3[%c0_2, %c0_3] : memref<144x128xbf16, #tpu.memory_space<vmem>>, vector<144x128xbf16>
    %cst = arith.constant dense<0.000000e+00> : vector<512x128xf32>
    %5 = tpu.matmul %3, %4, %cst {dimension_numbers = #tpu.dot_dimension_numbers<[1], [0], [0], [1], [0, 0, 1, 1], [], []>} : vector<512x144xbf16>, vector<144x128xbf16>, vector<512x128xf32> -> vector<512x128xf32>
    %6 = arith.truncf %5 : vector<512x128xf32> to vector<512x128xbf16>
    %c0_4 = arith.constant 0 : index
    %c0_5 = arith.constant 0 : index
    %7 = vector.load %arg4[%c0_4, %c0_5] : memref<512x128xbf16, #tpu.memory_space<vmem>>, vector<512x128xbf16>
    tpu.vector_store %arg4[%c0_4, %c0_5], %6 {strides = array<i32>} : memref<512x128xbf16, #tpu.memory_space<vmem>>, vector<512x128xbf16>,
    %c0_6 = arith.constant 0 : index
    %c0_7 = arith.constant 0 : index
    %8 = vector.load %arg6[%c0_6, %c0_7] : memref<1x128xf32, #tpu.memory_space<vmem>>, vector<1x128xf32>
    %cst_8 = arith.constant dense<0.000000e+00> : vector<128xf32>
    %9 = vector.multi_reduction <add>, %5, %cst_8 [0] : vector<512x128xf32> to vector<128xf32>
    %10 = vector.shape_cast %9 : vector<128xf32> to vector<1x128xf32>
    %11 = arith.addf %8, %10 : vector<1x128xf32>
    %c0_9 = arith.constant 0 : index
    %c0_10 = arith.constant 0 : index
    %12 = vector.load %arg6[%c0_9, %c0_10] : memref<1x128xf32, #tpu.memory_space<vmem>>, vector<1x128xf32>
    tpu.vector_store %arg6[%c0_9, %c0_10], %11 {strides = array<i32>} : memref<1x128xf32, #tpu.memory_space<vmem>>, vector<1x128xf32>,
    %c0_11 = arith.constant 0 : index
    %c0_12 = arith.constant 0 : index
    %13 = vector.load %arg7[%c0_11, %c0_12] : memref<1x128xf32, #tpu.memory_space<vmem>>, vector<1x128xf32>
    %14 = arith.mulf %5, %5 : vector<512x128xf32>
    %cst_13 = arith.constant dense<0.000000e+00> : vector<128xf32>
    %15 = vector.multi_reduction <add>, %14, %cst_13 [0] : vector<512x128xf32> to vector<128xf32>
    %16 = vector.shape_cast %15 : vector<128xf32> to vector<1x128xf32>
    %17 = arith.addf %13, %16 : vector<1x128xf32>
    %c0_14 = arith.constant 0 : index
    %c0_15 = arith.constant 0 : index
    %18 = vector.load %arg7[%c0_14, %c0_15] : memref<1x128xf32, #tpu.memory_space<vmem>>, vector<1x128xf32>
    tpu.vector_store %arg7[%c0_14, %c0_15], %17 {strides = array<i32>} : memref<1x128xf32, #tpu.memory_space<vmem>>, vector<1x128xf32>,
    %c0_i32_16 = arith.constant 0 : i32
    %19 = arith.cmpi eq, %arg1, %c0_i32_16 : i32
    %20 = arith.extui %19 : i1 to i32
    %c0_i32_17 = arith.constant 0 : i32
    %21 = arith.cmpi ne, %20, %c0_i32_17 : i32
    scf.if %21 {
      %c0_18 = arith.constant 0 : index
      %c0_19 = arith.constant 0 : index
      %22 = vector.load %arg6[%c0_18, %c0_19] : memref<1x128xf32, #tpu.memory_space<vmem>>, vector<1x128xf32>
      %c0_20 = arith.constant 0 : index
      %c0_21 = arith.constant 0 : index
      %c0_22 = arith.constant 0 : index
      %23 = vector.load %arg5[%c0_20, %c0_21, %c0_22] : memref<1x2x128xf32, #tpu.memory_space<vmem>>, vector<1x1x128xf32>
      %24 = vector.shape_cast %23 : vector<1x1x128xf32> to vector<1x128xf32>
      %25 = vector.shape_cast %22 : vector<1x128xf32> to vector<1x1x128xf32>
      tpu.vector_store %arg5[%c0_20, %c0_21, %c0_22], %25 {strides = array<i32>} : memref<1x2x128xf32, #tpu.memory_space<vmem>>, vector<1x1x128xf32>,
      %c0_23 = arith.constant 0 : index
      %c0_24 = arith.constant 0 : index
      %26 = vector.load %arg7[%c0_23, %c0_24] : memref<1x128xf32, #tpu.memory_space<vmem>>, vector<1x128xf32>
      %c0_25 = arith.constant 0 : index
      %c1 = arith.constant 1 : index
      %c0_26 = arith.constant 0 : index
      %27 = vector.load %arg5[%c0_25, %c1, %c0_26] : memref<1x2x128xf32, #tpu.memory_space<vmem>>, vector<1x1x128xf32>
      %28 = vector.shape_cast %27 : vector<1x1x128xf32> to vector<1x128xf32>
      %29 = vector.shape_cast %26 : vector<1x128xf32> to vector<1x1x128xf32>
      tpu.vector_store %arg5[%c0_25, %c1, %c0_26], %29 {strides = array<i32>} : memref<1x2x128xf32, #tpu.memory_space<vmem>>, vector<1x1x128xf32>,
    } else {
    }
    return
  }
  func.func @transform_0(%arg0: i32, %arg1: i32) -> (i32, i32) {
    %c1_i32 = arith.constant 1 : i32
    %0 = arith.muli %arg0, %c1_i32 : i32
    %1 = arith.addi %0, %arg1 : i32
    %c0_i32 = arith.constant 0 : i32
    %c0_i32_0 = arith.constant 0 : i32
    return %1, %c0_i32 : i32, i32
  }
  func.func @transform_1(%arg0: i32, %arg1: i32) -> (i32, i32) {
    %c0_i32 = arith.constant 0 : i32
    %c0_i32_0 = arith.constant 0 : i32
    %c0_i32_1 = arith.constant 0 : i32
    return %c0_i32, %c0_i32_0 : i32, i32
  }
  func.func @transform_2(%arg0: i32, %arg1: i32) -> (i32, i32) {
    %c1_i32 = arith.constant 1 : i32
    %0 = arith.muli %arg0, %c1_i32 : i32
    %1 = arith.addi %0, %arg1 : i32
    %c0_i32 = arith.constant 0 : i32
    %c0_i32_0 = arith.constant 0 : i32
    return %1, %c0_i32 : i32, i32
  }
  func.func @transform_3(%arg0: i32, %arg1: i32) -> (i32, i32, i32) {
    %c0_i32 = arith.constant 0 : i32
    %c0_i32_0 = arith.constant 0 : i32
    %c0_i32_1 = arith.constant 0 : i32
    return %arg0, %c0_i32, %c0_i32_0 : i32, i32, i32
  }
}

module attributes {stable_mosaic.version = 11 : i64} {
  func.func @_affine_relu_kernel(%arg0: i32, %arg1: memref<512x128xbf16, #tpu.memory_space<vmem>>, %arg2: memref<1x128xf32, #tpu.memory_space<vmem>>, %arg3: memref<1x128xf32, #tpu.memory_space<vmem>>, %arg4: memref<512x128xbf16, #tpu.memory_space<vmem>>) attributes {dimension_semantics = [#tpu.dimension_semantics<parallel>], iteration_bounds = array<i64: 1>, scalar_prefetch = 0 : i64, scratch_operands = 0 : i64, tpu.core_type = #tpu.core_type<tc>, window_params = [{transform_indices = @transform_0, window_bounds = array<i64: 512, 128>}, {pipeline_mode = #tpu.pipeline_mode<synchronous>, transform_indices = @transform_1, window_bounds = array<i64: 1, 128>}, {pipeline_mode = #tpu.pipeline_mode<synchronous>, transform_indices = @transform_2, window_bounds = array<i64: 1, 128>}, {transform_indices = @transform_3, window_bounds = array<i64: 512, 128>}]} {
    %c0 = arith.constant 0 : index
    %c0_0 = arith.constant 0 : index
    %0 = vector.load %arg1[%c0, %c0_0] : memref<512x128xbf16, #tpu.memory_space<vmem>>, vector<512x128xbf16>
    %1 = arith.extf %0 : vector<512x128xbf16> to vector<512x128xf32>
    %c0_1 = arith.constant 0 : index
    %c0_2 = arith.constant 0 : index
    %2 = vector.load %arg2[%c0_1, %c0_2] : memref<1x128xf32, #tpu.memory_space<vmem>>, vector<1x128xf32>
    %3 = vector.broadcast %2 : vector<1x128xf32> to vector<512x128xf32>
    %4 = arith.mulf %1, %3 : vector<512x128xf32>
    %c0_3 = arith.constant 0 : index
    %c0_4 = arith.constant 0 : index
    %5 = vector.load %arg3[%c0_3, %c0_4] : memref<1x128xf32, #tpu.memory_space<vmem>>, vector<1x128xf32>
    %6 = vector.broadcast %5 : vector<1x128xf32> to vector<512x128xf32>
    %7 = arith.addf %4, %6 : vector<512x128xf32>
    %cst = arith.constant 0.000000e+00 : f32
    %8 = vector.broadcast %cst : f32 to vector<512x128xf32>
    %9 = arith.maximumf %7, %8 : vector<512x128xf32>
    %10 = arith.truncf %9 : vector<512x128xf32> to vector<512x128xbf16>
    %c0_5 = arith.constant 0 : index
    %c0_6 = arith.constant 0 : index
    %11 = vector.load %arg4[%c0_5, %c0_6] : memref<512x128xbf16, #tpu.memory_space<vmem>>, vector<512x128xbf16>
    tpu.vector_store %arg4[%c0_5, %c0_6], %10 {strides = array<i32>} : memref<512x128xbf16, #tpu.memory_space<vmem>>, vector<512x128xbf16>,
    return
  }
  func.func @transform_0(%arg0: i32) -> (i32, i32) {
    %c0_i32 = arith.constant 0 : i32
    %c0_i32_0 = arith.constant 0 : i32
    return %arg0, %c0_i32 : i32, i32
  }
  func.func @transform_1(%arg0: i32) -> (i32, i32) {
    %c0_i32 = arith.constant 0 : i32
    %c0_i32_0 = arith.constant 0 : i32
    %c0_i32_1 = arith.constant 0 : i32
    return %c0_i32, %c0_i32_0 : i32, i32
  }
  func.func @transform_2(%arg0: i32) -> (i32, i32) {
    %c0_i32 = arith.constant 0 : i32
    %c0_i32_0 = arith.constant 0 : i32
    %c0_i32_1 = arith.constant 0 : i32
    return %c0_i32, %c0_i32_0 : i32, i32
  }
  func.func @transform_3(%arg0: i32) -> (i32, i32) {
    %c0_i32 = arith.constant 0 : i32
    %c0_i32_0 = arith.constant 0 : i32
    return %arg0, %c0_i32 : i32, i32
  }
}

module attributes {stable_mosaic.version = 11 : i64} {
  func.func @_matmul_tanh_kernel(%arg0: i32, %arg1: memref<1024x72xbf16, #tpu.memory_space<vmem>>, %arg2: memref<72x128xbf16, #tpu.memory_space<vmem>>, %arg3: memref<1024x128xbf16, #tpu.memory_space<vmem>>) attributes {dimension_semantics = [#tpu.dimension_semantics<parallel>], iteration_bounds = array<i64: 2>, scalar_prefetch = 0 : i64, scratch_operands = 0 : i64, tpu.core_type = #tpu.core_type<tc>, window_params = [{transform_indices = @transform_0, window_bounds = array<i64: 1024, 72>}, {pipeline_mode = #tpu.pipeline_mode<synchronous>, transform_indices = @transform_1, window_bounds = array<i64: 72, 128>}, {transform_indices = @transform_2, window_bounds = array<i64: 1024, 128>}]} {
    %c0 = arith.constant 0 : index
    %c0_0 = arith.constant 0 : index
    %0 = vector.load %arg1[%c0, %c0_0] : memref<1024x72xbf16, #tpu.memory_space<vmem>>, vector<1024x72xbf16>
    %c0_1 = arith.constant 0 : index
    %c0_2 = arith.constant 0 : index
    %1 = vector.load %arg2[%c0_1, %c0_2] : memref<72x128xbf16, #tpu.memory_space<vmem>>, vector<72x128xbf16>
    %cst = arith.constant dense<0.000000e+00> : vector<1024x128xf32>
    %2 = tpu.matmul %0, %1, %cst {dimension_numbers = #tpu.dot_dimension_numbers<[1], [0], [0], [1], [0, 0, 1, 1], [], []>} : vector<1024x72xbf16>, vector<72x128xbf16>, vector<1024x128xf32> -> vector<1024x128xf32>
    %3 = math.tanh %2 : vector<1024x128xf32>
    %4 = arith.truncf %3 : vector<1024x128xf32> to vector<1024x128xbf16>
    %c0_3 = arith.constant 0 : index
    %c0_4 = arith.constant 0 : index
    %5 = vector.load %arg3[%c0_3, %c0_4] : memref<1024x128xbf16, #tpu.memory_space<vmem>>, vector<1024x128xbf16>
    tpu.vector_store %arg3[%c0_3, %c0_4], %4 {strides = array<i32>} : memref<1024x128xbf16, #tpu.memory_space<vmem>>, vector<1024x128xbf16>,
    return
  }
  func.func @transform_0(%arg0: i32) -> (i32, i32) {
    %c0_i32 = arith.constant 0 : i32
    %c0_i32_0 = arith.constant 0 : i32
    return %arg0, %c0_i32 : i32, i32
  }
  func.func @transform_1(%arg0: i32) -> (i32, i32) {
    %c0_i32 = arith.constant 0 : i32
    %c0_i32_0 = arith.constant 0 : i32
    %c0_i32_1 = arith.constant 0 : i32
    return %c0_i32, %c0_i32_0 : i32, i32
  }
  func.func @transform_2(%arg0: i32) -> (i32, i32) {
    %c0_i32 = arith.constant 0 : i32
    %c0_i32_0 = arith.constant 0 : i32
    return %arg0, %c0_i32 : i32, i32
  }
}

</mosaic_0001>

<llo_original>
// kernel: forward.10
$region0: #{forward.10}
  #allocation0 [shape = 'u32[]', space=smem, size = 0x4, offset = 0x4, fixed_abs, tag = 'smem constant byte address 0x4 - core index']
  #allocation1 [shape = 'u32[144,128]{1,0:T(1,128)}', space=vmem, size = 0x12000, scoped, tag = 'internal scratch']
  %s0 = inlined_call_operand.vmem [shape: bf16[32,128], index: 0, kind: input, shape index: {}]
  %s1 = inlined_call_operand.vmem [shape: f32[1,128], index: 1, kind: input, shape index: {}]
  %s2 = inlined_call_operand.vmem [shape: f32[1,128], index: 2, kind: input, shape index: {}]
  %s3 = inlined_call_operand.vmem [shape: bf16[32,128], index: 3, kind: output, shape index: {}]
  %s4 = sld [smem:[#allocation0]]
  $region22: #{forward.10} parent=0
    _
  %s6 = ssub.s32 1, %s4
  %s7 = scalar_select 0, %s6, %s4
  // Predicated region
  $region2: #{forward.10} parent=0 // pred_check
    _
  $region3: #{forward.10} parent=0 // pred_check_branch
    %9 = sbr.rel (0) target = $region5
  $region4: #{forward.10} parent=0 // pred_region
    _
  $region5: #{forward.10} parent=0 // pred_fallthru
    _
  // Predicated region
  $region6: #{forward.10} parent=0 // pred_check
    _
  $region7: #{forward.10} parent=0 // pred_check_branch
    %11 = sbr.rel (0) target = $region9
  $region8: #{forward.10} parent=0 // pred_region
    _
  $region9: #{forward.10} parent=0 // pred_fallthru
    _
  // Predicated region
  $region10: #{forward.10} parent=0 // pred_check
    _
  $region11: #{forward.10} parent=0 // pred_check_branch
    %13 = sbr.rel (0) target = $region13
  $region12: #{forward.10} parent=0 // pred_region
    _
  $region13: #{forward.10} parent=0 // pred_fallthru
    _
  %v14 = vld [vmem:[%s0] sm:$0xf]
  %v15 = vld [vmem:[%s0 + $0x4] sm:$0xf]
  %v16 = vld [vmem:[%s0 + $0x8] sm:$0xf]
  %v17 = vld [vmem:[%s0 + $0xc] sm:$0xf]
  %v18 = vunpack.c.l.bf16 %v14
  %v19 = vunpack.c.l.bf16 %v15
  %v20 = vunpack.c.l.bf16 %v16
  %v21 = vunpack.c.l.bf16 %v17
  %v22 = vld [vmem:[%s1] sm:$0x1]
  %v24 = vlaneseq
  %v25 = vshrl.u32 %v24, 7
  %v26 = vsub.s32 0, %v25
  %v27 = vrot.slane %v22, %v26
  %v29 = vmul.f32 %v18, %v27
  %v30 = vmul.f32 %v19, %v27
  %v31 = vmul.f32 %v20, %v27
  %v32 = vmul.f32 %v21, %v27
  %v33 = vld [vmem:[%s2] sm:$0x1]
  %v35 = vlaneseq
  %v36 = vshrl.u32 %v35, 7
  %v37 = vsub.s32 0, %v36
  %v38 = vrot.slane %v33, %v37
  %v40 = vadd.f32 %v29, %v38
  %v41 = vadd.f32 %v30, %v38
  %v42 = vadd.f32 %v31, %v38
  %v43 = vadd.f32 %v32, %v38
  %v44 = vmax.f32 %v40, 0.0
  %v45 = vmax.f32 %v41, 0.0
  %v46 = vmax.f32 %v42, 0.0
  %v47 = vmax.f32 %v43, 0.0
  %v48 = vpack.c.bf16 %v45, %v44
  %v49 = vpack.c.bf16 %v47, %v46
  %v52 = vunpack.c.l.b16 %v48
  %v53 = vunpack.c.h.b16 %v48
  %v54 = vunpack.c.l.b16 %v49
  %v55 = vunpack.c.h.b16 %v49
  %v56 = vpack.c.b16 %v52, %v52
  %v57 = vpack.c.b16 %v53, %v53
  %v58 = vpack.c.b16 %v54, %v54
  %v59 = vpack.c.b16 %v55, %v55
  %64 = vst [vmem:[%s3] sm:$0xf] %v56
  %65 = vst [vmem:[%s3 + $0x4] sm:$0xf] %v57
  %66 = vst [vmem:[%s3 + $0x8] sm:$0xf] %v58
  %67 = vst [vmem:[%s3 + $0xc] sm:$0xf] %v59
  // Predicated region
  $region14: #{forward.10} parent=0 // pred_check
    _
  $region15: #{forward.10} parent=0 // pred_check_branch
    %69 = sbr.rel (0) target = $region17
  $region16: #{forward.10} parent=0 // pred_region
    _
  $region17: #{forward.10} parent=0 // pred_fallthru
    _
  // Predicated region
  $region18: #{forward.10} parent=0 // pred_check
    _
  $region19: #{forward.10} parent=0 // pred_check_branch
    %71 = sbr.rel (0) target = $region21
  $region20: #{forward.10} parent=0 // pred_region
    _
  $region21: #{forward.10} parent=0 // pred_fallthru
    _

// kernel: forward.9
$region0: #{forward.9}
  #allocation0 [shape = 'u32[]', space=smem, size = 0x4, offset = 0x4, fixed_abs, tag = 'smem constant byte address 0x4 - core index']
  #allocation1 [shape = 'u32[144,128]{1,0:T(1,128)}', space=vmem, size = 0x12000, scoped, tag = 'internal scratch']
  #allocation2 [shape = 'f32[1,128]{1,0:T(1,128)}', space=vmem, size = 0x200, scoped, tag = 'scratch operand']
  #allocation3 [shape = 'f32[1,128]{1,0:T(1,128)}', space=vmem, size = 0x200, scoped, tag = 'scratch operand']
  %s0 = inlined_call_operand.vmem [shape: bf16[32,128], index: 0, kind: input, shape index: {}]
  %s1 = inlined_call_operand.hbm [shape: bf16[128,128], index: 1, kind: input, shape index: {}]
  %s2 = inlined_call_operand.vmem [shape: bf16[32,128], index: 2, kind: output, shape index: {0}]
  %s3 = inlined_call_operand.vmem [shape: f32[1,2,128], index: 3, kind: output, shape index: {1}]
  %4 = xla_tuple %s2, %s3
  %s5 = sld [smem:[#allocation0]]
  $region38: #{forward.9} parent=0
    _
  %s7 = ssub.s32 1, %s5
  %s8 = scalar_select 0, %s7, %s5
  $region1: #{forward.9} parent=0
    #allocation4 [shape = 'u8[32768]{0}', space=vmem, size = 0x8000, scoped, tag = 'input window, operand 1, single buffered']
    #allocation5 [shape = 's32[1]{0}', space=sflag, size = 0x4, scoped, tag = 'scoped memory for forward.9']
    %9 = vsyncpa [#allocation5], 0
    // Predicated region
    $region2: #{forward.9} parent=1 // pred_check
      _
    $region3: #{forward.9} parent=1 // pred_check_branch
      %11 = sbr.rel (0) target = $region5
    $region4: #{forward.9} parent=1 // pred_region
      %s12 = sadd.s32 0, 0
      %s13 = smul.u32 4, %s12
      %p14 = scmp.lt.s32.totalorder %s13, 3
      %s15 = scalar_select %p14, %s13, 3
      %s16 = smul.addr %s15, 4
      %s17 = scalar_lea.vmem %s0, %s16
      %s18 = sadd.s32 0, 0
      %s19 = smul.u32 4, %s18
    $region5: #{forward.9} parent=1 // pred_fallthru
      _
    // Predicated region
    $region6: #{forward.9} parent=1 // pred_check
      _
    $region7: #{forward.9} parent=1 // pred_check_branch
      %21 = sbr.rel (0) target = $region9
    $region8: #{forward.9} parent=1 // pred_region
      %s23 = ssub.s32 1024, 1024
      %24 = vsyncadd [#allocation5], %s23
      %s25 = sshll.u32 [#allocation4], 4
      %s26 = int_to_ptr.vmem [resolvable:$true] %s25
      %31 = dma.hbm_to_vmem [thread:$0]  %s1, 1024, %s26, [#allocation5], 64, 64, 4
    $region9: #{forward.9} parent=1 // pred_fallthru
      _
    // Predicated region
    $region10: #{forward.9} parent=1 // pred_check
      _
    $region11: #{forward.9} parent=1 // pred_check_branch
      %33 = sbr.rel (0) target = $region13
    $region12: #{forward.9} parent=1 // pred_region
      %34 = dma.done [#allocation5], 1024
    $region13: #{forward.9} parent=1 // pred_fallthru
      _
    %s35 = sadd.s32 0, 0
    %s36 = smul.u32 4, %s35
    %p37 = scmp.lt.s32.totalorder %s36, 3
    %s38 = scalar_select %p37, %s36, 3
    %s39 = smul.addr %s38, 4
    %s40 = scalar_lea.vmem %s0, %s39
    %s41 = sadd.s32 0, 0
    %s42 = smul.u32 4, %s41
    %p43 = scmp.lt.s32.totalorder %s42, 3
    %s44 = scalar_select %p43, %s42, 3
    %s45 = smul.addr %s44, 4
    %s46 = scalar_lea.vmem %s2, %s45
    %s47 = sadd.s32 0, 0
    %s48 = smul.u32 4, %s47
    %p49 = scmp.lt.s32.totalorder %s48, 3
    %s50 = scalar_select %p49, %s48, 3
    %s51 = smul.addr %s50, 4
    %s52 = scalar_lea.vmem %s0, %s51
    %s53 = sadd.s32 0, 0
    %s54 = smul.u32 4, %s53
    %s55 = sadd.s32 0, 0
    %s56 = smul.u32 4, %s55
    %p57 = scmp.lt.s32.totalorder %s56, 3
    %s58 = scalar_select %p57, %s56, 3
    %s59 = smul.addr %s58, 4
    %s60 = scalar_lea.vmem %s2, %s59
    %s61 = sadd.s32 0, 0
    %s62 = smul.u32 4, %s61
    %p64 = scmp.eq.s32.totalorder 0, 0
    // Predicated region
    $region14: #{forward.9} parent=1 // pred_check
      %p65 = pneg %p64
    $region15: #{forward.9} parent=1 // pred_check_branch
      %67 = sbr.rel (%p65) target = $region17
    $region16: #{forward.9} parent=1 // pred_region
      %68 = vst [vmem:[#allocation2] sm:$0x1] 0.0
      %69 = vst [vmem:[#allocation3] sm:$0x1] 0.0
    $region17: #{forward.9} parent=1 // pred_fallthru
      _
    %v70 = vld [vmem:[%s52] sm:$0xf]
    %v71 = vld [vmem:[%s52 + $0x4] sm:$0xf]
    %v72 = vld [vmem:[%s52 + $0x8] sm:$0xf]
    %v73 = vld [vmem:[%s52 + $0xc] sm:$0xf]
    %v74 = vld [vmem:[#allocation4] sm:$0xf]
    %v75 = vld [vmem:[#allocation4 + $0x4] sm:$0xf]
    %v76 = vld [vmem:[#allocation4 + $0x8] sm:$0xf]
    %v77 = vld [vmem:[#allocation4 + $0xc] sm:$0xf]
    %v78 = vld [vmem:[#allocation4 + $0x10] sm:$0xf]
    %v79 = vld [vmem:[#allocation4 + $0x14] sm:$0xf]
    %v80 = vld [vmem:[#allocation4 + $0x18] sm:$0xf]
    %v81 = vld [vmem:[#allocation4 + $0x1c] sm:$0xf]
    %v82 = vld [vmem:[#allocation4 + $0x20] sm:$0xf]
    %v83 = vld [vmem:[#allocation4 + $0x24] sm:$0xf]
    %v84 = vld [vmem:[#allocation4 + $0x28] sm:$0xf]
    %v85 = vld [vmem:[#allocation4 + $0x2c] sm:$0xf]
    %v86 = vld [vmem:[#allocation4 + $0x30] sm:$0xf]
    %v87 = vld [vmem:[#allocation4 + $0x34] sm:$0xf]
    %v88 = vld [vmem:[#allocation4 + $0x38] sm:$0xf]
    %v89 = vld [vmem:[#allocation4 + $0x3c] sm:$0xf]
    %v94 = vunpack.c.l.b16 %v70
    %v95 = vunpack.c.l.b16 %v71
    %v96 = vunpack.c.l.b16 %v72
    %v97 = vunpack.c.l.b16 %v73
    %v98 = vpack.c.b16 %v95, %v94
    %v99 = vpack.c.b16 %v97, %v96
    %v118 = vunpack.c.l.b16 %v74
    %v119 = vunpack.c.l.b16 %v75
    %v120 = vunpack.c.l.b16 %v76
    %v121 = vunpack.c.l.b16 %v77
    %v122 = vunpack.c.l.b16 %v78
    %v123 = vunpack.c.l.b16 %v79
    %v124 = vunpack.c.l.b16 %v80
    %v125 = vunpack.c.l.b16 %v81
    %v126 = vunpack.c.l.b16 %v82
    %v127 = vunpack.c.l.b16 %v83
    %v128 = vunpack.c.l.b16 %v84
    %v129 = vunpack.c.l.b16 %v85
    %v130 = vunpack.c.l.b16 %v86
    %v131 = vunpack.c.l.b16 %v87
    %v132 = vunpack.c.l.b16 %v88
    %v133 = vunpack.c.l.b16 %v89
    %v134 = vpack.c.b16 %v119, %v118
    %v135 = vpack.c.b16 %v121, %v120
    %v136 = vpack.c.b16 %v123, %v122
    %v137 = vpack.c.b16 %v125, %v124
    %v138 = vpack.c.b16 %v127, %v126
    %v139 = vpack.c.b16 %v129, %v128
    %v140 = vpack.c.b16 %v131, %v130
    %v141 = vpack.c.b16 %v133, %v132
    %150 = vmatprep.subr.bf16.mxu0 0
    %151 = vmatpush1.bf16.msra.mxu0 %v134
    %152 = vmatprep.subr.bf16.mxu0 0
    %153 = vmatpush1.bf16.msra.mxu0 %v135
    %154 = vmatprep.subr.bf16.mxu0 0
    %155 = vmatpush1.bf16.msra.mxu0 %v136
    %156 = vmatprep.subr.bf16.mxu0 0
    %157 = vmatpush1.bf16.msra.mxu0 %v137
    %158 = vmatprep.subr.bf16.mxu0 0
    %159 = vmatpush1.bf16.msra.mxu0 %v138
    %160 = vmatprep.subr.bf16.mxu0 0
    %161 = vmatpush1.bf16.msra.mxu0 %v139
    %162 = vmatprep.subr.bf16.mxu0 0
    %163 = vmatpush1.bf16.msra.mxu0 %v140
    %164 = vmatprep.subr.bf16.mxu0 0
    %165 = vmatpush1.bf16.msra.mxu0 %v141
    %166 = vmatprep.subr.bf16.mxu0 0
    %167 = vmatpush1.bf16.msra.mxu0 0
    %168 = vmatprep.subr.bf16.mxu0 0
    %169 = vmatpush1.bf16.msra.mxu0 0
    %170 = vmatprep.subr.bf16.mxu0 0
    %171 = vmatpush1.bf16.msra.mxu0 0
    %172 = vmatprep.subr.bf16.mxu0 0
    %173 = vmatpush1.bf16.msra.mxu0 0
    %174 = vmatprep.subr.bf16.mxu0 0
    %175 = vmatpush1.bf16.msra.mxu0 0
    %176 = vmatprep.subr.bf16.mxu0 0
    %177 = vmatpush1.bf16.msra.mxu0 0
    %178 = vmatprep.subr.bf16.mxu0 0
    %179 = vmatpush1.bf16.msra.mxu0 0
    %180 = vmatprep.subr.bf16.mxu0 0
    %181 = vmatpush1.bf16.msra.mxu0 0
    %182 = vmatprep.mubr.bf16.mxu0 0
    %183 = vmatmul.mubr.bf16.gmra.mrb[0].mxu0 %v98
    %v184 = vpop.f32.mrb[0].mxu0
    %v185 = vadd.f32 0.0, %v184
    %v186 = vpop.f32.mrb[0].mxu0
    %v187 = vpop.f32.mrb[0].mxu0
    %v188 = vadd.f32 0.0, %v187
    %v189 = vpop.f32.mrb[0].mxu0
    %190 = vmatprep.mubr.bf16.mxu0 0
    %191 = vmatmul.mubr.bf16.gmra.mrb[0].mxu0 %v99
    %v192 = vpop.f32.mrb[0].mxu0
    %v193 = vadd.f32 0.0, %v192
    %v194 = vpop.f32.mrb[0].mxu0
    %v195 = vpop.f32.mrb[0].mxu0
    %v196 = vadd.f32 0.0, %v195
    %v197 = vpop.f32.mrb[0].mxu0
    %198 = vdwg.mxu0
    %v199 = vpack.c.bf16 %v188, %v185
    %v200 = vpack.c.bf16 %v196, %v193
    %v203 = vunpack.c.l.b16 %v199
    %v204 = vunpack.c.h.b16 %v199
    %v205 = vunpack.c.l.b16 %v200
    %v206 = vunpack.c.h.b16 %v200
    %v207 = vpack.c.b16 %v203, %v203
    %v208 = vpack.c.b16 %v204, %v204
    %v209 = vpack.c.b16 %v205, %v205
    %v210 = vpack.c.b16 %v206, %v206
    %215 = vst [vmem:[%s60] sm:$0xf] %v207
    %216 = vst [vmem:[%s60 + $0x4] sm:$0xf] %v208
    %217 = vst [vmem:[%s60 + $0x8] sm:$0xf] %v209
    %218 = vst [vmem:[%s60 + $0xc] sm:$0xf] %v210
    %v219 = vld [vmem:[#allocation2] sm:$0x1]
    %v220 = vadd.f32 %v185, %v188
    %v221 = vadd.f32 %v220, %v193
    %v222 = vadd.f32 %v221, %v196
    %v223 = vrot.slane %v222, 4
    %v224 = vadd.f32 %v222, %v223
    %v225 = vrot.slane %v224, 2
    %v226 = vadd.f32 %v224, %v225
    %v227 = vrot.slane %v226, 1
    %v228 = vadd.f32 %v226, %v227
    %v229 = vadd.f32 %v219, %v228
    %230 = vst [vmem:[#allocation2] sm:$0x1] %v229
    %v231 = vld [vmem:[#allocation3] sm:$0x1]
    %v232 = vmul.f32 %v185, %v185
    %v233 = vmul.f32 %v188, %v188
    %v234 = vmul.f32 %v193, %v193
    %v235 = vmul.f32 %v196, %v196
    %v236 = vadd.f32 %v232, %v233
    %v237 = vadd.f32 %v236, %v234
    %v238 = vadd.f32 %v237, %v235
    %v239 = vrot.slane %v238, 4
    %v240 = vadd.f32 %v238, %v239
    %v241 = vrot.slane %v240, 2
    %v242 = vadd.f32 %v240, %v241
    %v243 = vrot.slane %v242, 1
    %v244 = vadd.f32 %v242, %v243
    %v245 = vadd.f32 %v231, %v244
    %246 = vst [vmem:[#allocation3] sm:$0x1] %v245
    // Predicated region
    $region18: #{forward.9} parent=1 // pred_check
      %p247 = pneg %p64
    $region19: #{forward.9} parent=1 // pred_check_branch
      %249 = sbr.rel (%p247) target = $region21
    $region20: #{forward.9} parent=1 // pred_region
      %v250 = vld [vmem:[#allocation2] sm:$0x1]
      %251 = vst [vmem:[%s3] sm:$0x1] %v250
      %v252 = vld [vmem:[#allocation3] sm:$0x1]
      %253 = vst [vmem:[%s3 + $0x1] sm:$0x1] %v252
    $region21: #{forward.9} parent=1 // pred_fallthru
      _
    %s254 = sadd.s32 0, 0
    %s255 = smul.u32 4, %s254
    %p256 = scmp.lt.s32.totalorder %s255, 3
    %s257 = scalar_select %p256, %s255, 3
    %s258 = smul.addr %s257, 4
    %s259 = scalar_lea.vmem %s2, %s258
    // Predicated region
    $region22: #{forward.9} parent=1 // pred_check
      _
    $region23: #{forward.9} parent=1 // pred_check_branch
      %261 = sbr.rel (0) target = $region25
    $region24: #{forward.9} parent=1 // pred_region
      %s262 = sadd.s32 0, 0
      %s263 = smul.u32 4, %s262
    $region25: #{forward.9} parent=1 // pred_fallthru
      _
    // Predicated region
    $region26: #{forward.9} parent=1 // pred_check
      _
    $region27: #{forward.9} parent=1 // pred_check_branch
      %265 = sbr.rel (0) target = $region29
    $region28: #{forward.9} parent=1 // pred_region
      _
    $region29: #{forward.9} parent=1 // pred_fallthru
      _
    // Predicated region
    $region30: #{forward.9} parent=1 // pred_check
      _
    $region31: #{forward.9} parent=1 // pred_check_branch
      %267 = sbr.rel (0) target = $region33
    $region32: #{forward.9} parent=1 // pred_region
      %s268 = sadd.s32 0, 0
      %s269 = smul.u32 4, %s268
      %p270 = scmp.lt.s32.totalorder %s269, 3
      %s271 = scalar_select %p270, %s269, 3
      %s272 = smul.addr %s271, 4
      %s273 = scalar_lea.vmem %s2, %s272
    $region33: #{forward.9} parent=1 // pred_fallthru
      _
    // Predicated region
    $region34: #{forward.9} parent=1 // pred_check
      _
    $region35: #{forward.9} parent=1 // pred_check_branch
      %275 = sbr.rel (0) target = $region37
    $region36: #{forward.9} parent=1 // pred_region
      _
    $region37: #{forward.9} parent=1 // pred_fallthru
      _
    %276 = vsyncpa [#allocation5], 1

// kernel: squeeze.10
$region0: #{squeeze.10}
  %s0 = inlined_call_operand.vmem [shape: f32[128], index: 0, kind: input, shape index: {}]
  %s1 = inlined_call_operand.vmem [shape: f32[4,32], index: 1, kind: output, shape index: {}]
  $region1: #{squeeze.10} parent=0
    #allocation0 [shape = 'u8[4096]{0}', space=vmem, size = 0x1000, scoped, tag = 'scoped mem for output reshape']
    #allocation1 [shape = 'u8[4096]{0}', space=vmem, size = 0x1000, scoped, tag = 'scoped mem for input reshape']
    %s3 = sshllo.u32 0, 1
    %v4 = vld [vmem:[%s0] sm:%s3]
    %5 = vst [vmem:[#allocation1] sm:%s3] %v4
    %v6 = vld [vmem:[#allocation1] sm:$0x1]
    %vm7 = vcmask 261120
    %8 = vst.msk [vmem:[#allocation0] sm:$0x1] %vm7, %v6
    %v9 = vld [vmem:[#allocation1] sm:$0x1]
    %10 = vrot.lane.b32.xlu0 %v9, 96
    %v11 = vpop.permute.xlu0 %10
    %vm12 = vcmask 261120
    %s13 = scalar_lea.vmem [#allocation0], 1
    %14 = vst.msk [vmem:[%s13] sm:$0x1] %vm12, %v11
    %v15 = vld [vmem:[#allocation1] sm:$0x1]
    %16 = vrot.lane.b32.xlu0 %v15, 64
    %v17 = vpop.permute.xlu0 %16
    %vm18 = vcmask 261120
    %s19 = scalar_lea.vmem [#allocation0], 2
    %20 = vst.msk [vmem:[%s19] sm:$0x1] %vm18, %v17
    %v21 = vld [vmem:[#allocation1] sm:$0x1]
    %22 = vrot.lane.b32.xlu0 %v21, 32
    %v23 = vpop.permute.xlu0 %22
    %vm24 = vcmask 261120
    %s25 = scalar_lea.vmem [#allocation0], 3
    %26 = vst.msk [vmem:[%s25] sm:$0x1] %vm24, %v23
    %s28 = sshllo.u32 0, 4
    %v30 = vld [vmem:[#allocation0] sm:%s28]
    %s31 = sshllo.u32 0, 4
    %32 = vst [vmem:[%s1] sm:%s31] %v30

// kernel: tile.38
$region0: #{tile.38}
  #allocation0 [shape = 's32[1]{0}', space=sflag, size = 0x4, scoped, tag = 'scoped memory for tile.38']
  %s0 = inlined_call_operand.vmem [shape: f32[32], index: 0, kind: input, shape index: {}]
  %s1 = inlined_call_operand.vmem [shape: f32[4,32], index: 1, kind: output, shape index: {}]
  // Predicated region
  $region2: #{tile.38} parent=0 // pred_check
    _
  $region3: #{tile.38} parent=0 // pred_check_branch
    %3 = sbr.rel (0) target = $region5
  $region4: #{tile.38} parent=0 // pred_region
    _
  $region5: #{tile.38} parent=0 // pred_fallthru
    _
  %v4 = vld [vmem:[%s0] ss:$0 sm:$0xff]
  %5 = vst [vmem:[%s1] sm:$0xf] %v4

// kernel: forward.11
$region0: #{forward.11}
  #allocation0 [shape = 'u32[]', space=smem, size = 0x4, offset = 0x4, fixed_abs, tag = 'smem constant byte address 0x4 - core index']
  #allocation1 [shape = 'u32[144,128]{1,0:T(1,128)}', space=vmem, size = 0x12000, scoped, tag = 'internal scratch']
  #allocation2 [shape = 'f32[1,128]{1,0:T(1,128)}', space=vmem, size = 0x200, scoped, tag = 'scratch operand']
  #allocation3 [shape = 'f32[1,128]{1,0:T(1,128)}', space=vmem, size = 0x200, scoped, tag = 'scratch operand']
  %s0 = inlined_call_operand.vmem [shape: bf16[32,576], index: 0, kind: input, shape index: {}]
  %s1 = inlined_call_operand.hbm [shape: bf16[576,128], index: 1, kind: input, shape index: {}]
  %s2 = inlined_call_operand.vmem [shape: bf16[32,128], index: 2, kind: output, shape index: {0}]
  %s3 = inlined_call_operand.vmem [shape: f32[1,2,128], index: 3, kind: output, shape index: {1}]
  %4 = xla_tuple %s2, %s3
  %s5 = sld [smem:[#allocation0]]
  $region38: #{forward.11} parent=0
    _
  %s7 = ssub.s32 1, %s5
  %s8 = scalar_select 0, %s7, %s5
  $region1: #{forward.11} parent=0
    #allocation4 [shape = 'u8[147456]{0}', space=vmem, size = 0x24000, scoped, tag = 'input window, operand 1, single buffered']
    #allocation5 [shape = 's32[1]{0}', space=sflag, size = 0x4, scoped, tag = 'scoped memory for forward.11']
    %9 = vsyncpa [#allocation5], 0
    // Predicated region
    $region2: #{forward.11} parent=1 // pred_check
      _
    $region3: #{forward.11} parent=1 // pred_check_branch
      %11 = sbr.rel (0) target = $region5
    $region4: #{forward.11} parent=1 // pred_region
      %s12 = sadd.s32 0, 0
      %s13 = smul.u32 4, %s12
      %p14 = scmp.lt.s32.totalorder %s13, 3
      %s15 = scalar_select %p14, %s13, 3
      %s16 = smul.addr %s15, 5
      %s17 = smul.addr %s16, 4
      %s18 = scalar_lea.vmem %s0, %s17
      %s19 = sadd.s32 0, 0
      %s20 = smul.u32 4, %s19
    $region5: #{forward.11} parent=1 // pred_fallthru
      _
    // Predicated region
    $region6: #{forward.11} parent=1 // pred_check
      _
    $region7: #{forward.11} parent=1 // pred_check_branch
      %22 = sbr.rel (0) target = $region9
    $region8: #{forward.11} parent=1 // pred_region
      %s24 = ssub.s32 4608, 4608
      %25 = vsyncadd [#allocation5], %s24
      %s26 = sshll.u32 [#allocation4], 4
      %s27 = int_to_ptr.vmem [resolvable:$true] %s26
      %32 = dma.hbm_to_vmem [thread:$0]  %s1, 4608, %s27, [#allocation5], 64, 64, 4
    $region9: #{forward.11} parent=1 // pred_fallthru
      _
    // Predicated region
    $region10: #{forward.11} parent=1 // pred_check
      _
    $region11: #{forward.11} parent=1 // pred_check_branch
      %34 = sbr.rel (0) target = $region13
    $region12: #{forward.11} parent=1 // pred_region
      %35 = dma.done [#allocation5], 4608
    $region13: #{forward.11} parent=1 // pred_fallthru
      _
    %s36 = sadd.s32 0, 0
    %s37 = smul.u32 4, %s36
    %p38 = scmp.lt.s32.totalorder %s37, 3
    %s39 = scalar_select %p38, %s37, 3
    %s40 = smul.addr %s39, 5
    %s41 = smul.addr %s40, 4
    %s42 = scalar_lea.vmem %s0, %s41
    %s43 = sadd.s32 0, 0
    %s44 = smul.u32 4, %s43
    %p45 = scmp.lt.s32.totalorder %s44, 3
    %s46 = scalar_select %p45, %s44, 3
    %s47 = smul.addr %s46, 4
    %s48 = scalar_lea.vmem %s2, %s47
    %s49 = sadd.s32 0, 0
    %s50 = smul.u32 4, %s49
    %p51 = scmp.lt.s32.totalorder %s50, 3
    %s52 = scalar_select %p51, %s50, 3
    %s53 = smul.addr %s52, 5
    %s54 = smul.addr %s53, 4
    %s55 = scalar_lea.vmem %s0, %s54
    %s56 = sadd.s32 0, 0
    %s57 = smul.u32 4, %s56
    %s58 = sadd.s32 0, 0
    %s59 = smul.u32 4, %s58
    %p60 = scmp.lt.s32.totalorder %s59, 3
    %s61 = scalar_select %p60, %s59, 3
    %s62 = smul.addr %s61, 4
    %s63 = scalar_lea.vmem %s2, %s62
    %s64 = sadd.s32 0, 0
    %s65 = smul.u32 4, %s64
    %p67 = scmp.eq.s32.totalorder 0, 0
    // Predicated region
    $region14: #{forward.11} parent=1 // pred_check
      %p68 = pneg %p67
    $region15: #{forward.11} parent=1 // pred_check_branch
      %70 = sbr.rel (%p68) target = $region17
    $region16: #{forward.11} parent=1 // pred_region
      %71 = vst [vmem:[#allocation2] sm:$0x1] 0.0
      %72 = vst [vmem:[#allocation3] sm:$0x1] 0.0
    $region17: #{forward.11} parent=1 // pred_fallthru
      _
    %v73 = vld [vmem:[%s55] sm:$0xff]
    %v74 = vld [vmem:[%s55 + $0x8] sm:$0xff]
    %v75 = vld [vmem:[%s55 + $0x10] sm:$0xf]
    %v76 = vld [vmem:[%s55 + $0x14] sm:$0xff]
    %v77 = vld [vmem:[%s55 + $0x1c] sm:$0xff]
    %v78 = vld [vmem:[%s55 + $0x24] sm:$0xf]
    %v79 = vld [vmem:[%s55 + $0x28] sm:$0xff]
    %v80 = vld [vmem:[%s55 + $0x30] sm:$0xff]
    %v81 = vld [vmem:[%s55 + $0x38] sm:$0xf]
    %v82 = vld [vmem:[%s55 + $0x3c] sm:$0xff]
    %v83 = vld [vmem:[%s55 + $0x44] sm:$0xff]
    %v84 = vld [vmem:[%s55 + $0x4c] sm:$0xf]
    %v85 = vld [vmem:[#allocation4] sm:$0xf]
    %v86 = vld [vmem:[#allocation4 + $0x4] sm:$0xf]
    %v87 = vld [vmem:[#allocation4 + $0x8] sm:$0xf]
    %v88 = vld [vmem:[#allocation4 + $0xc] sm:$0xf]
    %v89 = vld [vmem:[#allocation4 + $0x10] sm:$0xf]
    %v90 = vld [vmem:[#allocation4 + $0x14] sm:$0xf]
    %v91 = vld [vmem:[#allocation4 + $0x18] sm:$0xf]
    %v92 = vld [vmem:[#allocation4 + $0x1c] sm:$0xf]
    %v93 = vld [vmem:[#allocation4 + $0x20] sm:$0xf]
    %v94 = vld [vmem:[#allocation4 + $0x24] sm:$0xf]
    %v95 = vld [vmem:[#allocation4 + $0x28] sm:$0xf]
    %v96 = vld [vmem:[#allocation4 + $0x2c] sm:$0xf]
    %v97 = vld [vmem:[#allocation4 + $0x30] sm:$0xf]
    %v98 = vld [vmem:[#allocation4 + $0x34] sm:$0xf]
    %v99 = vld [vmem:[#allocation4 + $0x38] sm:$0xf]
    %v100 = vld [vmem:[#allocation4 + $0x3c] sm:$0xf]
    %v101 = vld [vmem:[#allocation4 + $0x40] sm:$0xf]
    %v102 = vld [vmem:[#allocation4 + $0x44] sm:$0xf]
    %v103 = vld [vmem:[#allocation4 + $0x48] sm:$0xf]
    %v104 = vld [vmem:[#allocation4 + $0x4c] sm:$0xf]
    %v105 = vld [vmem:[#allocation4 + $0x50] sm:$0xf]
    %v106 = vld [vmem:[#allocation4 + $0x54] sm:$0xf]
    %v107 = vld [vmem:[#allocation4 + $0x58] sm:$0xf]
    %v108 = vld [vmem:[#allocation4 + $0x5c] sm:$0xf]
    %v109 = vld [vmem:[#allocation4 + $0x60] sm:$0xf]
    %v110 = vld [vmem:[#allocation4 + $0x64] sm:$0xf]
    %v111 = vld [vmem:[#allocation4 + $0x68] sm:$0xf]
    %v112 = vld [vmem:[#allocation4 + $0x6c] sm:$0xf]
    %v113 = vld [vmem:[#allocation4 + $0x70] sm:$0xf]
    %v114 = vld [vmem:[#allocation4 + $0x74] sm:$0xf]
    %v115 = vld [vmem:[#allocation4 + $0x78] sm:$0xf]
    %v116 = vld [vmem:[#allocation4 + $0x7c] sm:$0xf]
    %v117 = vld [vmem:[#allocation4 + $0x80] sm:$0xf]
    %v118 = vld [vmem:[#allocation4 + $0x84] sm:$0xf]
    %v119 = vld [vmem:[#allocation4 + $0x88] sm:$0xf]
    %v120 = vld [vmem:[#allocation4 + $0x8c] sm:$0xf]
    %v121 = vld [vmem:[#allocation4 + $0x90] sm:$0xf]
    %v122 = vld [vmem:[#allocation4 + $0x94] sm:$0xf]
    %v123 = vld [vmem:[#allocation4 + $0x98] sm:$0xf]
    %v124 = vld [vmem:[#allocation4 + $0x9c] sm:$0xf]
    %v125 = vld [vmem:[#allocation4 + $0xa0] sm:$0xf]
    %v126 = vld [vmem:[#allocation4 + $0xa4] sm:$0xf]
    %v127 = vld [vmem:[#allocation4 + $0xa8] sm:$0xf]
    %v128 = vld [vmem:[#allocation4 + $0xac] sm:$0xf]
    %v129 = vld [vmem:[#allocation4 + $0xb0] sm:$0xf]
    %v130 = vld [vmem:[#allocation4 + $0xb4] sm:$0xf]
    %v131 = vld [vmem:[#allocation4 + $0xb8] sm:$0xf]
    %v132 = vld [vmem:[#allocation4 + $0xbc] sm:$0xf]
    %v133 = vld [vmem:[#allocation4 + $0xc0] sm:$0xf]
    %v134 = vld [vmem:[#allocation4 + $0xc4] sm:$0xf]
    %v135 = vld [vmem:[#allocation4 + $0xc8] sm:$0xf]
    %v136 = vld [vmem:[#allocation4 + $0xcc] sm:$0xf]
    %v137 = vld [vmem:[#allocation4 + $0xd0] sm:$0xf]
    %v138 = vld [vmem:[#allocation4 + $0xd4] sm:$0xf]
    %v139 = vld [vmem:[#allocation4 + $0xd8] sm:$0xf]
    %v140 = vld [vmem:[#allocation4 + $0xdc] sm:$0xf]
    %v141 = vld [vmem:[#allocation4 + $0xe0] sm:$0xf]
    %v142 = vld [vmem:[#allocation4 + $0xe4] sm:$0xf]
    %v143 = vld [vmem:[#allocation4 + $0xe8] sm:$0xf]
    %v144 = vld [vmem:[#allocation4 + $0xec] sm:$0xf]
    %v145 = vld [vmem:[#allocation4 + $0xf0] sm:$0xf]
    %v146 = vld [vmem:[#allocation4 + $0xf4] sm:$0xf]
    %v147 = vld [vmem:[#allocation4 + $0xf8] sm:$0xf]
    %v148 = vld [vmem:[#allocation4 + $0xfc] sm:$0xf]
    %v149 = vld [vmem:[#allocation4 + $0x100] sm:$0xf]
    %v150 = vld [vmem:[#allocation4 + $0x104] sm:$0xf]
    %v151 = vld [vmem:[#allocation4 + $0x108] sm:$0xf]
    %v152 = vld [vmem:[#allocation4 + $0x10c] sm:$0xf]
    %v153 = vld [vmem:[#allocation4 + $0x110] sm:$0xf]
    %v154 = vld [vmem:[#allocation4 + $0x114] sm:$0xf]
    %v155 = vld [vmem:[#allocation4 + $0x118] sm:$0xf]
    %v156 = vld [vmem:[#allocation4 + $0x11c] sm:$0xf]
    %v169 = vunpack.c.l.b16 %v73
    %v170 = vunpack.c.h.b16 %v73
    %v171 = vunpack.c.l.b16 %v74
    %v172 = vunpack.c.h.b16 %v74
    %v173 = vunpack.c.l.b16 %v75
    %v174 = vunpack.c.l.b16 %v76
    %v175 = vunpack.c.h.b16 %v76
    %v176 = vunpack.c.l.b16 %v77
    %v177 = vunpack.c.h.b16 %v77
    %v178 = vunpack.c.l.b16 %v78
    %v179 = vunpack.c.l.b16 %v79
    %v180 = vunpack.c.h.b16 %v79
    %v181 = vunpack.c.l.b16 %v80
    %v182 = vunpack.c.h.b16 %v80
    %v183 = vunpack.c.l.b16 %v81
    %v184 = vunpack.c.l.b16 %v82
    %v185 = vunpack.c.h.b16 %v82
    %v186 = vunpack.c.l.b16 %v83
    %v187 = vunpack.c.h.b16 %v83
    %v188 = vunpack.c.l.b16 %v84
    %v189 = vpack.c.b16 %v174, %v169
    %v190 = vpack.c.b16 %v175, %v170
    %v191 = vpack.c.b16 %v176, %v171
    %v192 = vpack.c.b16 %v177, %v172
    %v193 = vpack.c.b16 %v178, %v173
    %v194 = vpack.c.b16 %v184, %v179
    %v195 = vpack.c.b16 %v185, %v180
    %v196 = vpack.c.b16 %v186, %v181
    %v197 = vpack.c.b16 %v187, %v182
    %v198 = vpack.c.b16 %v188, %v183
    %v279 = vunpack.c.l.b16 %v85
    %v280 = vunpack.c.l.b16 %v86
    %v281 = vunpack.c.l.b16 %v87
    %v282 = vunpack.c.l.b16 %v88
    %v283 = vunpack.c.l.b16 %v89
    %v284 = vunpack.c.l.b16 %v90
    %v285 = vunpack.c.l.b16 %v91
    %v286 = vunpack.c.l.b16 %v92
    %v287 = vunpack.c.l.b16 %v93
    %v288 = vunpack.c.l.b16 %v94
    %v289 = vunpack.c.l.b16 %v95
    %v290 = vunpack.c.l.b16 %v96
    %v291 = vunpack.c.l.b16 %v97
    %v292 = vunpack.c.l.b16 %v98
    %v293 = vunpack.c.l.b16 %v99
    %v294 = vunpack.c.l.b16 %v100
    %v295 = vunpack.c.l.b16 %v101
    %v296 = vunpack.c.l.b16 %v102
    %v297 = vunpack.c.l.b16 %v103
    %v298 = vunpack.c.l.b16 %v104
    %v299 = vunpack.c.l.b16 %v105
    %v300 = vunpack.c.l.b16 %v106
    %v301 = vunpack.c.l.b16 %v107
    %v302 = vunpack.c.l.b16 %v108
    %v303 = vunpack.c.l.b16 %v109
    %v304 = vunpack.c.l.b16 %v110
    %v305 = vunpack.c.l.b16 %v111
    %v306 = vunpack.c.l.b16 %v112
    %v307 = vunpack.c.l.b16 %v113
    %v308 = vunpack.c.l.b16 %v114
    %v309 = vunpack.c.l.b16 %v115
    %v310 = vunpack.c.l.b16 %v116
    %v311 = vunpack.c.l.b16 %v117
    %v312 = vunpack.c.l.b16 %v118
    %v313 = vunpack.c.l.b16 %v119
    %v314 = vunpack.c.l.b16 %v120
    %v315 = vunpack.c.l.b16 %v121
    %v316 = vunpack.c.l.b16 %v122
    %v317 = vunpack.c.l.b16 %v123
    %v318 = vunpack.c.l.b16 %v124
    %v319 = vunpack.c.l.b16 %v125
    %v320 = vunpack.c.l.b16 %v126
    %v321 = vunpack.c.l.b16 %v127
    %v322 = vunpack.c.l.b16 %v128
    %v323 = vunpack.c.l.b16 %v129
    %v324 = vunpack.c.l.b16 %v130
    %v325 = vunpack.c.l.b16 %v131
    %v326 = vunpack.c.l.b16 %v132
    %v327 = vunpack.c.l.b16 %v133
    %v328 = vunpack.c.l.b16 %v134
    %v329 = vunpack.c.l.b16 %v135
    %v330 = vunpack.c.l.b16 %v136
    %v331 = vunpack.c.l.b16 %v137
    %v332 = vunpack.c.l.b16 %v138
    %v333 = vunpack.c.l.b16 %v139
    %v334 = vunpack.c.l.b16 %v140
    %v335 = vunpack.c.l.b16 %v141
    %v336 = vunpack.c.l.b16 %v142
    %v337 = vunpack.c.l.b16 %v143
    %v338 = vunpack.c.l.b16 %v144
    %v339 = vunpack.c.l.b16 %v145
    %v340 = vunpack.c.l.b16 %v146
    %v341 = vunpack.c.l.b16 %v147
    %v342 = vunpack.c.l.b16 %v148
    %v343 = vunpack.c.l.b16 %v149
    %v344 = vunpack.c.l.b16 %v150
    %v345 = vunpack.c.l.b16 %v151
    %v346 = vunpack.c.l.b16 %v152
    %v347 = vunpack.c.l.b16 %v153
    %v348 = vunpack.c.l.b16 %v154
    %v349 = vunpack.c.l.b16 %v155
    %v350 = vunpack.c.l.b16 %v156
    %v351 = vpack.c.b16 %v280, %v279
    %v352 = vpack.c.b16 %v282, %v281
    %v353 = vpack.c.b16 %v284, %v283
    %v354 = vpack.c.b16 %v286, %v285
    %v355 = vpack.c.b16 %v288, %v287
    %v356 = vpack.c.b16 %v290, %v289
    %v357 = vpack.c.b16 %v292, %v291
    %v358 = vpack.c.b16 %v294, %v293
    %v359 = vpack.c.b16 %v296, %v295
    %v360 = vpack.c.b16 %v298, %v297
    %v361 = vpack.c.b16 %v300, %v299
    %v362 = vpack.c.b16 %v302, %v301
    %v363 = vpack.c.b16 %v304, %v303
    %v364 = vpack.c.b16 %v306, %v305
    %v365 = vpack.c.b16 %v308, %v307
    %v366 = vpack.c.b16 %v310, %v309
    %v367 = vpack.c.b16 %v312, %v311
    %v368 = vpack.c.b16 %v314, %v313
    %v369 = vpack.c.b16 %v316, %v315
    %v370 = vpack.c.b16 %v318, %v317
    %v371 = vpack.c.b16 %v320, %v319
    %v372 = vpack.c.b16 %v322, %v321
    %v373 = vpack.c.b16 %v324, %v323
    %v374 = vpack.c.b16 %v326, %v325
    %v375 = vpack.c.b16 %v328, %v327
    %v376 = vpack.c.b16 %v330, %v329
    %v377 = vpack.c.b16 %v332, %v331
    %v378 = vpack.c.b16 %v334, %v333
    %v379 = vpack.c.b16 %v336, %v335
    %v380 = vpack.c.b16 %v338, %v337
    %v381 = vpack.c.b16 %v340, %v339
    %v382 = vpack.c.b16 %v342, %v341
    %v383 = vpack.c.b16 %v344, %v343
    %v384 = vpack.c.b16 %v346, %v345
    %v385 = vpack.c.b16 %v348, %v347
    %v386 = vpack.c.b16 %v350, %v349
    %vm423 = vcmask 523264
    %v425 = vsel %vm423, %v193, 0
    %v428 = vsel %vm423, %v198, 0
    %430 = vmatprep.subr.bf16.mxu0 0
    %431 = vmatpush1.bf16.msra.mxu0 %v351
    %432 = vmatprep.subr.bf16.mxu0 0
    %433 = vmatpush1.bf16.msra.mxu0 %v352
    %434 = vmatprep.subr.bf16.mxu0 0
    %435 = vmatpush1.bf16.msra.mxu0 %v353
    %436 = vmatprep.subr.bf16.mxu0 0
    %437 = vmatpush1.bf16.msra.mxu0 %v354
    %438 = vmatprep.subr.bf16.mxu0 0
    %439 = vmatpush1.bf16.msra.mxu0 %v355
    %440 = vmatprep.subr.bf16.mxu0 0
    %441 = vmatpush1.bf16.msra.mxu0 %v356
    %442 = vmatprep.subr.bf16.mxu0 0
    %443 = vmatpush1.bf16.msra.mxu0 %v357
    %444 = vmatprep.subr.bf16.mxu0 0
    %445 = vmatpush1.bf16.msra.mxu0 %v358
    %446 = vmatprep.subr.bf16.mxu0 0
    %447 = vmatpush1.bf16.msra.mxu0 %v359
    %448 = vmatprep.subr.bf16.mxu0 0
    %449 = vmatpush1.bf16.msra.mxu0 %v360
    %450 = vmatprep.subr.bf16.mxu0 0
    %451 = vmatpush1.bf16.msra.mxu0 %v361
    %452 = vmatprep.subr.bf16.mxu0 0
    %453 = vmatpush1.bf16.msra.mxu0 %v362
    %454 = vmatprep.subr.bf16.mxu0 0
    %455 = vmatpush1.bf16.msra.mxu0 %v363
    %456 = vmatprep.subr.bf16.mxu0 0
    %457 = vmatpush1.bf16.msra.mxu0 %v364
    %458 = vmatprep.subr.bf16.mxu0 0
    %459 = vmatpush1.bf16.msra.mxu0 %v365
    %460 = vmatprep.subr.bf16.mxu0 0
    %461 = vmatpush1.bf16.msra.mxu0 %v366
    %462 = vmatprep.mubr.bf16.mxu0 %v190
    %463 = vmatmul.mubr.bf16.gmra.mrb[0].mxu0 %v189
    %v464 = vpop.f32.mrb[0].mxu0
    %v465 = vadd.f32 0.0, %v464
    %v466 = vpop.f32.mrb[0].mxu0
    %v467 = vpop.f32.mrb[0].mxu0
    %v468 = vadd.f32 0.0, %v467
    %v469 = vpop.f32.mrb[0].mxu0
    %470 = vmatprep.mubr.bf16.mxu0 %v195
    %471 = vmatmul.mubr.bf16.gmra.mrb[0].mxu0 %v194
    %v472 = vpop.f32.mrb[0].mxu0
    %v473 = vadd.f32 0.0, %v472
    %v474 = vpop.f32.mrb[0].mxu0
    %v475 = vpop.f32.mrb[0].mxu0
    %v476 = vadd.f32 0.0, %v475
    %v477 = vpop.f32.mrb[0].mxu0
    %478 = vdwg.mxu0
    %479 = vmatprep.subr.bf16.mxu0 0
    %480 = vmatpush1.bf16.msra.mxu0 %v367
    %481 = vmatprep.subr.bf16.mxu0 0
    %482 = vmatpush1.bf16.msra.mxu0 %v368
    %483 = vmatprep.subr.bf16.mxu0 0
    %484 = vmatpush1.bf16.msra.mxu0 %v369
    %485 = vmatprep.subr.bf16.mxu0 0
    %486 = vmatpush1.bf16.msra.mxu0 %v370
    %487 = vmatprep.subr.bf16.mxu0 0
    %488 = vmatpush1.bf16.msra.mxu0 %v371
    %489 = vmatprep.subr.bf16.mxu0 0
    %490 = vmatpush1.bf16.msra.mxu0 %v372
    %491 = vmatprep.subr.bf16.mxu0 0
    %492 = vmatpush1.bf16.msra.mxu0 %v373
    %493 = vmatprep.subr.bf16.mxu0 0
    %494 = vmatpush1.bf16.msra.mxu0 %v374
    %495 = vmatprep.subr.bf16.mxu0 0
    %496 = vmatpush1.bf16.msra.mxu0 %v375
    %497 = vmatprep.subr.bf16.mxu0 0
    %498 = vmatpush1.bf16.msra.mxu0 %v376
    %499 = vmatprep.subr.bf16.mxu0 0
    %500 = vmatpush1.bf16.msra.mxu0 %v377
    %501 = vmatprep.subr.bf16.mxu0 0
    %502 = vmatpush1.bf16.msra.mxu0 %v378
    %503 = vmatprep.subr.bf16.mxu0 0
    %504 = vmatpush1.bf16.msra.mxu0 %v379
    %505 = vmatprep.subr.bf16.mxu0 0
    %506 = vmatpush1.bf16.msra.mxu0 %v380
    %507 = vmatprep.subr.bf16.mxu0 0
    %508 = vmatpush1.bf16.msra.mxu0 %v381
    %509 = vmatprep.subr.bf16.mxu0 0
    %510 = vmatpush1.bf16.msra.mxu0 %v382
    %511 = vmatprep.mubr.bf16.mxu0 %v192
    %512 = vmatmul.mubr.bf16.gmra.mrb[0].mxu0 %v191
    %v513 = vpop.f32.mrb[0].mxu0
    %v514 = vadd.f32 %v465, %v513
    %v515 = vpop.f32.mrb[0].mxu0
    %v516 = vpop.f32.mrb[0].mxu0
    %v517 = vadd.f32 %v468, %v516
    %v518 = vpop.f32.mrb[0].mxu0
    %519 = vmatprep.mubr.bf16.mxu0 %v197
    %520 = vmatmul.mubr.bf16.gmra.mrb[0].mxu0 %v196
    %v521 = vpop.f32.mrb[0].mxu0
    %v522 = vadd.f32 %v473, %v521
    %v523 = vpop.f32.mrb[0].mxu0
    %v524 = vpop.f32.mrb[0].mxu0
    %v525 = vadd.f32 %v476, %v524
    %v526 = vpop.f32.mrb[0].mxu0
    %527 = vdwg.mxu0
    %528 = vmatprep.subr.bf16.mxu0 0
    %529 = vmatpush1.bf16.msra.mxu0 %v383
    %530 = vmatprep.subr.bf16.mxu0 0
    %531 = vmatpush1.bf16.msra.mxu0 %v384
    %532 = vmatprep.subr.bf16.mxu0 0
    %533 = vmatpush1.bf16.msra.mxu0 %v385
    %534 = vmatprep.subr.bf16.mxu0 0
    %535 = vmatpush1.bf16.msra.mxu0 %v386
    %536 = vmatprep.subr.bf16.mxu0 0
    %537 = vmatpush1.bf16.msra.mxu0 0
    %538 = vmatprep.subr.bf16.mxu0 0
    %539 = vmatpush1.bf16.msra.mxu0 0
    %540 = vmatprep.subr.bf16.mxu0 0
    %541 = vmatpush1.bf16.msra.mxu0 0
    %542 = vmatprep.subr.bf16.mxu0 0
    %543 = vmatpush1.bf16.msra.mxu0 0
    %544 = vmatprep.subr.bf16.mxu0 0
    %545 = vmatpush1.bf16.msra.mxu0 0
    %546 = vmatprep.subr.bf16.mxu0 0
    %547 = vmatpush1.bf16.msra.mxu0 0
    %548 = vmatprep.subr.bf16.mxu0 0
    %549 = vmatpush1.bf16.msra.mxu0 0
    %550 = vmatprep.subr.bf16.mxu0 0
    %551 = vmatpush1.bf16.msra.mxu0 0
    %552 = vmatprep.subr.bf16.mxu0 0
    %553 = vmatpush1.bf16.msra.mxu0 0
    %554 = vmatprep.subr.bf16.mxu0 0
    %555 = vmatpush1.bf16.msra.mxu0 0
    %556 = vmatprep.subr.bf16.mxu0 0
    %557 = vmatpush1.bf16.msra.mxu0 0
    %558 = vmatprep.subr.bf16.mxu0 0
    %559 = vmatpush1.bf16.msra.mxu0 0
    %560 = vmatprep.mubr.bf16.mxu0 0
    %561 = vmatmul.mubr.bf16.gmra.mrb[0].mxu0 %v425
    %v562 = vpop.f32.mrb[0].mxu0
    %v563 = vadd.f32 %v514, %v562
    %v564 = vpop.f32.mrb[0].mxu0
    %v565 = vpop.f32.mrb[0].mxu0
    %v566 = vadd.f32 %v517, %v565
    %v567 = vpop.f32.mrb[0].mxu0
    %568 = vmatprep.mubr.bf16.mxu0 0
    %569 = vmatmul.mubr.bf16.gmra.mrb[0].mxu0 %v428
    %v570 = vpop.f32.mrb[0].mxu0
    %v571 = vadd.f32 %v522, %v570
    %v572 = vpop.f32.mrb[0].mxu0
    %v573 = vpop.f32.mrb[0].mxu0
    %v574 = vadd.f32 %v525, %v573
    %v575 = vpop.f32.mrb[0].mxu0
    %576 = vdwg.mxu0
    %v577 = vpack.c.bf16 %v566, %v563
    %v578 = vpack.c.bf16 %v574, %v571
    %v581 = vunpack.c.l.b16 %v577
    %v582 = vunpack.c.h.b16 %v577
    %v583 = vunpack.c.l.b16 %v578
    %v584 = vunpack.c.h.b16 %v578
    %v585 = vpack.c.b16 %v581, %v581
    %v586 = vpack.c.b16 %v582, %v582
    %v587 = vpack.c.b16 %v583, %v583
    %v588 = vpack.c.b16 %v584, %v584
    %593 = vst [vmem:[%s63] sm:$0xf] %v585
    %594 = vst [vmem:[%s63 + $0x4] sm:$0xf] %v586
    %595 = vst [vmem:[%s63 + $0x8] sm:$0xf] %v587
    %596 = vst [vmem:[%s63 + $0xc] sm:$0xf] %v588
    %v597 = vld [vmem:[#allocation2] sm:$0x1]
    %v598 = vadd.f32 %v563, %v566
    %v599 = vadd.f32 %v598, %v571
    %v600 = vadd.f32 %v599, %v574
    %v601 = vrot.slane %v600, 4
    %v602 = vadd.f32 %v600, %v601
    %v603 = vrot.slane %v602, 2
    %v604 = vadd.f32 %v602, %v603
    %v605 = vrot.slane %v604, 1
    %v606 = vadd.f32 %v604, %v605
    %v607 = vadd.f32 %v597, %v606
    %608 = vst [vmem:[#allocation2] sm:$0x1] %v607
    %v609 = vld [vmem:[#allocation3] sm:$0x1]
    %v610 = vmul.f32 %v563, %v563
    %v611 = vmul.f32 %v566, %v566
    %v612 = vmul.f32 %v571, %v571
    %v613 = vmul.f32 %v574, %v574
    %v614 = vadd.f32 %v610, %v611
    %v615 = vadd.f32 %v614, %v612
    %v616 = vadd.f32 %v615, %v613
    %v617 = vrot.slane %v616, 4
    %v618 = vadd.f32 %v616, %v617
    %v619 = vrot.slane %v618, 2
    %v620 = vadd.f32 %v618, %v619
    %v621 = vrot.slane %v620, 1
    %v622 = vadd.f32 %v620, %v621
    %v623 = vadd.f32 %v609, %v622
    %624 = vst [vmem:[#allocation3] sm:$0x1] %v623
    // Predicated region
    $region18: #{forward.11} parent=1 // pred_check
      %p625 = pneg %p67
    $region19: #{forward.11} parent=1 // pred_check_branch
      %627 = sbr.rel (%p625) target = $region21
    $region20: #{forward.11} parent=1 // pred_region
      %v628 = vld [vmem:[#allocation2] sm:$0x1]
      %629 = vst [vmem:[%s3] sm:$0x1] %v628
      %v630 = vld [vmem:[#allocation3] sm:$0x1]
      %631 = vst [vmem:[%s3 + $0x1] sm:$0x1] %v630
    $region21: #{forward.11} parent=1 // pred_fallthru
      _
    %s632 = sadd.s32 0, 0
    %s633 = smul.u32 4, %s632
    %p634 = scmp.lt.s32.totalorder %s633, 3
    %s635 = scalar_select %p634, %s633, 3
    %s636 = smul.addr %s635, 4
    %s637 = scalar_lea.vmem %s2, %s636
    // Predicated region
    $region22: #{forward.11} parent=1 // pred_check
      _
    $region23: #{forward.11} parent=1 // pred_check_branch
      %639 = sbr.rel (0) target = $region25
    $region24: #{forward.11} parent=1 // pred_region
      %s640 = sadd.s32 0, 0
      %s641 = smul.u32 4, %s640
    $region25: #{forward.11} parent=1 // pred_fallthru
      _
    // Predicated region
    $region26: #{forward.11} parent=1 // pred_check
      _
    $region27: #{forward.11} parent=1 // pred_check_branch
      %643 = sbr.rel (0) target = $region29
    $region28: #{forward.11} parent=1 // pred_region
      _
    $region29: #{forward.11} parent=1 // pred_fallthru
      _
    // Predicated region
    $region30: #{forward.11} parent=1 // pred_check
      _
    $region31: #{forward.11} parent=1 // pred_check_branch
      %645 = sbr.rel (0) target = $region33
    $region32: #{forward.11} parent=1 // pred_region
      %s646 = sadd.s32 0, 0
      %s647 = smul.u32 4, %s646
      %p648 = scmp.lt.s32.totalorder %s647, 3
      %s649 = scalar_select %p648, %s647, 3
      %s650 = smul.addr %s649, 4
      %s651 = scalar_lea.vmem %s2, %s650
    $region33: #{forward.11} parent=1 // pred_fallthru
      _
    // Predicated region
    $region34: #{forward.11} parent=1 // pred_check
      _
    $region35: #{forward.11} parent=1 // pred_check_branch
      %653 = sbr.rel (0) target = $region37
    $region36: #{forward.11} parent=1 // pred_region
      _
    $region37: #{forward.11} parent=1 // pred_fallthru
      _
    %654 = vsyncpa [#allocation5], 1

// kernel: squeeze.12
$region0: #{squeeze.12}
  %s0 = inlined_call_operand.vmem [shape: f32[64], index: 0, kind: input, shape index: {}]
  %s1 = inlined_call_operand.vmem [shape: f32[4,16], index: 1, kind: output, shape index: {}]
  $region1: #{squeeze.12} parent=0
    #allocation0 [shape = 'u8[4096]{0}', space=vmem, size = 0x1000, scoped, tag = 'scoped mem for output reshape']
    #allocation1 [shape = 'u8[4096]{0}', space=vmem, size = 0x1000, scoped, tag = 'scoped mem for input reshape']
    %s3 = sshllo.u32 0, 1
    %v4 = vld [vmem:[%s0] sm:%s3]
    %5 = vst [vmem:[#allocation1] sm:%s3] %v4
    %v6 = vld [vmem:[#allocation1] sm:$0x1]
    %vm7 = vcmask 130048
    %8 = vst.msk [vmem:[#allocation0] sm:$0x1] %vm7, %v6
    %v9 = vld [vmem:[#allocation1] sm:$0x1]
    %10 = vrot.lane.b32.xlu0 %v9, 112
    %v11 = vpop.permute.xlu0 %10
    %vm12 = vcmask 130048
    %s13 = scalar_lea.vmem [#allocation0], 1
    %14 = vst.msk [vmem:[%s13] sm:$0x1] %vm12, %v11
    %v15 = vld [vmem:[#allocation1] sm:$0x1]
    %16 = vrot.lane.b32.xlu0 %v15, 96
    %v17 = vpop.permute.xlu0 %16
    %vm18 = vcmask 130048
    %s19 = scalar_lea.vmem [#allocation0], 2
    %20 = vst.msk [vmem:[%s19] sm:$0x1] %vm18, %v17
    %v21 = vld [vmem:[#allocation1] sm:$0x1]
    %22 = vrot.lane.b32.xlu0 %v21, 80
    %v23 = vpop.permute.xlu0 %22
    %vm24 = vcmask 130048
    %s25 = scalar_lea.vmem [#allocation0], 3
    %26 = vst.msk [vmem:[%s25] sm:$0x1] %vm24, %v23
    %s28 = sshllo.u32 0, 4
    %v30 = vld [vmem:[#allocation0] sm:%s28]
    %s31 = sshllo.u32 0, 4
    %32 = vst [vmem:[%s1] sm:%s31] %v30

// kernel: tile.48
$region0: #{tile.48}
  #allocation0 [shape = 's32[1]{0}', space=sflag, size = 0x4, scoped, tag = 'scoped memory for tile.48']
  %s0 = inlined_call_operand.vmem [shape: f32[16], index: 0, kind: input, shape index: {}]
  %s1 = inlined_call_operand.vmem [shape: f32[4,16], index: 1, kind: output, shape index: {}]
  // Predicated region
  $region2: #{tile.48} parent=0 // pred_check
    _
  $region3: #{tile.48} parent=0 // pred_check_branch
    %3 = sbr.rel (0) target = $region5
  $region4: #{tile.48} parent=0 // pred_region
    _
  $region5: #{tile.48} parent=0 // pred_fallthru
    _
  %v4 = vld [vmem:[%s0] ss:$0 sm:$0xff]
  %5 = vst [vmem:[%s1] sm:$0xf] %v4

// kernel: tile.49
$region0: #{tile.49}
  %s0 = inlined_call_operand.vmem [shape: f32[4,16], index: 0, kind: input, shape index: {}]
  %s1 = inlined_call_operand.vmem [shape: f32[64], index: 1, kind: output, shape index: {}]
  $region1: #{tile.49} parent=0
    #allocation0 [shape = 'u8[4096]{0}', space=vmem, size = 0x1000, scoped, tag = 'scoped mem for output reshape']
    #allocation1 [shape = 'u8[4096]{0}', space=vmem, size = 0x1000, scoped, tag = 'scoped mem for input reshape']
    %s3 = sshllo.u32 0, 4
    %v4 = vld [vmem:[%s0] sm:%s3]
    %5 = vst [vmem:[#allocation1] sm:%s3] %v4
    %v6 = vld [vmem:[#allocation1] sm:$0x1]
    %vm7 = vcmask 130048
    %8 = vst.msk [vmem:[#allocation0] sm:$0x1] %vm7, %v6
    %s9 = scalar_lea.vmem [#allocation1], 3
    %v10 = vld [vmem:[%s9] sm:$0x1]
    %11 = vrot.lane.b32.xlu0 %v10, 48
    %v12 = vpop.permute.xlu0 %11
    %vm13 = vcmask 523648
    %14 = vst.msk [vmem:[#allocation0] sm:$0x1] %vm13, %v12
    %s15 = scalar_lea.vmem [#allocation1], 2
    %v16 = vld [vmem:[%s15] sm:$0x1]
    %17 = vrot.lane.b32.xlu0 %v16, 32
    %v18 = vpop.permute.xlu0 %17
    %vm19 = vcmask 392448
    %20 = vst.msk [vmem:[#allocation0] sm:$0x1] %vm19, %v18
    %s21 = scalar_lea.vmem [#allocation1], 1
    %v22 = vld [vmem:[%s21] sm:$0x1]
    %23 = vrot.lane.b32.xlu0 %v22, 16
    %v24 = vpop.permute.xlu0 %23
    %vm25 = vcmask 261248
    %26 = vst.msk [vmem:[#allocation0] sm:$0x1] %vm25, %v24
    %s28 = sshllo.u32 0, 1
    %v30 = vld [vmem:[#allocation0] sm:%s28]
    %s31 = sshllo.u32 0, 1
    %32 = vst [vmem:[%s1] sm:%s31] %v30

// kernel: forward.14
$region0: #{forward.14}
  #allocation0 [shape = 'u32[]', space=smem, size = 0x4, offset = 0x4, fixed_abs, tag = 'smem constant byte address 0x4 - core index']
  #allocation1 [shape = 'u32[144,128]{1,0:T(1,128)}', space=vmem, size = 0x12000, scoped, tag = 'internal scratch']
  %s0 = inlined_call_operand.vmem [shape: bf16[128,128], index: 0, kind: input, shape index: {}]
  %s1 = inlined_call_operand.vmem [shape: f32[1,128], index: 1, kind: input, shape index: {}]
  %s2 = inlined_call_operand.vmem [shape: f32[1,128], index: 2, kind: input, shape index: {}]
  %s3 = inlined_call_operand.vmem [shape: bf16[128,128], index: 3, kind: output, shape index: {}]
  %s4 = sld [smem:[#allocation0]]
  $region22: #{forward.14} parent=0
    _
  %s6 = ssub.s32 1, %s4
  %s7 = scalar_select 0, %s6, %s4
  // Predicated region
  $region2: #{forward.14} parent=0 // pred_check
    _
  $region3: #{forward.14} parent=0 // pred_check_branch
    %9 = sbr.rel (0) target = $region5
  $region4: #{forward.14} parent=0 // pred_region
    _
  $region5: #{forward.14} parent=0 // pred_fallthru
    _
  // Predicated region
  $region6: #{forward.14} parent=0 // pred_check
    _
  $region7: #{forward.14} parent=0 // pred_check_branch
    %11 = sbr.rel (0) target = $region9
  $region8: #{forward.14} parent=0 // pred_region
    _
  $region9: #{forward.14} parent=0 // pred_fallthru
    _
  // Predicated region
  $region10: #{forward.14} parent=0 // pred_check
    _
  $region11: #{forward.14} parent=0 // pred_check_branch
    %13 = sbr.rel (0) target = $region13
  $region12: #{forward.14} parent=0 // pred_region
    _
  $region13: #{forward.14} parent=0 // pred_fallthru
    _
  %v14 = vld [vmem:[%s0] sm:$0xf]
  %v15 = vld [vmem:[%s0 + $0x4] sm:$0xf]
  %v16 = vld [vmem:[%s0 + $0x8] sm:$0xf]
  %v17 = vld [vmem:[%s0 + $0xc] sm:$0xf]
  %v18 = vld [vmem:[%s0 + $0x10] sm:$0xf]
  %v19 = vld [vmem:[%s0 + $0x14] sm:$0xf]
  %v20 = vld [vmem:[%s0 + $0x18] sm:$0xf]
  %v21 = vld [vmem:[%s0 + $0x1c] sm:$0xf]
  %v22 = vld [vmem:[%s0 + $0x20] sm:$0xf]
  %v23 = vld [vmem:[%s0 + $0x24] sm:$0xf]
  %v24 = vld [vmem:[%s0 + $0x28] sm:$0xf]
  %v25 = vld [vmem:[%s0 + $0x2c] sm:$0xf]
  %v26 = vld [vmem:[%s0 + $0x30] sm:$0xf]
  %v27 = vld [vmem:[%s0 + $0x34] sm:$0xf]
  %v28 = vld [vmem:[%s0 + $0x38] sm:$0xf]
  %v29 = vld [vmem:[%s0 + $0x3c] sm:$0xf]
  %v30 = vunpack.c.l.bf16 %v14
  %v31 = vunpack.c.l.bf16 %v15
  %v32 = vunpack.c.l.bf16 %v16
  %v33 = vunpack.c.l.bf16 %v17
  %v34 = vunpack.c.l.bf16 %v18
  %v35 = vunpack.c.l.bf16 %v19
  %v36 = vunpack.c.l.bf16 %v20
  %v37 = vunpack.c.l.bf16 %v21
  %v38 = vunpack.c.l.bf16 %v22
  %v39 = vunpack.c.l.bf16 %v23
  %v40 = vunpack.c.l.bf16 %v24
  %v41 = vunpack.c.l.bf16 %v25
  %v42 = vunpack.c.l.bf16 %v26
  %v43 = vunpack.c.l.bf16 %v27
  %v44 = vunpack.c.l.bf16 %v28
  %v45 = vunpack.c.l.bf16 %v29
  %v46 = vld [vmem:[%s1] sm:$0x1]
  %v48 = vlaneseq
  %v49 = vshrl.u32 %v48, 7
  %v50 = vsub.s32 0, %v49
  %v51 = vrot.slane %v46, %v50
  %v53 = vmul.f32 %v30, %v51
  %v54 = vmul.f32 %v31, %v51
  %v55 = vmul.f32 %v32, %v51
  %v56 = vmul.f32 %v33, %v51
  %v57 = vmul.f32 %v34, %v51
  %v58 = vmul.f32 %v35, %v51
  %v59 = vmul.f32 %v36, %v51
  %v60 = vmul.f32 %v37, %v51
  %v61 = vmul.f32 %v38, %v51
  %v62 = vmul.f32 %v39, %v51
  %v63 = vmul.f32 %v40, %v51
  %v64 = vmul.f32 %v41, %v51
  %v65 = vmul.f32 %v42, %v51
  %v66 = vmul.f32 %v43, %v51
  %v67 = vmul.f32 %v44, %v51
  %v68 = vmul.f32 %v45, %v51
  %v69 = vld [vmem:[%s2] sm:$0x1]
  %v71 = vlaneseq
  %v72 = vshrl.u32 %v71, 7
  %v73 = vsub.s32 0, %v72
  %v74 = vrot.slane %v69, %v73
  %v76 = vadd.f32 %v53, %v74
  %v77 = vadd.f32 %v54, %v74
  %v78 = vadd.f32 %v55, %v74
  %v79 = vadd.f32 %v56, %v74
  %v80 = vadd.f32 %v57, %v74
  %v81 = vadd.f32 %v58, %v74
  %v82 = vadd.f32 %v59, %v74
  %v83 = vadd.f32 %v60, %v74
  %v84 = vadd.f32 %v61, %v74
  %v85 = vadd.f32 %v62, %v74
  %v86 = vadd.f32 %v63, %v74
  %v87 = vadd.f32 %v64, %v74
  %v88 = vadd.f32 %v65, %v74
  %v89 = vadd.f32 %v66, %v74
  %v90 = vadd.f32 %v67, %v74
  %v91 = vadd.f32 %v68, %v74
  %v92 = vmax.f32 %v76, 0.0
  %v93 = vmax.f32 %v77, 0.0
  %v94 = vmax.f32 %v78, 0.0
  %v95 = vmax.f32 %v79, 0.0
  %v96 = vmax.f32 %v80, 0.0
  %v97 = vmax.f32 %v81, 0.0
  %v98 = vmax.f32 %v82, 0.0
  %v99 = vmax.f32 %v83, 0.0
  %v100 = vmax.f32 %v84, 0.0
  %v101 = vmax.f32 %v85, 0.0
  %v102 = vmax.f32 %v86, 0.0
  %v103 = vmax.f32 %v87, 0.0
  %v104 = vmax.f32 %v88, 0.0
  %v105 = vmax.f32 %v89, 0.0
  %v106 = vmax.f32 %v90, 0.0
  %v107 = vmax.f32 %v91, 0.0
  %v108 = vpack.c.bf16 %v93, %v92
  %v109 = vpack.c.bf16 %v95, %v94
  %v110 = vpack.c.bf16 %v97, %v96
  %v111 = vpack.c.bf16 %v99, %v98
  %v112 = vpack.c.bf16 %v101, %v100
  %v113 = vpack.c.bf16 %v103, %v102
  %v114 = vpack.c.bf16 %v105, %v104
  %v115 = vpack.c.bf16 %v107, %v106
  %v124 = vunpack.c.l.b16 %v108
  %v125 = vunpack.c.h.b16 %v108
  %v126 = vunpack.c.l.b16 %v109
  %v127 = vunpack.c.h.b16 %v109
  %v128 = vunpack.c.l.b16 %v110
  %v129 = vunpack.c.h.b16 %v110
  %v130 = vunpack.c.l.b16 %v111
  %v131 = vunpack.c.h.b16 %v111
  %v132 = vunpack.c.l.b16 %v112
  %v133 = vunpack.c.h.b16 %v112
  %v134 = vunpack.c.l.b16 %v113
  %v135 = vunpack.c.h.b16 %v113
  %v136 = vunpack.c.l.b16 %v114
  %v137 = vunpack.c.h.b16 %v114
  %v138 = vunpack.c.l.b16 %v115
  %v139 = vunpack.c.h.b16 %v115
  %v140 = vpack.c.b16 %v124, %v124
  %v141 = vpack.c.b16 %v125, %v125
  %v142 = vpack.c.b16 %v126, %v126
  %v143 = vpack.c.b16 %v127, %v127
  %v144 = vpack.c.b16 %v128, %v128
  %v145 = vpack.c.b16 %v129, %v129
  %v146 = vpack.c.b16 %v130, %v130
  %v147 = vpack.c.b16 %v131, %v131
  %v148 = vpack.c.b16 %v132, %v132
  %v149 = vpack.c.b16 %v133, %v133
  %v150 = vpack.c.b16 %v134, %v134
  %v151 = vpack.c.b16 %v135, %v135
  %v152 = vpack.c.b16 %v136, %v136
  %v153 = vpack.c.b16 %v137, %v137
  %v154 = vpack.c.b16 %v138, %v138
  %v155 = vpack.c.b16 %v139, %v139
  %172 = vst [vmem:[%s3] sm:$0xf] %v140
  %173 = vst [vmem:[%s3 + $0x4] sm:$0xf] %v141
  %174 = vst [vmem:[%s3 + $0x8] sm:$0xf] %v142
  %175 = vst [vmem:[%s3 + $0xc] sm:$0xf] %v143
  %176 = vst [vmem:[%s3 + $0x10] sm:$0xf] %v144
  %177 = vst [vmem:[%s3 + $0x14] sm:$0xf] %v145
  %178 = vst [vmem:[%s3 + $0x18] sm:$0xf] %v146
  %179 = vst [vmem:[%s3 + $0x1c] sm:$0xf] %v147
  %180 = vst [vmem:[%s3 + $0x20] sm:$0xf] %v148
  %181 = vst [vmem:[%s3 + $0x24] sm:$0xf] %v149
  %182 = vst [vmem:[%s3 + $0x28] sm:$0xf] %v150
  %183 = vst [vmem:[%s3 + $0x2c] sm:$0xf] %v151
  %184 = vst [vmem:[%s3 + $0x30] sm:$0xf] %v152
  %185 = vst [vmem:[%s3 + $0x34] sm:$0xf] %v153
  %186 = vst [vmem:[%s3 + $0x38] sm:$0xf] %v154
  %187 = vst [vmem:[%s3 + $0x3c] sm:$0xf] %v155
  // Predicated region
  $region14: #{forward.14} parent=0 // pred_check
    _
  $region15: #{forward.14} parent=0 // pred_check_branch
    %189 = sbr.rel (0) target = $region17
  $region16: #{forward.14} parent=0 // pred_region
    _
  $region17: #{forward.14} parent=0 // pred_fallthru
    _
  // Predicated region
  $region18: #{forward.14} parent=0 // pred_check
    _
  $region19: #{forward.14} parent=0 // pred_check_branch
    %191 = sbr.rel (0) target = $region21
  $region20: #{forward.14} parent=0 // pred_region
    _
  $region21: #{forward.14} parent=0 // pred_fallthru
    _

// kernel: forward.13
$region0: #{forward.13}
  #allocation0 [shape = 'u32[]', space=smem, size = 0x4, offset = 0x4, fixed_abs, tag = 'smem constant byte address 0x4 - core index']
  #allocation1 [shape = 'u32[144,128]{1,0:T(1,128)}', space=vmem, size = 0x12000, scoped, tag = 'internal scratch']
  #allocation2 [shape = 'f32[1,128]{1,0:T(1,128)}', space=vmem, size = 0x200, scoped, tag = 'scratch operand']
  #allocation3 [shape = 'f32[1,128]{1,0:T(1,128)}', space=vmem, size = 0x200, scoped, tag = 'scratch operand']
  %s0 = inlined_call_operand.vmem [shape: bf16[128,288], index: 0, kind: input, shape index: {}]
  %s1 = inlined_call_operand.hbm [shape: bf16[288,128], index: 1, kind: input, shape index: {}]
  %s2 = inlined_call_operand.vmem [shape: bf16[128,128], index: 2, kind: output, shape index: {0}]
  %s3 = inlined_call_operand.vmem [shape: f32[1,2,128], index: 3, kind: output, shape index: {1}]
  %4 = xla_tuple %s2, %s3
  %s5 = sld [smem:[#allocation0]]
  $region38: #{forward.13} parent=0
    _
  %s7 = ssub.s32 1, %s5
  %s8 = scalar_select 0, %s7, %s5
  $region1: #{forward.13} parent=0
    #allocation4 [shape = 'u8[73728]{0}', space=vmem, size = 0x12000, scoped, tag = 'input window, operand 1, single buffered']
    #allocation5 [shape = 's32[1]{0}', space=sflag, size = 0x4, scoped, tag = 'scoped memory for forward.13']
    %9 = vsyncpa [#allocation5], 0
    // Predicated region
    $region2: #{forward.13} parent=1 // pred_check
      _
    $region3: #{forward.13} parent=1 // pred_check_branch
      %11 = sbr.rel (0) target = $region5
    $region4: #{forward.13} parent=1 // pred_region
      %s12 = sadd.s32 0, 0
      %s13 = smul.u32 16, %s12
      %p14 = scmp.lt.s32.totalorder %s13, 15
      %s15 = scalar_select %p14, %s13, 15
      %s16 = smul.addr %s15, 3
      %s17 = smul.addr %s16, 4
      %s18 = scalar_lea.vmem %s0, %s17
      %s19 = sadd.s32 0, 0
      %s20 = smul.u32 16, %s19
    $region5: #{forward.13} parent=1 // pred_fallthru
      _
    // Predicated region
    $region6: #{forward.13} parent=1 // pred_check
      _
    $region7: #{forward.13} parent=1 // pred_check_branch
      %22 = sbr.rel (0) target = $region9
    $region8: #{forward.13} parent=1 // pred_region
      %s24 = ssub.s32 2304, 2304
      %25 = vsyncadd [#allocation5], %s24
      %s26 = sshll.u32 [#allocation4], 4
      %s27 = int_to_ptr.vmem [resolvable:$true] %s26
      %32 = dma.hbm_to_vmem [thread:$0]  %s1, 2304, %s27, [#allocation5], 64, 64, 4
    $region9: #{forward.13} parent=1 // pred_fallthru
      _
    // Predicated region
    $region10: #{forward.13} parent=1 // pred_check
      _
    $region11: #{forward.13} parent=1 // pred_check_branch
      %34 = sbr.rel (0) target = $region13
    $region12: #{forward.13} parent=1 // pred_region
      %35 = dma.done [#allocation5], 2304
    $region13: #{forward.13} parent=1 // pred_fallthru
      _
    %s36 = sadd.s32 0, 0
    %s37 = smul.u32 16, %s36
    %p38 = scmp.lt.s32.totalorder %s37, 15
    %s39 = scalar_select %p38, %s37, 15
    %s40 = smul.addr %s39, 3
    %s41 = smul.addr %s40, 4
    %s42 = scalar_lea.vmem %s0, %s41
    %s43 = sadd.s32 0, 0
    %s44 = smul.u32 16, %s43
    %p45 = scmp.lt.s32.totalorder %s44, 15
    %s46 = scalar_select %p45, %s44, 15
    %s47 = smul.addr %s46, 4
    %s48 = scalar_lea.vmem %s2, %s47
    %s49 = sadd.s32 0, 0
    %s50 = smul.u32 16, %s49
    %p51 = scmp.lt.s32.totalorder %s50, 15
    %s52 = scalar_select %p51, %s50, 15
    %s53 = smul.addr %s52, 3
    %s54 = smul.addr %s53, 4
    %s55 = scalar_lea.vmem %s0, %s54
    %s56 = sadd.s32 0, 0
    %s57 = smul.u32 16, %s56
    %s58 = sadd.s32 0, 0
    %s59 = smul.u32 16, %s58
    %p60 = scmp.lt.s32.totalorder %s59, 15
    %s61 = scalar_select %p60, %s59, 15
    %s62 = smul.addr %s61, 4
    %s63 = scalar_lea.vmem %s2, %s62
    %s64 = sadd.s32 0, 0
    %s65 = smul.u32 16, %s64
    %p67 = scmp.eq.s32.totalorder 0, 0
    // Predicated region
    $region14: #{forward.13} parent=1 // pred_check
      %p68 = pneg %p67
    $region15: #{forward.13} parent=1 // pred_check_branch
      %70 = sbr.rel (%p68) target = $region17
    $region16: #{forward.13} parent=1 // pred_region
      %71 = vst [vmem:[#allocation2] sm:$0x1] 0.0
      %72 = vst [vmem:[#allocation3] sm:$0x1] 0.0
    $region17: #{forward.13} parent=1 // pred_fallthru
      _
    %v73 = vld [vmem:[%s55] sm:$0xff]
    %v74 = vld [vmem:[%s55 + $0x8] sm:$0xf]
    %v75 = vld [vmem:[%s55 + $0xc] sm:$0xff]
    %v76 = vld [vmem:[%s55 + $0x14] sm:$0xf]
    %v77 = vld [vmem:[%s55 + $0x18] sm:$0xff]
    %v78 = vld [vmem:[%s55 + $0x20] sm:$0xf]
    %v79 = vld [vmem:[%s55 + $0x24] sm:$0xff]
    %v80 = vld [vmem:[%s55 + $0x2c] sm:$0xf]
    %v81 = vld [vmem:[%s55 + $0x30] sm:$0xff]
    %v82 = vld [vmem:[%s55 + $0x38] sm:$0xf]
    %v83 = vld [vmem:[%s55 + $0x3c] sm:$0xff]
    %v84 = vld [vmem:[%s55 + $0x44] sm:$0xf]
    %v85 = vld [vmem:[%s55 + $0x48] sm:$0xff]
    %v86 = vld [vmem:[%s55 + $0x50] sm:$0xf]
    %v87 = vld [vmem:[%s55 + $0x54] sm:$0xff]
    %v88 = vld [vmem:[%s55 + $0x5c] sm:$0xf]
    %v89 = vld [vmem:[%s55 + $0x60] sm:$0xff]
    %v90 = vld [vmem:[%s55 + $0x68] sm:$0xf]
    %v91 = vld [vmem:[%s55 + $0x6c] sm:$0xff]
    %v92 = vld [vmem:[%s55 + $0x74] sm:$0xf]
    %v93 = vld [vmem:[%s55 + $0x78] sm:$0xff]
    %v94 = vld [vmem:[%s55 + $0x80] sm:$0xf]
    %v95 = vld [vmem:[%s55 + $0x84] sm:$0xff]
    %v96 = vld [vmem:[%s55 + $0x8c] sm:$0xf]
    %v97 = vld [vmem:[%s55 + $0x90] sm:$0xff]
    %v98 = vld [vmem:[%s55 + $0x98] sm:$0xf]
    %v99 = vld [vmem:[%s55 + $0x9c] sm:$0xff]
    %v100 = vld [vmem:[%s55 + $0xa4] sm:$0xf]
    %v101 = vld [vmem:[%s55 + $0xa8] sm:$0xff]
    %v102 = vld [vmem:[%s55 + $0xb0] sm:$0xf]
    %v103 = vld [vmem:[%s55 + $0xb4] sm:$0xff]
    %v104 = vld [vmem:[%s55 + $0xbc] sm:$0xf]
    %v105 = vld [vmem:[#allocation4] sm:$0xf]
    %v106 = vld [vmem:[#allocation4 + $0x4] sm:$0xf]
    %v107 = vld [vmem:[#allocation4 + $0x8] sm:$0xf]
    %v108 = vld [vmem:[#allocation4 + $0xc] sm:$0xf]
    %v109 = vld [vmem:[#allocation4 + $0x10] sm:$0xf]
    %v110 = vld [vmem:[#allocation4 + $0x14] sm:$0xf]
    %v111 = vld [vmem:[#allocation4 + $0x18] sm:$0xf]
    %v112 = vld [vmem:[#allocation4 + $0x1c] sm:$0xf]
    %v113 = vld [vmem:[#allocation4 + $0x20] sm:$0xf]
    %v114 = vld [vmem:[#allocation4 + $0x24] sm:$0xf]
    %v115 = vld [vmem:[#allocation4 + $0x28] sm:$0xf]
    %v116 = vld [vmem:[#allocation4 + $0x2c] sm:$0xf]
    %v117 = vld [vmem:[#allocation4 + $0x30] sm:$0xf]
    %v118 = vld [vmem:[#allocation4 + $0x34] sm:$0xf]
    %v119 = vld [vmem:[#allocation4 + $0x38] sm:$0xf]
    %v120 = vld [vmem:[#allocation4 + $0x3c] sm:$0xf]
    %v121 = vld [vmem:[#allocation4 + $0x40] sm:$0xf]
    %v122 = vld [vmem:[#allocation4 + $0x44] sm:$0xf]
    %v123 = vld [vmem:[#allocation4 + $0x48] sm:$0xf]
    %v124 = vld [vmem:[#allocation4 + $0x4c] sm:$0xf]
    %v125 = vld [vmem:[#allocation4 + $0x50] sm:$0xf]
    %v126 = vld [vmem:[#allocation4 + $0x54] sm:$0xf]
    %v127 = vld [vmem:[#allocation4 + $0x58] sm:$0xf]
    %v128 = vld [vmem:[#allocation4 + $0x5c] sm:$0xf]
    %v129 = vld [vmem:[#allocation4 + $0x60] sm:$0xf]
    %v130 = vld [vmem:[#allocation4 + $0x64] sm:$0xf]
    %v131 = vld [vmem:[#allocation4 + $0x68] sm:$0xf]
    %v132 = vld [vmem:[#allocation4 + $0x6c] sm:$0xf]
    %v133 = vld [vmem:[#allocation4 + $0x70] sm:$0xf]
    %v134 = vld [vmem:[#allocation4 + $0x74] sm:$0xf]
    %v135 = vld [vmem:[#allocation4 + $0x78] sm:$0xf]
    %v136 = vld [vmem:[#allocation4 + $0x7c] sm:$0xf]
    %v137 = vld [vmem:[#allocation4 + $0x80] sm:$0xf]
    %v138 = vld [vmem:[#allocation4 + $0x84] sm:$0xf]
    %v139 = vld [vmem:[#allocation4 + $0x88] sm:$0xf]
    %v140 = vld [vmem:[#allocation4 + $0x8c] sm:$0xf]
    %v173 = vunpack.c.l.b16 %v73
    %v174 = vunpack.c.h.b16 %v73
    %v175 = vunpack.c.l.b16 %v74
    %v176 = vunpack.c.l.b16 %v75
    %v177 = vunpack.c.h.b16 %v75
    %v178 = vunpack.c.l.b16 %v76
    %v179 = vunpack.c.l.b16 %v77
    %v180 = vunpack.c.h.b16 %v77
    %v181 = vunpack.c.l.b16 %v78
    %v182 = vunpack.c.l.b16 %v79
    %v183 = vunpack.c.h.b16 %v79
    %v184 = vunpack.c.l.b16 %v80
    %v185 = vunpack.c.l.b16 %v81
    %v186 = vunpack.c.h.b16 %v81
    %v187 = vunpack.c.l.b16 %v82
    %v188 = vunpack.c.l.b16 %v83
    %v189 = vunpack.c.h.b16 %v83
    %v190 = vunpack.c.l.b16 %v84
    %v191 = vunpack.c.l.b16 %v85
    %v192 = vunpack.c.h.b16 %v85
    %v193 = vunpack.c.l.b16 %v86
    %v194 = vunpack.c.l.b16 %v87
    %v195 = vunpack.c.h.b16 %v87
    %v196 = vunpack.c.l.b16 %v88
    %v197 = vunpack.c.l.b16 %v89
    %v198 = vunpack.c.h.b16 %v89
    %v199 = vunpack.c.l.b16 %v90
    %v200 = vunpack.c.l.b16 %v91
    %v201 = vunpack.c.h.b16 %v91
    %v202 = vunpack.c.l.b16 %v92
    %v203 = vunpack.c.l.b16 %v93
    %v204 = vunpack.c.h.b16 %v93
    %v205 = vunpack.c.l.b16 %v94
    %v206 = vunpack.c.l.b16 %v95
    %v207 = vunpack.c.h.b16 %v95
    %v208 = vunpack.c.l.b16 %v96
    %v209 = vunpack.c.l.b16 %v97
    %v210 = vunpack.c.h.b16 %v97
    %v211 = vunpack.c.l.b16 %v98
    %v212 = vunpack.c.l.b16 %v99
    %v213 = vunpack.c.h.b16 %v99
    %v214 = vunpack.c.l.b16 %v100
    %v215 = vunpack.c.l.b16 %v101
    %v216 = vunpack.c.h.b16 %v101
    %v217 = vunpack.c.l.b16 %v102
    %v218 = vunpack.c.l.b16 %v103
    %v219 = vunpack.c.h.b16 %v103
    %v220 = vunpack.c.l.b16 %v104
    %v221 = vpack.c.b16 %v176, %v173
    %v222 = vpack.c.b16 %v177, %v174
    %v223 = vpack.c.b16 %v178, %v175
    %v224 = vpack.c.b16 %v182, %v179
    %v225 = vpack.c.b16 %v183, %v180
    %v226 = vpack.c.b16 %v184, %v181
    %v227 = vpack.c.b16 %v188, %v185
    %v228 = vpack.c.b16 %v189, %v186
    %v229 = vpack.c.b16 %v190, %v187
    %v230 = vpack.c.b16 %v194, %v191
    %v231 = vpack.c.b16 %v195, %v192
    %v232 = vpack.c.b16 %v196, %v193
    %v233 = vpack.c.b16 %v200, %v197
    %v234 = vpack.c.b16 %v201, %v198
    %v235 = vpack.c.b16 %v202, %v199
    %v236 = vpack.c.b16 %v206, %v203
    %v237 = vpack.c.b16 %v207, %v204
    %v238 = vpack.c.b16 %v208, %v205
    %v239 = vpack.c.b16 %v212, %v209
    %v240 = vpack.c.b16 %v213, %v210
    %v241 = vpack.c.b16 %v214, %v211
    %v242 = vpack.c.b16 %v218, %v215
    %v243 = vpack.c.b16 %v219, %v216
    %v244 = vpack.c.b16 %v220, %v217
    %v297 = vunpack.c.l.b16 %v105
    %v298 = vunpack.c.l.b16 %v106
    %v299 = vunpack.c.l.b16 %v107
    %v300 = vunpack.c.l.b16 %v108
    %v301 = vunpack.c.l.b16 %v109
    %v302 = vunpack.c.l.b16 %v110
    %v303 = vunpack.c.l.b16 %v111
    %v304 = vunpack.c.l.b16 %v112
    %v305 = vunpack.c.l.b16 %v113
    %v306 = vunpack.c.l.b16 %v114
    %v307 = vunpack.c.l.b16 %v115
    %v308 = vunpack.c.l.b16 %v116
    %v309 = vunpack.c.l.b16 %v117
    %v310 = vunpack.c.l.b16 %v118
    %v311 = vunpack.c.l.b16 %v119
    %v312 = vunpack.c.l.b16 %v120
    %v313 = vunpack.c.l.b16 %v121
    %v314 = vunpack.c.l.b16 %v122
    %v315 = vunpack.c.l.b16 %v123
    %v316 = vunpack.c.l.b16 %v124
    %v317 = vunpack.c.l.b16 %v125
    %v318 = vunpack.c.l.b16 %v126
    %v319 = vunpack.c.l.b16 %v127
    %v320 = vunpack.c.l.b16 %v128
    %v321 = vunpack.c.l.b16 %v129
    %v322 = vunpack.c.l.b16 %v130
    %v323 = vunpack.c.l.b16 %v131
    %v324 = vunpack.c.l.b16 %v132
    %v325 = vunpack.c.l.b16 %v133
    %v326 = vunpack.c.l.b16 %v134
    %v327 = vunpack.c.l.b16 %v135
    %v328 = vunpack.c.l.b16 %v136
    %v329 = vunpack.c.l.b16 %v137
    %v330 = vunpack.c.l.b16 %v138
    %v331 = vunpack.c.l.b16 %v139
    %v332 = vunpack.c.l.b16 %v140
    %v333 = vpack.c.b16 %v298, %v297
    %v334 = vpack.c.b16 %v300, %v299
    %v335 = vpack.c.b16 %v302, %v301
    %v336 = vpack.c.b16 %v304, %v303
    %v337 = vpack.c.b16 %v306, %v305
    %v338 = vpack.c.b16 %v308, %v307
    %v339 = vpack.c.b16 %v310, %v309
    %v340 = vpack.c.b16 %v312, %v311
    %v341 = vpack.c.b16 %v314, %v313
    %v342 = vpack.c.b16 %v316, %v315
    %v343 = vpack.c.b16 %v318, %v317
    %v344 = vpack.c.b16 %v320, %v319
    %v345 = vpack.c.b16 %v322, %v321
    %v346 = vpack.c.b16 %v324, %v323
    %v347 = vpack.c.b16 %v326, %v325
    %v348 = vpack.c.b16 %v328, %v327
    %v349 = vpack.c.b16 %v330, %v329
    %v350 = vpack.c.b16 %v332, %v331
    %vm369 = vcmask 261120
    %v371 = vsel %vm369, %v223, 0
    %v374 = vsel %vm369, %v226, 0
    %v377 = vsel %vm369, %v229, 0
    %v380 = vsel %vm369, %v232, 0
    %v383 = vsel %vm369, %v235, 0
    %v386 = vsel %vm369, %v238, 0
    %v389 = vsel %vm369, %v241, 0
    %v392 = vsel %vm369, %v244, 0
    %394 = vmatprep.subr.bf16.mxu0 0
    %395 = vmatpush1.bf16.msra.mxu0 %v333
    %396 = vmatprep.subr.bf16.mxu0 0
    %397 = vmatpush1.bf16.msra.mxu0 %v334
    %398 = vmatprep.subr.bf16.mxu0 0
    %399 = vmatpush1.bf16.msra.mxu0 %v335
    %400 = vmatprep.subr.bf16.mxu0 0
    %401 = vmatpush1.bf16.msra.mxu0 %v336
    %402 = vmatprep.subr.bf16.mxu0 0
    %403 = vmatpush1.bf16.msra.mxu0 %v337
    %404 = vmatprep.subr.bf16.mxu0 0
    %405 = vmatpush1.bf16.msra.mxu0 %v338
    %406 = vmatprep.subr.bf16.mxu0 0
    %407 = vmatpush1.bf16.msra.mxu0 %v339
    %408 = vmatprep.subr.bf16.mxu0 0
    %409 = vmatpush1.bf16.msra.mxu0 %v340
    %410 = vmatprep.subr.bf16.mxu0 0
    %411 = vmatpush1.bf16.msra.mxu0 %v341
    %412 = vmatprep.subr.bf16.mxu0 0
    %413 = vmatpush1.bf16.msra.mxu0 %v342
    %414 = vmatprep.subr.bf16.mxu0 0
    %415 = vmatpush1.bf16.msra.mxu0 %v343
    %416 = vmatprep.subr.bf16.mxu0 0
    %417 = vmatpush1.bf16.msra.mxu0 %v344
    %418 = vmatprep.subr.bf16.mxu0 0
    %419 = vmatpush1.bf16.msra.mxu0 %v345
    %420 = vmatprep.subr.bf16.mxu0 0
    %421 = vmatpush1.bf16.msra.mxu0 %v346
    %422 = vmatprep.subr.bf16.mxu0 0
    %423 = vmatpush1.bf16.msra.mxu0 %v347
    %424 = vmatprep.subr.bf16.mxu0 0
    %425 = vmatpush1.bf16.msra.mxu0 %v348
    %426 = vmatprep.mubr.bf16.mxu0 %v222
    %427 = vmatmul.mubr.bf16.gmra.mrb[0].mxu0 %v221
    %v428 = vpop.f32.mrb[0].mxu0
    %v429 = vadd.f32 0.0, %v428
    %v430 = vpop.f32.mrb[0].mxu0
    %v431 = vpop.f32.mrb[0].mxu0
    %v432 = vadd.f32 0.0, %v431
    %v433 = vpop.f32.mrb[0].mxu0
    %434 = vmatprep.mubr.bf16.mxu0 %v225
    %435 = vmatmul.mubr.bf16.gmra.mrb[0].mxu0 %v224
    %v436 = vpop.f32.mrb[0].mxu0
    %v437 = vadd.f32 0.0, %v436
    %v438 = vpop.f32.mrb[0].mxu0
    %v439 = vpop.f32.mrb[0].mxu0
    %v440 = vadd.f32 0.0, %v439
    %v441 = vpop.f32.mrb[0].mxu0
    %442 = vmatprep.mubr.bf16.mxu0 %v228
    %443 = vmatmul.mubr.bf16.gmra.mrb[0].mxu0 %v227
    %v444 = vpop.f32.mrb[0].mxu0
    %v445 = vadd.f32 0.0, %v444
    %v446 = vpop.f32.mrb[0].mxu0
    %v447 = vpop.f32.mrb[0].mxu0
    %v448 = vadd.f32 0.0, %v447
    %v449 = vpop.f32.mrb[0].mxu0
    %450 = vmatprep.mubr.bf16.mxu0 %v231
    %451 = vmatmul.mubr.bf16.gmra.mrb[0].mxu0 %v230
    %v452 = vpop.f32.mrb[0].mxu0
    %v453 = vadd.f32 0.0, %v452
    %v454 = vpop.f32.mrb[0].mxu0
    %v455 = vpop.f32.mrb[0].mxu0
    %v456 = vadd.f32 0.0, %v455
    %v457 = vpop.f32.mrb[0].mxu0
    %458 = vmatprep.mubr.bf16.mxu0 %v234
    %459 = vmatmul.mubr.bf16.gmra.mrb[0].mxu0 %v233
    %v460 = vpop.f32.mrb[0].mxu0
    %v461 = vadd.f32 0.0, %v460
    %v462 = vpop.f32.mrb[0].mxu0
    %v463 = vpop.f32.mrb[0].mxu0
    %v464 = vadd.f32 0.0, %v463
    %v465 = vpop.f32.mrb[0].mxu0
    %466 = vmatprep.mubr.bf16.mxu0 %v237
    %467 = vmatmul.mubr.bf16.gmra.mrb[0].mxu0 %v236
    %v468 = vpop.f32.mrb[0].mxu0
    %v469 = vadd.f32 0.0, %v468
    %v470 = vpop.f32.mrb[0].mxu0
    %v471 = vpop.f32.mrb[0].mxu0
    %v472 = vadd.f32 0.0, %v471
    %v473 = vpop.f32.mrb[0].mxu0
    %474 = vmatprep.mubr.bf16.mxu0 %v240
    %475 = vmatmul.mubr.bf16.gmra.mrb[0].mxu0 %v239
    %v476 = vpop.f32.mrb[0].mxu0
    %v477 = vadd.f32 0.0, %v476
    %v478 = vpop.f32.mrb[0].mxu0
    %v479 = vpop.f32.mrb[0].mxu0
    %v480 = vadd.f32 0.0, %v479
    %v481 = vpop.f32.mrb[0].mxu0
    %482 = vmatprep.mubr.bf16.mxu0 %v243
    %483 = vmatmul.mubr.bf16.gmra.mrb[0].mxu0 %v242
    %v484 = vpop.f32.mrb[0].mxu0
    %v485 = vadd.f32 0.0, %v484
    %v486 = vpop.f32.mrb[0].mxu0
    %v487 = vpop.f32.mrb[0].mxu0
    %v488 = vadd.f32 0.0, %v487
    %v489 = vpop.f32.mrb[0].mxu0
    %490 = vdwg.mxu0
    %491 = vmatprep.subr.bf16.mxu0 0
    %492 = vmatpush1.bf16.msra.mxu0 %v349
    %493 = vmatprep.subr.bf16.mxu0 0
    %494 = vmatpush1.bf16.msra.mxu0 %v350
    %495 = vmatprep.subr.bf16.mxu0 0
    %496 = vmatpush1.bf16.msra.mxu0 0
    %497 = vmatprep.subr.bf16.mxu0 0
    %498 = vmatpush1.bf16.msra.mxu0 0
    %499 = vmatprep.subr.bf16.mxu0 0
    %500 = vmatpush1.bf16.msra.mxu0 0
    %501 = vmatprep.subr.bf16.mxu0 0
    %502 = vmatpush1.bf16.msra.mxu0 0
    %503 = vmatprep.subr.bf16.mxu0 0
    %504 = vmatpush1.bf16.msra.mxu0 0
    %505 = vmatprep.subr.bf16.mxu0 0
    %506 = vmatpush1.bf16.msra.mxu0 0
    %507 = vmatprep.subr.bf16.mxu0 0
    %508 = vmatpush1.bf16.msra.mxu0 0
    %509 = vmatprep.subr.bf16.mxu0 0
    %510 = vmatpush1.bf16.msra.mxu0 0
    %511 = vmatprep.subr.bf16.mxu0 0
    %512 = vmatpush1.bf16.msra.mxu0 0
    %513 = vmatprep.subr.bf16.mxu0 0
    %514 = vmatpush1.bf16.msra.mxu0 0
    %515 = vmatprep.subr.bf16.mxu0 0
    %516 = vmatpush1.bf16.msra.mxu0 0
    %517 = vmatprep.subr.bf16.mxu0 0
    %518 = vmatpush1.bf16.msra.mxu0 0
    %519 = vmatprep.subr.bf16.mxu0 0
    %520 = vmatpush1.bf16.msra.mxu0 0
    %521 = vmatprep.subr.bf16.mxu0 0
    %522 = vmatpush1.bf16.msra.mxu0 0
    %523 = vmatprep.mubr.bf16.mxu0 0
    %524 = vmatmul.mubr.bf16.gmra.mrb[0].mxu0 %v371
    %v525 = vpop.f32.mrb[0].mxu0
    %v526 = vadd.f32 %v429, %v525
    %v527 = vpop.f32.mrb[0].mxu0
    %v528 = vpop.f32.mrb[0].mxu0
    %v529 = vadd.f32 %v432, %v528
    %v530 = vpop.f32.mrb[0].mxu0
    %531 = vmatprep.mubr.bf16.mxu0 0
    %532 = vmatmul.mubr.bf16.gmra.mrb[0].mxu0 %v374
    %v533 = vpop.f32.mrb[0].mxu0
    %v534 = vadd.f32 %v437, %v533
    %v535 = vpop.f32.mrb[0].mxu0
    %v536 = vpop.f32.mrb[0].mxu0
    %v537 = vadd.f32 %v440, %v536
    %v538 = vpop.f32.mrb[0].mxu0
    %539 = vmatprep.mubr.bf16.mxu0 0
    %540 = vmatmul.mubr.bf16.gmra.mrb[0].mxu0 %v377
    %v541 = vpop.f32.mrb[0].mxu0
    %v542 = vadd.f32 %v445, %v541
    %v543 = vpop.f32.mrb[0].mxu0
    %v544 = vpop.f32.mrb[0].mxu0
    %v545 = vadd.f32 %v448, %v544
    %v546 = vpop.f32.mrb[0].mxu0
    %547 = vmatprep.mubr.bf16.mxu0 0
    %548 = vmatmul.mubr.bf16.gmra.mrb[0].mxu0 %v380
    %v549 = vpop.f32.mrb[0].mxu0
    %v550 = vadd.f32 %v453, %v549
    %v551 = vpop.f32.mrb[0].mxu0
    %v552 = vpop.f32.mrb[0].mxu0
    %v553 = vadd.f32 %v456, %v552
    %v554 = vpop.f32.mrb[0].mxu0
    %555 = vmatprep.mubr.bf16.mxu0 0
    %556 = vmatmul.mubr.bf16.gmra.mrb[0].mxu0 %v383
    %v557 = vpop.f32.mrb[0].mxu0
    %v558 = vadd.f32 %v461, %v557
    %v559 = vpop.f32.mrb[0].mxu0
    %v560 = vpop.f32.mrb[0].mxu0
    %v561 = vadd.f32 %v464, %v560
    %v562 = vpop.f32.mrb[0].mxu0
    %563 = vmatprep.mubr.bf16.mxu0 0
    %564 = vmatmul.mubr.bf16.gmra.mrb[0].mxu0 %v386
    %v565 = vpop.f32.mrb[0].mxu0
    %v566 = vadd.f32 %v469, %v565
    %v567 = vpop.f32.mrb[0].mxu0
    %v568 = vpop.f32.mrb[0].mxu0
    %v569 = vadd.f32 %v472, %v568
    %v570 = vpop.f32.mrb[0].mxu0
    %571 = vmatprep.mubr.bf16.mxu0 0
    %572 = vmatmul.mubr.bf16.gmra.mrb[0].mxu0 %v389
    %v573 = vpop.f32.mrb[0].mxu0
    %v574 = vadd.f32 %v477, %v573
    %v575 = vpop.f32.mrb[0].mxu0
    %v576 = vpop.f32.mrb[0].mxu0
    %v577 = vadd.f32 %v480, %v576
    %v578 = vpop.f32.mrb[0].mxu0
    %579 = vmatprep.mubr.bf16.mxu0 0
    %580 = vmatmul.mubr.bf16.gmra.mrb[0].mxu0 %v392
    %v581 = vpop.f32.mrb[0].mxu0
    %v582 = vadd.f32 %v485, %v581
    %v583 = vpop.f32.mrb[0].mxu0
    %v584 = vpop.f32.mrb[0].mxu0
    %v585 = vadd.f32 %v488, %v584
    %v586 = vpop.f32.mrb[0].mxu0
    %587 = vdwg.mxu0
    %v588 = vpack.c.bf16 %v529, %v526
    %v589 = vpack.c.bf16 %v537, %v534
    %v590 = vpack.c.bf16 %v545, %v542
    %v591 = vpack.c.bf16 %v553, %v550
    %v592 = vpack.c.bf16 %v561, %v558
    %v593 = vpack.c.bf16 %v569, %v566
    %v594 = vpack.c.bf16 %v577, %v574
    %v595 = vpack.c.bf16 %v585, %v582
    %v604 = vunpack.c.l.b16 %v588
    %v605 = vunpack.c.h.b16 %v588
    %v606 = vunpack.c.l.b16 %v589
    %v607 = vunpack.c.h.b16 %v589
    %v608 = vunpack.c.l.b16 %v590
    %v609 = vunpack.c.h.b16 %v590
    %v610 = vunpack.c.l.b16 %v591
    %v611 = vunpack.c.h.b16 %v591
    %v612 = vunpack.c.l.b16 %v592
    %v613 = vunpack.c.h.b16 %v592
    %v614 = vunpack.c.l.b16 %v593
    %v615 = vunpack.c.h.b16 %v593
    %v616 = vunpack.c.l.b16 %v594
    %v617 = vunpack.c.h.b16 %v594
    %v618 = vunpack.c.l.b16 %v595
    %v619 = vunpack.c.h.b16 %v595
    %v620 = vpack.c.b16 %v604, %v604
    %v621 = vpack.c.b16 %v605, %v605
    %v622 = vpack.c.b16 %v606, %v606
    %v623 = vpack.c.b16 %v607, %v607
    %v624 = vpack.c.b16 %v608, %v608
    %v625 = vpack.c.b16 %v609, %v609
    %v626 = vpack.c.b16 %v610, %v610
    %v627 = vpack.c.b16 %v611, %v611
    %v628 = vpack.c.b16 %v612, %v612
    %v629 = vpack.c.b16 %v613, %v613
    %v630 = vpack.c.b16 %v614, %v614
    %v631 = vpack.c.b16 %v615, %v615
    %v632 = vpack.c.b16 %v616, %v616
    %v633 = vpack.c.b16 %v617, %v617
    %v634 = vpack.c.b16 %v618, %v618
    %v635 = vpack.c.b16 %v619, %v619
    %652 = vst [vmem:[%s63] sm:$0xf] %v620
    %653 = vst [vmem:[%s63 + $0x4] sm:$0xf] %v621
    %654 = vst [vmem:[%s63 + $0x8] sm:$0xf] %v622
    %655 = vst [vmem:[%s63 + $0xc] sm:$0xf] %v623
    %656 = vst [vmem:[%s63 + $0x10] sm:$0xf] %v624
    %657 = vst [vmem:[%s63 + $0x14] sm:$0xf] %v625
    %658 = vst [vmem:[%s63 + $0x18] sm:$0xf] %v626
    %659 = vst [vmem:[%s63 + $0x1c] sm:$0xf] %v627
    %660 = vst [vmem:[%s63 + $0x20] sm:$0xf] %v628
    %661 = vst [vmem:[%s63 + $0x24] sm:$0xf] %v629
    %662 = vst [vmem:[%s63 + $0x28] sm:$0xf] %v630
    %663 = vst [vmem:[%s63 + $0x2c] sm:$0xf] %v631
    %664 = vst [vmem:[%s63 + $0x30] sm:$0xf] %v632
    %665 = vst [vmem:[%s63 + $0x34] sm:$0xf] %v633
    %666 = vst [vmem:[%s63 + $0x38] sm:$0xf] %v634
    %667 = vst [vmem:[%s63 + $0x3c] sm:$0xf] %v635
    %v668 = vld [vmem:[#allocation2] sm:$0x1]
    %v669 = vadd.f32 %v526, %v529
    %v670 = vadd.f32 %v669, %v534
    %v671 = vadd.f32 %v670, %v537
    %v672 = vadd.f32 %v671, %v542
    %v673 = vadd.f32 %v672, %v545
    %v674 = vadd.f32 %v673, %v550
    %v675 = vadd.f32 %v674, %v553
    %v676 = vadd.f32 %v675, %v558
    %v677 = vadd.f32 %v676, %v561
    %v678 = vadd.f32 %v677, %v566
    %v679 = vadd.f32 %v678, %v569
    %v680 = vadd.f32 %v679, %v574
    %v681 = vadd.f32 %v680, %v577
    %v682 = vadd.f32 %v681, %v582
    %v683 = vadd.f32 %v682, %v585
    %v684 = vrot.slane %v683, 4
    %v685 = vadd.f32 %v683, %v684
    %v686 = vrot.slane %v685, 2
    %v687 = vadd.f32 %v685, %v686
    %v688 = vrot.slane %v687, 1
    %v689 = vadd.f32 %v687, %v688
    %v690 = vadd.f32 %v668, %v689
    %691 = vst [vmem:[#allocation2] sm:$0x1] %v690
    %v692 = vld [vmem:[#allocation3] sm:$0x1]
    %v693 = vmul.f32 %v526, %v526
    %v694 = vmul.f32 %v529, %v529
    %v695 = vmul.f32 %v534, %v534
    %v696 = vmul.f32 %v537, %v537
    %v697 = vmul.f32 %v542, %v542
    %v698 = vmul.f32 %v545, %v545
    %v699 = vmul.f32 %v550, %v550
    %v700 = vmul.f32 %v553, %v553
    %v701 = vmul.f32 %v558, %v558
    %v702 = vmul.f32 %v561, %v561
    %v703 = vmul.f32 %v566, %v566
    %v704 = vmul.f32 %v569, %v569
    %v705 = vmul.f32 %v574, %v574
    %v706 = vmul.f32 %v577, %v577
    %v707 = vmul.f32 %v582, %v582
    %v708 = vmul.f32 %v585, %v585
    %v709 = vadd.f32 %v693, %v694
    %v710 = vadd.f32 %v709, %v695
    %v711 = vadd.f32 %v710, %v696
    %v712 = vadd.f32 %v711, %v697
    %v713 = vadd.f32 %v712, %v698
    %v714 = vadd.f32 %v713, %v699
    %v715 = vadd.f32 %v714, %v700
    %v716 = vadd.f32 %v715, %v701
    %v717 = vadd.f32 %v716, %v702
    %v718 = vadd.f32 %v717, %v703
    %v719 = vadd.f32 %v718, %v704
    %v720 = vadd.f32 %v719, %v705
    %v721 = vadd.f32 %v720, %v706
    %v722 = vadd.f32 %v721, %v707
    %v723 = vadd.f32 %v722, %v708
    %v724 = vrot.slane %v723, 4
    %v725 = vadd.f32 %v723, %v724
    %v726 = vrot.slane %v725, 2
    %v727 = vadd.f32 %v725, %v726
    %v728 = vrot.slane %v727, 1
    %v729 = vadd.f32 %v727, %v728
    %v730 = vadd.f32 %v692, %v729
    %731 = vst [vmem:[#allocation3] sm:$0x1] %v730
    // Predicated region
    $region18: #{forward.13} parent=1 // pred_check
      %p732 = pneg %p67
    $region19: #{forward.13} parent=1 // pred_check_branch
      %734 = sbr.rel (%p732) target = $region21
    $region20: #{forward.13} parent=1 // pred_region
      %v735 = vld [vmem:[#allocation2] sm:$0x1]
      %736 = vst [vmem:[%s3] sm:$0x1] %v735
      %v737 = vld [vmem:[#allocation3] sm:$0x1]
      %738 = vst [vmem:[%s3 + $0x1] sm:$0x1] %v737
    $region21: #{forward.13} parent=1 // pred_fallthru
      _
    %s739 = sadd.s32 0, 0
    %s740 = smul.u32 16, %s739
    %p741 = scmp.lt.s32.totalorder %s740, 15
    %s742 = scalar_select %p741, %s740, 15
    %s743 = smul.addr %s742, 4
    %s744 = scalar_lea.vmem %s2, %s743
    // Predicated region
    $region22: #{forward.13} parent=1 // pred_check
      _
    $region23: #{forward.13} parent=1 // pred_check_branch
      %746 = sbr.rel (0) target = $region25
    $region24: #{forward.13} parent=1 // pred_region
      %s747 = sadd.s32 0, 0
      %s748 = smul.u32 16, %s747
    $region25: #{forward.13} parent=1 // pred_fallthru
      _
    // Predicated region
    $region26: #{forward.13} parent=1 // pred_check
      _
    $region27: #{forward.13} parent=1 // pred_check_branch
      %750 = sbr.rel (0) target = $region29
    $region28: #{forward.13} parent=1 // pred_region
      _
    $region29: #{forward.13} parent=1 // pred_fallthru
      _
    // Predicated region
    $region30: #{forward.13} parent=1 // pred_check
      _
    $region31: #{forward.13} parent=1 // pred_check_branch
      %752 = sbr.rel (0) target = $region33
    $region32: #{forward.13} parent=1 // pred_region
      %s753 = sadd.s32 0, 0
      %s754 = smul.u32 16, %s753
      %p755 = scmp.lt.s32.totalorder %s754, 15
      %s756 = scalar_select %p755, %s754, 15
      %s757 = smul.addr %s756, 4
      %s758 = scalar_lea.vmem %s2, %s757
    $region33: #{forward.13} parent=1 // pred_fallthru
      _
    // Predicated region
    $region34: #{forward.13} parent=1 // pred_check
      _
    $region35: #{forward.13} parent=1 // pred_check_branch
      %760 = sbr.rel (0) target = $region37
    $region36: #{forward.13} parent=1 // pred_region
      _
    $region37: #{forward.13} parent=1 // pred_fallthru
      _
    %761 = vsyncpa [#allocation5], 1

// kernel: squeeze.14
$region0: #{squeeze.14}
  %s0 = inlined_call_operand.vmem [shape: f32[32], index: 0, kind: input, shape index: {}]
  %s1 = inlined_call_operand.vmem [shape: f32[4,8], index: 1, kind: output, shape index: {}]
  $region1: #{squeeze.14} parent=0
    #allocation0 [shape = 'u8[4096]{0}', space=vmem, size = 0x1000, scoped, tag = 'scoped mem for output reshape']
    #allocation1 [shape = 'u8[4096]{0}', space=vmem, size = 0x1000, scoped, tag = 'scoped mem for input reshape']
    %s3 = sshllo.u32 0, 1
    %v4 = vld [vmem:[%s0] sm:%s3]
    %5 = vst [vmem:[#allocation1] sm:%s3] %v4
    %v6 = vld [vmem:[#allocation1] sm:$0x1]
    %vm7 = vcmask 64512
    %8 = vst.msk [vmem:[#allocation0] sm:$0x1] %vm7, %v6
    %v9 = vld [vmem:[#allocation1] sm:$0x1]
    %10 = vrot.lane.b32.xlu0 %v9, 120
    %v11 = vpop.permute.xlu0 %10
    %vm12 = vcmask 64512
    %s13 = scalar_lea.vmem [#allocation0], 1
    %14 = vst.msk [vmem:[%s13] sm:$0x1] %vm12, %v11
    %v15 = vld [vmem:[#allocation1] sm:$0x1]
    %16 = vrot.lane.b32.xlu0 %v15, 112
    %v17 = vpop.permute.xlu0 %16
    %vm18 = vcmask 64512
    %s19 = scalar_lea.vmem [#allocation0], 2
    %20 = vst.msk [vmem:[%s19] sm:$0x1] %vm18, %v17
    %v21 = vld [vmem:[#allocation1] sm:$0x1]
    %22 = vrot.lane.b32.xlu0 %v21, 104
    %v23 = vpop.permute.xlu0 %22
    %vm24 = vcmask 64512
    %s25 = scalar_lea.vmem [#allocation0], 3
    %26 = vst.msk [vmem:[%s25] sm:$0x1] %vm24, %v23
    %s28 = sshllo.u32 0, 4
    %v30 = vld [vmem:[#allocation0] sm:%s28]
    %s31 = sshllo.u32 0, 4
    %32 = vst [vmem:[%s1] sm:%s31] %v30

// kernel: tile.58
$region0: #{tile.58}
  #allocation0 [shape = 's32[1]{0}', space=sflag, size = 0x4, scoped, tag = 'scoped memory for tile.58']
  %s0 = inlined_call_operand.vmem [shape: f32[8], index: 0, kind: input, shape index: {}]
  %s1 = inlined_call_operand.vmem [shape: f32[4,8], index: 1, kind: output, shape index: {}]
  // Predicated region
  $region2: #{tile.58} parent=0 // pred_check
    _
  $region3: #{tile.58} parent=0 // pred_check_branch
    %3 = sbr.rel (0) target = $region5
  $region4: #{tile.58} parent=0 // pred_region
    _
  $region5: #{tile.58} parent=0 // pred_fallthru
    _
  %v4 = vld [vmem:[%s0] ss:$0 sm:$0xff]
  %5 = vst [vmem:[%s1] sm:$0xf] %v4

// kernel: tile.59
$region0: #{tile.59}
  %s0 = inlined_call_operand.vmem [shape: f32[4,8], index: 0, kind: input, shape index: {}]
  %s1 = inlined_call_operand.vmem [shape: f32[32], index: 1, kind: output, shape index: {}]
  $region1: #{tile.59} parent=0
    #allocation0 [shape = 'u8[4096]{0}', space=vmem, size = 0x1000, scoped, tag = 'scoped mem for output reshape']
    #allocation1 [shape = 'u8[4096]{0}', space=vmem, size = 0x1000, scoped, tag = 'scoped mem for input reshape']
    %s3 = sshllo.u32 0, 4
    %v4 = vld [vmem:[%s0] sm:%s3]
    %5 = vst [vmem:[#allocation1] sm:%s3] %v4
    %v6 = vld [vmem:[#allocation1] sm:$0x1]
    %vm7 = vcmask 64512
    %8 = vst.msk [vmem:[#allocation0] sm:$0x1] %vm7, %v6
    %s9 = scalar_lea.vmem [#allocation1], 3
    %v10 = vld [vmem:[%s9] sm:$0x1]
    %11 = vrot.lane.b32.xlu0 %v10, 24
    %v12 = vpop.permute.xlu0 %11
    %vm13 = vcmask 261312
    %14 = vst.msk [vmem:[#allocation0] sm:$0x1] %vm13, %v12
    %s15 = scalar_lea.vmem [#allocation1], 2
    %v16 = vld [vmem:[%s15] sm:$0x1]
    %17 = vrot.lane.b32.xlu0 %v16, 16
    %v18 = vpop.permute.xlu0 %17
    %vm19 = vcmask 195712
    %20 = vst.msk [vmem:[#allocation0] sm:$0x1] %vm19, %v18
    %s21 = scalar_lea.vmem [#allocation1], 1
    %v22 = vld [vmem:[%s21] sm:$0x1]
    %23 = vrot.lane.b32.xlu0 %v22, 8
    %v24 = vpop.permute.xlu0 %23
    %vm25 = vcmask 130112
    %26 = vst.msk [vmem:[#allocation0] sm:$0x1] %vm25, %v24
    %s28 = sshllo.u32 0, 1
    %v30 = vld [vmem:[#allocation0] sm:%s28]
    %s31 = sshllo.u32 0, 1
    %32 = vst [vmem:[%s1] sm:%s31] %v30

// kernel: forward.15
$region0: #{forward.15}
  #allocation0 [shape = 'u32[]', space=smem, size = 0x4, offset = 0x4, fixed_abs, tag = 'smem constant byte address 0x4 - core index']
  #allocation1 [shape = 'u32[144,128]{1,0:T(1,128)}', space=vmem, size = 0x12000, scoped, tag = 'internal scratch']
  #allocation2 [shape = 'f32[1,128]{1,0:T(1,128)}', space=vmem, size = 0x200, scoped, tag = 'scratch operand']
  #allocation3 [shape = 'f32[1,128]{1,0:T(1,128)}', space=vmem, size = 0x200, scoped, tag = 'scratch operand']
  %s0 = inlined_call_operand.vmem [shape: bf16[512,144], index: 0, kind: input, shape index: {}]
  %s1 = inlined_call_operand.hbm [shape: bf16[144,128], index: 1, kind: input, shape index: {}]
  %s2 = inlined_call_operand.vmem [shape: bf16[512,128], index: 2, kind: output, shape index: {0}]
  %s3 = inlined_call_operand.vmem [shape: f32[1,2,128], index: 3, kind: output, shape index: {1}]
  %4 = xla_tuple %s2, %s3
  %s5 = sld [smem:[#allocation0]]
  $region38: #{forward.15} parent=0
    _
  %s7 = ssub.s32 1, %s5
  %s8 = scalar_select 0, %s7, %s5
  $region1: #{forward.15} parent=0
    #allocation4 [shape = 'u8[36864]{0}', space=vmem, size = 0x9000, scoped, tag = 'input window, operand 1, single buffered']
    #allocation5 [shape = 's32[1]{0}', space=sflag, size = 0x4, scoped, tag = 'scoped memory for forward.15']
    %9 = vsyncpa [#allocation5], 0
    // Predicated region
    $region2: #{forward.15} parent=1 // pred_check
      _
    $region3: #{forward.15} parent=1 // pred_check_branch
      %11 = sbr.rel (0) target = $region5
    $region4: #{forward.15} parent=1 // pred_region
      %s12 = sadd.s32 0, 0
      %s13 = smul.u32 64, %s12
      %p14 = scmp.lt.s32.totalorder %s13, 63
      %s15 = scalar_select %p14, %s13, 63
      %s16 = smul.addr %s15, 2
      %s17 = smul.addr %s16, 4
      %s18 = scalar_lea.vmem %s0, %s17
      %s19 = sadd.s32 0, 0
      %s20 = smul.u32 64, %s19
    $region5: #{forward.15} parent=1 // pred_fallthru
      _
    // Predicated region
    $region6: #{forward.15} parent=1 // pred_check
      _
    $region7: #{forward.15} parent=1 // pred_check_branch
      %22 = sbr.rel (0) target = $region9
    $region8: #{forward.15} parent=1 // pred_region
      %s24 = ssub.s32 1152, 1152
      %25 = vsyncadd [#allocation5], %s24
      %s26 = sshll.u32 [#allocation4], 4
      %s27 = int_to_ptr.vmem [resolvable:$true] %s26
      %32 = dma.hbm_to_vmem [thread:$0]  %s1, 1152, %s27, [#allocation5], 64, 64, 4
    $region9: #{forward.15} parent=1 // pred_fallthru
      _
    // Predicated region
    $region10: #{forward.15} parent=1 // pred_check
      _
    $region11: #{forward.15} parent=1 // pred_check_branch
      %34 = sbr.rel (0) target = $region13
    $region12: #{forward.15} parent=1 // pred_region
      %35 = dma.done [#allocation5], 1152
    $region13: #{forward.15} parent=1 // pred_fallthru
      _
    %s36 = sadd.s32 0, 0
    %s37 = smul.u32 64, %s36
    %p38 = scmp.lt.s32.totalorder %s37, 63
    %s39 = scalar_select %p38, %s37, 63
    %s40 = smul.addr %s39, 2
    %s41 = smul.addr %s40, 4
    %s42 = scalar_lea.vmem %s0, %s41
    %s43 = sadd.s32 0, 0
    %s44 = smul.u32 64, %s43
    %p45 = scmp.lt.s32.totalorder %s44, 63
    %s46 = scalar_select %p45, %s44, 63
    %s47 = smul.addr %s46, 4
    %s48 = scalar_lea.vmem %s2, %s47
    %s49 = sadd.s32 0, 0
    %s50 = smul.u32 64, %s49
    %p51 = scmp.lt.s32.totalorder %s50, 63
    %s52 = scalar_select %p51, %s50, 63
    %s53 = smul.addr %s52, 2
    %s54 = smul.addr %s53, 4
    %s55 = scalar_lea.vmem %s0, %s54
    %s56 = sadd.s32 0, 0
    %s57 = smul.u32 64, %s56
    %s58 = sadd.s32 0, 0
    %s59 = smul.u32 64, %s58
    %p60 = scmp.lt.s32.totalorder %s59, 63
    %s61 = scalar_select %p60, %s59, 63
    %s62 = smul.addr %s61, 4
    %s63 = scalar_lea.vmem %s2, %s62
    %s64 = sadd.s32 0, 0
    %s65 = smul.u32 64, %s64
    %p67 = scmp.eq.s32.totalorder 0, 0
    // Predicated region
    $region14: #{forward.15} parent=1 // pred_check
      %p68 = pneg %p67
    $region15: #{forward.15} parent=1 // pred_check_branch
      %70 = sbr.rel (%p68) target = $region17
    $region16: #{forward.15} parent=1 // pred_region
      %71 = vst [vmem:[#allocation2] sm:$0x1] 0.0
      %72 = vst [vmem:[#allocation3] sm:$0x1] 0.0
    $region17: #{forward.15} parent=1 // pred_fallthru
      _
    %v73 = vld [vmem:[%s55] sm:$0xff]
    %v74 = vld [vmem:[%s55 + $0x8] sm:$0xff]
    %v75 = vld [vmem:[%s55 + $0x10] sm:$0xff]
    %v76 = vld [vmem:[%s55 + $0x18] sm:$0xff]
    %v77 = vld [vmem:[%s55 + $0x20] sm:$0xff]
    %v78 = vld [vmem:[%s55 + $0x28] sm:$0xff]
    %v79 = vld [vmem:[%s55 + $0x30] sm:$0xff]
    %v80 = vld [vmem:[%s55 + $0x38] sm:$0xff]
    %v81 = vld [vmem:[%s55 + $0x40] sm:$0xff]
    %v82 = vld [vmem:[%s55 + $0x48] sm:$0xff]
    %v83 = vld [vmem:[%s55 + $0x50] sm:$0xff]
    %v84 = vld [vmem:[%s55 + $0x58] sm:$0xff]
    %v85 = vld [vmem:[%s55 + $0x60] sm:$0xff]
    %v86 = vld [vmem:[%s55 + $0x68] sm:$0xff]
    %v87 = vld [vmem:[%s55 + $0x70] sm:$0xff]
    %v88 = vld [vmem:[%s55 + $0x78] sm:$0xff]
    %v89 = vld [vmem:[%s55 + $0x80] sm:$0xff]
    %v90 = vld [vmem:[%s55 + $0x88] sm:$0xff]
    %v91 = vld [vmem:[%s55 + $0x90] sm:$0xff]
    %v92 = vld [vmem:[%s55 + $0x98] sm:$0xff]
    %v93 = vld [vmem:[%s55 + $0xa0] sm:$0xff]
    %v94 = vld [vmem:[%s55 + $0xa8] sm:$0xff]
    %v95 = vld [vmem:[%s55 + $0xb0] sm:$0xff]
    %v96 = vld [vmem:[%s55 + $0xb8] sm:$0xff]
    %v97 = vld [vmem:[%s55 + $0xc0] sm:$0xff]
    %v98 = vld [vmem:[%s55 + $0xc8] sm:$0xff]
    %v99 = vld [vmem:[%s55 + $0xd0] sm:$0xff]
    %v100 = vld [vmem:[%s55 + $0xd8] sm:$0xff]
    %v101 = vld [vmem:[%s55 + $0xe0] sm:$0xff]
    %v102 = vld [vmem:[%s55 + $0xe8] sm:$0xff]
    %v103 = vld [vmem:[%s55 + $0xf0] sm:$0xff]
    %v104 = vld [vmem:[%s55 + $0xf8] sm:$0xff]
    %v105 = vld [vmem:[%s55 + $0x100] sm:$0xff]
    %v106 = vld [vmem:[%s55 + $0x108] sm:$0xff]
    %v107 = vld [vmem:[%s55 + $0x110] sm:$0xff]
    %v108 = vld [vmem:[%s55 + $0x118] sm:$0xff]
    %v109 = vld [vmem:[%s55 + $0x120] sm:$0xff]
    %v110 = vld [vmem:[%s55 + $0x128] sm:$0xff]
    %v111 = vld [vmem:[%s55 + $0x130] sm:$0xff]
    %v112 = vld [vmem:[%s55 + $0x138] sm:$0xff]
    %v113 = vld [vmem:[%s55 + $0x140] sm:$0xff]
    %v114 = vld [vmem:[%s55 + $0x148] sm:$0xff]
    %v115 = vld [vmem:[%s55 + $0x150] sm:$0xff]
    %v116 = vld [vmem:[%s55 + $0x158] sm:$0xff]
    %v117 = vld [vmem:[%s55 + $0x160] sm:$0xff]
    %v118 = vld [vmem:[%s55 + $0x168] sm:$0xff]
    %v119 = vld [vmem:[%s55 + $0x170] sm:$0xff]
    %v120 = vld [vmem:[%s55 + $0x178] sm:$0xff]
    %v121 = vld [vmem:[%s55 + $0x180] sm:$0xff]
    %v122 = vld [vmem:[%s55 + $0x188] sm:$0xff]
    %v123 = vld [vmem:[%s55 + $0x190] sm:$0xff]
    %v124 = vld [vmem:[%s55 + $0x198] sm:$0xff]
    %v125 = vld [vmem:[%s55 + $0x1a0] sm:$0xff]
    %v126 = vld [vmem:[%s55 + $0x1a8] sm:$0xff]
    %v127 = vld [vmem:[%s55 + $0x1b0] sm:$0xff]
    %v128 = vld [vmem:[%s55 + $0x1b8] sm:$0xff]
    %v129 = vld [vmem:[%s55 + $0x1c0] sm:$0xff]
    %v130 = vld [vmem:[%s55 + $0x1c8] sm:$0xff]
    %v131 = vld [vmem:[%s55 + $0x1d0] sm:$0xff]
    %v132 = vld [vmem:[%s55 + $0x1d8] sm:$0xff]
    %v133 = vld [vmem:[%s55 + $0x1e0] sm:$0xff]
    %v134 = vld [vmem:[%s55 + $0x1e8] sm:$0xff]
    %v135 = vld [vmem:[%s55 + $0x1f0] sm:$0xff]
    %v136 = vld [vmem:[%s55 + $0x1f8] sm:$0xff]
    %v137 = vld [vmem:[#allocation4] sm:$0xf]
    %v138 = vld [vmem:[#allocation4 + $0x4] sm:$0xf]
    %v139 = vld [vmem:[#allocation4 + $0x8] sm:$0xf]
    %v140 = vld [vmem:[#allocation4 + $0xc] sm:$0xf]
    %v141 = vld [vmem:[#allocation4 + $0x10] sm:$0xf]
    %v142 = vld [vmem:[#allocation4 + $0x14] sm:$0xf]
    %v143 = vld [vmem:[#allocation4 + $0x18] sm:$0xf]
    %v144 = vld [vmem:[#allocation4 + $0x1c] sm:$0xf]
    %v145 = vld [vmem:[#allocation4 + $0x20] sm:$0xf]
    %v146 = vld [vmem:[#allocation4 + $0x24] sm:$0xf]
    %v147 = vld [vmem:[#allocation4 + $0x28] sm:$0xf]
    %v148 = vld [vmem:[#allocation4 + $0x2c] sm:$0xf]
    %v149 = vld [vmem:[#allocation4 + $0x30] sm:$0xf]
    %v150 = vld [vmem:[#allocation4 + $0x34] sm:$0xf]
    %v151 = vld [vmem:[#allocation4 + $0x38] sm:$0xf]
    %v152 = vld [vmem:[#allocation4 + $0x3c] sm:$0xf]
    %v153 = vld [vmem:[#allocation4 + $0x40] sm:$0xf]
    %v154 = vld [vmem:[#allocation4 + $0x44] sm:$0xf]
    %v219 = vunpack.c.l.b16 %v73
    %v220 = vunpack.c.h.b16 %v73
    %v221 = vunpack.c.l.b16 %v74
    %v222 = vunpack.c.h.b16 %v74
    %v223 = vunpack.c.l.b16 %v75
    %v224 = vunpack.c.h.b16 %v75
    %v225 = vunpack.c.l.b16 %v76
    %v226 = vunpack.c.h.b16 %v76
    %v227 = vunpack.c.l.b16 %v77
    %v228 = vunpack.c.h.b16 %v77
    %v229 = vunpack.c.l.b16 %v78
    %v230 = vunpack.c.h.b16 %v78
    %v231 = vunpack.c.l.b16 %v79
    %v232 = vunpack.c.h.b16 %v79
    %v233 = vunpack.c.l.b16 %v80
    %v234 = vunpack.c.h.b16 %v80
    %v235 = vunpack.c.l.b16 %v81
    %v236 = vunpack.c.h.b16 %v81
    %v237 = vunpack.c.l.b16 %v82
    %v238 = vunpack.c.h.b16 %v82
    %v239 = vunpack.c.l.b16 %v83
    %v240 = vunpack.c.h.b16 %v83
    %v241 = vunpack.c.l.b16 %v84
    %v242 = vunpack.c.h.b16 %v84
    %v243 = vunpack.c.l.b16 %v85
    %v244 = vunpack.c.h.b16 %v85
    %v245 = vunpack.c.l.b16 %v86
    %v246 = vunpack.c.h.b16 %v86
    %v247 = vunpack.c.l.b16 %v87
    %v248 = vunpack.c.h.b16 %v87
    %v249 = vunpack.c.l.b16 %v88
    %v250 = vunpack.c.h.b16 %v88
    %v251 = vunpack.c.l.b16 %v89
    %v252 = vunpack.c.h.b16 %v89
    %v253 = vunpack.c.l.b16 %v90
    %v254 = vunpack.c.h.b16 %v90
    %v255 = vunpack.c.l.b16 %v91
    %v256 = vunpack.c.h.b16 %v91
    %v257 = vunpack.c.l.b16 %v92
    %v258 = vunpack.c.h.b16 %v92
    %v259 = vunpack.c.l.b16 %v93
    %v260 = vunpack.c.h.b16 %v93
    %v261 = vunpack.c.l.b16 %v94
    %v262 = vunpack.c.h.b16 %v94
    %v263 = vunpack.c.l.b16 %v95
    %v264 = vunpack.c.h.b16 %v95
    %v265 = vunpack.c.l.b16 %v96
    %v266 = vunpack.c.h.b16 %v96
    %v267 = vunpack.c.l.b16 %v97
    %v268 = vunpack.c.h.b16 %v97
    %v269 = vunpack.c.l.b16 %v98
    %v270 = vunpack.c.h.b16 %v98
    %v271 = vunpack.c.l.b16 %v99
    %v272 = vunpack.c.h.b16 %v99
    %v273 = vunpack.c.l.b16 %v100
    %v274 = vunpack.c.h.b16 %v100
    %v275 = vunpack.c.l.b16 %v101
    %v276 = vunpack.c.h.b16 %v101
    %v277 = vunpack.c.l.b16 %v102
    %v278 = vunpack.c.h.b16 %v102
    %v279 = vunpack.c.l.b16 %v103
    %v280 = vunpack.c.h.b16 %v103
    %v281 = vunpack.c.l.b16 %v104
    %v282 = vunpack.c.h.b16 %v104
    %v283 = vunpack.c.l.b16 %v105
    %v284 = vunpack.c.h.b16 %v105
    %v285 = vunpack.c.l.b16 %v106
    %v286 = vunpack.c.h.b16 %v106
    %v287 = vunpack.c.l.b16 %v107
    %v288 = vunpack.c.h.b16 %v107
    %v289 = vunpack.c.l.b16 %v108
    %v290 = vunpack.c.h.b16 %v108
    %v291 = vunpack.c.l.b16 %v109
    %v292 = vunpack.c.h.b16 %v109
    %v293 = vunpack.c.l.b16 %v110
    %v294 = vunpack.c.h.b16 %v110
    %v295 = vunpack.c.l.b16 %v111
    %v296 = vunpack.c.h.b16 %v111
    %v297 = vunpack.c.l.b16 %v112
    %v298 = vunpack.c.h.b16 %v112
    %v299 = vunpack.c.l.b16 %v113
    %v300 = vunpack.c.h.b16 %v113
    %v301 = vunpack.c.l.b16 %v114
    %v302 = vunpack.c.h.b16 %v114
    %v303 = vunpack.c.l.b16 %v115
    %v304 = vunpack.c.h.b16 %v115
    %v305 = vunpack.c.l.b16 %v116
    %v306 = vunpack.c.h.b16 %v116
    %v307 = vunpack.c.l.b16 %v117
    %v308 = vunpack.c.h.b16 %v117
    %v309 = vunpack.c.l.b16 %v118
    %v310 = vunpack.c.h.b16 %v118
    %v311 = vunpack.c.l.b16 %v119
    %v312 = vunpack.c.h.b16 %v119
    %v313 = vunpack.c.l.b16 %v120
    %v314 = vunpack.c.h.b16 %v120
    %v315 = vunpack.c.l.b16 %v121
    %v316 = vunpack.c.h.b16 %v121
    %v317 = vunpack.c.l.b16 %v122
    %v318 = vunpack.c.h.b16 %v122
    %v319 = vunpack.c.l.b16 %v123
    %v320 = vunpack.c.h.b16 %v123
    %v321 = vunpack.c.l.b16 %v124
    %v322 = vunpack.c.h.b16 %v124
    %v323 = vunpack.c.l.b16 %v125
    %v324 = vunpack.c.h.b16 %v125
    %v325 = vunpack.c.l.b16 %v126
    %v326 = vunpack.c.h.b16 %v126
    %v327 = vunpack.c.l.b16 %v127
    %v328 = vunpack.c.h.b16 %v127
    %v329 = vunpack.c.l.b16 %v128
    %v330 = vunpack.c.h.b16 %v128
    %v331 = vunpack.c.l.b16 %v129
    %v332 = vunpack.c.h.b16 %v129
    %v333 = vunpack.c.l.b16 %v130
    %v334 = vunpack.c.h.b16 %v130
    %v335 = vunpack.c.l.b16 %v131
    %v336 = vunpack.c.h.b16 %v131
    %v337 = vunpack.c.l.b16 %v132
    %v338 = vunpack.c.h.b16 %v132
    %v339 = vunpack.c.l.b16 %v133
    %v340 = vunpack.c.h.b16 %v133
    %v341 = vunpack.c.l.b16 %v134
    %v342 = vunpack.c.h.b16 %v134
    %v343 = vunpack.c.l.b16 %v135
    %v344 = vunpack.c.h.b16 %v135
    %v345 = vunpack.c.l.b16 %v136
    %v346 = vunpack.c.h.b16 %v136
    %v347 = vpack.c.b16 %v221, %v219
    %v348 = vpack.c.b16 %v222, %v220
    %v349 = vpack.c.b16 %v225, %v223
    %v350 = vpack.c.b16 %v226, %v224
    %v351 = vpack.c.b16 %v229, %v227
    %v352 = vpack.c.b16 %v230, %v228
    %v353 = vpack.c.b16 %v233, %v231
    %v354 = vpack.c.b16 %v234, %v232
    %v355 = vpack.c.b16 %v237, %v235
    %v356 = vpack.c.b16 %v238, %v236
    %v357 = vpack.c.b16 %v241, %v239
    %v358 = vpack.c.b16 %v242, %v240
    %v359 = vpack.c.b16 %v245, %v243
    %v360 = vpack.c.b16 %v246, %v244
    %v361 = vpack.c.b16 %v249, %v247
    %v362 = vpack.c.b16 %v250, %v248
    %v363 = vpack.c.b16 %v253, %v251
    %v364 = vpack.c.b16 %v254, %v252
    %v365 = vpack.c.b16 %v257, %v255
    %v366 = vpack.c.b16 %v258, %v256
    %v367 = vpack.c.b16 %v261, %v259
    %v368 = vpack.c.b16 %v262, %v260
    %v369 = vpack.c.b16 %v265, %v263
    %v370 = vpack.c.b16 %v266, %v264
    %v371 = vpack.c.b16 %v269, %v267
    %v372 = vpack.c.b16 %v270, %v268
    %v373 = vpack.c.b16 %v273, %v271
    %v374 = vpack.c.b16 %v274, %v272
    %v375 = vpack.c.b16 %v277, %v275
    %v376 = vpack.c.b16 %v278, %v276
    %v377 = vpack.c.b16 %v281, %v279
    %v378 = vpack.c.b16 %v282, %v280
    %v379 = vpack.c.b16 %v285, %v283
    %v380 = vpack.c.b16 %v286, %v284
    %v381 = vpack.c.b16 %v289, %v287
    %v382 = vpack.c.b16 %v290, %v288
    %v383 = vpack.c.b16 %v293, %v291
    %v384 = vpack.c.b16 %v294, %v292
    %v385 = vpack.c.b16 %v297, %v295
    %v386 = vpack.c.b16 %v298, %v296
    %v387 = vpack.c.b16 %v301, %v299
    %v388 = vpack.c.b16 %v302, %v300
    %v389 = vpack.c.b16 %v305, %v303
    %v390 = vpack.c.b16 %v306, %v304
    %v391 = vpack.c.b16 %v309, %v307
    %v392 = vpack.c.b16 %v310, %v308
    %v393 = vpack.c.b16 %v313, %v311
    %v394 = vpack.c.b16 %v314, %v312
    %v395 = vpack.c.b16 %v317, %v315
    %v396 = vpack.c.b16 %v318, %v316
    %v397 = vpack.c.b16 %v321, %v319
    %v398 = vpack.c.b16 %v322, %v320
    %v399 = vpack.c.b16 %v325, %v323
    %v400 = vpack.c.b16 %v326, %v324
    %v401 = vpack.c.b16 %v329, %v327
    %v402 = vpack.c.b16 %v330, %v328
    %v403 = vpack.c.b16 %v333, %v331
    %v404 = vpack.c.b16 %v334, %v332
    %v405 = vpack.c.b16 %v337, %v335
    %v406 = vpack.c.b16 %v338, %v336
    %v407 = vpack.c.b16 %v341, %v339
    %v408 = vpack.c.b16 %v342, %v340
    %v409 = vpack.c.b16 %v345, %v343
    %v410 = vpack.c.b16 %v346, %v344
    %v461 = vunpack.c.l.b16 %v137
    %v462 = vunpack.c.l.b16 %v138
    %v463 = vunpack.c.l.b16 %v139
    %v464 = vunpack.c.l.b16 %v140
    %v465 = vunpack.c.l.b16 %v141
    %v466 = vunpack.c.l.b16 %v142
    %v467 = vunpack.c.l.b16 %v143
    %v468 = vunpack.c.l.b16 %v144
    %v469 = vunpack.c.l.b16 %v145
    %v470 = vunpack.c.l.b16 %v146
    %v471 = vunpack.c.l.b16 %v147
    %v472 = vunpack.c.l.b16 %v148
    %v473 = vunpack.c.l.b16 %v149
    %v474 = vunpack.c.l.b16 %v150
    %v475 = vunpack.c.l.b16 %v151
    %v476 = vunpack.c.l.b16 %v152
    %v477 = vunpack.c.l.b16 %v153
    %v478 = vunpack.c.l.b16 %v154
    %v479 = vpack.c.b16 %v462, %v461
    %v480 = vpack.c.b16 %v464, %v463
    %v481 = vpack.c.b16 %v466, %v465
    %v482 = vpack.c.b16 %v468, %v467
    %v483 = vpack.c.b16 %v470, %v469
    %v484 = vpack.c.b16 %v472, %v471
    %v485 = vpack.c.b16 %v474, %v473
    %v486 = vpack.c.b16 %v476, %v475
    %v487 = vpack.c.b16 %v478, %v477
    %vm497 = vcmask 130048
    %v499 = vsel %vm497, %v348, 0
    %v502 = vsel %vm497, %v350, 0
    %v505 = vsel %vm497, %v352, 0
    %v508 = vsel %vm497, %v354, 0
    %v511 = vsel %vm497, %v356, 0
    %v514 = vsel %vm497, %v358, 0
    %v517 = vsel %vm497, %v360, 0
    %v520 = vsel %vm497, %v362, 0
    %v523 = vsel %vm497, %v364, 0
    %v526 = vsel %vm497, %v366, 0
    %v529 = vsel %vm497, %v368, 0
    %v532 = vsel %vm497, %v370, 0
    %v535 = vsel %vm497, %v372, 0
    %v538 = vsel %vm497, %v374, 0
    %v541 = vsel %vm497, %v376, 0
    %v544 = vsel %vm497, %v378, 0
    %v547 = vsel %vm497, %v380, 0
    %v550 = vsel %vm497, %v382, 0
    %v553 = vsel %vm497, %v384, 0
    %v556 = vsel %vm497, %v386, 0
    %v559 = vsel %vm497, %v388, 0
    %v562 = vsel %vm497, %v390, 0
    %v565 = vsel %vm497, %v392, 0
    %v568 = vsel %vm497, %v394, 0
    %v571 = vsel %vm497, %v396, 0
    %v574 = vsel %vm497, %v398, 0
    %v577 = vsel %vm497, %v400, 0
    %v580 = vsel %vm497, %v402, 0
    %v583 = vsel %vm497, %v404, 0
    %v586 = vsel %vm497, %v406, 0
    %v589 = vsel %vm497, %v408, 0
    %v592 = vsel %vm497, %v410, 0
    %594 = vmatprep.subr.bf16.mxu0 0
    %595 = vmatpush1.bf16.msra.mxu0 %v479
    %596 = vmatprep.subr.bf16.mxu0 0
    %597 = vmatpush1.bf16.msra.mxu0 %v480
    %598 = vmatprep.subr.bf16.mxu0 0
    %599 = vmatpush1.bf16.msra.mxu0 %v481
    %600 = vmatprep.subr.bf16.mxu0 0
    %601 = vmatpush1.bf16.msra.mxu0 %v482
    %602 = vmatprep.subr.bf16.mxu0 0
    %603 = vmatpush1.bf16.msra.mxu0 %v483
    %604 = vmatprep.subr.bf16.mxu0 0
    %605 = vmatpush1.bf16.msra.mxu0 %v484
    %606 = vmatprep.subr.bf16.mxu0 0
    %607 = vmatpush1.bf16.msra.mxu0 %v485
    %608 = vmatprep.subr.bf16.mxu0 0
    %609 = vmatpush1.bf16.msra.mxu0 %v486
    %610 = vmatprep.subr.bf16.mxu0 0
    %611 = vmatpush1.bf16.msra.mxu0 %v487
    %612 = vmatprep.subr.bf16.mxu0 0
    %613 = vmatpush1.bf16.msra.mxu0 0
    %614 = vmatprep.subr.bf16.mxu0 0
    %615 = vmatpush1.bf16.msra.mxu0 0
    %616 = vmatprep.subr.bf16.mxu0 0
    %617 = vmatpush1.bf16.msra.mxu0 0
    %618 = vmatprep.subr.bf16.mxu0 0
    %619 = vmatpush1.bf16.msra.mxu0 0
    %620 = vmatprep.subr.bf16.mxu0 0
    %621 = vmatpush1.bf16.msra.mxu0 0
    %622 = vmatprep.subr.bf16.mxu0 0
    %623 = vmatpush1.bf16.msra.mxu0 0
    %624 = vmatprep.subr.bf16.mxu0 0
    %625 = vmatpush1.bf16.msra.mxu0 0
    %626 = vmatprep.mubr.bf16.mxu0 %v499
    %627 = vmatmul.mubr.bf16.gmra.mrb[0].mxu0 %v347
    %v628 = vpop.f32.mrb[0].mxu0
    %v629 = vadd.f32 0.0, %v628
    %v630 = vpop.f32.mrb[0].mxu0
    %v631 = vpop.f32.mrb[0].mxu0
    %v632 = vadd.f32 0.0, %v631
    %v633 = vpop.f32.mrb[0].mxu0
    %634 = vmatprep.mubr.bf16.mxu0 %v502
    %635 = vmatmul.mubr.bf16.gmra.mrb[0].mxu0 %v349
    %v636 = vpop.f32.mrb[0].mxu0
    %v637 = vadd.f32 0.0, %v636
    %v638 = vpop.f32.mrb[0].mxu0
    %v639 = vpop.f32.mrb[0].mxu0
    %v640 = vadd.f32 0.0, %v639
    %v641 = vpop.f32.mrb[0].mxu0
    %642 = vmatprep.mubr.bf16.mxu0 %v505
    %643 = vmatmul.mubr.bf16.gmra.mrb[0].mxu0 %v351
    %v644 = vpop.f32.mrb[0].mxu0
    %v645 = vadd.f32 0.0, %v644
    %v646 = vpop.f32.mrb[0].mxu0
    %v647 = vpop.f32.mrb[0].mxu0
    %v648 = vadd.f32 0.0, %v647
    %v649 = vpop.f32.mrb[0].mxu0
    %650 = vmatprep.mubr.bf16.mxu0 %v508
    %651 = vmatmul.mubr.bf16.gmra.mrb[0].mxu0 %v353
    %v652 = vpop.f32.mrb[0].mxu0
    %v653 = vadd.f32 0.0, %v652
    %v654 = vpop.f32.mrb[0].mxu0
    %v655 = vpop.f32.mrb[0].mxu0
    %v656 = vadd.f32 0.0, %v655
    %v657 = vpop.f32.mrb[0].mxu0
    %658 = vmatprep.mubr.bf16.mxu0 %v511
    %659 = vmatmul.mubr.bf16.gmra.mrb[0].mxu0 %v355
    %v660 = vpop.f32.mrb[0].mxu0
    %v661 = vadd.f32 0.0, %v660
    %v662 = vpop.f32.mrb[0].mxu0
    %v663 = vpop.f32.mrb[0].mxu0
    %v664 = vadd.f32 0.0, %v663
    %v665 = vpop.f32.mrb[0].mxu0
    %666 = vmatprep.mubr.bf16.mxu0 %v514
    %667 = vmatmul.mubr.bf16.gmra.mrb[0].mxu0 %v357
    %v668 = vpop.f32.mrb[0].mxu0
    %v669 = vadd.f32 0.0, %v668
    %v670 = vpop.f32.mrb[0].mxu0
    %v671 = vpop.f32.mrb[0].mxu0
    %v672 = vadd.f32 0.0, %v671
    %v673 = vpop.f32.mrb[0].mxu0
    %674 = vmatprep.mubr.bf16.mxu0 %v517
    %675 = vmatmul.mubr.bf16.gmra.mrb[0].mxu0 %v359
    %v676 = vpop.f32.mrb[0].mxu0
    %v677 = vadd.f32 0.0, %v676
    %v678 = vpop.f32.mrb[0].mxu0
    %v679 = vpop.f32.mrb[0].mxu0
    %v680 = vadd.f32 0.0, %v679
    %v681 = vpop.f32.mrb[0].mxu0
    %682 = vmatprep.mubr.bf16.mxu0 %v520
    %683 = vmatmul.mubr.bf16.gmra.mrb[0].mxu0 %v361
    %v684 = vpop.f32.mrb[0].mxu0
    %v685 = vadd.f32 0.0, %v684
    %v686 = vpop.f32.mrb[0].mxu0
    %v687 = vpop.f32.mrb[0].mxu0
    %v688 = vadd.f32 0.0, %v687
    %v689 = vpop.f32.mrb[0].mxu0
    %690 = vmatprep.mubr.bf16.mxu0 %v523
    %691 = vmatmul.mubr.bf16.gmra.mrb[0].mxu0 %v363
    %v692 = vpop.f32.mrb[0].mxu0
    %v693 = vadd.f32 0.0, %v692
    %v694 = vpop.f32.mrb[0].mxu0
    %v695 = vpop.f32.mrb[0].mxu0
    %v696 = vadd.f32 0.0, %v695
    %v697 = vpop.f32.mrb[0].mxu0
    %698 = vmatprep.mubr.bf16.mxu0 %v526
    %699 = vmatmul.mubr.bf16.gmra.mrb[0].mxu0 %v365
    %v700 = vpop.f32.mrb[0].mxu0
    %v701 = vadd.f32 0.0, %v700
    %v702 = vpop.f32.mrb[0].mxu0
    %v703 = vpop.f32.mrb[0].mxu0
    %v704 = vadd.f32 0.0, %v703
    %v705 = vpop.f32.mrb[0].mxu0
    %706 = vmatprep.mubr.bf16.mxu0 %v529
    %707 = vmatmul.mubr.bf16.gmra.mrb[0].mxu0 %v367
    %v708 = vpop.f32.mrb[0].mxu0
    %v709 = vadd.f32 0.0, %v708
    %v710 = vpop.f32.mrb[0].mxu0
    %v711 = vpop.f32.mrb[0].mxu0
    %v712 = vadd.f32 0.0, %v711
    %v713 = vpop.f32.mrb[0].mxu0
    %714 = vmatprep.mubr.bf16.mxu0 %v532
    %715 = vmatmul.mubr.bf16.gmra.mrb[0].mxu0 %v369
    %v716 = vpop.f32.mrb[0].mxu0
    %v717 = vadd.f32 0.0, %v716
    %v718 = vpop.f32.mrb[0].mxu0
    %v719 = vpop.f32.mrb[0].mxu0
    %v720 = vadd.f32 0.0, %v719
    %v721 = vpop.f32.mrb[0].mxu0
    %722 = vmatprep.mubr.bf16.mxu0 %v535
    %723 = vmatmul.mubr.bf16.gmra.mrb[0].mxu0 %v371
    %v724 = vpop.f32.mrb[0].mxu0
    %v725 = vadd.f32 0.0, %v724
    %v726 = vpop.f32.mrb[0].mxu0
    %v727 = vpop.f32.mrb[0].mxu0
    %v728 = vadd.f32 0.0, %v727
    %v729 = vpop.f32.mrb[0].mxu0
    %730 = vmatprep.mubr.bf16.mxu0 %v538
    %731 = vmatmul.mubr.bf16.gmra.mrb[0].mxu0 %v373
    %v732 = vpop.f32.mrb[0].mxu0
    %v733 = vadd.f32 0.0, %v732
    %v734 = vpop.f32.mrb[0].mxu0
    %v735 = vpop.f32.mrb[0].mxu0
    %v736 = vadd.f32 0.0, %v735
    %v737 = vpop.f32.mrb[0].mxu0
    %738 = vmatprep.mubr.bf16.mxu0 %v541
    %739 = vmatmul.mubr.bf16.gmra.mrb[0].mxu0 %v375
    %v740 = vpop.f32.mrb[0].mxu0
    %v741 = vadd.f32 0.0, %v740
    %v742 = vpop.f32.mrb[0].mxu0
    %v743 = vpop.f32.mrb[0].mxu0
    %v744 = vadd.f32 0.0, %v743
    %v745 = vpop.f32.mrb[0].mxu0
    %746 = vmatprep.mubr.bf16.mxu0 %v544
    %747 = vmatmul.mubr.bf16.gmra.mrb[0].mxu0 %v377
    %v748 = vpop.f32.mrb[0].mxu0
    %v749 = vadd.f32 0.0, %v748
    %v750 = vpop.f32.mrb[0].mxu0
    %v751 = vpop.f32.mrb[0].mxu0
    %v752 = vadd.f32 0.0, %v751
    %v753 = vpop.f32.mrb[0].mxu0
    %754 = vmatprep.mubr.bf16.mxu0 %v547
    %755 = vmatmul.mubr.bf16.gmra.mrb[0].mxu0 %v379
    %v756 = vpop.f32.mrb[0].mxu0
    %v757 = vadd.f32 0.0, %v756
    %v758 = vpop.f32.mrb[0].mxu0
    %v759 = vpop.f32.mrb[0].mxu0
    %v760 = vadd.f32 0.0, %v759
    %v761 = vpop.f32.mrb[0].mxu0
    %762 = vmatprep.mubr.bf16.mxu0 %v550
    %763 = vmatmul.mubr.bf16.gmra.mrb[0].mxu0 %v381
    %v764 = vpop.f32.mrb[0].mxu0
    %v765 = vadd.f32 0.0, %v764
    %v766 = vpop.f32.mrb[0].mxu0
    %v767 = vpop.f32.mrb[0].mxu0
    %v768 = vadd.f32 0.0, %v767
    %v769 = vpop.f32.mrb[0].mxu0
    %770 = vmatprep.mubr.bf16.mxu0 %v553
    %771 = vmatmul.mubr.bf16.gmra.mrb[0].mxu0 %v383
    %v772 = vpop.f32.mrb[0].mxu0
    %v773 = vadd.f32 0.0, %v772
    %v774 = vpop.f32.mrb[0].mxu0
    %v775 = vpop.f32.mrb[0].mxu0
    %v776 = vadd.f32 0.0, %v775
    %v777 = vpop.f32.mrb[0].mxu0
    %778 = vmatprep.mubr.bf16.mxu0 %v556
    %779 = vmatmul.mubr.bf16.gmra.mrb[0].mxu0 %v385
    %v780 = vpop.f32.mrb[0].mxu0
    %v781 = vadd.f32 0.0, %v780
    %v782 = vpop.f32.mrb[0].mxu0
    %v783 = vpop.f32.mrb[0].mxu0
    %v784 = vadd.f32 0.0, %v783
    %v785 = vpop.f32.mrb[0].mxu0
    %786 = vmatprep.mubr.bf16.mxu0 %v559
    %787 = vmatmul.mubr.bf16.gmra.mrb[0].mxu0 %v387
    %v788 = vpop.f32.mrb[0].mxu0
    %v789 = vadd.f32 0.0, %v788
    %v790 = vpop.f32.mrb[0].mxu0
    %v791 = vpop.f32.mrb[0].mxu0
    %v792 = vadd.f32 0.0, %v791
    %v793 = vpop.f32.mrb[0].mxu0
    %794 = vmatprep.mubr.bf16.mxu0 %v562
    %795 = vmatmul.mubr.bf16.gmra.mrb[0].mxu0 %v389
    %v796 = vpop.f32.mrb[0].mxu0
    %v797 = vadd.f32 0.0, %v796
    %v798 = vpop.f32.mrb[0].mxu0
    %v799 = vpop.f32.mrb[0].mxu0
    %v800 = vadd.f32 0.0, %v799
    %v801 = vpop.f32.mrb[0].mxu0
    %802 = vmatprep.mubr.bf16.mxu0 %v565
    %803 = vmatmul.mubr.bf16.gmra.mrb[0].mxu0 %v391
    %v804 = vpop.f32.mrb[0].mxu0
    %v805 = vadd.f32 0.0, %v804
    %v806 = vpop.f32.mrb[0].mxu0
    %v807 = vpop.f32.mrb[0].mxu0
    %v808 = vadd.f32 0.0, %v807
    %v809 = vpop.f32.mrb[0].mxu0
    %810 = vmatprep.mubr.bf16.mxu0 %v568
    %811 = vmatmul.mubr.bf16.gmra.mrb[0].mxu0 %v393
    %v812 = vpop.f32.mrb[0].mxu0
    %v813 = vadd.f32 0.0, %v812
    %v814 = vpop.f32.mrb[0].mxu0
    %v815 = vpop.f32.mrb[0].mxu0
    %v816 = vadd.f32 0.0, %v815
    %v817 = vpop.f32.mrb[0].mxu0
    %818 = vmatprep.mubr.bf16.mxu0 %v571
    %819 = vmatmul.mubr.bf16.gmra.mrb[0].mxu0 %v395
    %v820 = vpop.f32.mrb[0].mxu0
    %v821 = vadd.f32 0.0, %v820
    %v822 = vpop.f32.mrb[0].mxu0
    %v823 = vpop.f32.mrb[0].mxu0
    %v824 = vadd.f32 0.0, %v823
    %v825 = vpop.f32.mrb[0].mxu0
    %826 = vmatprep.mubr.bf16.mxu0 %v574
    %827 = vmatmul.mubr.bf16.gmra.mrb[0].mxu0 %v397
    %v828 = vpop.f32.mrb[0].mxu0
    %v829 = vadd.f32 0.0, %v828
    %v830 = vpop.f32.mrb[0].mxu0
    %v831 = vpop.f32.mrb[0].mxu0
    %v832 = vadd.f32 0.0, %v831
    %v833 = vpop.f32.mrb[0].mxu0
    %834 = vmatprep.mubr.bf16.mxu0 %v577
    %835 = vmatmul.mubr.bf16.gmra.mrb[0].mxu0 %v399
    %v836 = vpop.f32.mrb[0].mxu0
    %v837 = vadd.f32 0.0, %v836
    %v838 = vpop.f32.mrb[0].mxu0
    %v839 = vpop.f32.mrb[0].mxu0
    %v840 = vadd.f32 0.0, %v839
    %v841 = vpop.f32.mrb[0].mxu0
    %842 = vmatprep.mubr.bf16.mxu0 %v580
    %843 = vmatmul.mubr.bf16.gmra.mrb[0].mxu0 %v401
    %v844 = vpop.f32.mrb[0].mxu0
    %v845 = vadd.f32 0.0, %v844
    %v846 = vpop.f32.mrb[0].mxu0
    %v847 = vpop.f32.mrb[0].mxu0
    %v848 = vadd.f32 0.0, %v847
    %v849 = vpop.f32.mrb[0].mxu0
    %850 = vmatprep.mubr.bf16.mxu0 %v583
    %851 = vmatmul.mubr.bf16.gmra.mrb[0].mxu0 %v403
    %v852 = vpop.f32.mrb[0].mxu0
    %v853 = vadd.f32 0.0, %v852
    %v854 = vpop.f32.mrb[0].mxu0
    %v855 = vpop.f32.mrb[0].mxu0
    %v856 = vadd.f32 0.0, %v855
    %v857 = vpop.f32.mrb[0].mxu0
    %858 = vmatprep.mubr.bf16.mxu0 %v586
    %859 = vmatmul.mubr.bf16.gmra.mrb[0].mxu0 %v405
    %v860 = vpop.f32.mrb[0].mxu0
    %v861 = vadd.f32 0.0, %v860
    %v862 = vpop.f32.mrb[0].mxu0
    %v863 = vpop.f32.mrb[0].mxu0
    %v864 = vadd.f32 0.0, %v863
    %v865 = vpop.f32.mrb[0].mxu0
    %866 = vmatprep.mubr.bf16.mxu0 %v589
    %867 = vmatmul.mubr.bf16.gmra.mrb[0].mxu0 %v407
    %v868 = vpop.f32.mrb[0].mxu0
    %v869 = vadd.f32 0.0, %v868
    %v870 = vpop.f32.mrb[0].mxu0
    %v871 = vpop.f32.mrb[0].mxu0
    %v872 = vadd.f32 0.0, %v871
    %v873 = vpop.f32.mrb[0].mxu0
    %874 = vmatprep.mubr.bf16.mxu0 %v592
    %875 = vmatmul.mubr.bf16.gmra.mrb[0].mxu0 %v409
    %v876 = vpop.f32.mrb[0].mxu0
    %v877 = vadd.f32 0.0, %v876
    %v878 = vpop.f32.mrb[0].mxu0
    %v879 = vpop.f32.mrb[0].mxu0
    %v880 = vadd.f32 0.0, %v879
    %v881 = vpop.f32.mrb[0].mxu0
    %882 = vdwg.mxu0
    %v883 = vpack.c.bf16 %v632, %v629
    %v884 = vpack.c.bf16 %v640, %v637
    %v885 = vpack.c.bf16 %v648, %v645
    %v886 = vpack.c.bf16 %v656, %v653
    %v887 = vpack.c.bf16 %v664, %v661
    %v888 = vpack.c.bf16 %v672, %v669
    %v889 = vpack.c.bf16 %v680, %v677
    %v890 = vpack.c.bf16 %v688, %v685
    %v891 = vpack.c.bf16 %v696, %v693
    %v892 = vpack.c.bf16 %v704, %v701
    %v893 = vpack.c.bf16 %v712, %v709
    %v894 = vpack.c.bf16 %v720, %v717
    %v895 = vpack.c.bf16 %v728, %v725
    %v896 = vpack.c.bf16 %v736, %v733
    %v897 = vpack.c.bf16 %v744, %v741
    %v898 = vpack.c.bf16 %v752, %v749
    %v899 = vpack.c.bf16 %v760, %v757
    %v900 = vpack.c.bf16 %v768, %v765
    %v901 = vpack.c.bf16 %v776, %v773
    %v902 = vpack.c.bf16 %v784, %v781
    %v903 = vpack.c.bf16 %v792, %v789
    %v904 = vpack.c.bf16 %v800, %v797
    %v905 = vpack.c.bf16 %v808, %v805
    %v906 = vpack.c.bf16 %v816, %v813
    %v907 = vpack.c.bf16 %v824, %v821
    %v908 = vpack.c.bf16 %v832, %v829
    %v909 = vpack.c.bf16 %v840, %v837
    %v910 = vpack.c.bf16 %v848, %v845
    %v911 = vpack.c.bf16 %v856, %v853
    %v912 = vpack.c.bf16 %v864, %v861
    %v913 = vpack.c.bf16 %v872, %v869
    %v914 = vpack.c.bf16 %v880, %v877
    %v947 = vunpack.c.l.b16 %v883
    %v948 = vunpack.c.h.b16 %v883
    %v949 = vunpack.c.l.b16 %v884
    %v950 = vunpack.c.h.b16 %v884
    %v951 = vunpack.c.l.b16 %v885
    %v952 = vunpack.c.h.b16 %v885
    %v953 = vunpack.c.l.b16 %v886
    %v954 = vunpack.c.h.b16 %v886
    %v955 = vunpack.c.l.b16 %v887
    %v956 = vunpack.c.h.b16 %v887
    %v957 = vunpack.c.l.b16 %v888
    %v958 = vunpack.c.h.b16 %v888
    %v959 = vunpack.c.l.b16 %v889
    %v960 = vunpack.c.h.b16 %v889
    %v961 = vunpack.c.l.b16 %v890
    %v962 = vunpack.c.h.b16 %v890
    %v963 = vunpack.c.l.b16 %v891
    %v964 = vunpack.c.h.b16 %v891
    %v965 = vunpack.c.l.b16 %v892
    %v966 = vunpack.c.h.b16 %v892
    %v967 = vunpack.c.l.b16 %v893
    %v968 = vunpack.c.h.b16 %v893
    %v969 = vunpack.c.l.b16 %v894
    %v970 = vunpack.c.h.b16 %v894
    %v971 = vunpack.c.l.b16 %v895
    %v972 = vunpack.c.h.b16 %v895
    %v973 = vunpack.c.l.b16 %v896
    %v974 = vunpack.c.h.b16 %v896
    %v975 = vunpack.c.l.b16 %v897
    %v976 = vunpack.c.h.b16 %v897
    %v977 = vunpack.c.l.b16 %v898
    %v978 = vunpack.c.h.b16 %v898
    %v979 = vunpack.c.l.b16 %v899
    %v980 = vunpack.c.h.b16 %v899
    %v981 = vunpack.c.l.b16 %v900
    %v982 = vunpack.c.h.b16 %v900
    %v983 = vunpack.c.l.b16 %v901
    %v984 = vunpack.c.h.b16 %v901
    %v985 = vunpack.c.l.b16 %v902
    %v986 = vunpack.c.h.b16 %v902
    %v987 = vunpack.c.l.b16 %v903
    %v988 = vunpack.c.h.b16 %v903
    %v989 = vunpack.c.l.b16 %v904
    %v990 = vunpack.c.h.b16 %v904
    %v991 = vunpack.c.l.b16 %v905
    %v992 = vunpack.c.h.b16 %v905
    %v993 = vunpack.c.l.b16 %v906
    %v994 = vunpack.c.h.b16 %v906
    %v995 = vunpack.c.l.b16 %v907
    %v996 = vunpack.c.h.b16 %v907
    %v997 = vunpack.c.l.b16 %v908
    %v998 = vunpack.c.h.b16 %v908
    %v999 = vunpack.c.l.b16 %v909
    %v1000 = vunpack.c.h.b16 %v909
    %v1001 = vunpack.c.l.b16 %v910
    %v1002 = vunpack.c.h.b16 %v910
    %v1003 = vunpack.c.l.b16 %v911
    %v1004 = vunpack.c.h.b16 %v911
    %v1005 = vunpack.c.l.b16 %v912
    %v1006 = vunpack.c.h.b16 %v912
    %v1007 = vunpack.c.l.b16 %v913
    %v1008 = vunpack.c.h.b16 %v913
    %v1009 = vunpack.c.l.b16 %v914
    %v1010 = vunpack.c.h.b16 %v914
    %v1011 = vpack.c.b16 %v947, %v947
    %v1012 = vpack.c.b16 %v948, %v948
    %v1013 = vpack.c.b16 %v949, %v949
    %v1014 = vpack.c.b16 %v950, %v950
    %v1015 = vpack.c.b16 %v951, %v951
    %v1016 = vpack.c.b16 %v952, %v952
    %v1017 = vpack.c.b16 %v953, %v953
    %v1018 = vpack.c.b16 %v954, %v954
    %v1019 = vpack.c.b16 %v955, %v955
    %v1020 = vpack.c.b16 %v956, %v956
    %v1021 = vpack.c.b16 %v957, %v957
    %v1022 = vpack.c.b16 %v958, %v958
    %v1023 = vpack.c.b16 %v959, %v959
    %v1024 = vpack.c.b16 %v960, %v960
    %v1025 = vpack.c.b16 %v961, %v961
    %v1026 = vpack.c.b16 %v962, %v962
    %v1027 = vpack.c.b16 %v963, %v963
    %v1028 = vpack.c.b16 %v964, %v964
    %v1029 = vpack.c.b16 %v965, %v965
    %v1030 = vpack.c.b16 %v966, %v966
    %v1031 = vpack.c.b16 %v967, %v967
    %v1032 = vpack.c.b16 %v968, %v968
    %v1033 = vpack.c.b16 %v969, %v969
    %v1034 = vpack.c.b16 %v970, %v970
    %v1035 = vpack.c.b16 %v971, %v971
    %v1036 = vpack.c.b16 %v972, %v972
    %v1037 = vpack.c.b16 %v973, %v973
    %v1038 = vpack.c.b16 %v974, %v974
    %v1039 = vpack.c.b16 %v975, %v975
    %v1040 = vpack.c.b16 %v976, %v976
    %v1041 = vpack.c.b16 %v977, %v977
    %v1042 = vpack.c.b16 %v978, %v978
    %v1043 = vpack.c.b16 %v979, %v979
    %v1044 = vpack.c.b16 %v980, %v980
    %v1045 = vpack.c.b16 %v981, %v981
    %v1046 = vpack.c.b16 %v982, %v982
    %v1047 = vpack.c.b16 %v983, %v983
    %v1048 = vpack.c.b16 %v984, %v984
    %v1049 = vpack.c.b16 %v985, %v985
    %v1050 = vpack.c.b16 %v986, %v986
    %v1051 = vpack.c.b16 %v987, %v987
    %v1052 = vpack.c.b16 %v988, %v988
    %v1053 = vpack.c.b16 %v989, %v989
    %v1054 = vpack.c.b16 %v990, %v990
    %v1055 = vpack.c.b16 %v991, %v991
    %v1056 = vpack.c.b16 %v992, %v992
    %v1057 = vpack.c.b16 %v993, %v993
    %v1058 = vpack.c.b16 %v994, %v994
    %v1059 = vpack.c.b16 %v995, %v995
    %v1060 = vpack.c.b16 %v996, %v996
    %v1061 = vpack.c.b16 %v997, %v997
    %v1062 = vpack.c.b16 %v998, %v998
    %v1063 = vpack.c.b16 %v999, %v999
    %v1064 = vpack.c.b16 %v1000, %v1000
    %v1065 = vpack.c.b16 %v1001, %v1001
    %v1066 = vpack.c.b16 %v1002, %v1002
    %v1067 = vpack.c.b16 %v1003, %v1003
    %v1068 = vpack.c.b16 %v1004, %v1004
    %v1069 = vpack.c.b16 %v1005, %v1005
    %v1070 = vpack.c.b16 %v1006, %v1006
    %v1071 = vpack.c.b16 %v1007, %v1007
    %v1072 = vpack.c.b16 %v1008, %v1008
    %v1073 = vpack.c.b16 %v1009, %v1009
    %v1074 = vpack.c.b16 %v1010, %v1010
    %1139 = vst [vmem:[%s63] sm:$0xf] %v1011
    %1140 = vst [vmem:[%s63 + $0x4] sm:$0xf] %v1012
    %1141 = vst [vmem:[%s63 + $0x8] sm:$0xf] %v1013
    %1142 = vst [vmem:[%s63 + $0xc] sm:$0xf] %v1014
    %1143 = vst [vmem:[%s63 + $0x10] sm:$0xf] %v1015
    %1144 = vst [vmem:[%s63 + $0x14] sm:$0xf] %v1016
    %1145 = vst [vmem:[%s63 + $0x18] sm:$0xf] %v1017
    %1146 = vst [vmem:[%s63 + $0x1c] sm:$0xf] %v1018
    %1147 = vst [vmem:[%s63 + $0x20] sm:$0xf] %v1019
    %1148 = vst [vmem:[%s63 + $0x24] sm:$0xf] %v1020
    %1149 = vst [vmem:[%s63 + $0x28] sm:$0xf] %v1021
    %1150 = vst [vmem:[%s63 + $0x2c] sm:$0xf] %v1022
    %1151 = vst [vmem:[%s63 + $0x30] sm:$0xf] %v1023
    %1152 = vst [vmem:[%s63 + $0x34] sm:$0xf] %v1024
    %1153 = vst [vmem:[%s63 + $0x38] sm:$0xf] %v1025
    %1154 = vst [vmem:[%s63 + $0x3c] sm:$0xf] %v1026
    %1155 = vst [vmem:[%s63 + $0x40] sm:$0xf] %v1027
    %1156 = vst [vmem:[%s63 + $0x44] sm:$0xf] %v1028
    %1157 = vst [vmem:[%s63 + $0x48] sm:$0xf] %v1029
    %1158 = vst [vmem:[%s63 + $0x4c] sm:$0xf] %v1030
    %1159 = vst [vmem:[%s63 + $0x50] sm:$0xf] %v1031
    %1160 = vst [vmem:[%s63 + $0x54] sm:$0xf] %v1032
    %1161 = vst [vmem:[%s63 + $0x58] sm:$0xf] %v1033
    %1162 = vst [vmem:[%s63 + $0x5c] sm:$0xf] %v1034
    %1163 = vst [vmem:[%s63 + $0x60] sm:$0xf] %v1035
    %1164 = vst [vmem:[%s63 + $0x64] sm:$0xf] %v1036
    %1165 = vst [vmem:[%s63 + $0x68] sm:$0xf] %v1037
    %1166 = vst [vmem:[%s63 + $0x6c] sm:$0xf] %v1038
    %1167 = vst [vmem:[%s63 + $0x70] sm:$0xf] %v1039
    %1168 = vst [vmem:[%s63 + $0x74] sm:$0xf] %v1040
    %1169 = vst [vmem:[%s63 + $0x78] sm:$0xf] %v1041
    %1170 = vst [vmem:[%s63 + $0x7c] sm:$0xf] %v1042
    %1171 = vst [vmem:[%s63 + $0x80] sm:$0xf] %v1043
    %1172 = vst [vmem:[%s63 + $0x84] sm:$0xf] %v1044
    %1173 = vst [vmem:[%s63 + $0x88] sm:$0xf] %v1045
    %1174 = vst [vmem:[%s63 + $0x8c] sm:$0xf] %v1046
    %1175 = vst [vmem:[%s63 + $0x90] sm:$0xf] %v1047
    %1176 = vst [vmem:[%s63 + $0x94] sm:$0xf] %v1048
    %1177 = vst [vmem:[%s63 + $0x98] sm:$0xf] %v1049
    %1178 = vst [vmem:[%s63 + $0x9c] sm:$0xf] %v1050
    %1179 = vst [vmem:[%s63 + $0xa0] sm:$0xf] %v1051
    %1180 = vst [vmem:[%s63 + $0xa4] sm:$0xf] %v1052
    %1181 = vst [vmem:[%s63 + $0xa8] sm:$0xf] %v1053
    %1182 = vst [vmem:[%s63 + $0xac] sm:$0xf] %v1054
    %1183 = vst [vmem:[%s63 + $0xb0] sm:$0xf] %v1055
    %1184 = vst [vmem:[%s63 + $0xb4] sm:$0xf] %v1056
    %1185 = vst [vmem:[%s63 + $0xb8] sm:$0xf] %v1057
    %1186 = vst [vmem:[%s63 + $0xbc] sm:$0xf] %v1058
    %1187 = vst [vmem:[%s63 + $0xc0] sm:$0xf] %v1059
    %1188 = vst [vmem:[%s63 + $0xc4] sm:$0xf] %v1060
    %1189 = vst [vmem:[%s63 + $0xc8] sm:$0xf] %v1061
    %1190 = vst [vmem:[%s63 + $0xcc] sm:$0xf] %v1062
    %1191 = vst [vmem:[%s63 + $0xd0] sm:$0xf] %v1063
    %1192 = vst [vmem:[%s63 + $0xd4] sm:$0xf] %v1064
    %1193 = vst [vmem:[%s63 + $0xd8] sm:$0xf] %v1065
    %1194 = vst [vmem:[%s63 + $0xdc] sm:$0xf] %v1066
    %1195 = vst [vmem:[%s63 + $0xe0] sm:$0xf] %v1067
    %1196 = vst [vmem:[%s63 + $0xe4] sm:$0xf] %v1068
    %1197 = vst [vmem:[%s63 + $0xe8] sm:$0xf] %v1069
    %1198 = vst [vmem:[%s63 + $0xec] sm:$0xf] %v1070
    %1199 = vst [vmem:[%s63 + $0xf0] sm:$0xf] %v1071
    %1200 = vst [vmem:[%s63 + $0xf4] sm:$0xf] %v1072
    %1201 = vst [vmem:[%s63 + $0xf8] sm:$0xf] %v1073
    %1202 = vst [vmem:[%s63 + $0xfc] sm:$0xf] %v1074
    %v1203 = vld [vmem:[#allocation2] sm:$0x1]
    %v1204 = vadd.f32 %v629, %v632
    %v1205 = vadd.f32 %v1204, %v637
    %v1206 = vadd.f32 %v1205, %v640
    %v1207 = vadd.f32 %v1206, %v645
    %v1208 = vadd.f32 %v1207, %v648
    %v1209 = vadd.f32 %v1208, %v653
    %v1210 = vadd.f32 %v1209, %v656
    %v1211 = vadd.f32 %v1210, %v661
    %v1212 = vadd.f32 %v1211, %v664
    %v1213 = vadd.f32 %v1212, %v669
    %v1214 = vadd.f32 %v1213, %v672
    %v1215 = vadd.f32 %v1214, %v677
    %v1216 = vadd.f32 %v1215, %v680
    %v1217 = vadd.f32 %v1216, %v685
    %v1218 = vadd.f32 %v1217, %v688
    %v1219 = vadd.f32 %v1218, %v693
    %v1220 = vadd.f32 %v1219, %v696
    %v1221 = vadd.f32 %v1220, %v701
    %v1222 = vadd.f32 %v1221, %v704
    %v1223 = vadd.f32 %v1222, %v709
    %v1224 = vadd.f32 %v1223, %v712
    %v1225 = vadd.f32 %v1224, %v717
    %v1226 = vadd.f32 %v1225, %v720
    %v1227 = vadd.f32 %v1226, %v725
    %v1228 = vadd.f32 %v1227, %v728
    %v1229 = vadd.f32 %v1228, %v733
    %v1230 = vadd.f32 %v1229, %v736
    %v1231 = vadd.f32 %v1230, %v741
    %v1232 = vadd.f32 %v1231, %v744
    %v1233 = vadd.f32 %v1232, %v749
    %v1234 = vadd.f32 %v1233, %v752
    %v1235 = vadd.f32 %v1234, %v757
    %v1236 = vadd.f32 %v1235, %v760
    %v1237 = vadd.f32 %v1236, %v765
    %v1238 = vadd.f32 %v1237, %v768
    %v1239 = vadd.f32 %v1238, %v773
    %v1240 = vadd.f32 %v1239, %v776
    %v1241 = vadd.f32 %v1240, %v781
    %v1242 = vadd.f32 %v1241, %v784
    %v1243 = vadd.f32 %v1242, %v789
    %v1244 = vadd.f32 %v1243, %v792
    %v1245 = vadd.f32 %v1244, %v797
    %v1246 = vadd.f32 %v1245, %v800
    %v1247 = vadd.f32 %v1246, %v805
    %v1248 = vadd.f32 %v1247, %v808
    %v1249 = vadd.f32 %v1248, %v813
    %v1250 = vadd.f32 %v1249, %v816
    %v1251 = vadd.f32 %v1250, %v821
    %v1252 = vadd.f32 %v1251, %v824
    %v1253 = vadd.f32 %v1252, %v829
    %v1254 = vadd.f32 %v1253, %v832
    %v1255 = vadd.f32 %v1254, %v837
    %v1256 = vadd.f32 %v1255, %v840
    %v1257 = vadd.f32 %v1256, %v845
    %v1258 = vadd.f32 %v1257, %v848
    %v1259 = vadd.f32 %v1258, %v853
    %v1260 = vadd.f32 %v1259, %v856
    %v1261 = vadd.f32 %v1260, %v861
    %v1262 = vadd.f32 %v1261, %v864
    %v1263 = vadd.f32 %v1262, %v869
    %v1264 = vadd.f32 %v1263, %v872
    %v1265 = vadd.f32 %v1264, %v877
    %v1266 = vadd.f32 %v1265, %v880
    %v1267 = vrot.slane %v1266, 4
    %v1268 = vadd.f32 %v1266, %v1267
    %v1269 = vrot.slane %v1268, 2
    %v1270 = vadd.f32 %v1268, %v1269
    %v1271 = vrot.slane %v1270, 1
    %v1272 = vadd.f32 %v1270, %v1271
    %v1273 = vadd.f32 %v1203, %v1272
    %1274 = vst [vmem:[#allocation2] sm:$0x1] %v1273
    %v1275 = vld [vmem:[#allocation3] sm:$0x1]
    %v1276 = vmul.f32 %v629, %v629
    %v1277 = vmul.f32 %v632, %v632
    %v1278 = vmul.f32 %v637, %v637
    %v1279 = vmul.f32 %v640, %v640
    %v1280 = vmul.f32 %v645, %v645
    %v1281 = vmul.f32 %v648, %v648
    %v1282 = vmul.f32 %v653, %v653
    %v1283 = vmul.f32 %v656, %v656
    %v1284 = vmul.f32 %v661, %v661
    %v1285 = vmul.f32 %v664, %v664
    %v1286 = vmul.f32 %v669, %v669
    %v1287 = vmul.f32 %v672, %v672
    %v1288 = vmul.f32 %v677, %v677
    %v1289 = vmul.f32 %v680, %v680
    %v1290 = vmul.f32 %v685, %v685
    %v1291 = vmul.f32 %v688, %v688
    %v1292 = vmul.f32 %v693, %v693
    %v1293 = vmul.f32 %v696, %v696
    %v1294 = vmul.f32 %v701, %v701
    %v1295 = vmul.f32 %v704, %v704
    %v1296 = vmul.f32 %v709, %v709
    %v1297 = vmul.f32 %v712, %v712
    %v1298 = vmul.f32 %v717, %v717
    %v1299 = vmul.f32 %v720, %v720
    %v1300 = vmul.f32 %v725, %v725
    %v1301 = vmul.f32 %v728, %v728
    %v1302 = vmul.f32 %v733, %v733
    %v1303 = vmul.f32 %v736, %v736
    %v1304 = vmul.f32 %v741, %v741
    %v1305 = vmul.f32 %v744, %v744
    %v1306 = vmul.f32 %v749, %v749
    %v1307 = vmul.f32 %v752, %v752
    %v1308 = vmul.f32 %v757, %v757
    %v1309 = vmul.f32 %v760, %v760
    %v1310 = vmul.f32 %v765, %v765
    %v1311 = vmul.f32 %v768, %v768
    %v1312 = vmul.f32 %v773, %v773
    %v1313 = vmul.f32 %v776, %v776
    %v1314 = vmul.f32 %v781, %v781
    %v1315 = vmul.f32 %v784, %v784
    %v1316 = vmul.f32 %v789, %v789
    %v1317 = vmul.f32 %v792, %v792
    %v1318 = vmul.f32 %v797, %v797
    %v1319 = vmul.f32 %v800, %v800
    %v1320 = vmul.f32 %v805, %v805
    %v1321 = vmul.f32 %v808, %v808
    %v1322 = vmul.f32 %v813, %v813
    %v1323 = vmul.f32 %v816, %v816
    %v1324 = vmul.f32 %v821, %v821
    %v1325 = vmul.f32 %v824, %v824
    %v1326 = vmul.f32 %v829, %v829
    %v1327 = vmul.f32 %v832, %v832
    %v1328 = vmul.f32 %v837, %v837
    %v1329 = vmul.f32 %v840, %v840
    %v1330 = vmul.f32 %v845, %v845
    %v1331 = vmul.f32 %v848, %v848
    %v1332 = vmul.f32 %v853, %v853
    %v1333 = vmul.f32 %v856, %v856
    %v1334 = vmul.f32 %v861, %v861
    %v1335 = vmul.f32 %v864, %v864
    %v1336 = vmul.f32 %v869, %v869
    %v1337 = vmul.f32 %v872, %v872
    %v1338 = vmul.f32 %v877, %v877
    %v1339 = vmul.f32 %v880, %v880
    %v1340 = vadd.f32 %v1276, %v1277
    %v1341 = vadd.f32 %v1340, %v1278
    %v1342 = vadd.f32 %v1341, %v1279
    %v1343 = vadd.f32 %v1342, %v1280
    %v1344 = vadd.f32 %v1343, %v1281
    %v1345 = vadd.f32 %v1344, %v1282
    %v1346 = vadd.f32 %v1345, %v1283
    %v1347 = vadd.f32 %v1346, %v1284
    %v1348 = vadd.f32 %v1347, %v1285
    %v1349 = vadd.f32 %v1348, %v1286
    %v1350 = vadd.f32 %v1349, %v1287
    %v1351 = vadd.f32 %v1350, %v1288
    %v1352 = vadd.f32 %v1351, %v1289
    %v1353 = vadd.f32 %v1352, %v1290
    %v1354 = vadd.f32 %v1353, %v1291
    %v1355 = vadd.f32 %v1354, %v1292
    %v1356 = vadd.f32 %v1355, %v1293
    %v1357 = vadd.f32 %v1356, %v1294
    %v1358 = vadd.f32 %v1357, %v1295
    %v1359 = vadd.f32 %v1358, %v1296
    %v1360 = vadd.f32 %v1359, %v1297
    %v1361 = vadd.f32 %v1360, %v1298
    %v1362 = vadd.f32 %v1361, %v1299
    %v1363 = vadd.f32 %v1362, %v1300
    %v1364 = vadd.f32 %v1363, %v1301
    %v1365 = vadd.f32 %v1364, %v1302
    %v1366 = vadd.f32 %v1365, %v1303
    %v1367 = vadd.f32 %v1366, %v1304
    %v1368 = vadd.f32 %v1367, %v1305
    %v1369 = vadd.f32 %v1368, %v1306
    %v1370 = vadd.f32 %v1369, %v1307
    %v1371 = vadd.f32 %v1370, %v1308
    %v1372 = vadd.f32 %v1371, %v1309
    %v1373 = vadd.f32 %v1372, %v1310
    %v1374 = vadd.f32 %v1373, %v1311
    %v1375 = vadd.f32 %v1374, %v1312
    %v1376 = vadd.f32 %v1375, %v1313
    %v1377 = vadd.f32 %v1376, %v1314
    %v1378 = vadd.f32 %v1377, %v1315
    %v1379 = vadd.f32 %v1378, %v1316
    %v1380 = vadd.f32 %v1379, %v1317
    %v1381 = vadd.f32 %v1380, %v1318
    %v1382 = vadd.f32 %v1381, %v1319
    %v1383 = vadd.f32 %v1382, %v1320
    %v1384 = vadd.f32 %v1383, %v1321
    %v1385 = vadd.f32 %v1384, %v1322
    %v1386 = vadd.f32 %v1385, %v1323
    %v1387 = vadd.f32 %v1386, %v1324
    %v1388 = vadd.f32 %v1387, %v1325
    %v1389 = vadd.f32 %v1388, %v1326
    %v1390 = vadd.f32 %v1389, %v1327
    %v1391 = vadd.f32 %v1390, %v1328
    %v1392 = vadd.f32 %v1391, %v1329
    %v1393 = vadd.f32 %v1392, %v1330
    %v1394 = vadd.f32 %v1393, %v1331
    %v1395 = vadd.f32 %v1394, %v1332
    %v1396 = vadd.f32 %v1395, %v1333
    %v1397 = vadd.f32 %v1396, %v1334
    %v1398 = vadd.f32 %v1397, %v1335
    %v1399 = vadd.f32 %v1398, %v1336
    %v1400 = vadd.f32 %v1399, %v1337
    %v1401 = vadd.f32 %v1400, %v1338
    %v1402 = vadd.f32 %v1401, %v1339
    %v1403 = vrot.slane %v1402, 4
    %v1404 = vadd.f32 %v1402, %v1403
    %v1405 = vrot.slane %v1404, 2
    %v1406 = vadd.f32 %v1404, %v1405
    %v1407 = vrot.slane %v1406, 1
    %v1408 = vadd.f32 %v1406, %v1407
    %v1409 = vadd.f32 %v1275, %v1408
    %1410 = vst [vmem:[#allocation3] sm:$0x1] %v1409
    // Predicated region
    $region18: #{forward.15} parent=1 // pred_check
      %p1411 = pneg %p67
    $region19: #{forward.15} parent=1 // pred_check_branch
      %1413 = sbr.rel (%p1411) target = $region21
    $region20: #{forward.15} parent=1 // pred_region
      %v1414 = vld [vmem:[#allocation2] sm:$0x1]
      %1415 = vst [vmem:[%s3] sm:$0x1] %v1414
      %v1416 = vld [vmem:[#allocation3] sm:$0x1]
      %1417 = vst [vmem:[%s3 + $0x1] sm:$0x1] %v1416
    $region21: #{forward.15} parent=1 // pred_fallthru
      _
    %s1418 = sadd.s32 0, 0
    %s1419 = smul.u32 64, %s1418
    %p1420 = scmp.lt.s32.totalorder %s1419, 63
    %s1421 = scalar_select %p1420, %s1419, 63
    %s1422 = smul.addr %s1421, 4
    %s1423 = scalar_lea.vmem %s2, %s1422
    // Predicated region
    $region22: #{forward.15} parent=1 // pred_check
      _
    $region23: #{forward.15} parent=1 // pred_check_branch
      %1425 = sbr.rel (0) target = $region25
    $region24: #{forward.15} parent=1 // pred_region
      %s1426 = sadd.s32 0, 0
      %s1427 = smul.u32 64, %s1426
    $region25: #{forward.15} parent=1 // pred_fallthru
      _
    // Predicated region
    $region26: #{forward.15} parent=1 // pred_check
      _
    $region27: #{forward.15} parent=1 // pred_check_branch
      %1429 = sbr.rel (0) target = $region29
    $region28: #{forward.15} parent=1 // pred_region
      _
    $region29: #{forward.15} parent=1 // pred_fallthru
      _
    // Predicated region
    $region30: #{forward.15} parent=1 // pred_check
      _
    $region31: #{forward.15} parent=1 // pred_check_branch
      %1431 = sbr.rel (0) target = $region33
    $region32: #{forward.15} parent=1 // pred_region
      %s1432 = sadd.s32 0, 0
      %s1433 = smul.u32 64, %s1432
      %p1434 = scmp.lt.s32.totalorder %s1433, 63
      %s1435 = scalar_select %p1434, %s1433, 63
      %s1436 = smul.addr %s1435, 4
      %s1437 = scalar_lea.vmem %s2, %s1436
    $region33: #{forward.15} parent=1 // pred_fallthru
      _
    // Predicated region
    $region34: #{forward.15} parent=1 // pred_check
      _
    $region35: #{forward.15} parent=1 // pred_check_branch
      %1439 = sbr.rel (0) target = $region37
    $region36: #{forward.15} parent=1 // pred_region
      _
    $region37: #{forward.15} parent=1 // pred_fallthru
      _
    %1440 = vsyncpa [#allocation5], 1

// kernel: forward.16
$region0: #{forward.16}
  #allocation0 [shape = 'u32[]', space=smem, size = 0x4, offset = 0x4, fixed_abs, tag = 'smem constant byte address 0x4 - core index']
  #allocation1 [shape = 'u32[144,128]{1,0:T(1,128)}', space=vmem, size = 0x12000, scoped, tag = 'internal scratch']
  %s0 = inlined_call_operand.vmem [shape: bf16[512,128], index: 0, kind: input, shape index: {}]
  %s1 = inlined_call_operand.vmem [shape: f32[1,128], index: 1, kind: input, shape index: {}]
  %s2 = inlined_call_operand.vmem [shape: f32[1,128], index: 2, kind: input, shape index: {}]
  %s3 = inlined_call_operand.vmem [shape: bf16[512,128], index: 3, kind: output, shape index: {}]
  %s4 = sld [smem:[#allocation0]]
  $region22: #{forward.16} parent=0
    _
  %s6 = ssub.s32 1, %s4
  %s7 = scalar_select 0, %s6, %s4
  // Predicated region
  $region2: #{forward.16} parent=0 // pred_check
    _
  $region3: #{forward.16} parent=0 // pred_check_branch
    %9 = sbr.rel (0) target = $region5
  $region4: #{forward.16} parent=0 // pred_region
    _
  $region5: #{forward.16} parent=0 // pred_fallthru
    _
  // Predicated region
  $region6: #{forward.16} parent=0 // pred_check
    _
  $region7: #{forward.16} parent=0 // pred_check_branch
    %11 = sbr.rel (0) target = $region9
  $region8: #{forward.16} parent=0 // pred_region
    _
  $region9: #{forward.16} parent=0 // pred_fallthru
    _
  // Predicated region
  $region10: #{forward.16} parent=0 // pred_check
    _
  $region11: #{forward.16} parent=0 // pred_check_branch
    %13 = sbr.rel (0) target = $region13
  $region12: #{forward.16} parent=0 // pred_region
    _
  $region13: #{forward.16} parent=0 // pred_fallthru
    _
  %v14 = vld [vmem:[%s0] sm:$0xf]
  %v15 = vld [vmem:[%s0 + $0x4] sm:$0xf]
  %v16 = vld [vmem:[%s0 + $0x8] sm:$0xf]
  %v17 = vld [vmem:[%s0 + $0xc] sm:$0xf]
  %v18 = vld [vmem:[%s0 + $0x10] sm:$0xf]
  %v19 = vld [vmem:[%s0 + $0x14] sm:$0xf]
  %v20 = vld [vmem:[%s0 + $0x18] sm:$0xf]
  %v21 = vld [vmem:[%s0 + $0x1c] sm:$0xf]
  %v22 = vld [vmem:[%s0 + $0x20] sm:$0xf]
  %v23 = vld [vmem:[%s0 + $0x24] sm:$0xf]
  %v24 = vld [vmem:[%s0 + $0x28] sm:$0xf]
  %v25 = vld [vmem:[%s0 + $0x2c] sm:$0xf]
  %v26 = vld [vmem:[%s0 + $0x30] sm:$0xf]
  %v27 = vld [vmem:[%s0 + $0x34] sm:$0xf]
  %v28 = vld [vmem:[%s0 + $0x38] sm:$0xf]
  %v29 = vld [vmem:[%s0 + $0x3c] sm:$0xf]
  %v30 = vld [vmem:[%s0 + $0x40] sm:$0xf]
  %v31 = vld [vmem:[%s0 + $0x44] sm:$0xf]
  %v32 = vld [vmem:[%s0 + $0x48] sm:$0xf]
  %v33 = vld [vmem:[%s0 + $0x4c] sm:$0xf]
  %v34 = vld [vmem:[%s0 + $0x50] sm:$0xf]
  %v35 = vld [vmem:[%s0 + $0x54] sm:$0xf]
  %v36 = vld [vmem:[%s0 + $0x58] sm:$0xf]
  %v37 = vld [vmem:[%s0 + $0x5c] sm:$0xf]
  %v38 = vld [vmem:[%s0 + $0x60] sm:$0xf]
  %v39 = vld [vmem:[%s0 + $0x64] sm:$0xf]
  %v40 = vld [vmem:[%s0 + $0x68] sm:$0xf]
  %v41 = vld [vmem:[%s0 + $0x6c] sm:$0xf]
  %v42 = vld [vmem:[%s0 + $0x70] sm:$0xf]
  %v43 = vld [vmem:[%s0 + $0x74] sm:$0xf]
  %v44 = vld [vmem:[%s0 + $0x78] sm:$0xf]
  %v45 = vld [vmem:[%s0 + $0x7c] sm:$0xf]
  %v46 = vld [vmem:[%s0 + $0x80] sm:$0xf]
  %v47 = vld [vmem:[%s0 + $0x84] sm:$0xf]
  %v48 = vld [vmem:[%s0 + $0x88] sm:$0xf]
  %v49 = vld [vmem:[%s0 + $0x8c] sm:$0xf]
  %v50 = vld [vmem:[%s0 + $0x90] sm:$0xf]
  %v51 = vld [vmem:[%s0 + $0x94] sm:$0xf]
  %v52 = vld [vmem:[%s0 + $0x98] sm:$0xf]
  %v53 = vld [vmem:[%s0 + $0x9c] sm:$0xf]
  %v54 = vld [vmem:[%s0 + $0xa0] sm:$0xf]
  %v55 = vld [vmem:[%s0 + $0xa4] sm:$0xf]
  %v56 = vld [vmem:[%s0 + $0xa8] sm:$0xf]
  %v57 = vld [vmem:[%s0 + $0xac] sm:$0xf]
  %v58 = vld [vmem:[%s0 + $0xb0] sm:$0xf]
  %v59 = vld [vmem:[%s0 + $0xb4] sm:$0xf]
  %v60 = vld [vmem:[%s0 + $0xb8] sm:$0xf]
  %v61 = vld [vmem:[%s0 + $0xbc] sm:$0xf]
  %v62 = vld [vmem:[%s0 + $0xc0] sm:$0xf]
  %v63 = vld [vmem:[%s0 + $0xc4] sm:$0xf]
  %v64 = vld [vmem:[%s0 + $0xc8] sm:$0xf]
  %v65 = vld [vmem:[%s0 + $0xcc] sm:$0xf]
  %v66 = vld [vmem:[%s0 + $0xd0] sm:$0xf]
  %v67 = vld [vmem:[%s0 + $0xd4] sm:$0xf]
  %v68 = vld [vmem:[%s0 + $0xd8] sm:$0xf]
  %v69 = vld [vmem:[%s0 + $0xdc] sm:$0xf]
  %v70 = vld [vmem:[%s0 + $0xe0] sm:$0xf]
  %v71 = vld [vmem:[%s0 + $0xe4] sm:$0xf]
  %v72 = vld [vmem:[%s0 + $0xe8] sm:$0xf]
  %v73 = vld [vmem:[%s0 + $0xec] sm:$0xf]
  %v74 = vld [vmem:[%s0 + $0xf0] sm:$0xf]
  %v75 = vld [vmem:[%s0 + $0xf4] sm:$0xf]
  %v76 = vld [vmem:[%s0 + $0xf8] sm:$0xf]
  %v77 = vld [vmem:[%s0 + $0xfc] sm:$0xf]
  %v78 = vunpack.c.l.bf16 %v14
  %v79 = vunpack.c.l.bf16 %v15
  %v80 = vunpack.c.l.bf16 %v16
  %v81 = vunpack.c.l.bf16 %v17
  %v82 = vunpack.c.l.bf16 %v18
  %v83 = vunpack.c.l.bf16 %v19
  %v84 = vunpack.c.l.bf16 %v20
  %v85 = vunpack.c.l.bf16 %v21
  %v86 = vunpack.c.l.bf16 %v22
  %v87 = vunpack.c.l.bf16 %v23
  %v88 = vunpack.c.l.bf16 %v24
  %v89 = vunpack.c.l.bf16 %v25
  %v90 = vunpack.c.l.bf16 %v26
  %v91 = vunpack.c.l.bf16 %v27
  %v92 = vunpack.c.l.bf16 %v28
  %v93 = vunpack.c.l.bf16 %v29
  %v94 = vunpack.c.l.bf16 %v30
  %v95 = vunpack.c.l.bf16 %v31
  %v96 = vunpack.c.l.bf16 %v32
  %v97 = vunpack.c.l.bf16 %v33
  %v98 = vunpack.c.l.bf16 %v34
  %v99 = vunpack.c.l.bf16 %v35
  %v100 = vunpack.c.l.bf16 %v36
  %v101 = vunpack.c.l.bf16 %v37
  %v102 = vunpack.c.l.bf16 %v38
  %v103 = vunpack.c.l.bf16 %v39
  %v104 = vunpack.c.l.bf16 %v40
  %v105 = vunpack.c.l.bf16 %v41
  %v106 = vunpack.c.l.bf16 %v42
  %v107 = vunpack.c.l.bf16 %v43
  %v108 = vunpack.c.l.bf16 %v44
  %v109 = vunpack.c.l.bf16 %v45
  %v110 = vunpack.c.l.bf16 %v46
  %v111 = vunpack.c.l.bf16 %v47
  %v112 = vunpack.c.l.bf16 %v48
  %v113 = vunpack.c.l.bf16 %v49
  %v114 = vunpack.c.l.bf16 %v50
  %v115 = vunpack.c.l.bf16 %v51
  %v116 = vunpack.c.l.bf16 %v52
  %v117 = vunpack.c.l.bf16 %v53
  %v118 = vunpack.c.l.bf16 %v54
  %v119 = vunpack.c.l.bf16 %v55
  %v120 = vunpack.c.l.bf16 %v56
  %v121 = vunpack.c.l.bf16 %v57
  %v122 = vunpack.c.l.bf16 %v58
  %v123 = vunpack.c.l.bf16 %v59
  %v124 = vunpack.c.l.bf16 %v60
  %v125 = vunpack.c.l.bf16 %v61
  %v126 = vunpack.c.l.bf16 %v62
  %v127 = vunpack.c.l.bf16 %v63
  %v128 = vunpack.c.l.bf16 %v64
  %v129 = vunpack.c.l.bf16 %v65
  %v130 = vunpack.c.l.bf16 %v66
  %v131 = vunpack.c.l.bf16 %v67
  %v132 = vunpack.c.l.bf16 %v68
  %v133 = vunpack.c.l.bf16 %v69
  %v134 = vunpack.c.l.bf16 %v70
  %v135 = vunpack.c.l.bf16 %v71
  %v136 = vunpack.c.l.bf16 %v72
  %v137 = vunpack.c.l.bf16 %v73
  %v138 = vunpack.c.l.bf16 %v74
  %v139 = vunpack.c.l.bf16 %v75
  %v140 = vunpack.c.l.bf16 %v76
  %v141 = vunpack.c.l.bf16 %v77
  %v142 = vld [vmem:[%s1] sm:$0x1]
  %v144 = vlaneseq
  %v145 = vshrl.u32 %v144, 7
  %v146 = vsub.s32 0, %v145
  %v147 = vrot.slane %v142, %v146
  %v149 = vmul.f32 %v78, %v147
  %v150 = vmul.f32 %v79, %v147
  %v151 = vmul.f32 %v80, %v147
  %v152 = vmul.f32 %v81, %v147
  %v153 = vmul.f32 %v82, %v147
  %v154 = vmul.f32 %v83, %v147
  %v155 = vmul.f32 %v84, %v147
  %v156 = vmul.f32 %v85, %v147
  %v157 = vmul.f32 %v86, %v147
  %v158 = vmul.f32 %v87, %v147
  %v159 = vmul.f32 %v88, %v147
  %v160 = vmul.f32 %v89, %v147
  %v161 = vmul.f32 %v90, %v147
  %v162 = vmul.f32 %v91, %v147
  %v163 = vmul.f32 %v92, %v147
  %v164 = vmul.f32 %v93, %v147
  %v165 = vmul.f32 %v94, %v147
  %v166 = vmul.f32 %v95, %v147
  %v167 = vmul.f32 %v96, %v147
  %v168 = vmul.f32 %v97, %v147
  %v169 = vmul.f32 %v98, %v147
  %v170 = vmul.f32 %v99, %v147
  %v171 = vmul.f32 %v100, %v147
  %v172 = vmul.f32 %v101, %v147
  %v173 = vmul.f32 %v102, %v147
  %v174 = vmul.f32 %v103, %v147
  %v175 = vmul.f32 %v104, %v147
  %v176 = vmul.f32 %v105, %v147
  %v177 = vmul.f32 %v106, %v147
  %v178 = vmul.f32 %v107, %v147
  %v179 = vmul.f32 %v108, %v147
  %v180 = vmul.f32 %v109, %v147
  %v181 = vmul.f32 %v110, %v147
  %v182 = vmul.f32 %v111, %v147
  %v183 = vmul.f32 %v112, %v147
  %v184 = vmul.f32 %v113, %v147
  %v185 = vmul.f32 %v114, %v147
  %v186 = vmul.f32 %v115, %v147
  %v187 = vmul.f32 %v116, %v147
  %v188 = vmul.f32 %v117, %v147
  %v189 = vmul.f32 %v118, %v147
  %v190 = vmul.f32 %v119, %v147
  %v191 = vmul.f32 %v120, %v147
  %v192 = vmul.f32 %v121, %v147
  %v193 = vmul.f32 %v122, %v147
  %v194 = vmul.f32 %v123, %v147
  %v195 = vmul.f32 %v124, %v147
  %v196 = vmul.f32 %v125, %v147
  %v197 = vmul.f32 %v126, %v147
  %v198 = vmul.f32 %v127, %v147
  %v199 = vmul.f32 %v128, %v147
  %v200 = vmul.f32 %v129, %v147
  %v201 = vmul.f32 %v130, %v147
  %v202 = vmul.f32 %v131, %v147
  %v203 = vmul.f32 %v132, %v147
  %v204 = vmul.f32 %v133, %v147
  %v205 = vmul.f32 %v134, %v147
  %v206 = vmul.f32 %v135, %v147
  %v207 = vmul.f32 %v136, %v147
  %v208 = vmul.f32 %v137, %v147
  %v209 = vmul.f32 %v138, %v147
  %v210 = vmul.f32 %v139, %v147
  %v211 = vmul.f32 %v140, %v147
  %v212 = vmul.f32 %v141, %v147
  %v213 = vld [vmem:[%s2] sm:$0x1]
  %v215 = vlaneseq
  %v216 = vshrl.u32 %v215, 7
  %v217 = vsub.s32 0, %v216
  %v218 = vrot.slane %v213, %v217
  %v220 = vadd.f32 %v149, %v218
  %v221 = vadd.f32 %v150, %v218
  %v222 = vadd.f32 %v151, %v218
  %v223 = vadd.f32 %v152, %v218
  %v224 = vadd.f32 %v153, %v218
  %v225 = vadd.f32 %v154, %v218
  %v226 = vadd.f32 %v155, %v218
  %v227 = vadd.f32 %v156, %v218
  %v228 = vadd.f32 %v157, %v218
  %v229 = vadd.f32 %v158, %v218
  %v230 = vadd.f32 %v159, %v218
  %v231 = vadd.f32 %v160, %v218
  %v232 = vadd.f32 %v161, %v218
  %v233 = vadd.f32 %v162, %v218
  %v234 = vadd.f32 %v163, %v218
  %v235 = vadd.f32 %v164, %v218
  %v236 = vadd.f32 %v165, %v218
  %v237 = vadd.f32 %v166, %v218
  %v238 = vadd.f32 %v167, %v218
  %v239 = vadd.f32 %v168, %v218
  %v240 = vadd.f32 %v169, %v218
  %v241 = vadd.f32 %v170, %v218
  %v242 = vadd.f32 %v171, %v218
  %v243 = vadd.f32 %v172, %v218
  %v244 = vadd.f32 %v173, %v218
  %v245 = vadd.f32 %v174, %v218
  %v246 = vadd.f32 %v175, %v218
  %v247 = vadd.f32 %v176, %v218
  %v248 = vadd.f32 %v177, %v218
  %v249 = vadd.f32 %v178, %v218
  %v250 = vadd.f32 %v179, %v218
  %v251 = vadd.f32 %v180, %v218
  %v252 = vadd.f32 %v181, %v218
  %v253 = vadd.f32 %v182, %v218
  %v254 = vadd.f32 %v183, %v218
  %v255 = vadd.f32 %v184, %v218
  %v256 = vadd.f32 %v185, %v218
  %v257 = vadd.f32 %v186, %v218
  %v258 = vadd.f32 %v187, %v218
  %v259 = vadd.f32 %v188, %v218
  %v260 = vadd.f32 %v189, %v218
  %v261 = vadd.f32 %v190, %v218
  %v262 = vadd.f32 %v191, %v218
  %v263 = vadd.f32 %v192, %v218
  %v264 = vadd.f32 %v193, %v218
  %v265 = vadd.f32 %v194, %v218
  %v266 = vadd.f32 %v195, %v218
  %v267 = vadd.f32 %v196, %v218
  %v268 = vadd.f32 %v197, %v218
  %v269 = vadd.f32 %v198, %v218
  %v270 = vadd.f32 %v199, %v218
  %v271 = vadd.f32 %v200, %v218
  %v272 = vadd.f32 %v201, %v218
  %v273 = vadd.f32 %v202, %v218
  %v274 = vadd.f32 %v203, %v218
  %v275 = vadd.f32 %v204, %v218
  %v276 = vadd.f32 %v205, %v218
  %v277 = vadd.f32 %v206, %v218
  %v278 = vadd.f32 %v207, %v218
  %v279 = vadd.f32 %v208, %v218
  %v280 = vadd.f32 %v209, %v218
  %v281 = vadd.f32 %v210, %v218
  %v282 = vadd.f32 %v211, %v218
  %v283 = vadd.f32 %v212, %v218
  %v284 = vmax.f32 %v220, 0.0
  %v285 = vmax.f32 %v221, 0.0
  %v286 = vmax.f32 %v222, 0.0
  %v287 = vmax.f32 %v223, 0.0
  %v288 = vmax.f32 %v224, 0.0
  %v289 = vmax.f32 %v225, 0.0
  %v290 = vmax.f32 %v226, 0.0
  %v291 = vmax.f32 %v227, 0.0
  %v292 = vmax.f32 %v228, 0.0
  %v293 = vmax.f32 %v229, 0.0
  %v294 = vmax.f32 %v230, 0.0
  %v295 = vmax.f32 %v231, 0.0
  %v296 = vmax.f32 %v232, 0.0
  %v297 = vmax.f32 %v233, 0.0
  %v298 = vmax.f32 %v234, 0.0
  %v299 = vmax.f32 %v235, 0.0
  %v300 = vmax.f32 %v236, 0.0
  %v301 = vmax.f32 %v237, 0.0
  %v302 = vmax.f32 %v238, 0.0
  %v303 = vmax.f32 %v239, 0.0
  %v304 = vmax.f32 %v240, 0.0
  %v305 = vmax.f32 %v241, 0.0
  %v306 = vmax.f32 %v242, 0.0
  %v307 = vmax.f32 %v243, 0.0
  %v308 = vmax.f32 %v244, 0.0
  %v309 = vmax.f32 %v245, 0.0
  %v310 = vmax.f32 %v246, 0.0
  %v311 = vmax.f32 %v247, 0.0
  %v312 = vmax.f32 %v248, 0.0
  %v313 = vmax.f32 %v249, 0.0
  %v314 = vmax.f32 %v250, 0.0
  %v315 = vmax.f32 %v251, 0.0
  %v316 = vmax.f32 %v252, 0.0
  %v317 = vmax.f32 %v253, 0.0
  %v318 = vmax.f32 %v254, 0.0
  %v319 = vmax.f32 %v255, 0.0
  %v320 = vmax.f32 %v256, 0.0
  %v321 = vmax.f32 %v257, 0.0
  %v322 = vmax.f32 %v258, 0.0
  %v323 = vmax.f32 %v259, 0.0
  %v324 = vmax.f32 %v260, 0.0
  %v325 = vmax.f32 %v261, 0.0
  %v326 = vmax.f32 %v262, 0.0
  %v327 = vmax.f32 %v263, 0.0
  %v328 = vmax.f32 %v264, 0.0
  %v329 = vmax.f32 %v265, 0.0
  %v330 = vmax.f32 %v266, 0.0
  %v331 = vmax.f32 %v267, 0.0
  %v332 = vmax.f32 %v268, 0.0
  %v333 = vmax.f32 %v269, 0.0
  %v334 = vmax.f32 %v270, 0.0
  %v335 = vmax.f32 %v271, 0.0
  %v336 = vmax.f32 %v272, 0.0
  %v337 = vmax.f32 %v273, 0.0
  %v338 = vmax.f32 %v274, 0.0
  %v339 = vmax.f32 %v275, 0.0
  %v340 = vmax.f32 %v276, 0.0
  %v341 = vmax.f32 %v277, 0.0
  %v342 = vmax.f32 %v278, 0.0
  %v343 = vmax.f32 %v279, 0.0
  %v344 = vmax.f32 %v280, 0.0
  %v345 = vmax.f32 %v281, 0.0
  %v346 = vmax.f32 %v282, 0.0
  %v347 = vmax.f32 %v283, 0.0
  %v348 = vpack.c.bf16 %v285, %v284
  %v349 = vpack.c.bf16 %v287, %v286
  %v350 = vpack.c.bf16 %v289, %v288
  %v351 = vpack.c.bf16 %v291, %v290
  %v352 = vpack.c.bf16 %v293, %v292
  %v353 = vpack.c.bf16 %v295, %v294
  %v354 = vpack.c.bf16 %v297, %v296
  %v355 = vpack.c.bf16 %v299, %v298
  %v356 = vpack.c.bf16 %v301, %v300
  %v357 = vpack.c.bf16 %v303, %v302
  %v358 = vpack.c.bf16 %v305, %v304
  %v359 = vpack.c.bf16 %v307, %v306
  %v360 = vpack.c.bf16 %v309, %v308
  %v361 = vpack.c.bf16 %v311, %v310
  %v362 = vpack.c.bf16 %v313, %v312
  %v363 = vpack.c.bf16 %v315, %v314
  %v364 = vpack.c.bf16 %v317, %v316
  %v365 = vpack.c.bf16 %v319, %v318
  %v366 = vpack.c.bf16 %v321, %v320
  %v367 = vpack.c.bf16 %v323, %v322
  %v368 = vpack.c.bf16 %v325, %v324
  %v369 = vpack.c.bf16 %v327, %v326
  %v370 = vpack.c.bf16 %v329, %v328
  %v371 = vpack.c.bf16 %v331, %v330
  %v372 = vpack.c.bf16 %v333, %v332
  %v373 = vpack.c.bf16 %v335, %v334
  %v374 = vpack.c.bf16 %v337, %v336
  %v375 = vpack.c.bf16 %v339, %v338
  %v376 = vpack.c.bf16 %v341, %v340
  %v377 = vpack.c.bf16 %v343, %v342
  %v378 = vpack.c.bf16 %v345, %v344
  %v379 = vpack.c.bf16 %v347, %v346
  %v412 = vunpack.c.l.b16 %v348
  %v413 = vunpack.c.h.b16 %v348
  %v414 = vunpack.c.l.b16 %v349
  %v415 = vunpack.c.h.b16 %v349
  %v416 = vunpack.c.l.b16 %v350
  %v417 = vunpack.c.h.b16 %v350
  %v418 = vunpack.c.l.b16 %v351
  %v419 = vunpack.c.h.b16 %v351
  %v420 = vunpack.c.l.b16 %v352
  %v421 = vunpack.c.h.b16 %v352
  %v422 = vunpack.c.l.b16 %v353
  %v423 = vunpack.c.h.b16 %v353
  %v424 = vunpack.c.l.b16 %v354
  %v425 = vunpack.c.h.b16 %v354
  %v426 = vunpack.c.l.b16 %v355
  %v427 = vunpack.c.h.b16 %v355
  %v428 = vunpack.c.l.b16 %v356
  %v429 = vunpack.c.h.b16 %v356
  %v430 = vunpack.c.l.b16 %v357
  %v431 = vunpack.c.h.b16 %v357
  %v432 = vunpack.c.l.b16 %v358
  %v433 = vunpack.c.h.b16 %v358
  %v434 = vunpack.c.l.b16 %v359
  %v435 = vunpack.c.h.b16 %v359
  %v436 = vunpack.c.l.b16 %v360
  %v437 = vunpack.c.h.b16 %v360
  %v438 = vunpack.c.l.b16 %v361
  %v439 = vunpack.c.h.b16 %v361
  %v440 = vunpack.c.l.b16 %v362
  %v441 = vunpack.c.h.b16 %v362
  %v442 = vunpack.c.l.b16 %v363
  %v443 = vunpack.c.h.b16 %v363
  %v444 = vunpack.c.l.b16 %v364
  %v445 = vunpack.c.h.b16 %v364
  %v446 = vunpack.c.l.b16 %v365
  %v447 = vunpack.c.h.b16 %v365
  %v448 = vunpack.c.l.b16 %v366
  %v449 = vunpack.c.h.b16 %v366
  %v450 = vunpack.c.l.b16 %v367
  %v451 = vunpack.c.h.b16 %v367
  %v452 = vunpack.c.l.b16 %v368
  %v453 = vunpack.c.h.b16 %v368
  %v454 = vunpack.c.l.b16 %v369
  %v455 = vunpack.c.h.b16 %v369
  %v456 = vunpack.c.l.b16 %v370
  %v457 = vunpack.c.h.b16 %v370
  %v458 = vunpack.c.l.b16 %v371
  %v459 = vunpack.c.h.b16 %v371
  %v460 = vunpack.c.l.b16 %v372
  %v461 = vunpack.c.h.b16 %v372
  %v462 = vunpack.c.l.b16 %v373
  %v463 = vunpack.c.h.b16 %v373
  %v464 = vunpack.c.l.b16 %v374
  %v465 = vunpack.c.h.b16 %v374
  %v466 = vunpack.c.l.b16 %v375
  %v467 = vunpack.c.h.b16 %v375
  %v468 = vunpack.c.l.b16 %v376
  %v469 = vunpack.c.h.b16 %v376
  %v470 = vunpack.c.l.b16 %v377
  %v471 = vunpack.c.h.b16 %v377
  %v472 = vunpack.c.l.b16 %v378
  %v473 = vunpack.c.h.b16 %v378
  %v474 = vunpack.c.l.b16 %v379
  %v475 = vunpack.c.h.b16 %v379
  %v476 = vpack.c.b16 %v412, %v412
  %v477 = vpack.c.b16 %v413, %v413
  %v478 = vpack.c.b16 %v414, %v414
  %v479 = vpack.c.b16 %v415, %v415
  %v480 = vpack.c.b16 %v416, %v416
  %v481 = vpack.c.b16 %v417, %v417
  %v482 = vpack.c.b16 %v418, %v418
  %v483 = vpack.c.b16 %v419, %v419
  %v484 = vpack.c.b16 %v420, %v420
  %v485 = vpack.c.b16 %v421, %v421
  %v486 = vpack.c.b16 %v422, %v422
  %v487 = vpack.c.b16 %v423, %v423
  %v488 = vpack.c.b16 %v424, %v424
  %v489 = vpack.c.b16 %v425, %v425
  %v490 = vpack.c.b16 %v426, %v426
  %v491 = vpack.c.b16 %v427, %v427
  %v492 = vpack.c.b16 %v428, %v428
  %v493 = vpack.c.b16 %v429, %v429
  %v494 = vpack.c.b16 %v430, %v430
  %v495 = vpack.c.b16 %v431, %v431
  %v496 = vpack.c.b16 %v432, %v432
  %v497 = vpack.c.b16 %v433, %v433
  %v498 = vpack.c.b16 %v434, %v434
  %v499 = vpack.c.b16 %v435, %v435
  %v500 = vpack.c.b16 %v436, %v436
  %v501 = vpack.c.b16 %v437, %v437
  %v502 = vpack.c.b16 %v438, %v438
  %v503 = vpack.c.b16 %v439, %v439
  %v504 = vpack.c.b16 %v440, %v440
  %v505 = vpack.c.b16 %v441, %v441
  %v506 = vpack.c.b16 %v442, %v442
  %v507 = vpack.c.b16 %v443, %v443
  %v508 = vpack.c.b16 %v444, %v444
  %v509 = vpack.c.b16 %v445, %v445
  %v510 = vpack.c.b16 %v446, %v446
  %v511 = vpack.c.b16 %v447, %v447
  %v512 = vpack.c.b16 %v448, %v448
  %v513 = vpack.c.b16 %v449, %v449
  %v514 = vpack.c.b16 %v450, %v450
  %v515 = vpack.c.b16 %v451, %v451
  %v516 = vpack.c.b16 %v452, %v452
  %v517 = vpack.c.b16 %v453, %v453
  %v518 = vpack.c.b16 %v454, %v454
  %v519 = vpack.c.b16 %v455, %v455
  %v520 = vpack.c.b16 %v456, %v456
  %v521 = vpack.c.b16 %v457, %v457
  %v522 = vpack.c.b16 %v458, %v458
  %v523 = vpack.c.b16 %v459, %v459
  %v524 = vpack.c.b16 %v460, %v460
  %v525 = vpack.c.b16 %v461, %v461
  %v526 = vpack.c.b16 %v462, %v462
  %v527 = vpack.c.b16 %v463, %v463
  %v528 = vpack.c.b16 %v464, %v464
  %v529 = vpack.c.b16 %v465, %v465
  %v530 = vpack.c.b16 %v466, %v466
  %v531 = vpack.c.b16 %v467, %v467
  %v532 = vpack.c.b16 %v468, %v468
  %v533 = vpack.c.b16 %v469, %v469
  %v534 = vpack.c.b16 %v470, %v470
  %v535 = vpack.c.b16 %v471, %v471
  %v536 = vpack.c.b16 %v472, %v472
  %v537 = vpack.c.b16 %v473, %v473
  %v538 = vpack.c.b16 %v474, %v474
  %v539 = vpack.c.b16 %v475, %v475
  %604 = vst [vmem:[%s3] sm:$0xf] %v476
  %605 = vst [vmem:[%s3 + $0x4] sm:$0xf] %v477
  %606 = vst [vmem:[%s3 + $0x8] sm:$0xf] %v478
  %607 = vst [vmem:[%s3 + $0xc] sm:$0xf] %v479
  %608 = vst [vmem:[%s3 + $0x10] sm:$0xf] %v480
  %609 = vst [vmem:[%s3 + $0x14] sm:$0xf] %v481
  %610 = vst [vmem:[%s3 + $0x18] sm:$0xf] %v482
  %611 = vst [vmem:[%s3 + $0x1c] sm:$0xf] %v483
  %612 = vst [vmem:[%s3 + $0x20] sm:$0xf] %v484
  %613 = vst [vmem:[%s3 + $0x24] sm:$0xf] %v485
  %614 = vst [vmem:[%s3 + $0x28] sm:$0xf] %v486
  %615 = vst [vmem:[%s3 + $0x2c] sm:$0xf] %v487
  %616 = vst [vmem:[%s3 + $0x30] sm:$0xf] %v488
  %617 = vst [vmem:[%s3 + $0x34] sm:$0xf] %v489
  %618 = vst [vmem:[%s3 + $0x38] sm:$0xf] %v490
  %619 = vst [vmem:[%s3 + $0x3c] sm:$0xf] %v491
  %620 = vst [vmem:[%s3 + $0x40] sm:$0xf] %v492
  %621 = vst [vmem:[%s3 + $0x44] sm:$0xf] %v493
  %622 = vst [vmem:[%s3 + $0x48] sm:$0xf] %v494
  %623 = vst [vmem:[%s3 + $0x4c] sm:$0xf] %v495
  %624 = vst [vmem:[%s3 + $0x50] sm:$0xf] %v496
  %625 = vst [vmem:[%s3 + $0x54] sm:$0xf] %v497
  %626 = vst [vmem:[%s3 + $0x58] sm:$0xf] %v498
  %627 = vst [vmem:[%s3 + $0x5c] sm:$0xf] %v499
  %628 = vst [vmem:[%s3 + $0x60] sm:$0xf] %v500
  %629 = vst [vmem:[%s3 + $0x64] sm:$0xf] %v501
  %630 = vst [vmem:[%s3 + $0x68] sm:$0xf] %v502
  %631 = vst [vmem:[%s3 + $0x6c] sm:$0xf] %v503
  %632 = vst [vmem:[%s3 + $0x70] sm:$0xf] %v504
  %633 = vst [vmem:[%s3 + $0x74] sm:$0xf] %v505
  %634 = vst [vmem:[%s3 + $0x78] sm:$0xf] %v506
  %635 = vst [vmem:[%s3 + $0x7c] sm:$0xf] %v507
  %636 = vst [vmem:[%s3 + $0x80] sm:$0xf] %v508
  %637 = vst [vmem:[%s3 + $0x84] sm:$0xf] %v509
  %638 = vst [vmem:[%s3 + $0x88] sm:$0xf] %v510
  %639 = vst [vmem:[%s3 + $0x8c] sm:$0xf] %v511
  %640 = vst [vmem:[%s3 + $0x90] sm:$0xf] %v512
  %641 = vst [vmem:[%s3 + $0x94] sm:$0xf] %v513
  %642 = vst [vmem:[%s3 + $0x98] sm:$0xf] %v514
  %643 = vst [vmem:[%s3 + $0x9c] sm:$0xf] %v515
  %644 = vst [vmem:[%s3 + $0xa0] sm:$0xf] %v516
  %645 = vst [vmem:[%s3 + $0xa4] sm:$0xf] %v517
  %646 = vst [vmem:[%s3 + $0xa8] sm:$0xf] %v518
  %647 = vst [vmem:[%s3 + $0xac] sm:$0xf] %v519
  %648 = vst [vmem:[%s3 + $0xb0] sm:$0xf] %v520
  %649 = vst [vmem:[%s3 + $0xb4] sm:$0xf] %v521
  %650 = vst [vmem:[%s3 + $0xb8] sm:$0xf] %v522
  %651 = vst [vmem:[%s3 + $0xbc] sm:$0xf] %v523
  %652 = vst [vmem:[%s3 + $0xc0] sm:$0xf] %v524
  %653 = vst [vmem:[%s3 + $0xc4] sm:$0xf] %v525
  %654 = vst [vmem:[%s3 + $0xc8] sm:$0xf] %v526
  %655 = vst [vmem:[%s3 + $0xcc] sm:$0xf] %v527
  %656 = vst [vmem:[%s3 + $0xd0] sm:$0xf] %v528
  %657 = vst [vmem:[%s3 + $0xd4] sm:$0xf] %v529
  %658 = vst [vmem:[%s3 + $0xd8] sm:$0xf] %v530
  %659 = vst [vmem:[%s3 + $0xdc] sm:$0xf] %v531
  %660 = vst [vmem:[%s3 + $0xe0] sm:$0xf] %v532
  %661 = vst [vmem:[%s3 + $0xe4] sm:$0xf] %v533
  %662 = vst [vmem:[%s3 + $0xe8] sm:$0xf] %v534
  %663 = vst [vmem:[%s3 + $0xec] sm:$0xf] %v535
  %664 = vst [vmem:[%s3 + $0xf0] sm:$0xf] %v536
  %665 = vst [vmem:[%s3 + $0xf4] sm:$0xf] %v537
  %666 = vst [vmem:[%s3 + $0xf8] sm:$0xf] %v538
  %667 = vst [vmem:[%s3 + $0xfc] sm:$0xf] %v539
  // Predicated region
  $region14: #{forward.16} parent=0 // pred_check
    _
  $region15: #{forward.16} parent=0 // pred_check_branch
    %669 = sbr.rel (0) target = $region17
  $region16: #{forward.16} parent=0 // pred_region
    _
  $region17: #{forward.16} parent=0 // pred_fallthru
    _
  // Predicated region
  $region18: #{forward.16} parent=0 // pred_check
    _
  $region19: #{forward.16} parent=0 // pred_check_branch
    %671 = sbr.rel (0) target = $region21
  $region20: #{forward.16} parent=0 // pred_region
    _
  $region21: #{forward.16} parent=0 // pred_fallthru
    _

// kernel: forward.17
$region0: #{forward.17}
  #allocation0 [shape = 'u32[]', space=smem, size = 0x4, offset = 0x4, fixed_abs, tag = 'smem constant byte address 0x4 - core index']
  #allocation1 [shape = 'u32[144,128]{1,0:T(1,128)}', space=vmem, size = 0x12000, scoped, tag = 'internal scratch']
  %s0 = inlined_call_operand.vmem [shape: bf16[2048,72], index: 0, kind: input, shape index: {}]
  %s1 = inlined_call_operand.vmem [shape: bf16[72,128], index: 1, kind: input, shape index: {}]
  %s2 = inlined_call_operand.vmem [shape: bf16[2048,128], index: 2, kind: output, shape index: {}]
  %s3 = sld [smem:[#allocation0]]
  $region41: #{forward.17} parent=0
    _
  %s5 = ssub.s32 1, %s3
  %s6 = scalar_select 0, %s5, %s3
  loop: start=0, step=1, limit=4
  $region2: #{forward.17} parent=0 // loop_pre_header
    _
  $region3: #{forward.17} parent=0 // loop_header
    %s8 = sphi 0, %s12
    %p9 = scmp.ge.s32.totalorder %s8, 4
    %s18 = sphi 0, %s20
    %s21 = sphi 0, %s18
    %s22 = sphi 0, %s21
    %s38 = sphi 0, %s22
    %s42 = sphi 0, %s42
    %s44 = sphi 0, %s42
    %s45 = sphi 0, %s44
    %s59 = sphi 0, %s45
    %s65 = sphi 0, %s67
    %s68 = sphi 0, %s65
    %s69 = sphi 0, %s68
    %s85 = sphi 0, %s69
  $region4: #{forward.17} parent=0 // loop_header_branch
    %11 = sbr.rel (%p9) target = $region8
  $region5: #{forward.17} parent=0 // loop_body
    %s13 = ssub.s32 %s8, 1
    %s14 = ssub.s32 %s8, 2
    %s15 = sadd.s32 %s8, 1
    %s16 = ssub.s32 %s8, %s15
    %p17 = scmp.eq.s32.totalorder %s16, 0
    %s19 = sadd.s32 %s18, 1
    %s20 = scalar_select %p17, %s18, %s19
    %p23 = pneg %p17
    %p24 = scmp.eq.s32.totalorder %s8, 1
    %p25 = por %p23, %p24
    %p26 = scmp.ne.s32.totalorder %s18, %s21
    %p27 = scmp.eq.s32.totalorder %s8, 0
    %p28 = por %p26, %p27
    %p29 = scmp.ne.s32.totalorder %s18, %s21
    %p30 = scmp.eq.s32.totalorder %s13, 1
    %p31 = por %p29, %p30
    %p32 = scmp.ne.s32.totalorder %s21, %s22
    %p33 = scmp.eq.s32.totalorder %s13, 0
    %p34 = por %p32, %p33
    %p35 = scmp.ne.s32.totalorder %s21, %s22
    %p36 = scmp.eq.s32.totalorder %s14, 1
    %p37 = por %p35, %p36
    %p39 = scmp.ne.s32.totalorder %s22, %s38
    %p40 = scmp.eq.s32.totalorder %s14, 0
    %p41 = por %p39, %p40
    %s43 = sadd.s32 %s42, 1
    %p46 = scmp.eq.s32.totalorder %s8, 1
    %p47 = scmp.ne.s32.totalorder %s42, %s44
    %p48 = scmp.eq.s32.totalorder %s8, 0
    %p49 = por %p47, %p48
    %p50 = scmp.ne.s32.totalorder %s42, %s44
    %p51 = scmp.eq.s32.totalorder %s13, 1
    %p52 = por %p50, %p51
    %p53 = scmp.ne.s32.totalorder %s44, %s45
    %p54 = scmp.eq.s32.totalorder %s13, 0
    %p55 = por %p53, %p54
    %p56 = scmp.ne.s32.totalorder %s44, %s45
    %p57 = scmp.eq.s32.totalorder %s14, 1
    %p58 = por %p56, %p57
    %p60 = scmp.ne.s32.totalorder %s45, %s59
    %p61 = scmp.eq.s32.totalorder %s14, 0
    %p62 = por %p60, %p61
    %s63 = ssub.s32 %s8, %s15
    %p64 = scmp.eq.s32.totalorder %s63, 0
    %s66 = sadd.s32 %s65, 1
    %s67 = scalar_select %p64, %s65, %s66
    %p70 = pneg %p64
    %p71 = scmp.eq.s32.totalorder %s8, 1
    %p72 = por %p70, %p71
    %p73 = scmp.ne.s32.totalorder %s65, %s68
    %p74 = scmp.eq.s32.totalorder %s8, 0
    %p75 = por %p73, %p74
    %p76 = scmp.ne.s32.totalorder %s65, %s68
    %p77 = scmp.eq.s32.totalorder %s13, 1
    %p78 = por %p76, %p77
    %p79 = scmp.ne.s32.totalorder %s68, %s69
    %p80 = scmp.eq.s32.totalorder %s13, 0
    %p81 = por %p79, %p80
    %p82 = scmp.ne.s32.totalorder %s68, %s69
    %p83 = scmp.eq.s32.totalorder %s14, 1
    %p84 = por %p82, %p83
    %p86 = scmp.ne.s32.totalorder %s69, %s85
    %p87 = scmp.eq.s32.totalorder %s14, 0
    %p88 = por %p86, %p87
    %p89 = scmp.le.s32.totalorder 1, %s8
    %p90 = scmp.lt.s32.totalorder %s8, 3
    %p91 = pnand %p89, %p90
    %p92 = pneg %p91
    // Predicated region
    $region9: #{forward.17} parent=5 // pred_check
      _
    $region10: #{forward.17} parent=5 // pred_check_branch
      %94 = sbr.rel (%p91) target = $region12
    $region11: #{forward.17} parent=5 // pred_region
      %s95 = ssub.s32 %s8, 1
      // Predicated region
      $region13: #{forward.17} parent=11 // pred_check
        %p96 = pneg %p55
      $region14: #{forward.17} parent=11 // pred_check_branch
        %98 = sbr.rel (%p96) target = $region16
      $region15: #{forward.17} parent=11 // pred_region
        _
      $region16: #{forward.17} parent=11 // pred_fallthru
        _
    $region12: #{forward.17} parent=5 // pred_fallthru
      _
    %p99 = scmp.lt.s32.totalorder %s8, 2
    // Predicated region
    $region17: #{forward.17} parent=5 // pred_check
      %p100 = pneg %p99
    $region18: #{forward.17} parent=5 // pred_check_branch
      %102 = sbr.rel (%p100) target = $region20
    $region19: #{forward.17} parent=5 // pred_region
      // Predicated region
      $region21: #{forward.17} parent=19 // pred_check
        %p103 = pneg %p28
      $region22: #{forward.17} parent=19 // pred_check_branch
        %105 = sbr.rel (%p103) target = $region24
      $region23: #{forward.17} parent=19 // pred_region
        %s106 = smul.u32 128, %s8
        %p107 = scmp.lt.s32.totalorder %s106, 255
        %s108 = scalar_select %p107, %s106, 255
        %s109 = smul.addr %s108, 4
        %s110 = scalar_lea.vmem %s0, %s109
        %s111 = smul.u32 128, %s8
      $region24: #{forward.17} parent=19 // pred_fallthru
        _
    $region20: #{forward.17} parent=5 // pred_fallthru
      _
    %p112 = scmp.le.s32.totalorder 1, %s8
    %p113 = scmp.lt.s32.totalorder %s8, 3
    %p114 = pnand %p112, %p113
    %p115 = pneg %p114
    // Predicated region
    $region25: #{forward.17} parent=5 // pred_check
      _
    $region26: #{forward.17} parent=5 // pred_check_branch
      %117 = sbr.rel (%p114) target = $region28
    $region27: #{forward.17} parent=5 // pred_region
      %s118 = ssub.s32 %s8, 1
      %s119 = smul.u32 128, %s13
      %p120 = scmp.lt.s32.totalorder %s119, 255
      %s121 = scalar_select %p120, %s119, 255
      %s122 = smul.addr %s121, 4
      %s123 = scalar_lea.vmem %s0, %s122
      %p124 = pneg %p34
      %p125 = pneg %p31
      %p126 = pneg %p55
      %p127 = pneg %p52
      %p128 = pneg %p81
      %p129 = pneg %p78
      %s130 = smul.u32 128, %s13
      %p131 = scmp.lt.s32.totalorder %s130, 255
      %s132 = scalar_select %p131, %s130, 255
      %s133 = smul.addr %s132, 4
      %s134 = scalar_lea.vmem %s2, %s133
      %s135 = smul.u32 128, %s13
      %p136 = scmp.lt.s32.totalorder %s135, 255
      %s137 = scalar_select %p136, %s135, 255
      %s138 = smul.addr %s137, 4
      %s139 = scalar_lea.vmem %s0, %s138
      %s140 = smul.u32 128, %s13
      %s141 = smul.u32 128, %s13
      %p142 = scmp.lt.s32.totalorder %s141, 255
      %s143 = scalar_select %p142, %s141, 255
      %s144 = smul.addr %s143, 4
      %s145 = scalar_lea.vmem %s2, %s144
      %s146 = smul.u32 128, %s13
      %v148 = vld [vmem:[%s139] sm:$0xf]
      %v149 = vld [vmem:[%s139 + $0x4] sm:$0xf]
      %v150 = vld [vmem:[%s139 + $0x8] sm:$0xf]
      %v151 = vld [vmem:[%s139 + $0xc] sm:$0xf]
      %v152 = vld [vmem:[%s139 + $0x10] sm:$0xf]
      %v153 = vld [vmem:[%s139 + $0x14] sm:$0xf]
      %v154 = vld [vmem:[%s139 + $0x18] sm:$0xf]
      %v155 = vld [vmem:[%s139 + $0x1c] sm:$0xf]
      %v156 = vld [vmem:[%s139 + $0x20] sm:$0xf]
      %v157 = vld [vmem:[%s139 + $0x24] sm:$0xf]
      %v158 = vld [vmem:[%s139 + $0x28] sm:$0xf]
      %v159 = vld [vmem:[%s139 + $0x2c] sm:$0xf]
      %v160 = vld [vmem:[%s139 + $0x30] sm:$0xf]
      %v161 = vld [vmem:[%s139 + $0x34] sm:$0xf]
      %v162 = vld [vmem:[%s139 + $0x38] sm:$0xf]
      %v163 = vld [vmem:[%s139 + $0x3c] sm:$0xf]
      %v164 = vld [vmem:[%s139 + $0x40] sm:$0xf]
      %v165 = vld [vmem:[%s139 + $0x44] sm:$0xf]
      %v166 = vld [vmem:[%s139 + $0x48] sm:$0xf]
      %v167 = vld [vmem:[%s139 + $0x4c] sm:$0xf]
      %v168 = vld [vmem:[%s139 + $0x50] sm:$0xf]
      %v169 = vld [vmem:[%s139 + $0x54] sm:$0xf]
      %v170 = vld [vmem:[%s139 + $0x58] sm:$0xf]
      %v171 = vld [vmem:[%s139 + $0x5c] sm:$0xf]
      %v172 = vld [vmem:[%s139 + $0x60] sm:$0xf]
      %v173 = vld [vmem:[%s139 + $0x64] sm:$0xf]
      %v174 = vld [vmem:[%s139 + $0x68] sm:$0xf]
      %v175 = vld [vmem:[%s139 + $0x6c] sm:$0xf]
      %v176 = vld [vmem:[%s139 + $0x70] sm:$0xf]
      %v177 = vld [vmem:[%s139 + $0x74] sm:$0xf]
      %v178 = vld [vmem:[%s139 + $0x78] sm:$0xf]
      %v179 = vld [vmem:[%s139 + $0x7c] sm:$0xf]
      %v180 = vld [vmem:[%s139 + $0x80] sm:$0xf]
      %v181 = vld [vmem:[%s139 + $0x84] sm:$0xf]
      %v182 = vld [vmem:[%s139 + $0x88] sm:$0xf]
      %v183 = vld [vmem:[%s139 + $0x8c] sm:$0xf]
      %v184 = vld [vmem:[%s139 + $0x90] sm:$0xf]
      %v185 = vld [vmem:[%s139 + $0x94] sm:$0xf]
      %v186 = vld [vmem:[%s139 + $0x98] sm:$0xf]
      %v187 = vld [vmem:[%s139 + $0x9c] sm:$0xf]
      %v188 = vld [vmem:[%s139 + $0xa0] sm:$0xf]
      %v189 = vld [vmem:[%s139 + $0xa4] sm:$0xf]
      %v190 = vld [vmem:[%s139 + $0xa8] sm:$0xf]
      %v191 = vld [vmem:[%s139 + $0xac] sm:$0xf]
      %v192 = vld [vmem:[%s139 + $0xb0] sm:$0xf]
      %v193 = vld [vmem:[%s139 + $0xb4] sm:$0xf]
      %v194 = vld [vmem:[%s139 + $0xb8] sm:$0xf]
      %v195 = vld [vmem:[%s139 + $0xbc] sm:$0xf]
      %v196 = vld [vmem:[%s139 + $0xc0] sm:$0xf]
      %v197 = vld [vmem:[%s139 + $0xc4] sm:$0xf]
      %v198 = vld [vmem:[%s139 + $0xc8] sm:$0xf]
      %v199 = vld [vmem:[%s139 + $0xcc] sm:$0xf]
      %v200 = vld [vmem:[%s139 + $0xd0] sm:$0xf]
      %v201 = vld [vmem:[%s139 + $0xd4] sm:$0xf]
      %v202 = vld [vmem:[%s139 + $0xd8] sm:$0xf]
      %v203 = vld [vmem:[%s139 + $0xdc] sm:$0xf]
      %v204 = vld [vmem:[%s139 + $0xe0] sm:$0xf]
      %v205 = vld [vmem:[%s139 + $0xe4] sm:$0xf]
      %v206 = vld [vmem:[%s139 + $0xe8] sm:$0xf]
      %v207 = vld [vmem:[%s139 + $0xec] sm:$0xf]
      %v208 = vld [vmem:[%s139 + $0xf0] sm:$0xf]
      %v209 = vld [vmem:[%s139 + $0xf4] sm:$0xf]
      %v210 = vld [vmem:[%s139 + $0xf8] sm:$0xf]
      %v211 = vld [vmem:[%s139 + $0xfc] sm:$0xf]
      %v212 = vld [vmem:[%s139 + $0x100] sm:$0xf]
      %v213 = vld [vmem:[%s139 + $0x104] sm:$0xf]
      %v214 = vld [vmem:[%s139 + $0x108] sm:$0xf]
      %v215 = vld [vmem:[%s139 + $0x10c] sm:$0xf]
      %v216 = vld [vmem:[%s139 + $0x110] sm:$0xf]
      %v217 = vld [vmem:[%s139 + $0x114] sm:$0xf]
      %v218 = vld [vmem:[%s139 + $0x118] sm:$0xf]
      %v219 = vld [vmem:[%s139 + $0x11c] sm:$0xf]
      %v220 = vld [vmem:[%s139 + $0x120] sm:$0xf]
      %v221 = vld [vmem:[%s139 + $0x124] sm:$0xf]
      %v222 = vld [vmem:[%s139 + $0x128] sm:$0xf]
      %v223 = vld [vmem:[%s139 + $0x12c] sm:$0xf]
      %v224 = vld [vmem:[%s139 + $0x130] sm:$0xf]
      %v225 = vld [vmem:[%s139 + $0x134] sm:$0xf]
      %v226 = vld [vmem:[%s139 + $0x138] sm:$0xf]
      %v227 = vld [vmem:[%s139 + $0x13c] sm:$0xf]
      %v228 = vld [vmem:[%s139 + $0x140] sm:$0xf]
      %v229 = vld [vmem:[%s139 + $0x144] sm:$0xf]
      %v230 = vld [vmem:[%s139 + $0x148] sm:$0xf]
      %v231 = vld [vmem:[%s139 + $0x14c] sm:$0xf]
      %v232 = vld [vmem:[%s139 + $0x150] sm:$0xf]
      %v233 = vld [vmem:[%s139 + $0x154] sm:$0xf]
      %v234 = vld [vmem:[%s139 + $0x158] sm:$0xf]
      %v235 = vld [vmem:[%s139 + $0x15c] sm:$0xf]
      %v236 = vld [vmem:[%s139 + $0x160] sm:$0xf]
      %v237 = vld [vmem:[%s139 + $0x164] sm:$0xf]
      %v238 = vld [vmem:[%s139 + $0x168] sm:$0xf]
      %v239 = vld [vmem:[%s139 + $0x16c] sm:$0xf]
      %v240 = vld [vmem:[%s139 + $0x170] sm:$0xf]
      %v241 = vld [vmem:[%s139 + $0x174] sm:$0xf]
      %v242 = vld [vmem:[%s139 + $0x178] sm:$0xf]
      %v243 = vld [vmem:[%s139 + $0x17c] sm:$0xf]
      %v244 = vld [vmem:[%s139 + $0x180] sm:$0xf]
      %v245 = vld [vmem:[%s139 + $0x184] sm:$0xf]
      %v246 = vld [vmem:[%s139 + $0x188] sm:$0xf]
      %v247 = vld [vmem:[%s139 + $0x18c] sm:$0xf]
      %v248 = vld [vmem:[%s139 + $0x190] sm:$0xf]
      %v249 = vld [vmem:[%s139 + $0x194] sm:$0xf]
      %v250 = vld [vmem:[%s139 + $0x198] sm:$0xf]
      %v251 = vld [vmem:[%s139 + $0x19c] sm:$0xf]
      %v252 = vld [vmem:[%s139 + $0x1a0] sm:$0xf]
      %v253 = vld [vmem:[%s139 + $0x1a4] sm:$0xf]
      %v254 = vld [vmem:[%s139 + $0x1a8] sm:$0xf]
      %v255 = vld [vmem:[%s139 + $0x1ac] sm:$0xf]
      %v256 = vld [vmem:[%s139 + $0x1b0] sm:$0xf]
      %v257 = vld [vmem:[%s139 + $0x1b4] sm:$0xf]
      %v258 = vld [vmem:[%s139 + $0x1b8] sm:$0xf]
      %v259 = vld [vmem:[%s139 + $0x1bc] sm:$0xf]
      %v260 = vld [vmem:[%s139 + $0x1c0] sm:$0xf]
      %v261 = vld [vmem:[%s139 + $0x1c4] sm:$0xf]
      %v262 = vld [vmem:[%s139 + $0x1c8] sm:$0xf]
      %v263 = vld [vmem:[%s139 + $0x1cc] sm:$0xf]
      %v264 = vld [vmem:[%s139 + $0x1d0] sm:$0xf]
      %v265 = vld [vmem:[%s139 + $0x1d4] sm:$0xf]
      %v266 = vld [vmem:[%s139 + $0x1d8] sm:$0xf]
      %v267 = vld [vmem:[%s139 + $0x1dc] sm:$0xf]
      %v268 = vld [vmem:[%s139 + $0x1e0] sm:$0xf]
      %v269 = vld [vmem:[%s139 + $0x1e4] sm:$0xf]
      %v270 = vld [vmem:[%s139 + $0x1e8] sm:$0xf]
      %v271 = vld [vmem:[%s139 + $0x1ec] sm:$0xf]
      %v272 = vld [vmem:[%s139 + $0x1f0] sm:$0xf]
      %v273 = vld [vmem:[%s139 + $0x1f4] sm:$0xf]
      %v274 = vld [vmem:[%s139 + $0x1f8] sm:$0xf]
      %v275 = vld [vmem:[%s139 + $0x1fc] sm:$0xf]
      %v276 = vld [vmem:[%s1] sm:$0xf]
      %v277 = vld [vmem:[%s1 + $0x4] sm:$0xf]
      %v278 = vld [vmem:[%s1 + $0x8] sm:$0xf]
      %v279 = vld [vmem:[%s1 + $0xc] sm:$0xf]
      %v280 = vld [vmem:[%s1 + $0x10] sm:$0xf]
      %v281 = vld [vmem:[%s1 + $0x14] sm:$0xf]
      %v282 = vld [vmem:[%s1 + $0x18] sm:$0xf]
      %v283 = vld [vmem:[%s1 + $0x1c] sm:$0xf]
      %v284 = vld [vmem:[%s1 + $0x20] sm:$0xf]
      %v413 = vunpack.c.l.b16 %v148
      %v414 = vunpack.c.l.b16 %v149
      %v415 = vunpack.c.l.b16 %v150
      %v416 = vunpack.c.l.b16 %v151
      %v417 = vunpack.c.l.b16 %v152
      %v418 = vunpack.c.l.b16 %v153
      %v419 = vunpack.c.l.b16 %v154
      %v420 = vunpack.c.l.b16 %v155
      %v421 = vunpack.c.l.b16 %v156
      %v422 = vunpack.c.l.b16 %v157
      %v423 = vunpack.c.l.b16 %v158
      %v424 = vunpack.c.l.b16 %v159
      %v425 = vunpack.c.l.b16 %v160
      %v426 = vunpack.c.l.b16 %v161
      %v427 = vunpack.c.l.b16 %v162
      %v428 = vunpack.c.l.b16 %v163
      %v429 = vunpack.c.l.b16 %v164
      %v430 = vunpack.c.l.b16 %v165
      %v431 = vunpack.c.l.b16 %v166
      %v432 = vunpack.c.l.b16 %v167
      %v433 = vunpack.c.l.b16 %v168
      %v434 = vunpack.c.l.b16 %v169
      %v435 = vunpack.c.l.b16 %v170
      %v436 = vunpack.c.l.b16 %v171
      %v437 = vunpack.c.l.b16 %v172
      %v438 = vunpack.c.l.b16 %v173
      %v439 = vunpack.c.l.b16 %v174
      %v440 = vunpack.c.l.b16 %v175
      %v441 = vunpack.c.l.b16 %v176
      %v442 = vunpack.c.l.b16 %v177
      %v443 = vunpack.c.l.b16 %v178
      %v444 = vunpack.c.l.b16 %v179
      %v445 = vunpack.c.l.b16 %v180
      %v446 = vunpack.c.l.b16 %v181
      %v447 = vunpack.c.l.b16 %v182
      %v448 = vunpack.c.l.b16 %v183
      %v449 = vunpack.c.l.b16 %v184
      %v450 = vunpack.c.l.b16 %v185
      %v451 = vunpack.c.l.b16 %v186
      %v452 = vunpack.c.l.b16 %v187
      %v453 = vunpack.c.l.b16 %v188
      %v454 = vunpack.c.l.b16 %v189
      %v455 = vunpack.c.l.b16 %v190
      %v456 = vunpack.c.l.b16 %v191
      %v457 = vunpack.c.l.b16 %v192
      %v458 = vunpack.c.l.b16 %v193
      %v459 = vunpack.c.l.b16 %v194
      %v460 = vunpack.c.l.b16 %v195
      %v461 = vunpack.c.l.b16 %v196
      %v462 = vunpack.c.l.b16 %v197
      %v463 = vunpack.c.l.b16 %v198
      %v464 = vunpack.c.l.b16 %v199
      %v465 = vunpack.c.l.b16 %v200
      %v466 = vunpack.c.l.b16 %v201
      %v467 = vunpack.c.l.b16 %v202
      %v468 = vunpack.c.l.b16 %v203
      %v469 = vunpack.c.l.b16 %v204
      %v470 = vunpack.c.l.b16 %v205
      %v471 = vunpack.c.l.b16 %v206
      %v472 = vunpack.c.l.b16 %v207
      %v473 = vunpack.c.l.b16 %v208
      %v474 = vunpack.c.l.b16 %v209
      %v475 = vunpack.c.l.b16 %v210
      %v476 = vunpack.c.l.b16 %v211
      %v477 = vunpack.c.l.b16 %v212
      %v478 = vunpack.c.l.b16 %v213
      %v479 = vunpack.c.l.b16 %v214
      %v480 = vunpack.c.l.b16 %v215
      %v481 = vunpack.c.l.b16 %v216
      %v482 = vunpack.c.l.b16 %v217
      %v483 = vunpack.c.l.b16 %v218
      %v484 = vunpack.c.l.b16 %v219
      %v485 = vunpack.c.l.b16 %v220
      %v486 = vunpack.c.l.b16 %v221
      %v487 = vunpack.c.l.b16 %v222
      %v488 = vunpack.c.l.b16 %v223
      %v489 = vunpack.c.l.b16 %v224
      %v490 = vunpack.c.l.b16 %v225
      %v491 = vunpack.c.l.b16 %v226
      %v492 = vunpack.c.l.b16 %v227
      %v493 = vunpack.c.l.b16 %v228
      %v494 = vunpack.c.l.b16 %v229
      %v495 = vunpack.c.l.b16 %v230
      %v496 = vunpack.c.l.b16 %v231
      %v497 = vunpack.c.l.b16 %v232
      %v498 = vunpack.c.l.b16 %v233
      %v499 = vunpack.c.l.b16 %v234
      %v500 = vunpack.c.l.b16 %v235
      %v501 = vunpack.c.l.b16 %v236
      %v502 = vunpack.c.l.b16 %v237
      %v503 = vunpack.c.l.b16 %v238
      %v504 = vunpack.c.l.b16 %v239
      %v505 = vunpack.c.l.b16 %v240
      %v506 = vunpack.c.l.b16 %v241
      %v507 = vunpack.c.l.b16 %v242
      %v508 = vunpack.c.l.b16 %v243
      %v509 = vunpack.c.l.b16 %v244
      %v510 = vunpack.c.l.b16 %v245
      %v511 = vunpack.c.l.b16 %v246
      %v512 = vunpack.c.l.b16 %v247
      %v513 = vunpack.c.l.b16 %v248
      %v514 = vunpack.c.l.b16 %v249
      %v515 = vunpack.c.l.b16 %v250
      %v516 = vunpack.c.l.b16 %v251
      %v517 = vunpack.c.l.b16 %v252
      %v518 = vunpack.c.l.b16 %v253
      %v519 = vunpack.c.l.b16 %v254
      %v520 = vunpack.c.l.b16 %v255
      %v521 = vunpack.c.l.b16 %v256
      %v522 = vunpack.c.l.b16 %v257
      %v523 = vunpack.c.l.b16 %v258
      %v524 = vunpack.c.l.b16 %v259
      %v525 = vunpack.c.l.b16 %v260
      %v526 = vunpack.c.l.b16 %v261
      %v527 = vunpack.c.l.b16 %v262
      %v528 = vunpack.c.l.b16 %v263
      %v529 = vunpack.c.l.b16 %v264
      %v530 = vunpack.c.l.b16 %v265
      %v531 = vunpack.c.l.b16 %v266
      %v532 = vunpack.c.l.b16 %v267
      %v533 = vunpack.c.l.b16 %v268
      %v534 = vunpack.c.l.b16 %v269
      %v535 = vunpack.c.l.b16 %v270
      %v536 = vunpack.c.l.b16 %v271
      %v537 = vunpack.c.l.b16 %v272
      %v538 = vunpack.c.l.b16 %v273
      %v539 = vunpack.c.l.b16 %v274
      %v540 = vunpack.c.l.b16 %v275
      %v541 = vpack.c.b16 %v414, %v413
      %v542 = vpack.c.b16 %v416, %v415
      %v543 = vpack.c.b16 %v418, %v417
      %v544 = vpack.c.b16 %v420, %v419
      %v545 = vpack.c.b16 %v422, %v421
      %v546 = vpack.c.b16 %v424, %v423
      %v547 = vpack.c.b16 %v426, %v425
      %v548 = vpack.c.b16 %v428, %v427
      %v549 = vpack.c.b16 %v430, %v429
      %v550 = vpack.c.b16 %v432, %v431
      %v551 = vpack.c.b16 %v434, %v433
      %v552 = vpack.c.b16 %v436, %v435
      %v553 = vpack.c.b16 %v438, %v437
      %v554 = vpack.c.b16 %v440, %v439
      %v555 = vpack.c.b16 %v442, %v441
      %v556 = vpack.c.b16 %v444, %v443
      %v557 = vpack.c.b16 %v446, %v445
      %v558 = vpack.c.b16 %v448, %v447
      %v559 = vpack.c.b16 %v450, %v449
      %v560 = vpack.c.b16 %v452, %v451
      %v561 = vpack.c.b16 %v454, %v453
      %v562 = vpack.c.b16 %v456, %v455
      %v563 = vpack.c.b16 %v458, %v457
      %v564 = vpack.c.b16 %v460, %v459
      %v565 = vpack.c.b16 %v462, %v461
      %v566 = vpack.c.b16 %v464, %v463
      %v567 = vpack.c.b16 %v466, %v465
      %v568 = vpack.c.b16 %v468, %v467
      %v569 = vpack.c.b16 %v470, %v469
      %v570 = vpack.c.b16 %v472, %v471
      %v571 = vpack.c.b16 %v474, %v473
      %v572 = vpack.c.b16 %v476, %v475
      %v573 = vpack.c.b16 %v478, %v477
      %v574 = vpack.c.b16 %v480, %v479
      %v575 = vpack.c.b16 %v482, %v481
      %v576 = vpack.c.b16 %v484, %v483
      %v577 = vpack.c.b16 %v486, %v485
      %v578 = vpack.c.b16 %v488, %v487
      %v579 = vpack.c.b16 %v490, %v489
      %v580 = vpack.c.b16 %v492, %v491
      %v581 = vpack.c.b16 %v494, %v493
      %v582 = vpack.c.b16 %v496, %v495
      %v583 = vpack.c.b16 %v498, %v497
      %v584 = vpack.c.b16 %v500, %v499
      %v585 = vpack.c.b16 %v502, %v501
      %v586 = vpack.c.b16 %v504, %v503
      %v587 = vpack.c.b16 %v506, %v505
      %v588 = vpack.c.b16 %v508, %v507
      %v589 = vpack.c.b16 %v510, %v509
      %v590 = vpack.c.b16 %v512, %v511
      %v591 = vpack.c.b16 %v514, %v513
      %v592 = vpack.c.b16 %v516, %v515
      %v593 = vpack.c.b16 %v518, %v517
      %v594 = vpack.c.b16 %v520, %v519
      %v595 = vpack.c.b16 %v522, %v521
      %v596 = vpack.c.b16 %v524, %v523
      %v597 = vpack.c.b16 %v526, %v525
      %v598 = vpack.c.b16 %v528, %v527
      %v599 = vpack.c.b16 %v530, %v529
      %v600 = vpack.c.b16 %v532, %v531
      %v601 = vpack.c.b16 %v534, %v533
      %v602 = vpack.c.b16 %v536, %v535
      %v603 = vpack.c.b16 %v538, %v537
      %v604 = vpack.c.b16 %v540, %v539
      %v614 = vunpack.c.l.b16 %v276
      %v615 = vunpack.c.l.b16 %v277
      %v616 = vunpack.c.l.b16 %v278
      %v617 = vunpack.c.l.b16 %v279
      %v618 = vunpack.c.l.b16 %v280
      %v619 = vunpack.c.l.b16 %v281
      %v620 = vunpack.c.l.b16 %v282
      %v621 = vunpack.c.l.b16 %v283
      %v622 = vunpack.c.l.b16 %v284
      %v623 = vpack.c.b16 %v615, %v614
      %v624 = vpack.c.b16 %v617, %v616
      %v625 = vpack.c.b16 %v619, %v618
      %v626 = vpack.c.b16 %v621, %v620
      %v627 = vpack.c.b16 %v622, %v622
      %vm632 = vcmask 588800
      %v634 = vsel %vm632, %v541, 0
      %v637 = vsel %vm632, %v542, 0
      %v640 = vsel %vm632, %v543, 0
      %v643 = vsel %vm632, %v544, 0
      %v646 = vsel %vm632, %v545, 0
      %v649 = vsel %vm632, %v546, 0
      %v652 = vsel %vm632, %v547, 0
      %v655 = vsel %vm632, %v548, 0
      %v658 = vsel %vm632, %v549, 0
      %v661 = vsel %vm632, %v550, 0
      %v664 = vsel %vm632, %v551, 0
      %v667 = vsel %vm632, %v552, 0
      %v670 = vsel %vm632, %v553, 0
      %v673 = vsel %vm632, %v554, 0
      %v676 = vsel %vm632, %v555, 0
      %v679 = vsel %vm632, %v556, 0
      %v682 = vsel %vm632, %v557, 0
      %v685 = vsel %vm632, %v558, 0
      %v688 = vsel %vm632, %v559, 0
      %v691 = vsel %vm632, %v560, 0
      %v694 = vsel %vm632, %v561, 0
      %v697 = vsel %vm632, %v562, 0
      %v700 = vsel %vm632, %v563, 0
      %v703 = vsel %vm632, %v564, 0
      %v706 = vsel %vm632, %v565, 0
      %v709 = vsel %vm632, %v566, 0
      %v712 = vsel %vm632, %v567, 0
      %v715 = vsel %vm632, %v568, 0
      %v718 = vsel %vm632, %v569, 0
      %v721 = vsel %vm632, %v570, 0
      %v724 = vsel %vm632, %v571, 0
      %v727 = vsel %vm632, %v572, 0
      %v730 = vsel %vm632, %v573, 0
      %v733 = vsel %vm632, %v574, 0
      %v736 = vsel %vm632, %v575, 0
      %v739 = vsel %vm632, %v576, 0
      %v742 = vsel %vm632, %v577, 0
      %v745 = vsel %vm632, %v578, 0
      %v748 = vsel %vm632, %v579, 0
      %v751 = vsel %vm632, %v580, 0
      %v754 = vsel %vm632, %v581, 0
      %v757 = vsel %vm632, %v582, 0
      %v760 = vsel %vm632, %v583, 0
      %v763 = vsel %vm632, %v584, 0
      %v766 = vsel %vm632, %v585, 0
      %v769 = vsel %vm632, %v586, 0
      %v772 = vsel %vm632, %v587, 0
      %v775 = vsel %vm632, %v588, 0
      %v778 = vsel %vm632, %v589, 0
      %v781 = vsel %vm632, %v590, 0
      %v784 = vsel %vm632, %v591, 0
      %v787 = vsel %vm632, %v592, 0
      %v790 = vsel %vm632, %v593, 0
      %v793 = vsel %vm632, %v594, 0
      %v796 = vsel %vm632, %v595, 0
      %v799 = vsel %vm632, %v596, 0
      %v802 = vsel %vm632, %v597, 0
      %v805 = vsel %vm632, %v598, 0
      %v808 = vsel %vm632, %v599, 0
      %v811 = vsel %vm632, %v600, 0
      %v814 = vsel %vm632, %v601, 0
      %v817 = vsel %vm632, %v602, 0
      %v820 = vsel %vm632, %v603, 0
      %v823 = vsel %vm632, %v604, 0
      %vm825 = vcmask 1043456
      %v827 = vsel %vm825, %v627, 0
      %829 = vmatprep.subr.bf16.mxu0 0
      %830 = vmatpush1.bf16.msra.mxu0 %v623
      %831 = vmatprep.subr.bf16.mxu0 0
      %832 = vmatpush1.bf16.msra.mxu0 %v624
      %833 = vmatprep.subr.bf16.mxu0 0
      %834 = vmatpush1.bf16.msra.mxu0 %v625
      %835 = vmatprep.subr.bf16.mxu0 0
      %836 = vmatpush1.bf16.msra.mxu0 %v626
      %837 = vmatprep.subr.bf16.mxu0 0
      %838 = vmatpush1.bf16.msra.mxu0 %v827
      %839 = vmatprep.subr.bf16.mxu0 0
      %840 = vmatpush1.bf16.msra.mxu0 0
      %841 = vmatprep.subr.bf16.mxu0 0
      %842 = vmatpush1.bf16.msra.mxu0 0
      %843 = vmatprep.subr.bf16.mxu0 0
      %844 = vmatpush1.bf16.msra.mxu0 0
      %845 = vmatprep.subr.bf16.mxu0 0
      %846 = vmatpush1.bf16.msra.mxu0 0
      %847 = vmatprep.subr.bf16.mxu0 0
      %848 = vmatpush1.bf16.msra.mxu0 0
      %849 = vmatprep.subr.bf16.mxu0 0
      %850 = vmatpush1.bf16.msra.mxu0 0
      %851 = vmatprep.subr.bf16.mxu0 0
      %852 = vmatpush1.bf16.msra.mxu0 0
      %853 = vmatprep.subr.bf16.mxu0 0
      %854 = vmatpush1.bf16.msra.mxu0 0
      %855 = vmatprep.subr.bf16.mxu0 0
      %856 = vmatpush1.bf16.msra.mxu0 0
      %857 = vmatprep.subr.bf16.mxu0 0
      %858 = vmatpush1.bf16.msra.mxu0 0
      %859 = vmatprep.subr.bf16.mxu0 0
      %860 = vmatpush1.bf16.msra.mxu0 0
      %861 = vmatprep.mubr.bf16.mxu0 0
      %862 = vmatmul.mubr.bf16.gmra.mrb[0].mxu0 %v634
      %v863 = vpop.f32.mrb[0].mxu0
      %v864 = vadd.f32 0.0, %v863
      %v865 = vpop.f32.mrb[0].mxu0
      %v866 = vpop.f32.mrb[0].mxu0
      %v867 = vadd.f32 0.0, %v866
      %v868 = vpop.f32.mrb[0].mxu0
      %869 = vmatprep.mubr.bf16.mxu0 0
      %870 = vmatmul.mubr.bf16.gmra.mrb[0].mxu0 %v637
      %v871 = vpop.f32.mrb[0].mxu0
      %v872 = vadd.f32 0.0, %v871
      %v873 = vpop.f32.mrb[0].mxu0
      %v874 = vpop.f32.mrb[0].mxu0
      %v875 = vadd.f32 0.0, %v874
      %v876 = vpop.f32.mrb[0].mxu0
      %877 = vmatprep.mubr.bf16.mxu0 0
      %878 = vmatmul.mubr.bf16.gmra.mrb[0].mxu0 %v640
      %v879 = vpop.f32.mrb[0].mxu0
      %v880 = vadd.f32 0.0, %v879
      %v881 = vpop.f32.mrb[0].mxu0
      %v882 = vpop.f32.mrb[0].mxu0
      %v883 = vadd.f32 0.0, %v882
      %v884 = vpop.f32.mrb[0].mxu0
      %885 = vmatprep.mubr.bf16.mxu0 0
      %886 = vmatmul.mubr.bf16.gmra.mrb[0].mxu0 %v643
      %v887 = vpop.f32.mrb[0].mxu0
      %v888 = vadd.f32 0.0, %v887
      %v889 = vpop.f32.mrb[0].mxu0
      %v890 = vpop.f32.mrb[0].mxu0
      %v891 = vadd.f32 0.0, %v890
      %v892 = vpop.f32.mrb[0].mxu0
      %893 = vmatprep.mubr.bf16.mxu0 0
      %894 = vmatmul.mubr.bf16.gmra.mrb[0].mxu0 %v646
      %v895 = vpop.f32.mrb[0].mxu0
      %v896 = vadd.f32 0.0, %v895
      %v897 = vpop.f32.mrb[0].mxu0
      %v898 = vpop.f32.mrb[0].mxu0
      %v899 = vadd.f32 0.0, %v898
      %v900 = vpop.f32.mrb[0].mxu0
      %901 = vmatprep.mubr.bf16.mxu0 0
      %902 = vmatmul.mubr.bf16.gmra.mrb[0].mxu0 %v649
      %v903 = vpop.f32.mrb[0].mxu0
      %v904 = vadd.f32 0.0, %v903
      %v905 = vpop.f32.mrb[0].mxu0
      %v906 = vpop.f32.mrb[0].mxu0
      %v907 = vadd.f32 0.0, %v906
      %v908 = vpop.f32.mrb[0].mxu0
      %909 = vmatprep.mubr.bf16.mxu0 0
      %910 = vmatmul.mubr.bf16.gmra.mrb[0].mxu0 %v652
      %v911 = vpop.f32.mrb[0].mxu0
      %v912 = vadd.f32 0.0, %v911
      %v913 = vpop.f32.mrb[0].mxu0
      %v914 = vpop.f32.mrb[0].mxu0
      %v915 = vadd.f32 0.0, %v914
      %v916 = vpop.f32.mrb[0].mxu0
      %917 = vmatprep.mubr.bf16.mxu0 0
      %918 = vmatmul.mubr.bf16.gmra.mrb[0].mxu0 %v655
      %v919 = vpop.f32.mrb[0].mxu0
      %v920 = vadd.f32 0.0, %v919
      %v921 = vpop.f32.mrb[0].mxu0
      %v922 = vpop.f32.mrb[0].mxu0
      %v923 = vadd.f32 0.0, %v922
      %v924 = vpop.f32.mrb[0].mxu0
      %925 = vmatprep.mubr.bf16.mxu0 0
      %926 = vmatmul.mubr.bf16.gmra.mrb[0].mxu0 %v658
      %v927 = vpop.f32.mrb[0].mxu0
      %v928 = vadd.f32 0.0, %v927
      %v929 = vpop.f32.mrb[0].mxu0
      %v930 = vpop.f32.mrb[0].mxu0
      %v931 = vadd.f32 0.0, %v930
      %v932 = vpop.f32.mrb[0].mxu0
      %933 = vmatprep.mubr.bf16.mxu0 0
      %934 = vmatmul.mubr.bf16.gmra.mrb[0].mxu0 %v661
      %v935 = vpop.f32.mrb[0].mxu0
      %v936 = vadd.f32 0.0, %v935
      %v937 = vpop.f32.mrb[0].mxu0
      %v938 = vpop.f32.mrb[0].mxu0
      %v939 = vadd.f32 0.0, %v938
      %v940 = vpop.f32.mrb[0].mxu0
      %941 = vmatprep.mubr.bf16.mxu0 0
      %942 = vmatmul.mubr.bf16.gmra.mrb[0].mxu0 %v664
      %v943 = vpop.f32.mrb[0].mxu0
      %v944 = vadd.f32 0.0, %v943
      %v945 = vpop.f32.mrb[0].mxu0
      %v946 = vpop.f32.mrb[0].mxu0
      %v947 = vadd.f32 0.0, %v946
      %v948 = vpop.f32.mrb[0].mxu0
      %949 = vmatprep.mubr.bf16.mxu0 0
      %950 = vmatmul.mubr.bf16.gmra.mrb[0].mxu0 %v667
      %v951 = vpop.f32.mrb[0].mxu0
      %v952 = vadd.f32 0.0, %v951
      %v953 = vpop.f32.mrb[0].mxu0
      %v954 = vpop.f32.mrb[0].mxu0
      %v955 = vadd.f32 0.0, %v954
      %v956 = vpop.f32.mrb[0].mxu0
      %957 = vmatprep.mubr.bf16.mxu0 0
      %958 = vmatmul.mubr.bf16.gmra.mrb[0].mxu0 %v670
      %v959 = vpop.f32.mrb[0].mxu0
      %v960 = vadd.f32 0.0, %v959
      %v961 = vpop.f32.mrb[0].mxu0
      %v962 = vpop.f32.mrb[0].mxu0
      %v963 = vadd.f32 0.0, %v962
      %v964 = vpop.f32.mrb[0].mxu0
      %965 = vmatprep.mubr.bf16.mxu0 0
      %966 = vmatmul.mubr.bf16.gmra.mrb[0].mxu0 %v673
      %v967 = vpop.f32.mrb[0].mxu0
      %v968 = vadd.f32 0.0, %v967
      %v969 = vpop.f32.mrb[0].mxu0
      %v970 = vpop.f32.mrb[0].mxu0
      %v971 = vadd.f32 0.0, %v970
      %v972 = vpop.f32.mrb[0].mxu0
      %973 = vmatprep.mubr.bf16.mxu0 0
      %974 = vmatmul.mubr.bf16.gmra.mrb[0].mxu0 %v676
      %v975 = vpop.f32.mrb[0].mxu0
      %v976 = vadd.f32 0.0, %v975
      %v977 = vpop.f32.mrb[0].mxu0
      %v978 = vpop.f32.mrb[0].mxu0
      %v979 = vadd.f32 0.0, %v978
      %v980 = vpop.f32.mrb[0].mxu0
      %981 = vmatprep.mubr.bf16.mxu0 0
      %982 = vmatmul.mubr.bf16.gmra.mrb[0].mxu0 %v679
      %v983 = vpop.f32.mrb[0].mxu0
      %v984 = vadd.f32 0.0, %v983
      %v985 = vpop.f32.mrb[0].mxu0
      %v986 = vpop.f32.mrb[0].mxu0
      %v987 = vadd.f32 0.0, %v986
      %v988 = vpop.f32.mrb[0].mxu0
      %989 = vmatprep.mubr.bf16.mxu0 0
      %990 = vmatmul.mubr.bf16.gmra.mrb[0].mxu0 %v682
      %v991 = vpop.f32.mrb[0].mxu0
      %v992 = vadd.f32 0.0, %v991
      %v993 = vpop.f32.mrb[0].mxu0
      %v994 = vpop.f32.mrb[0].mxu0
      %v995 = vadd.f32 0.0, %v994
      %v996 = vpop.f32.mrb[0].mxu0
      %997 = vmatprep.mubr.bf16.mxu0 0
      %998 = vmatmul.mubr.bf16.gmra.mrb[0].mxu0 %v685
      %v999 = vpop.f32.mrb[0].mxu0
      %v1000 = vadd.f32 0.0, %v999
      %v1001 = vpop.f32.mrb[0].mxu0
      %v1002 = vpop.f32.mrb[0].mxu0
      %v1003 = vadd.f32 0.0, %v1002
      %v1004 = vpop.f32.mrb[0].mxu0
      %1005 = vmatprep.mubr.bf16.mxu0 0
      %1006 = vmatmul.mubr.bf16.gmra.mrb[0].mxu0 %v688
      %v1007 = vpop.f32.mrb[0].mxu0
      %v1008 = vadd.f32 0.0, %v1007
      %v1009 = vpop.f32.mrb[0].mxu0
      %v1010 = vpop.f32.mrb[0].mxu0
      %v1011 = vadd.f32 0.0, %v1010
      %v1012 = vpop.f32.mrb[0].mxu0
      %1013 = vmatprep.mubr.bf16.mxu0 0
      %1014 = vmatmul.mubr.bf16.gmra.mrb[0].mxu0 %v691
      %v1015 = vpop.f32.mrb[0].mxu0
      %v1016 = vadd.f32 0.0, %v1015
      %v1017 = vpop.f32.mrb[0].mxu0
      %v1018 = vpop.f32.mrb[0].mxu0
      %v1019 = vadd.f32 0.0, %v1018
      %v1020 = vpop.f32.mrb[0].mxu0
      %1021 = vmatprep.mubr.bf16.mxu0 0
      %1022 = vmatmul.mubr.bf16.gmra.mrb[0].mxu0 %v694
      %v1023 = vpop.f32.mrb[0].mxu0
      %v1024 = vadd.f32 0.0, %v1023
      %v1025 = vpop.f32.mrb[0].mxu0
      %v1026 = vpop.f32.mrb[0].mxu0
      %v1027 = vadd.f32 0.0, %v1026
      %v1028 = vpop.f32.mrb[0].mxu0
      %1029 = vmatprep.mubr.bf16.mxu0 0
      %1030 = vmatmul.mubr.bf16.gmra.mrb[0].mxu0 %v697
      %v1031 = vpop.f32.mrb[0].mxu0
      %v1032 = vadd.f32 0.0, %v1031
      %v1033 = vpop.f32.mrb[0].mxu0
      %v1034 = vpop.f32.mrb[0].mxu0
      %v1035 = vadd.f32 0.0, %v1034
      %v1036 = vpop.f32.mrb[0].mxu0
      %1037 = vmatprep.mubr.bf16.mxu0 0
      %1038 = vmatmul.mubr.bf16.gmra.mrb[0].mxu0 %v700
      %v1039 = vpop.f32.mrb[0].mxu0
      %v1040 = vadd.f32 0.0, %v1039
      %v1041 = vpop.f32.mrb[0].mxu0
      %v1042 = vpop.f32.mrb[0].mxu0
      %v1043 = vadd.f32 0.0, %v1042
      %v1044 = vpop.f32.mrb[0].mxu0
      %1045 = vmatprep.mubr.bf16.mxu0 0
      %1046 = vmatmul.mubr.bf16.gmra.mrb[0].mxu0 %v703
      %v1047 = vpop.f32.mrb[0].mxu0
      %v1048 = vadd.f32 0.0, %v1047
      %v1049 = vpop.f32.mrb[0].mxu0
      %v1050 = vpop.f32.mrb[0].mxu0
      %v1051 = vadd.f32 0.0, %v1050
      %v1052 = vpop.f32.mrb[0].mxu0
      %1053 = vmatprep.mubr.bf16.mxu0 0
      %1054 = vmatmul.mubr.bf16.gmra.mrb[0].mxu0 %v706
      %v1055 = vpop.f32.mrb[0].mxu0
      %v1056 = vadd.f32 0.0, %v1055
      %v1057 = vpop.f32.mrb[0].mxu0
      %v1058 = vpop.f32.mrb[0].mxu0
      %v1059 = vadd.f32 0.0, %v1058
      %v1060 = vpop.f32.mrb[0].mxu0
      %1061 = vmatprep.mubr.bf16.mxu0 0
      %1062 = vmatmul.mubr.bf16.gmra.mrb[0].mxu0 %v709
      %v1063 = vpop.f32.mrb[0].mxu0
      %v1064 = vadd.f32 0.0, %v1063
      %v1065 = vpop.f32.mrb[0].mxu0
      %v1066 = vpop.f32.mrb[0].mxu0
      %v1067 = vadd.f32 0.0, %v1066
      %v1068 = vpop.f32.mrb[0].mxu0
      %1069 = vmatprep.mubr.bf16.mxu0 0
      %1070 = vmatmul.mubr.bf16.gmra.mrb[0].mxu0 %v712
      %v1071 = vpop.f32.mrb[0].mxu0
      %v1072 = vadd.f32 0.0, %v1071
      %v1073 = vpop.f32.mrb[0].mxu0
      %v1074 = vpop.f32.mrb[0].mxu0
      %v1075 = vadd.f32 0.0, %v1074
      %v1076 = vpop.f32.mrb[0].mxu0
      %1077 = vmatprep.mubr.bf16.mxu0 0
      %1078 = vmatmul.mubr.bf16.gmra.mrb[0].mxu0 %v715
      %v1079 = vpop.f32.mrb[0].mxu0
      %v1080 = vadd.f32 0.0, %v1079
      %v1081 = vpop.f32.mrb[0].mxu0
      %v1082 = vpop.f32.mrb[0].mxu0
      %v1083 = vadd.f32 0.0, %v1082
      %v1084 = vpop.f32.mrb[0].mxu0
      %1085 = vmatprep.mubr.bf16.mxu0 0
      %1086 = vmatmul.mubr.bf16.gmra.mrb[0].mxu0 %v718
      %v1087 = vpop.f32.mrb[0].mxu0
      %v1088 = vadd.f32 0.0, %v1087
      %v1089 = vpop.f32.mrb[0].mxu0
      %v1090 = vpop.f32.mrb[0].mxu0
      %v1091 = vadd.f32 0.0, %v1090
      %v1092 = vpop.f32.mrb[0].mxu0
      %1093 = vmatprep.mubr.bf16.mxu0 0
      %1094 = vmatmul.mubr.bf16.gmra.mrb[0].mxu0 %v721
      %v1095 = vpop.f32.mrb[0].mxu0
      %v1096 = vadd.f32 0.0, %v1095
      %v1097 = vpop.f32.mrb[0].mxu0
      %v1098 = vpop.f32.mrb[0].mxu0
      %v1099 = vadd.f32 0.0, %v1098
      %v1100 = vpop.f32.mrb[0].mxu0
      %1101 = vmatprep.mubr.bf16.mxu0 0
      %1102 = vmatmul.mubr.bf16.gmra.mrb[0].mxu0 %v724
      %v1103 = vpop.f32.mrb[0].mxu0
      %v1104 = vadd.f32 0.0, %v1103
      %v1105 = vpop.f32.mrb[0].mxu0
      %v1106 = vpop.f32.mrb[0].mxu0
      %v1107 = vadd.f32 0.0, %v1106
      %v1108 = vpop.f32.mrb[0].mxu0
      %1109 = vmatprep.mubr.bf16.mxu0 0
      %1110 = vmatmul.mubr.bf16.gmra.mrb[0].mxu0 %v727
      %v1111 = vpop.f32.mrb[0].mxu0
      %v1112 = vadd.f32 0.0, %v1111
      %v1113 = vpop.f32.mrb[0].mxu0
      %v1114 = vpop.f32.mrb[0].mxu0
      %v1115 = vadd.f32 0.0, %v1114
      %v1116 = vpop.f32.mrb[0].mxu0
      %1117 = vmatprep.mubr.bf16.mxu0 0
      %1118 = vmatmul.mubr.bf16.gmra.mrb[0].mxu0 %v730
      %v1119 = vpop.f32.mrb[0].mxu0
      %v1120 = vadd.f32 0.0, %v1119
      %v1121 = vpop.f32.mrb[0].mxu0
      %v1122 = vpop.f32.mrb[0].mxu0
      %v1123 = vadd.f32 0.0, %v1122
      %v1124 = vpop.f32.mrb[0].mxu0
      %1125 = vmatprep.mubr.bf16.mxu0 0
      %1126 = vmatmul.mubr.bf16.gmra.mrb[0].mxu0 %v733
      %v1127 = vpop.f32.mrb[0].mxu0
      %v1128 = vadd.f32 0.0, %v1127
      %v1129 = vpop.f32.mrb[0].mxu0
      %v1130 = vpop.f32.mrb[0].mxu0
      %v1131 = vadd.f32 0.0, %v1130
      %v1132 = vpop.f32.mrb[0].mxu0
      %1133 = vmatprep.mubr.bf16.mxu0 0
      %1134 = vmatmul.mubr.bf16.gmra.mrb[0].mxu0 %v736
      %v1135 = vpop.f32.mrb[0].mxu0
      %v1136 = vadd.f32 0.0, %v1135
      %v1137 = vpop.f32.mrb[0].mxu0
      %v1138 = vpop.f32.mrb[0].mxu0
      %v1139 = vadd.f32 0.0, %v1138
      %v1140 = vpop.f32.mrb[0].mxu0
      %1141 = vmatprep.mubr.bf16.mxu0 0
      %1142 = vmatmul.mubr.bf16.gmra.mrb[0].mxu0 %v739
      %v1143 = vpop.f32.mrb[0].mxu0
      %v1144 = vadd.f32 0.0, %v1143
      %v1145 = vpop.f32.mrb[0].mxu0
      %v1146 = vpop.f32.mrb[0].mxu0
      %v1147 = vadd.f32 0.0, %v1146
      %v1148 = vpop.f32.mrb[0].mxu0
      %1149 = vmatprep.mubr.bf16.mxu0 0
      %1150 = vmatmul.mubr.bf16.gmra.mrb[0].mxu0 %v742
      %v1151 = vpop.f32.mrb[0].mxu0
      %v1152 = vadd.f32 0.0, %v1151
      %v1153 = vpop.f32.mrb[0].mxu0
      %v1154 = vpop.f32.mrb[0].mxu0
      %v1155 = vadd.f32 0.0, %v1154
      %v1156 = vpop.f32.mrb[0].mxu0
      %1157 = vmatprep.mubr.bf16.mxu0 0
      %1158 = vmatmul.mubr.bf16.gmra.mrb[0].mxu0 %v745
      %v1159 = vpop.f32.mrb[0].mxu0
      %v1160 = vadd.f32 0.0, %v1159
      %v1161 = vpop.f32.mrb[0].mxu0
      %v1162 = vpop.f32.mrb[0].mxu0
      %v1163 = vadd.f32 0.0, %v1162
      %v1164 = vpop.f32.mrb[0].mxu0
      %1165 = vmatprep.mubr.bf16.mxu0 0
      %1166 = vmatmul.mubr.bf16.gmra.mrb[0].mxu0 %v748
      %v1167 = vpop.f32.mrb[0].mxu0
      %v1168 = vadd.f32 0.0, %v1167
      %v1169 = vpop.f32.mrb[0].mxu0
      %v1170 = vpop.f32.mrb[0].mxu0
      %v1171 = vadd.f32 0.0, %v1170
      %v1172 = vpop.f32.mrb[0].mxu0
      %1173 = vmatprep.mubr.bf16.mxu0 0
      %1174 = vmatmul.mubr.bf16.gmra.mrb[0].mxu0 %v751
      %v1175 = vpop.f32.mrb[0].mxu0
      %v1176 = vadd.f32 0.0, %v1175
      %v1177 = vpop.f32.mrb[0].mxu0
      %v1178 = vpop.f32.mrb[0].mxu0
      %v1179 = vadd.f32 0.0, %v1178
      %v1180 = vpop.f32.mrb[0].mxu0
      %1181 = vmatprep.mubr.bf16.mxu0 0
      %1182 = vmatmul.mubr.bf16.gmra.mrb[0].mxu0 %v754
      %v1183 = vpop.f32.mrb[0].mxu0
      %v1184 = vadd.f32 0.0, %v1183
      %v1185 = vpop.f32.mrb[0].mxu0
      %v1186 = vpop.f32.mrb[0].mxu0
      %v1187 = vadd.f32 0.0, %v1186
      %v1188 = vpop.f32.mrb[0].mxu0
      %1189 = vmatprep.mubr.bf16.mxu0 0
      %1190 = vmatmul.mubr.bf16.gmra.mrb[0].mxu0 %v757
      %v1191 = vpop.f32.mrb[0].mxu0
      %v1192 = vadd.f32 0.0, %v1191
      %v1193 = vpop.f32.mrb[0].mxu0
      %v1194 = vpop.f32.mrb[0].mxu0
      %v1195 = vadd.f32 0.0, %v1194
      %v1196 = vpop.f32.mrb[0].mxu0
      %1197 = vmatprep.mubr.bf16.mxu0 0
      %1198 = vmatmul.mubr.bf16.gmra.mrb[0].mxu0 %v760
      %v1199 = vpop.f32.mrb[0].mxu0
      %v1200 = vadd.f32 0.0, %v1199
      %v1201 = vpop.f32.mrb[0].mxu0
      %v1202 = vpop.f32.mrb[0].mxu0
      %v1203 = vadd.f32 0.0, %v1202
      %v1204 = vpop.f32.mrb[0].mxu0
      %1205 = vmatprep.mubr.bf16.mxu0 0
      %1206 = vmatmul.mubr.bf16.gmra.mrb[0].mxu0 %v763
      %v1207 = vpop.f32.mrb[0].mxu0
      %v1208 = vadd.f32 0.0, %v1207
      %v1209 = vpop.f32.mrb[0].mxu0
      %v1210 = vpop.f32.mrb[0].mxu0
      %v1211 = vadd.f32 0.0, %v1210
      %v1212 = vpop.f32.mrb[0].mxu0
      %1213 = vmatprep.mubr.bf16.mxu0 0
      %1214 = vmatmul.mubr.bf16.gmra.mrb[0].mxu0 %v766
      %v1215 = vpop.f32.mrb[0].mxu0
      %v1216 = vadd.f32 0.0, %v1215
      %v1217 = vpop.f32.mrb[0].mxu0
      %v1218 = vpop.f32.mrb[0].mxu0
      %v1219 = vadd.f32 0.0, %v1218
      %v1220 = vpop.f32.mrb[0].mxu0
      %1221 = vmatprep.mubr.bf16.mxu0 0
      %1222 = vmatmul.mubr.bf16.gmra.mrb[0].mxu0 %v769
      %v1223 = vpop.f32.mrb[0].mxu0
      %v1224 = vadd.f32 0.0, %v1223
      %v1225 = vpop.f32.mrb[0].mxu0
      %v1226 = vpop.f32.mrb[0].mxu0
      %v1227 = vadd.f32 0.0, %v1226
      %v1228 = vpop.f32.mrb[0].mxu0
      %1229 = vmatprep.mubr.bf16.mxu0 0
      %1230 = vmatmul.mubr.bf16.gmra.mrb[0].mxu0 %v772
      %v1231 = vpop.f32.mrb[0].mxu0
      %v1232 = vadd.f32 0.0, %v1231
      %v1233 = vpop.f32.mrb[0].mxu0
      %v1234 = vpop.f32.mrb[0].mxu0
      %v1235 = vadd.f32 0.0, %v1234
      %v1236 = vpop.f32.mrb[0].mxu0
      %1237 = vmatprep.mubr.bf16.mxu0 0
      %1238 = vmatmul.mubr.bf16.gmra.mrb[0].mxu0 %v775
      %v1239 = vpop.f32.mrb[0].mxu0
      %v1240 = vadd.f32 0.0, %v1239
      %v1241 = vpop.f32.mrb[0].mxu0
      %v1242 = vpop.f32.mrb[0].mxu0
      %v1243 = vadd.f32 0.0, %v1242
      %v1244 = vpop.f32.mrb[0].mxu0
      %1245 = vmatprep.mubr.bf16.mxu0 0
      %1246 = vmatmul.mubr.bf16.gmra.mrb[0].mxu0 %v778
      %v1247 = vpop.f32.mrb[0].mxu0
      %v1248 = vadd.f32 0.0, %v1247
      %v1249 = vpop.f32.mrb[0].mxu0
      %v1250 = vpop.f32.mrb[0].mxu0
      %v1251 = vadd.f32 0.0, %v1250
      %v1252 = vpop.f32.mrb[0].mxu0
      %1253 = vmatprep.mubr.bf16.mxu0 0
      %1254 = vmatmul.mubr.bf16.gmra.mrb[0].mxu0 %v781
      %v1255 = vpop.f32.mrb[0].mxu0
      %v1256 = vadd.f32 0.0, %v1255
      %v1257 = vpop.f32.mrb[0].mxu0
      %v1258 = vpop.f32.mrb[0].mxu0
      %v1259 = vadd.f32 0.0, %v1258
      %v1260 = vpop.f32.mrb[0].mxu0
      %1261 = vmatprep.mubr.bf16.mxu0 0
      %1262 = vmatmul.mubr.bf16.gmra.mrb[0].mxu0 %v784
      %v1263 = vpop.f32.mrb[0].mxu0
      %v1264 = vadd.f32 0.0, %v1263
      %v1265 = vpop.f32.mrb[0].mxu0
      %v1266 = vpop.f32.mrb[0].mxu0
      %v1267 = vadd.f32 0.0, %v1266
      %v1268 = vpop.f32.mrb[0].mxu0
      %1269 = vmatprep.mubr.bf16.mxu0 0
      %1270 = vmatmul.mubr.bf16.gmra.mrb[0].mxu0 %v787
      %v1271 = vpop.f32.mrb[0].mxu0
      %v1272 = vadd.f32 0.0, %v1271
      %v1273 = vpop.f32.mrb[0].mxu0
      %v1274 = vpop.f32.mrb[0].mxu0
      %v1275 = vadd.f32 0.0, %v1274
      %v1276 = vpop.f32.mrb[0].mxu0
      %1277 = vmatprep.mubr.bf16.mxu0 0
      %1278 = vmatmul.mubr.bf16.gmra.mrb[0].mxu0 %v790
      %v1279 = vpop.f32.mrb[0].mxu0
      %v1280 = vadd.f32 0.0, %v1279
      %v1281 = vpop.f32.mrb[0].mxu0
      %v1282 = vpop.f32.mrb[0].mxu0
      %v1283 = vadd.f32 0.0, %v1282
      %v1284 = vpop.f32.mrb[0].mxu0
      %1285 = vmatprep.mubr.bf16.mxu0 0
      %1286 = vmatmul.mubr.bf16.gmra.mrb[0].mxu0 %v793
      %v1287 = vpop.f32.mrb[0].mxu0
      %v1288 = vadd.f32 0.0, %v1287
      %v1289 = vpop.f32.mrb[0].mxu0
      %v1290 = vpop.f32.mrb[0].mxu0
      %v1291 = vadd.f32 0.0, %v1290
      %v1292 = vpop.f32.mrb[0].mxu0
      %1293 = vmatprep.mubr.bf16.mxu0 0
      %1294 = vmatmul.mubr.bf16.gmra.mrb[0].mxu0 %v796
      %v1295 = vpop.f32.mrb[0].mxu0
      %v1296 = vadd.f32 0.0, %v1295
      %v1297 = vpop.f32.mrb[0].mxu0
      %v1298 = vpop.f32.mrb[0].mxu0
      %v1299 = vadd.f32 0.0, %v1298
      %v1300 = vpop.f32.mrb[0].mxu0
      %1301 = vmatprep.mubr.bf16.mxu0 0
      %1302 = vmatmul.mubr.bf16.gmra.mrb[0].mxu0 %v799
      %v1303 = vpop.f32.mrb[0].mxu0
      %v1304 = vadd.f32 0.0, %v1303
      %v1305 = vpop.f32.mrb[0].mxu0
      %v1306 = vpop.f32.mrb[0].mxu0
      %v1307 = vadd.f32 0.0, %v1306
      %v1308 = vpop.f32.mrb[0].mxu0
      %1309 = vmatprep.mubr.bf16.mxu0 0
      %1310 = vmatmul.mubr.bf16.gmra.mrb[0].mxu0 %v802
      %v1311 = vpop.f32.mrb[0].mxu0
      %v1312 = vadd.f32 0.0, %v1311
      %v1313 = vpop.f32.mrb[0].mxu0
      %v1314 = vpop.f32.mrb[0].mxu0
      %v1315 = vadd.f32 0.0, %v1314
      %v1316 = vpop.f32.mrb[0].mxu0
      %1317 = vmatprep.mubr.bf16.mxu0 0
      %1318 = vmatmul.mubr.bf16.gmra.mrb[0].mxu0 %v805
      %v1319 = vpop.f32.mrb[0].mxu0
      %v1320 = vadd.f32 0.0, %v1319
      %v1321 = vpop.f32.mrb[0].mxu0
      %v1322 = vpop.f32.mrb[0].mxu0
      %v1323 = vadd.f32 0.0, %v1322
      %v1324 = vpop.f32.mrb[0].mxu0
      %1325 = vmatprep.mubr.bf16.mxu0 0
      %1326 = vmatmul.mubr.bf16.gmra.mrb[0].mxu0 %v808
      %v1327 = vpop.f32.mrb[0].mxu0
      %v1328 = vadd.f32 0.0, %v1327
      %v1329 = vpop.f32.mrb[0].mxu0
      %v1330 = vpop.f32.mrb[0].mxu0
      %v1331 = vadd.f32 0.0, %v1330
      %v1332 = vpop.f32.mrb[0].mxu0
      %1333 = vmatprep.mubr.bf16.mxu0 0
      %1334 = vmatmul.mubr.bf16.gmra.mrb[0].mxu0 %v811
      %v1335 = vpop.f32.mrb[0].mxu0
      %v1336 = vadd.f32 0.0, %v1335
      %v1337 = vpop.f32.mrb[0].mxu0
      %v1338 = vpop.f32.mrb[0].mxu0
      %v1339 = vadd.f32 0.0, %v1338
      %v1340 = vpop.f32.mrb[0].mxu0
      %1341 = vmatprep.mubr.bf16.mxu0 0
      %1342 = vmatmul.mubr.bf16.gmra.mrb[0].mxu0 %v814
      %v1343 = vpop.f32.mrb[0].mxu0
      %v1344 = vadd.f32 0.0, %v1343
      %v1345 = vpop.f32.mrb[0].mxu0
      %v1346 = vpop.f32.mrb[0].mxu0
      %v1347 = vadd.f32 0.0, %v1346
      %v1348 = vpop.f32.mrb[0].mxu0
      %1349 = vmatprep.mubr.bf16.mxu0 0
      %1350 = vmatmul.mubr.bf16.gmra.mrb[0].mxu0 %v817
      %v1351 = vpop.f32.mrb[0].mxu0
      %v1352 = vadd.f32 0.0, %v1351
      %v1353 = vpop.f32.mrb[0].mxu0
      %v1354 = vpop.f32.mrb[0].mxu0
      %v1355 = vadd.f32 0.0, %v1354
      %v1356 = vpop.f32.mrb[0].mxu0
      %1357 = vmatprep.mubr.bf16.mxu0 0
      %1358 = vmatmul.mubr.bf16.gmra.mrb[0].mxu0 %v820
      %v1359 = vpop.f32.mrb[0].mxu0
      %v1360 = vadd.f32 0.0, %v1359
      %v1361 = vpop.f32.mrb[0].mxu0
      %v1362 = vpop.f32.mrb[0].mxu0
      %v1363 = vadd.f32 0.0, %v1362
      %v1364 = vpop.f32.mrb[0].mxu0
      %1365 = vmatprep.mubr.bf16.mxu0 0
      %1366 = vmatmul.mubr.bf16.gmra.mrb[0].mxu0 %v823
      %v1367 = vpop.f32.mrb[0].mxu0
      %v1368 = vadd.f32 0.0, %v1367
      %v1369 = vpop.f32.mrb[0].mxu0
      %v1370 = vpop.f32.mrb[0].mxu0
      %v1371 = vadd.f32 0.0, %v1370
      %v1372 = vpop.f32.mrb[0].mxu0
      %1373 = vdwg.mxu0
      %v1374 = vtanh.pop %v864
      %v1375 = vtanh.pop %v867
      %v1376 = vtanh.pop %v872
      %v1377 = vtanh.pop %v875
      %v1378 = vtanh.pop %v880
      %v1379 = vtanh.pop %v883
      %v1380 = vtanh.pop %v888
      %v1381 = vtanh.pop %v891
      %v1382 = vtanh.pop %v896
      %v1383 = vtanh.pop %v899
      %v1384 = vtanh.pop %v904
      %v1385 = vtanh.pop %v907
      %v1386 = vtanh.pop %v912
      %v1387 = vtanh.pop %v915
      %v1388 = vtanh.pop %v920
      %v1389 = vtanh.pop %v923
      %v1390 = vtanh.pop %v928
      %v1391 = vtanh.pop %v931
      %v1392 = vtanh.pop %v936
      %v1393 = vtanh.pop %v939
      %v1394 = vtanh.pop %v944
      %v1395 = vtanh.pop %v947
      %v1396 = vtanh.pop %v952
      %v1397 = vtanh.pop %v955
      %v1398 = vtanh.pop %v960
      %v1399 = vtanh.pop %v963
      %v1400 = vtanh.pop %v968
      %v1401 = vtanh.pop %v971
      %v1402 = vtanh.pop %v976
      %v1403 = vtanh.pop %v979
      %v1404 = vtanh.pop %v984
      %v1405 = vtanh.pop %v987
      %v1406 = vtanh.pop %v992
      %v1407 = vtanh.pop %v995
      %v1408 = vtanh.pop %v1000
      %v1409 = vtanh.pop %v1003
      %v1410 = vtanh.pop %v1008
      %v1411 = vtanh.pop %v1011
      %v1412 = vtanh.pop %v1016
      %v1413 = vtanh.pop %v1019
      %v1414 = vtanh.pop %v1024
      %v1415 = vtanh.pop %v1027
      %v1416 = vtanh.pop %v1032
      %v1417 = vtanh.pop %v1035
      %v1418 = vtanh.pop %v1040
      %v1419 = vtanh.pop %v1043
      %v1420 = vtanh.pop %v1048
      %v1421 = vtanh.pop %v1051
      %v1422 = vtanh.pop %v1056
      %v1423 = vtanh.pop %v1059
      %v1424 = vtanh.pop %v1064
      %v1425 = vtanh.pop %v1067
      %v1426 = vtanh.pop %v1072
      %v1427 = vtanh.pop %v1075
      %v1428 = vtanh.pop %v1080
      %v1429 = vtanh.pop %v1083
      %v1430 = vtanh.pop %v1088
      %v1431 = vtanh.pop %v1091
      %v1432 = vtanh.pop %v1096
      %v1433 = vtanh.pop %v1099
      %v1434 = vtanh.pop %v1104
      %v1435 = vtanh.pop %v1107
      %v1436 = vtanh.pop %v1112
      %v1437 = vtanh.pop %v1115
      %v1438 = vtanh.pop %v1120
      %v1439 = vtanh.pop %v1123
      %v1440 = vtanh.pop %v1128
      %v1441 = vtanh.pop %v1131
      %v1442 = vtanh.pop %v1136
      %v1443 = vtanh.pop %v1139
      %v1444 = vtanh.pop %v1144
      %v1445 = vtanh.pop %v1147
      %v1446 = vtanh.pop %v1152
      %v1447 = vtanh.pop %v1155
      %v1448 = vtanh.pop %v1160
      %v1449 = vtanh.pop %v1163
      %v1450 = vtanh.pop %v1168
      %v1451 = vtanh.pop %v1171
      %v1452 = vtanh.pop %v1176
      %v1453 = vtanh.pop %v1179
      %v1454 = vtanh.pop %v1184
      %v1455 = vtanh.pop %v1187
      %v1456 = vtanh.pop %v1192
      %v1457 = vtanh.pop %v1195
      %v1458 = vtanh.pop %v1200
      %v1459 = vtanh.pop %v1203
      %v1460 = vtanh.pop %v1208
      %v1461 = vtanh.pop %v1211
      %v1462 = vtanh.pop %v1216
      %v1463 = vtanh.pop %v1219
      %v1464 = vtanh.pop %v1224
      %v1465 = vtanh.pop %v1227
      %v1466 = vtanh.pop %v1232
      %v1467 = vtanh.pop %v1235
      %v1468 = vtanh.pop %v1240
      %v1469 = vtanh.pop %v1243
      %v1470 = vtanh.pop %v1248
      %v1471 = vtanh.pop %v1251
      %v1472 = vtanh.pop %v1256
      %v1473 = vtanh.pop %v1259
      %v1474 = vtanh.pop %v1264
      %v1475 = vtanh.pop %v1267
      %v1476 = vtanh.pop %v1272
      %v1477 = vtanh.pop %v1275
      %v1478 = vtanh.pop %v1280
      %v1479 = vtanh.pop %v1283
      %v1480 = vtanh.pop %v1288
      %v1481 = vtanh.pop %v1291
      %v1482 = vtanh.pop %v1296
      %v1483 = vtanh.pop %v1299
      %v1484 = vtanh.pop %v1304
      %v1485 = vtanh.pop %v1307
      %v1486 = vtanh.pop %v1312
      %v1487 = vtanh.pop %v1315
      %v1488 = vtanh.pop %v1320
      %v1489 = vtanh.pop %v1323
      %v1490 = vtanh.pop %v1328
      %v1491 = vtanh.pop %v1331
      %v1492 = vtanh.pop %v1336
      %v1493 = vtanh.pop %v1339
      %v1494 = vtanh.pop %v1344
      %v1495 = vtanh.pop %v1347
      %v1496 = vtanh.pop %v1352
      %v1497 = vtanh.pop %v1355
      %v1498 = vtanh.pop %v1360
      %v1499 = vtanh.pop %v1363
      %v1500 = vtanh.pop %v1368
      %v1501 = vtanh.pop %v1371
      %v1502 = vpack.c.bf16 %v1375, %v1374
      %v1503 = vpack.c.bf16 %v1377, %v1376
      %v1504 = vpack.c.bf16 %v1379, %v1378
      %v1505 = vpack.c.bf16 %v1381, %v1380
      %v1506 = vpack.c.bf16 %v1383, %v1382
      %v1507 = vpack.c.bf16 %v1385, %v1384
      %v1508 = vpack.c.bf16 %v1387, %v1386
      %v1509 = vpack.c.bf16 %v1389, %v1388
      %v1510 = vpack.c.bf16 %v1391, %v1390
      %v1511 = vpack.c.bf16 %v1393, %v1392
      %v1512 = vpack.c.bf16 %v1395, %v1394
      %v1513 = vpack.c.bf16 %v1397, %v1396
      %v1514 = vpack.c.bf16 %v1399, %v1398
      %v1515 = vpack.c.bf16 %v1401, %v1400
      %v1516 = vpack.c.bf16 %v1403, %v1402
      %v1517 = vpack.c.bf16 %v1405, %v1404
      %v1518 = vpack.c.bf16 %v1407, %v1406
      %v1519 = vpack.c.bf16 %v1409, %v1408
      %v1520 = vpack.c.bf16 %v1411, %v1410
      %v1521 = vpack.c.bf16 %v1413, %v1412
      %v1522 = vpack.c.bf16 %v1415, %v1414
      %v1523 = vpack.c.bf16 %v1417, %v1416
      %v1524 = vpack.c.bf16 %v1419, %v1418
      %v1525 = vpack.c.bf16 %v1421, %v1420
      %v1526 = vpack.c.bf16 %v1423, %v1422
      %v1527 = vpack.c.bf16 %v1425, %v1424
      %v1528 = vpack.c.bf16 %v1427, %v1426
      %v1529 = vpack.c.bf16 %v1429, %v1428
      %v1530 = vpack.c.bf16 %v1431, %v1430
      %v1531 = vpack.c.bf16 %v1433, %v1432
      %v1532 = vpack.c.bf16 %v1435, %v1434
      %v1533 = vpack.c.bf16 %v1437, %v1436
      %v1534 = vpack.c.bf16 %v1439, %v1438
      %v1535 = vpack.c.bf16 %v1441, %v1440
      %v1536 = vpack.c.bf16 %v1443, %v1442
      %v1537 = vpack.c.bf16 %v1445, %v1444
      %v1538 = vpack.c.bf16 %v1447, %v1446
      %v1539 = vpack.c.bf16 %v1449, %v1448
      %v1540 = vpack.c.bf16 %v1451, %v1450
      %v1541 = vpack.c.bf16 %v1453, %v1452
      %v1542 = vpack.c.bf16 %v1455, %v1454
      %v1543 = vpack.c.bf16 %v1457, %v1456
      %v1544 = vpack.c.bf16 %v1459, %v1458
      %v1545 = vpack.c.bf16 %v1461, %v1460
      %v1546 = vpack.c.bf16 %v1463, %v1462
      %v1547 = vpack.c.bf16 %v1465, %v1464
      %v1548 = vpack.c.bf16 %v1467, %v1466
      %v1549 = vpack.c.bf16 %v1469, %v1468
      %v1550 = vpack.c.bf16 %v1471, %v1470
      %v1551 = vpack.c.bf16 %v1473, %v1472
      %v1552 = vpack.c.bf16 %v1475, %v1474
      %v1553 = vpack.c.bf16 %v1477, %v1476
      %v1554 = vpack.c.bf16 %v1479, %v1478
      %v1555 = vpack.c.bf16 %v1481, %v1480
      %v1556 = vpack.c.bf16 %v1483, %v1482
      %v1557 = vpack.c.bf16 %v1485, %v1484
      %v1558 = vpack.c.bf16 %v1487, %v1486
      %v1559 = vpack.c.bf16 %v1489, %v1488
      %v1560 = vpack.c.bf16 %v1491, %v1490
      %v1561 = vpack.c.bf16 %v1493, %v1492
      %v1562 = vpack.c.bf16 %v1495, %v1494
      %v1563 = vpack.c.bf16 %v1497, %v1496
      %v1564 = vpack.c.bf16 %v1499, %v1498
      %v1565 = vpack.c.bf16 %v1501, %v1500
      %v1630 = vunpack.c.l.b16 %v1502
      %v1631 = vunpack.c.h.b16 %v1502
      %v1632 = vunpack.c.l.b16 %v1503
      %v1633 = vunpack.c.h.b16 %v1503
      %v1634 = vunpack.c.l.b16 %v1504
      %v1635 = vunpack.c.h.b16 %v1504
      %v1636 = vunpack.c.l.b16 %v1505
      %v1637 = vunpack.c.h.b16 %v1505
      %v1638 = vunpack.c.l.b16 %v1506
      %v1639 = vunpack.c.h.b16 %v1506
      %v1640 = vunpack.c.l.b16 %v1507
      %v1641 = vunpack.c.h.b16 %v1507
      %v1642 = vunpack.c.l.b16 %v1508
      %v1643 = vunpack.c.h.b16 %v1508
      %v1644 = vunpack.c.l.b16 %v1509
      %v1645 = vunpack.c.h.b16 %v1509
      %v1646 = vunpack.c.l.b16 %v1510
      %v1647 = vunpack.c.h.b16 %v1510
      %v1648 = vunpack.c.l.b16 %v1511
      %v1649 = vunpack.c.h.b16 %v1511
      %v1650 = vunpack.c.l.b16 %v1512
      %v1651 = vunpack.c.h.b16 %v1512
      %v1652 = vunpack.c.l.b16 %v1513
      %v1653 = vunpack.c.h.b16 %v1513
      %v1654 = vunpack.c.l.b16 %v1514
      %v1655 = vunpack.c.h.b16 %v1514
      %v1656 = vunpack.c.l.b16 %v1515
      %v1657 = vunpack.c.h.b16 %v1515
      %v1658 = vunpack.c.l.b16 %v1516
      %v1659 = vunpack.c.h.b16 %v1516
      %v1660 = vunpack.c.l.b16 %v1517
      %v1661 = vunpack.c.h.b16 %v1517
      %v1662 = vunpack.c.l.b16 %v1518
      %v1663 = vunpack.c.h.b16 %v1518
      %v1664 = vunpack.c.l.b16 %v1519
      %v1665 = vunpack.c.h.b16 %v1519
      %v1666 = vunpack.c.l.b16 %v1520
      %v1667 = vunpack.c.h.b16 %v1520
      %v1668 = vunpack.c.l.b16 %v1521
      %v1669 = vunpack.c.h.b16 %v1521
      %v1670 = vunpack.c.l.b16 %v1522
      %v1671 = vunpack.c.h.b16 %v1522
      %v1672 = vunpack.c.l.b16 %v1523
      %v1673 = vunpack.c.h.b16 %v1523
      %v1674 = vunpack.c.l.b16 %v1524
      %v1675 = vunpack.c.h.b16 %v1524
      %v1676 = vunpack.c.l.b16 %v1525
      %v1677 = vunpack.c.h.b16 %v1525
      %v1678 = vunpack.c.l.b16 %v1526
      %v1679 = vunpack.c.h.b16 %v1526
      %v1680 = vunpack.c.l.b16 %v1527
      %v1681 = vunpack.c.h.b16 %v1527
      %v1682 = vunpack.c.l.b16 %v1528
      %v1683 = vunpack.c.h.b16 %v1528
      %v1684 = vunpack.c.l.b16 %v1529
      %v1685 = vunpack.c.h.b16 %v1529
      %v1686 = vunpack.c.l.b16 %v1530
      %v1687 = vunpack.c.h.b16 %v1530
      %v1688 = vunpack.c.l.b16 %v1531
      %v1689 = vunpack.c.h.b16 %v1531
      %v1690 = vunpack.c.l.b16 %v1532
      %v1691 = vunpack.c.h.b16 %v1532
      %v1692 = vunpack.c.l.b16 %v1533
      %v1693 = vunpack.c.h.b16 %v1533
      %v1694 = vunpack.c.l.b16 %v1534
      %v1695 = vunpack.c.h.b16 %v1534
      %v1696 = vunpack.c.l.b16 %v1535
      %v1697 = vunpack.c.h.b16 %v1535
      %v1698 = vunpack.c.l.b16 %v1536
      %v1699 = vunpack.c.h.b16 %v1536
      %v1700 = vunpack.c.l.b16 %v1537
      %v1701 = vunpack.c.h.b16 %v1537
      %v1702 = vunpack.c.l.b16 %v1538
      %v1703 = vunpack.c.h.b16 %v1538
      %v1704 = vunpack.c.l.b16 %v1539
      %v1705 = vunpack.c.h.b16 %v1539
      %v1706 = vunpack.c.l.b16 %v1540
      %v1707 = vunpack.c.h.b16 %v1540
      %v1708 = vunpack.c.l.b16 %v1541
      %v1709 = vunpack.c.h.b16 %v1541
      %v1710 = vunpack.c.l.b16 %v1542
      %v1711 = vunpack.c.h.b16 %v1542
      %v1712 = vunpack.c.l.b16 %v1543
      %v1713 = vunpack.c.h.b16 %v1543
      %v1714 = vunpack.c.l.b16 %v1544
      %v1715 = vunpack.c.h.b16 %v1544
      %v1716 = vunpack.c.l.b16 %v1545
      %v1717 = vunpack.c.h.b16 %v1545
      %v1718 = vunpack.c.l.b16 %v1546
      %v1719 = vunpack.c.h.b16 %v1546
      %v1720 = vunpack.c.l.b16 %v1547
      %v1721 = vunpack.c.h.b16 %v1547
      %v1722 = vunpack.c.l.b16 %v1548
      %v1723 = vunpack.c.h.b16 %v1548
      %v1724 = vunpack.c.l.b16 %v1549
      %v1725 = vunpack.c.h.b16 %v1549
      %v1726 = vunpack.c.l.b16 %v1550
      %v1727 = vunpack.c.h.b16 %v1550
      %v1728 = vunpack.c.l.b16 %v1551
      %v1729 = vunpack.c.h.b16 %v1551
      %v1730 = vunpack.c.l.b16 %v1552
      %v1731 = vunpack.c.h.b16 %v1552
      %v1732 = vunpack.c.l.b16 %v1553
      %v1733 = vunpack.c.h.b16 %v1553
      %v1734 = vunpack.c.l.b16 %v1554
      %v1735 = vunpack.c.h.b16 %v1554
      %v1736 = vunpack.c.l.b16 %v1555
      %v1737 = vunpack.c.h.b16 %v1555
      %v1738 = vunpack.c.l.b16 %v1556
      %v1739 = vunpack.c.h.b16 %v1556
      %v1740 = vunpack.c.l.b16 %v1557
      %v1741 = vunpack.c.h.b16 %v1557
      %v1742 = vunpack.c.l.b16 %v1558
      %v1743 = vunpack.c.h.b16 %v1558
      %v1744 = vunpack.c.l.b16 %v1559
      %v1745 = vunpack.c.h.b16 %v1559
      %v1746 = vunpack.c.l.b16 %v1560
      %v1747 = vunpack.c.h.b16 %v1560
      %v1748 = vunpack.c.l.b16 %v1561
      %v1749 = vunpack.c.h.b16 %v1561
      %v1750 = vunpack.c.l.b16 %v1562
      %v1751 = vunpack.c.h.b16 %v1562
      %v1752 = vunpack.c.l.b16 %v1563
      %v1753 = vunpack.c.h.b16 %v1563
      %v1754 = vunpack.c.l.b16 %v1564
      %v1755 = vunpack.c.h.b16 %v1564
      %v1756 = vunpack.c.l.b16 %v1565
      %v1757 = vunpack.c.h.b16 %v1565
      %v1758 = vpack.c.b16 %v1630, %v1630
      %v1759 = vpack.c.b16 %v1631, %v1631
      %v1760 = vpack.c.b16 %v1632, %v1632
      %v1761 = vpack.c.b16 %v1633, %v1633
      %v1762 = vpack.c.b16 %v1634, %v1634
      %v1763 = vpack.c.b16 %v1635, %v1635
      %v1764 = vpack.c.b16 %v1636, %v1636
      %v1765 = vpack.c.b16 %v1637, %v1637
      %v1766 = vpack.c.b16 %v1638, %v1638
      %v1767 = vpack.c.b16 %v1639, %v1639
      %v1768 = vpack.c.b16 %v1640, %v1640
      %v1769 = vpack.c.b16 %v1641, %v1641
      %v1770 = vpack.c.b16 %v1642, %v1642
      %v1771 = vpack.c.b16 %v1643, %v1643
      %v1772 = vpack.c.b16 %v1644, %v1644
      %v1773 = vpack.c.b16 %v1645, %v1645
      %v1774 = vpack.c.b16 %v1646, %v1646
      %v1775 = vpack.c.b16 %v1647, %v1647
      %v1776 = vpack.c.b16 %v1648, %v1648
      %v1777 = vpack.c.b16 %v1649, %v1649
      %v1778 = vpack.c.b16 %v1650, %v1650
      %v1779 = vpack.c.b16 %v1651, %v1651
      %v1780 = vpack.c.b16 %v1652, %v1652
      %v1781 = vpack.c.b16 %v1653, %v1653
      %v1782 = vpack.c.b16 %v1654, %v1654
      %v1783 = vpack.c.b16 %v1655, %v1655
      %v1784 = vpack.c.b16 %v1656, %v1656
      %v1785 = vpack.c.b16 %v1657, %v1657
      %v1786 = vpack.c.b16 %v1658, %v1658
      %v1787 = vpack.c.b16 %v1659, %v1659
      %v1788 = vpack.c.b16 %v1660, %v1660
      %v1789 = vpack.c.b16 %v1661, %v1661
      %v1790 = vpack.c.b16 %v1662, %v1662
      %v1791 = vpack.c.b16 %v1663, %v1663
      %v1792 = vpack.c.b16 %v1664, %v1664
      %v1793 = vpack.c.b16 %v1665, %v1665
      %v1794 = vpack.c.b16 %v1666, %v1666
      %v1795 = vpack.c.b16 %v1667, %v1667
      %v1796 = vpack.c.b16 %v1668, %v1668
      %v1797 = vpack.c.b16 %v1669, %v1669
      %v1798 = vpack.c.b16 %v1670, %v1670
      %v1799 = vpack.c.b16 %v1671, %v1671
      %v1800 = vpack.c.b16 %v1672, %v1672
      %v1801 = vpack.c.b16 %v1673, %v1673
      %v1802 = vpack.c.b16 %v1674, %v1674
      %v1803 = vpack.c.b16 %v1675, %v1675
      %v1804 = vpack.c.b16 %v1676, %v1676
      %v1805 = vpack.c.b16 %v1677, %v1677
      %v1806 = vpack.c.b16 %v1678, %v1678
      %v1807 = vpack.c.b16 %v1679, %v1679
      %v1808 = vpack.c.b16 %v1680, %v1680
      %v1809 = vpack.c.b16 %v1681, %v1681
      %v1810 = vpack.c.b16 %v1682, %v1682
      %v1811 = vpack.c.b16 %v1683, %v1683
      %v1812 = vpack.c.b16 %v1684, %v1684
      %v1813 = vpack.c.b16 %v1685, %v1685
      %v1814 = vpack.c.b16 %v1686, %v1686
      %v1815 = vpack.c.b16 %v1687, %v1687
      %v1816 = vpack.c.b16 %v1688, %v1688
      %v1817 = vpack.c.b16 %v1689, %v1689
      %v1818 = vpack.c.b16 %v1690, %v1690
      %v1819 = vpack.c.b16 %v1691, %v1691
      %v1820 = vpack.c.b16 %v1692, %v1692
      %v1821 = vpack.c.b16 %v1693, %v1693
      %v1822 = vpack.c.b16 %v1694, %v1694
      %v1823 = vpack.c.b16 %v1695, %v1695
      %v1824 = vpack.c.b16 %v1696, %v1696
      %v1825 = vpack.c.b16 %v1697, %v1697
      %v1826 = vpack.c.b16 %v1698, %v1698
      %v1827 = vpack.c.b16 %v1699, %v1699
      %v1828 = vpack.c.b16 %v1700, %v1700
      %v1829 = vpack.c.b16 %v1701, %v1701
      %v1830 = vpack.c.b16 %v1702, %v1702
      %v1831 = vpack.c.b16 %v1703, %v1703
      %v1832 = vpack.c.b16 %v1704, %v1704
      %v1833 = vpack.c.b16 %v1705, %v1705
      %v1834 = vpack.c.b16 %v1706, %v1706
      %v1835 = vpack.c.b16 %v1707, %v1707
      %v1836 = vpack.c.b16 %v1708, %v1708
      %v1837 = vpack.c.b16 %v1709, %v1709
      %v1838 = vpack.c.b16 %v1710, %v1710
      %v1839 = vpack.c.b16 %v1711, %v1711
      %v1840 = vpack.c.b16 %v1712, %v1712
      %v1841 = vpack.c.b16 %v1713, %v1713
      %v1842 = vpack.c.b16 %v1714, %v1714
      %v1843 = vpack.c.b16 %v1715, %v1715
      %v1844 = vpack.c.b16 %v1716, %v1716
      %v1845 = vpack.c.b16 %v1717, %v1717
      %v1846 = vpack.c.b16 %v1718, %v1718
      %v1847 = vpack.c.b16 %v1719, %v1719
      %v1848 = vpack.c.b16 %v1720, %v1720
      %v1849 = vpack.c.b16 %v1721, %v1721
      %v1850 = vpack.c.b16 %v1722, %v1722
      %v1851 = vpack.c.b16 %v1723, %v1723
      %v1852 = vpack.c.b16 %v1724, %v1724
      %v1853 = vpack.c.b16 %v1725, %v1725
      %v1854 = vpack.c.b16 %v1726, %v1726
      %v1855 = vpack.c.b16 %v1727, %v1727
      %v1856 = vpack.c.b16 %v1728, %v1728
      %v1857 = vpack.c.b16 %v1729, %v1729
      %v1858 = vpack.c.b16 %v1730, %v1730
      %v1859 = vpack.c.b16 %v1731, %v1731
      %v1860 = vpack.c.b16 %v1732, %v1732
      %v1861 = vpack.c.b16 %v1733, %v1733
      %v1862 = vpack.c.b16 %v1734, %v1734
      %v1863 = vpack.c.b16 %v1735, %v1735
      %v1864 = vpack.c.b16 %v1736, %v1736
      %v1865 = vpack.c.b16 %v1737, %v1737
      %v1866 = vpack.c.b16 %v1738, %v1738
      %v1867 = vpack.c.b16 %v1739, %v1739
      %v1868 = vpack.c.b16 %v1740, %v1740
      %v1869 = vpack.c.b16 %v1741, %v1741
      %v1870 = vpack.c.b16 %v1742, %v1742
      %v1871 = vpack.c.b16 %v1743, %v1743
      %v1872 = vpack.c.b16 %v1744, %v1744
      %v1873 = vpack.c.b16 %v1745, %v1745
      %v1874 = vpack.c.b16 %v1746, %v1746
      %v1875 = vpack.c.b16 %v1747, %v1747
      %v1876 = vpack.c.b16 %v1748, %v1748
      %v1877 = vpack.c.b16 %v1749, %v1749
      %v1878 = vpack.c.b16 %v1750, %v1750
      %v1879 = vpack.c.b16 %v1751, %v1751
      %v1880 = vpack.c.b16 %v1752, %v1752
      %v1881 = vpack.c.b16 %v1753, %v1753
      %v1882 = vpack.c.b16 %v1754, %v1754
      %v1883 = vpack.c.b16 %v1755, %v1755
      %v1884 = vpack.c.b16 %v1756, %v1756
      %v1885 = vpack.c.b16 %v1757, %v1757
      %2014 = vst [vmem:[%s145] sm:$0xf] %v1758
      %2015 = vst [vmem:[%s145 + $0x4] sm:$0xf] %v1759
      %2016 = vst [vmem:[%s145 + $0x8] sm:$0xf] %v1760
      %2017 = vst [vmem:[%s145 + $0xc] sm:$0xf] %v1761
      %2018 = vst [vmem:[%s145 + $0x10] sm:$0xf] %v1762
      %2019 = vst [vmem:[%s145 + $0x14] sm:$0xf] %v1763
      %2020 = vst [vmem:[%s145 + $0x18] sm:$0xf] %v1764
      %2021 = vst [vmem:[%s145 + $0x1c] sm:$0xf] %v1765
      %2022 = vst [vmem:[%s145 + $0x20] sm:$0xf] %v1766
      %2023 = vst [vmem:[%s145 + $0x24] sm:$0xf] %v1767
      %2024 = vst [vmem:[%s145 + $0x28] sm:$0xf] %v1768
      %2025 = vst [vmem:[%s145 + $0x2c] sm:$0xf] %v1769
      %2026 = vst [vmem:[%s145 + $0x30] sm:$0xf] %v1770
      %2027 = vst [vmem:[%s145 + $0x34] sm:$0xf] %v1771
      %2028 = vst [vmem:[%s145 + $0x38] sm:$0xf] %v1772
      %2029 = vst [vmem:[%s145 + $0x3c] sm:$0xf] %v1773
      %2030 = vst [vmem:[%s145 + $0x40] sm:$0xf] %v1774
      %2031 = vst [vmem:[%s145 + $0x44] sm:$0xf] %v1775
      %2032 = vst [vmem:[%s145 + $0x48] sm:$0xf] %v1776
      %2033 = vst [vmem:[%s145 + $0x4c] sm:$0xf] %v1777
      %2034 = vst [vmem:[%s145 + $0x50] sm:$0xf] %v1778
      %2035 = vst [vmem:[%s145 + $0x54] sm:$0xf] %v1779
      %2036 = vst [vmem:[%s145 + $0x58] sm:$0xf] %v1780
      %2037 = vst [vmem:[%s145 + $0x5c] sm:$0xf] %v1781
      %2038 = vst [vmem:[%s145 + $0x60] sm:$0xf] %v1782
      %2039 = vst [vmem:[%s145 + $0x64] sm:$0xf] %v1783
      %2040 = vst [vmem:[%s145 + $0x68] sm:$0xf] %v1784
      %2041 = vst [vmem:[%s145 + $0x6c] sm:$0xf] %v1785
      %2042 = vst [vmem:[%s145 + $0x70] sm:$0xf] %v1786
      %2043 = vst [vmem:[%s145 + $0x74] sm:$0xf] %v1787
      %2044 = vst [vmem:[%s145 + $0x78] sm:$0xf] %v1788
      %2045 = vst [vmem:[%s145 + $0x7c] sm:$0xf] %v1789
      %2046 = vst [vmem:[%s145 + $0x80] sm:$0xf] %v1790
      %2047 = vst [vmem:[%s145 + $0x84] sm:$0xf] %v1791
      %2048 = vst [vmem:[%s145 + $0x88] sm:$0xf] %v1792
      %2049 = vst [vmem:[%s145 + $0x8c] sm:$0xf] %v1793
      %2050 = vst [vmem:[%s145 + $0x90] sm:$0xf] %v1794
      %2051 = vst [vmem:[%s145 + $0x94] sm:$0xf] %v1795
      %2052 = vst [vmem:[%s145 + $0x98] sm:$0xf] %v1796
      %2053 = vst [vmem:[%s145 + $0x9c] sm:$0xf] %v1797
      %2054 = vst [vmem:[%s145 + $0xa0] sm:$0xf] %v1798
      %2055 = vst [vmem:[%s145 + $0xa4] sm:$0xf] %v1799
      %2056 = vst [vmem:[%s145 + $0xa8] sm:$0xf] %v1800
      %2057 = vst [vmem:[%s145 + $0xac] sm:$0xf] %v1801
      %2058 = vst [vmem:[%s145 + $0xb0] sm:$0xf] %v1802
      %2059 = vst [vmem:[%s145 + $0xb4] sm:$0xf] %v1803
      %2060 = vst [vmem:[%s145 + $0xb8] sm:$0xf] %v1804
      %2061 = vst [vmem:[%s145 + $0xbc] sm:$0xf] %v1805
      %2062 = vst [vmem:[%s145 + $0xc0] sm:$0xf] %v1806
      %2063 = vst [vmem:[%s145 + $0xc4] sm:$0xf] %v1807
      %2064 = vst [vmem:[%s145 + $0xc8] sm:$0xf] %v1808
      %2065 = vst [vmem:[%s145 + $0xcc] sm:$0xf] %v1809
      %2066 = vst [vmem:[%s145 + $0xd0] sm:$0xf] %v1810
      %2067 = vst [vmem:[%s145 + $0xd4] sm:$0xf] %v1811
      %2068 = vst [vmem:[%s145 + $0xd8] sm:$0xf] %v1812
      %2069 = vst [vmem:[%s145 + $0xdc] sm:$0xf] %v1813
      %2070 = vst [vmem:[%s145 + $0xe0] sm:$0xf] %v1814
      %2071 = vst [vmem:[%s145 + $0xe4] sm:$0xf] %v1815
      %2072 = vst [vmem:[%s145 + $0xe8] sm:$0xf] %v1816
      %2073 = vst [vmem:[%s145 + $0xec] sm:$0xf] %v1817
      %2074 = vst [vmem:[%s145 + $0xf0] sm:$0xf] %v1818
      %2075 = vst [vmem:[%s145 + $0xf4] sm:$0xf] %v1819
      %2076 = vst [vmem:[%s145 + $0xf8] sm:$0xf] %v1820
      %2077 = vst [vmem:[%s145 + $0xfc] sm:$0xf] %v1821
      %2078 = vst [vmem:[%s145 + $0x100] sm:$0xf] %v1822
      %2079 = vst [vmem:[%s145 + $0x104] sm:$0xf] %v1823
      %2080 = vst [vmem:[%s145 + $0x108] sm:$0xf] %v1824
      %2081 = vst [vmem:[%s145 + $0x10c] sm:$0xf] %v1825
      %2082 = vst [vmem:[%s145 + $0x110] sm:$0xf] %v1826
      %2083 = vst [vmem:[%s145 + $0x114] sm:$0xf] %v1827
      %2084 = vst [vmem:[%s145 + $0x118] sm:$0xf] %v1828
      %2085 = vst [vmem:[%s145 + $0x11c] sm:$0xf] %v1829
      %2086 = vst [vmem:[%s145 + $0x120] sm:$0xf] %v1830
      %2087 = vst [vmem:[%s145 + $0x124] sm:$0xf] %v1831
      %2088 = vst [vmem:[%s145 + $0x128] sm:$0xf] %v1832
      %2089 = vst [vmem:[%s145 + $0x12c] sm:$0xf] %v1833
      %2090 = vst [vmem:[%s145 + $0x130] sm:$0xf] %v1834
      %2091 = vst [vmem:[%s145 + $0x134] sm:$0xf] %v1835
      %2092 = vst [vmem:[%s145 + $0x138] sm:$0xf] %v1836
      %2093 = vst [vmem:[%s145 + $0x13c] sm:$0xf] %v1837
      %2094 = vst [vmem:[%s145 + $0x140] sm:$0xf] %v1838
      %2095 = vst [vmem:[%s145 + $0x144] sm:$0xf] %v1839
      %2096 = vst [vmem:[%s145 + $0x148] sm:$0xf] %v1840
      %2097 = vst [vmem:[%s145 + $0x14c] sm:$0xf] %v1841
      %2098 = vst [vmem:[%s145 + $0x150] sm:$0xf] %v1842
      %2099 = vst [vmem:[%s145 + $0x154] sm:$0xf] %v1843
      %2100 = vst [vmem:[%s145 + $0x158] sm:$0xf] %v1844
      %2101 = vst [vmem:[%s145 + $0x15c] sm:$0xf] %v1845
      %2102 = vst [vmem:[%s145 + $0x160] sm:$0xf] %v1846
      %2103 = vst [vmem:[%s145 + $0x164] sm:$0xf] %v1847
      %2104 = vst [vmem:[%s145 + $0x168] sm:$0xf] %v1848
      %2105 = vst [vmem:[%s145 + $0x16c] sm:$0xf] %v1849
      %2106 = vst [vmem:[%s145 + $0x170] sm:$0xf] %v1850
      %2107 = vst [vmem:[%s145 + $0x174] sm:$0xf] %v1851
      %2108 = vst [vmem:[%s145 + $0x178] sm:$0xf] %v1852
      %2109 = vst [vmem:[%s145 + $0x17c] sm:$0xf] %v1853
      %2110 = vst [vmem:[%s145 + $0x180] sm:$0xf] %v1854
      %2111 = vst [vmem:[%s145 + $0x184] sm:$0xf] %v1855
      %2112 = vst [vmem:[%s145 + $0x188] sm:$0xf] %v1856
      %2113 = vst [vmem:[%s145 + $0x18c] sm:$0xf] %v1857
      %2114 = vst [vmem:[%s145 + $0x190] sm:$0xf] %v1858
      %2115 = vst [vmem:[%s145 + $0x194] sm:$0xf] %v1859
      %2116 = vst [vmem:[%s145 + $0x198] sm:$0xf] %v1860
      %2117 = vst [vmem:[%s145 + $0x19c] sm:$0xf] %v1861
      %2118 = vst [vmem:[%s145 + $0x1a0] sm:$0xf] %v1862
      %2119 = vst [vmem:[%s145 + $0x1a4] sm:$0xf] %v1863
      %2120 = vst [vmem:[%s145 + $0x1a8] sm:$0xf] %v1864
      %2121 = vst [vmem:[%s145 + $0x1ac] sm:$0xf] %v1865
      %2122 = vst [vmem:[%s145 + $0x1b0] sm:$0xf] %v1866
      %2123 = vst [vmem:[%s145 + $0x1b4] sm:$0xf] %v1867
      %2124 = vst [vmem:[%s145 + $0x1b8] sm:$0xf] %v1868
      %2125 = vst [vmem:[%s145 + $0x1bc] sm:$0xf] %v1869
      %2126 = vst [vmem:[%s145 + $0x1c0] sm:$0xf] %v1870
      %2127 = vst [vmem:[%s145 + $0x1c4] sm:$0xf] %v1871
      %2128 = vst [vmem:[%s145 + $0x1c8] sm:$0xf] %v1872
      %2129 = vst [vmem:[%s145 + $0x1cc] sm:$0xf] %v1873
      %2130 = vst [vmem:[%s145 + $0x1d0] sm:$0xf] %v1874
      %2131 = vst [vmem:[%s145 + $0x1d4] sm:$0xf] %v1875
      %2132 = vst [vmem:[%s145 + $0x1d8] sm:$0xf] %v1876
      %2133 = vst [vmem:[%s145 + $0x1dc] sm:$0xf] %v1877
      %2134 = vst [vmem:[%s145 + $0x1e0] sm:$0xf] %v1878
      %2135 = vst [vmem:[%s145 + $0x1e4] sm:$0xf] %v1879
      %2136 = vst [vmem:[%s145 + $0x1e8] sm:$0xf] %v1880
      %2137 = vst [vmem:[%s145 + $0x1ec] sm:$0xf] %v1881
      %2138 = vst [vmem:[%s145 + $0x1f0] sm:$0xf] %v1882
      %2139 = vst [vmem:[%s145 + $0x1f4] sm:$0xf] %v1883
      %2140 = vst [vmem:[%s145 + $0x1f8] sm:$0xf] %v1884
      %2141 = vst [vmem:[%s145 + $0x1fc] sm:$0xf] %v1885
      %s2142 = smul.u32 128, %s13
      %p2143 = scmp.lt.s32.totalorder %s2142, 255
      %s2144 = scalar_select %p2143, %s2142, 255
      %s2145 = smul.addr %s2144, 4
      %s2146 = scalar_lea.vmem %s2, %s2145
      // Predicated region
      $region29: #{forward.17} parent=27 // pred_check
        %p2147 = pneg %p78
      $region30: #{forward.17} parent=27 // pred_check_branch
        %2149 = sbr.rel (%p2147) target = $region32
      $region31: #{forward.17} parent=27 // pred_region
        %s2150 = smul.u32 128, %s13
      $region32: #{forward.17} parent=27 // pred_fallthru
        _
    $region28: #{forward.17} parent=5 // pred_fallthru
      _
    %p2151 = scmp.le.s32.totalorder 2, %s8
    // Predicated region
    $region33: #{forward.17} parent=5 // pred_check
      %p2152 = pneg %p2151
    $region34: #{forward.17} parent=5 // pred_check_branch
      %2154 = sbr.rel (%p2152) target = $region36
    $region35: #{forward.17} parent=5 // pred_region
      %s2155 = ssub.s32 %s8, 2
      // Predicated region
      $region37: #{forward.17} parent=35 // pred_check
        %p2156 = pneg %p84
      $region38: #{forward.17} parent=35 // pred_check_branch
        %2158 = sbr.rel (%p2156) target = $region40
      $region39: #{forward.17} parent=35 // pred_region
        %s2159 = smul.u32 128, %s14
        %p2160 = scmp.lt.s32.totalorder %s2159, 255
        %s2161 = scalar_select %p2160, %s2159, 255
        %s2162 = smul.addr %s2161, 4
        %s2163 = scalar_lea.vmem %s2, %s2162
      $region40: #{forward.17} parent=35 // pred_fallthru
        _
    $region36: #{forward.17} parent=5 // pred_fallthru
      _
  $region6: #{forward.17} parent=0 // loop_footer
    %s12 = sadd.s32 1, %s8
  $region7: #{forward.17} parent=0 // loop_footer_branch
    %7 = sbr.rel target = $region3
  $region8: #{forward.17} parent=0 // loop_exit
    _

</llo_original>
